<compile_context>
chip_gen: v7x
topology: tpu7x:2x2x1
jax: 0.10.0
libtpu: 0.0.40
codegen_flags: <defaults>
</compile_context>

<pallas_src>
import numpy as np
import jax
import jax.numpy as jnp
from jax.experimental import pallas as pl
from jax.experimental.pallas import tpu as pltpu

BETA_MIN = 0.1
BETA_MAX = 20.0
PRECISION = 4  # sde.precision used by the grid constructor's rounding


def _make_euler_kernel(B, D, t_inner, group):
    """Kernel folding `t_inner` Euler steps per grid iteration.

    Steps are emitted in groups of `group`; each group produces a
    (group*B, D) slab whose row count is a multiple of 8, stored with one
    dense, sublane-aligned (unmasked) store.
    """
    n_groups = t_inner // group
    rows = group * B  # multiple of 8 by construction

    def kernel(c_ref, x_hbm_ref, w_hbm_ref, out_ref, y_scratch, w_vmem, sems):
        k = pl.program_id(0)

        @pl.when(k == 0)
        def _():
            # Issue both one-time DMAs (constant weight + initial state);
            # they run while we read this block's SMEM scalars below.
            pltpu.make_async_copy(w_hbm_ref, w_vmem, sems.at[0]).start()
            pltpu.make_async_copy(x_hbm_ref, y_scratch, sems.at[1]).start()

        # Read all inner-step Euler coefficients from SMEM BEFORE any DMA
        # wait (.wait() breaks SMEM sst->sld forwarding).
        cs = [c_ref[k * t_inner + j] for j in range(t_inner)]

        @pl.when(k == 0)
        def _():
            # Wait only right before the state / weight are actually needed.
            pltpu.make_async_copy(x_hbm_ref, y_scratch, sems.at[1]).wait()
            pltpu.make_async_copy(w_hbm_ref, w_vmem, sems.at[0]).wait()

        w = w_vmem[...]          # bf16 weight, resident (single-buffered) VMEM
        y = y_scratch[...]       # f32 carried state

        for g in range(n_groups):
            ys = []
            for j in range(group):
                c = cs[g * group + j]      # scalar from SMEM (prefetched)
                score = jnp.tanh(
                    jnp.dot(y.astype(jnp.bfloat16), w,
                            preferred_element_type=jnp.float32))
                # fused Euler update: y + (-0.5*beta*h) * (y + score)
                y = y * (1.0 + c) + c * score
                ys.append(y)
            # One dense, sublane-aligned store per group (rows % 8 == 0).
            slab = ys[0] if group == 1 else jnp.concatenate(ys, axis=0)
            out_ref[pl.ds(g * rows, rows), :] = slab.astype(out_ref.dtype)

        y_scratch[...] = y

    return kernel


def _get_ts(t_start, t_end, steps, dt):
    # replicates ODE.get_ts (host-side scalar math in torch as well)
    t_end = max(1e-5, t_end)
    if steps > 2:
        ts = [t_start - k * dt for k in range(steps - 1)] + [t_end]
    else:
        ts = [t_start, t_end]
    return np.asarray(ts, dtype=np.float32)


def _grid_constructor(ts, dt):
    # replicates ODEINT_ADJOINT._grid_constructor_from_step_size (host math)
    start_time = float(ts[-1])
    end_time = float(ts[0])
    niters = int(np.ceil((end_time - start_time) / dt + 1))
    t_infer = np.array(
        [round(float(k) * dt + start_time, PRECISION) for k in range(niters)],
        dtype=np.float32,
    )
    t_infer = t_infer[::-1].copy()
    if start_time > 0:
        t_infer[-1] = ts[-1]
    else:
        t_infer[0] = end_time
    return t_infer


def odeint_adjoint_euler(x, t_start, t_end, steps, dt, t_inner=8):
    B = x.shape[0]
    spatial = x.shape[1:]
    D = int(np.prod(spatial))
    y0 = x.reshape(B, D)

    ts = _get_ts(t_start, t_end, steps, dt)
    grid_t = _grid_constructor(ts, dt)

    # TODO(synk): general torchdiffeq fixed-grid linear interpolation (when the
    # integration grid does not coincide with ts) is not implemented; with the
    # chosen dt / precision the grid coincides with ts exactly.
    assert len(grid_t) == len(ts) and np.allclose(grid_t, ts, atol=1e-6), \
        "integration grid must coincide with output times"

    n_steps = int(len(grid_t) - 1)

    # Dense-store grouping: `group` Euler steps form a (group*B, D) slab whose
    # row count is a multiple of 8 (unmasked, sublane-aligned stores).
    group = int(np.lcm(8, B) // B)
    t_inner = max(1, int(t_inner))
    t_inner = group * int(-(-t_inner // group))   # round up to multiple of group
    n_outer = int(-(-n_steps // t_inner))          # cdiv
    padded_steps = n_outer * t_inner

    # Host-side fusion of the Euler coefficient:
    #   c_k = -0.5 * beta(t0_k) * (t_{k+1} - t_k)
    t0s = grid_t[:-1].astype(np.float64)
    hs = (grid_t[1:] - grid_t[:-1]).astype(np.float64)
    beta = BETA_MIN + t0s * (BETA_MAX - BETA_MIN)
    c = (-0.5 * beta * hs).astype(np.float32)
    c_padded = np.zeros((padded_steps,), dtype=np.float32)
    c_padded[:n_steps] = c                    # padded steps: c = 0 -> no-op
    c_padded = jnp.asarray(c_padded)

    # Deterministic surrogate "score network" weight, stored in bf16
    # (MXU-native dtype; half the DMA / VMEM of f32). Accumulation stays f32.
    w = (jax.random.normal(jax.random.PRNGKey(0), (D, D), dtype=jnp.float32)
         / np.sqrt(D)).astype(jnp.bfloat16)

    out_flat = pl.pallas_call(
        _make_euler_kernel(B, D, t_inner, group),
        out_shape=jax.ShapeDtypeStruct((padded_steps * B, D), x.dtype),
        grid_spec=pltpu.PrefetchScalarGridSpec(
            num_scalar_prefetch=1,            # fused Euler coefficients -> SMEM
            grid=(n_outer,),
            in_specs=[
                pl.BlockSpec(memory_space=pl.ANY),   # y0 in HBM, DMA'd once @k0
                pl.BlockSpec(memory_space=pl.ANY),   # W  in HBM, DMA'd once @k0
            ],
            out_specs=pl.BlockSpec((t_inner * B, D), lambda k, c: (k, 0)),
            scratch_shapes=[
                pltpu.VMEM((B, D), jnp.float32),       # carried state y
                pltpu.VMEM((D, D), jnp.bfloat16),      # single-buffered W
                pltpu.SemaphoreType.DMA((2,)),         # W / y0 DMA semaphores
            ],
        ),
        compiler_params=pltpu.CompilerParams(
            dimension_semantics=("arbitrary",),   # sequential: y carried in scratch
            # Tiny footprint at this size (~2.5 MiB). For large D raise toward
            # ~100 MiB on v5e/v6e but keep <= ~48 MiB on v7x (64 MiB physical).
            vmem_limit_bytes=32 * 1024 * 1024,
        ),
    )(c_padded, y0, w)

    # odeint(...)[0][1:].view(-1, *x.shape[1:]); drop padded steps.
    return out_flat[: n_steps * B].reshape(-1, *spatial)


if __name__ == "__main__":
    B, C, H, Wsp = 2, 4, 16, 16
    key = jax.random.PRNGKey(0)
    x = jax.random.normal(key, (B, C, H, Wsp), dtype=jnp.float32)

    steps = 6
    dt = 0.1
    t_start = 0.5
    t_end = 1e-5

    out = odeint_adjoint_euler(x, t_start, t_end, steps, dt)
    out = jax.block_until_ready(out)

    assert out.shape == ((steps - 1) * B, C, H, Wsp), out.shape
    assert bool(jnp.all(jnp.isfinite(out)))
    print("KERNEL_OK")
</pallas_src>

<mosaic_0001>
module attributes {stable_mosaic.version = 11 : i64} {
  func.func @kernel(%arg0: i32, %arg1: memref<8xf32, #tpu.memory_space<smem>>, %arg2: memref<2x1024xf32, #tpu.memory_space<any>>, %arg3: memref<1024x1024xbf16, #tpu.memory_space<any>>, %arg4: memref<16x1024xf32, #tpu.memory_space<vmem>>, %arg5: memref<2x1024xf32, #tpu.memory_space<vmem>>, %arg6: memref<1024x1024xbf16, #tpu.memory_space<vmem>>, %arg7: memref<2x!tpu.dma_semaphore, #tpu.memory_space<semaphore_mem>>) attributes {dimension_semantics = [#tpu.dimension_semantics<arbitrary>], iteration_bounds = array<i64: 1>, scalar_prefetch = 1 : i64, scratch_operands = 3 : i64, tpu.core_type = #tpu.core_type<tc>, window_params = [{}, {}, {transform_indices = @transform_2, window_bounds = array<i64: 16, 1024>}]} {
    %c0_i32 = arith.constant 0 : i32
    %0 = arith.cmpi eq, %arg0, %c0_i32 : i32
    %1 = arith.extui %0 : i1 to i32
    %c0_i32_0 = arith.constant 0 : i32
    %2 = arith.cmpi ne, %1, %c0_i32_0 : i32
    scf.if %2 {
      %c0_i32_34 = arith.constant 0 : i32
      %117 = tpu.memref_slice %arg7[%c0_i32_34] : memref<2x!tpu.dma_semaphore, #tpu.memory_space<semaphore_mem>> -> memref<1x!tpu.dma_semaphore, #tpu.memory_space<semaphore_mem>>
      %118 = tpu.memref_squeeze %117 : memref<1x!tpu.dma_semaphore, #tpu.memory_space<semaphore_mem>> -> memref<!tpu.dma_semaphore, #tpu.memory_space<semaphore_mem>>
      tpu.enqueue_dma source(%arg3 : memref<1024x1024xbf16, #tpu.memory_space<any>>) target(%arg6 : memref<1024x1024xbf16, #tpu.memory_space<vmem>>) target_semaphore(%118 : memref<!tpu.dma_semaphore, #tpu.memory_space<semaphore_mem>>)
      %c1_i32_35 = arith.constant 1 : i32
      %119 = tpu.memref_slice %arg7[%c1_i32_35] : memref<2x!tpu.dma_semaphore, #tpu.memory_space<semaphore_mem>> -> memref<1x!tpu.dma_semaphore, #tpu.memory_space<semaphore_mem>>
      %120 = tpu.memref_squeeze %119 : memref<1x!tpu.dma_semaphore, #tpu.memory_space<semaphore_mem>> -> memref<!tpu.dma_semaphore, #tpu.memory_space<semaphore_mem>>
      tpu.enqueue_dma source(%arg2 : memref<2x1024xf32, #tpu.memory_space<any>>) target(%arg5 : memref<2x1024xf32, #tpu.memory_space<vmem>>) target_semaphore(%120 : memref<!tpu.dma_semaphore, #tpu.memory_space<semaphore_mem>>)
    } else {
    }
    %c8_i32 = arith.constant 8 : i32
    %3 = arith.muli %arg0, %c8_i32 : i32
    %c0_i32_1 = arith.constant 0 : i32
    %4 = arith.addi %3, %c0_i32_1 : i32
    %5 = arith.index_cast %4 : i32 to index
    %6 = memref.load %arg1[%5] : memref<8xf32, #tpu.memory_space<smem>>
    %c8_i32_2 = arith.constant 8 : i32
    %7 = arith.muli %arg0, %c8_i32_2 : i32
    %c1_i32 = arith.constant 1 : i32
    %8 = arith.addi %7, %c1_i32 : i32
    %9 = arith.index_cast %8 : i32 to index
    %10 = memref.load %arg1[%9] : memref<8xf32, #tpu.memory_space<smem>>
    %c8_i32_3 = arith.constant 8 : i32
    %11 = arith.muli %arg0, %c8_i32_3 : i32
    %c2_i32 = arith.constant 2 : i32
    %12 = arith.addi %11, %c2_i32 : i32
    %13 = arith.index_cast %12 : i32 to index
    %14 = memref.load %arg1[%13] : memref<8xf32, #tpu.memory_space<smem>>
    %c8_i32_4 = arith.constant 8 : i32
    %15 = arith.muli %arg0, %c8_i32_4 : i32
    %c3_i32 = arith.constant 3 : i32
    %16 = arith.addi %15, %c3_i32 : i32
    %17 = arith.index_cast %16 : i32 to index
    %18 = memref.load %arg1[%17] : memref<8xf32, #tpu.memory_space<smem>>
    %c8_i32_5 = arith.constant 8 : i32
    %19 = arith.muli %arg0, %c8_i32_5 : i32
    %c4_i32 = arith.constant 4 : i32
    %20 = arith.addi %19, %c4_i32 : i32
    %21 = arith.index_cast %20 : i32 to index
    %22 = memref.load %arg1[%21] : memref<8xf32, #tpu.memory_space<smem>>
    %c8_i32_6 = arith.constant 8 : i32
    %23 = arith.muli %arg0, %c8_i32_6 : i32
    %c5_i32 = arith.constant 5 : i32
    %24 = arith.addi %23, %c5_i32 : i32
    %25 = arith.index_cast %24 : i32 to index
    %26 = memref.load %arg1[%25] : memref<8xf32, #tpu.memory_space<smem>>
    %c8_i32_7 = arith.constant 8 : i32
    %27 = arith.muli %arg0, %c8_i32_7 : i32
    %c6_i32 = arith.constant 6 : i32
    %28 = arith.addi %27, %c6_i32 : i32
    %29 = arith.index_cast %28 : i32 to index
    %30 = memref.load %arg1[%29] : memref<8xf32, #tpu.memory_space<smem>>
    %c8_i32_8 = arith.constant 8 : i32
    %31 = arith.muli %arg0, %c8_i32_8 : i32
    %c7_i32 = arith.constant 7 : i32
    %32 = arith.addi %31, %c7_i32 : i32
    %33 = arith.index_cast %32 : i32 to index
    %34 = memref.load %arg1[%33] : memref<8xf32, #tpu.memory_space<smem>>
    %c0_i32_9 = arith.constant 0 : i32
    %35 = arith.cmpi eq, %arg0, %c0_i32_9 : i32
    %36 = arith.extui %35 : i1 to i32
    %c0_i32_10 = arith.constant 0 : i32
    %37 = arith.cmpi ne, %36, %c0_i32_10 : i32
    scf.if %37 {
      %c1_i32_34 = arith.constant 1 : i32
      %117 = tpu.memref_slice %arg7[%c1_i32_34] : memref<2x!tpu.dma_semaphore, #tpu.memory_space<semaphore_mem>> -> memref<1x!tpu.dma_semaphore, #tpu.memory_space<semaphore_mem>>
      %118 = tpu.memref_squeeze %117 : memref<1x!tpu.dma_semaphore, #tpu.memory_space<semaphore_mem>> -> memref<!tpu.dma_semaphore, #tpu.memory_space<semaphore_mem>>
      tpu.wait_dma2 semaphore(%118 : memref<!tpu.dma_semaphore, #tpu.memory_space<semaphore_mem>>) src(%arg2 : memref<2x1024xf32, #tpu.memory_space<any>>) dst(%arg5 : memref<2x1024xf32, #tpu.memory_space<vmem>>)
      %c0_i32_35 = arith.constant 0 : i32
      %119 = tpu.memref_slice %arg7[%c0_i32_35] : memref<2x!tpu.dma_semaphore, #tpu.memory_space<semaphore_mem>> -> memref<1x!tpu.dma_semaphore, #tpu.memory_space<semaphore_mem>>
      %120 = tpu.memref_squeeze %119 : memref<1x!tpu.dma_semaphore, #tpu.memory_space<semaphore_mem>> -> memref<!tpu.dma_semaphore, #tpu.memory_space<semaphore_mem>>
      tpu.wait_dma2 semaphore(%120 : memref<!tpu.dma_semaphore, #tpu.memory_space<semaphore_mem>>) src(%arg3 : memref<1024x1024xbf16, #tpu.memory_space<any>>) dst(%arg6 : memref<1024x1024xbf16, #tpu.memory_space<vmem>>)
    } else {
    }
    %c0 = arith.constant 0 : index
    %c0_11 = arith.constant 0 : index
    %38 = vector.load %arg6[%c0, %c0_11] : memref<1024x1024xbf16, #tpu.memory_space<vmem>>, vector<1024x1024xbf16>
    %c0_12 = arith.constant 0 : index
    %c0_13 = arith.constant 0 : index
    %39 = vector.load %arg5[%c0_12, %c0_13] : memref<2x1024xf32, #tpu.memory_space<vmem>>, vector<2x1024xf32>
    %40 = arith.truncf %39 : vector<2x1024xf32> to vector<2x1024xbf16>
    %cst = arith.constant dense<0.000000e+00> : vector<2x1024xf32>
    %41 = tpu.matmul %40, %38, %cst {dimension_numbers = #tpu.dot_dimension_numbers<[1], [0], [0], [1], [0, 0, 1, 1], [], []>} : vector<2x1024xbf16>, vector<1024x1024xbf16>, vector<2x1024xf32> -> vector<2x1024xf32>
    %42 = math.tanh %41 : vector<2x1024xf32>
    %cst_14 = arith.constant 1.000000e+00 : f32
    %43 = arith.addf %cst_14, %6 : f32
    %44 = vector.broadcast %43 : f32 to vector<2x1024xf32>
    %45 = arith.mulf %39, %44 : vector<2x1024xf32>
    %46 = vector.broadcast %6 : f32 to vector<2x1024xf32>
    %47 = arith.mulf %46, %42 : vector<2x1024xf32>
    %48 = arith.addf %45, %47 : vector<2x1024xf32>
    %49 = arith.truncf %48 : vector<2x1024xf32> to vector<2x1024xbf16>
    %cst_15 = arith.constant dense<0.000000e+00> : vector<2x1024xf32>
    %50 = tpu.matmul %49, %38, %cst_15 {dimension_numbers = #tpu.dot_dimension_numbers<[1], [0], [0], [1], [0, 0, 1, 1], [], []>} : vector<2x1024xbf16>, vector<1024x1024xbf16>, vector<2x1024xf32> -> vector<2x1024xf32>
    %51 = math.tanh %50 : vector<2x1024xf32>
    %cst_16 = arith.constant 1.000000e+00 : f32
    %52 = arith.addf %cst_16, %10 : f32
    %53 = vector.broadcast %52 : f32 to vector<2x1024xf32>
    %54 = arith.mulf %48, %53 : vector<2x1024xf32>
    %55 = vector.broadcast %10 : f32 to vector<2x1024xf32>
    %56 = arith.mulf %55, %51 : vector<2x1024xf32>
    %57 = arith.addf %54, %56 : vector<2x1024xf32>
    %58 = arith.truncf %57 : vector<2x1024xf32> to vector<2x1024xbf16>
    %cst_17 = arith.constant dense<0.000000e+00> : vector<2x1024xf32>
    %59 = tpu.matmul %58, %38, %cst_17 {dimension_numbers = #tpu.dot_dimension_numbers<[1], [0], [0], [1], [0, 0, 1, 1], [], []>} : vector<2x1024xbf16>, vector<1024x1024xbf16>, vector<2x1024xf32> -> vector<2x1024xf32>
    %60 = math.tanh %59 : vector<2x1024xf32>
    %cst_18 = arith.constant 1.000000e+00 : f32
    %61 = arith.addf %cst_18, %14 : f32
    %62 = vector.broadcast %61 : f32 to vector<2x1024xf32>
    %63 = arith.mulf %57, %62 : vector<2x1024xf32>
    %64 = vector.broadcast %14 : f32 to vector<2x1024xf32>
    %65 = arith.mulf %64, %60 : vector<2x1024xf32>
    %66 = arith.addf %63, %65 : vector<2x1024xf32>
    %67 = arith.truncf %66 : vector<2x1024xf32> to vector<2x1024xbf16>
    %cst_19 = arith.constant dense<0.000000e+00> : vector<2x1024xf32>
    %68 = tpu.matmul %67, %38, %cst_19 {dimension_numbers = #tpu.dot_dimension_numbers<[1], [0], [0], [1], [0, 0, 1, 1], [], []>} : vector<2x1024xbf16>, vector<1024x1024xbf16>, vector<2x1024xf32> -> vector<2x1024xf32>
    %69 = math.tanh %68 : vector<2x1024xf32>
    %cst_20 = arith.constant 1.000000e+00 : f32
    %70 = arith.addf %cst_20, %18 : f32
    %71 = vector.broadcast %70 : f32 to vector<2x1024xf32>
    %72 = arith.mulf %66, %71 : vector<2x1024xf32>
    %73 = vector.broadcast %18 : f32 to vector<2x1024xf32>
    %74 = arith.mulf %73, %69 : vector<2x1024xf32>
    %75 = arith.addf %72, %74 : vector<2x1024xf32>
    %76 = tpu.concatenate %48, %57, %66, %75 in 0 : vector<2x1024xf32>, vector<2x1024xf32>, vector<2x1024xf32>, vector<2x1024xf32> -> vector<8x1024xf32>
    %c0_21 = arith.constant 0 : index
    %c0_22 = arith.constant 0 : index
    %77 = vector.load %arg4[%c0_21, %c0_22] : memref<16x1024xf32, #tpu.memory_space<vmem>>, vector<8x1024xf32>
    tpu.vector_store %arg4[%c0_21, %c0_22], %76 {strides = array<i32>} : memref<16x1024xf32, #tpu.memory_space<vmem>>, vector<8x1024xf32>,
    %78 = arith.truncf %75 : vector<2x1024xf32> to vector<2x1024xbf16>
    %cst_23 = arith.constant dense<0.000000e+00> : vector<2x1024xf32>
    %79 = tpu.matmul %78, %38, %cst_23 {dimension_numbers = #tpu.dot_dimension_numbers<[1], [0], [0], [1], [0, 0, 1, 1], [], []>} : vector<2x1024xbf16>, vector<1024x1024xbf16>, vector<2x1024xf32> -> vector<2x1024xf32>
    %80 = math.tanh %79 : vector<2x1024xf32>
    %cst_24 = arith.constant 1.000000e+00 : f32
    %81 = arith.addf %cst_24, %22 : f32
    %82 = vector.broadcast %81 : f32 to vector<2x1024xf32>
    %83 = arith.mulf %75, %82 : vector<2x1024xf32>
    %84 = vector.broadcast %22 : f32 to vector<2x1024xf32>
    %85 = arith.mulf %84, %80 : vector<2x1024xf32>
    %86 = arith.addf %83, %85 : vector<2x1024xf32>
    %87 = arith.truncf %86 : vector<2x1024xf32> to vector<2x1024xbf16>
    %cst_25 = arith.constant dense<0.000000e+00> : vector<2x1024xf32>
    %88 = tpu.matmul %87, %38, %cst_25 {dimension_numbers = #tpu.dot_dimension_numbers<[1], [0], [0], [1], [0, 0, 1, 1], [], []>} : vector<2x1024xbf16>, vector<1024x1024xbf16>, vector<2x1024xf32> -> vector<2x1024xf32>
    %89 = math.tanh %88 : vector<2x1024xf32>
    %cst_26 = arith.constant 1.000000e+00 : f32
    %90 = arith.addf %cst_26, %26 : f32
    %91 = vector.broadcast %90 : f32 to vector<2x1024xf32>
    %92 = arith.mulf %86, %91 : vector<2x1024xf32>
    %93 = vector.broadcast %26 : f32 to vector<2x1024xf32>
    %94 = arith.mulf %93, %89 : vector<2x1024xf32>
    %95 = arith.addf %92, %94 : vector<2x1024xf32>
    %96 = arith.truncf %95 : vector<2x1024xf32> to vector<2x1024xbf16>
    %cst_27 = arith.constant dense<0.000000e+00> : vector<2x1024xf32>
    %97 = tpu.matmul %96, %38, %cst_27 {dimension_numbers = #tpu.dot_dimension_numbers<[1], [0], [0], [1], [0, 0, 1, 1], [], []>} : vector<2x1024xbf16>, vector<1024x1024xbf16>, vector<2x1024xf32> -> vector<2x1024xf32>
    %98 = math.tanh %97 : vector<2x1024xf32>
    %cst_28 = arith.constant 1.000000e+00 : f32
    %99 = arith.addf %cst_28, %30 : f32
    %100 = vector.broadcast %99 : f32 to vector<2x1024xf32>
    %101 = arith.mulf %95, %100 : vector<2x1024xf32>
    %102 = vector.broadcast %30 : f32 to vector<2x1024xf32>
    %103 = arith.mulf %102, %98 : vector<2x1024xf32>
    %104 = arith.addf %101, %103 : vector<2x1024xf32>
    %105 = arith.truncf %104 : vector<2x1024xf32> to vector<2x1024xbf16>
    %cst_29 = arith.constant dense<0.000000e+00> : vector<2x1024xf32>
    %106 = tpu.matmul %105, %38, %cst_29 {dimension_numbers = #tpu.dot_dimension_numbers<[1], [0], [0], [1], [0, 0, 1, 1], [], []>} : vector<2x1024xbf16>, vector<1024x1024xbf16>, vector<2x1024xf32> -> vector<2x1024xf32>
    %107 = math.tanh %106 : vector<2x1024xf32>
    %cst_30 = arith.constant 1.000000e+00 : f32
    %108 = arith.addf %cst_30, %34 : f32
    %109 = vector.broadcast %108 : f32 to vector<2x1024xf32>
    %110 = arith.mulf %104, %109 : vector<2x1024xf32>
    %111 = vector.broadcast %34 : f32 to vector<2x1024xf32>
    %112 = arith.mulf %111, %107 : vector<2x1024xf32>
    %113 = arith.addf %110, %112 : vector<2x1024xf32>
    %114 = tpu.concatenate %86, %95, %104, %113 in 0 : vector<2x1024xf32>, vector<2x1024xf32>, vector<2x1024xf32>, vector<2x1024xf32> -> vector<8x1024xf32>
    %c8 = arith.constant 8 : index
    %c0_31 = arith.constant 0 : index
    %115 = vector.load %arg4[%c8, %c0_31] : memref<16x1024xf32, #tpu.memory_space<vmem>>, vector<8x1024xf32>
    tpu.vector_store %arg4[%c8, %c0_31], %114 {strides = array<i32>} : memref<16x1024xf32, #tpu.memory_space<vmem>>, vector<8x1024xf32>,
    %c0_32 = arith.constant 0 : index
    %c0_33 = arith.constant 0 : index
    %116 = vector.load %arg5[%c0_32, %c0_33] : memref<2x1024xf32, #tpu.memory_space<vmem>>, vector<2x1024xf32>
    tpu.vector_store %arg5[%c0_32, %c0_33], %113 {strides = array<i32>} : memref<2x1024xf32, #tpu.memory_space<vmem>>, vector<2x1024xf32>,
    return
  }
  func.func @transform_2(%arg0: i32, %arg1: memref<8xf32, #tpu.memory_space<smem>>) -> (i32, i32) {
    %c0_i32 = arith.constant 0 : i32
    %c0_i32_0 = arith.constant 0 : i32
    return %arg0, %c0_i32 : i32, i32
  }
}

</mosaic_0001>

<llo_original>
// kernel: tpu_custom_call.1
$region0: #{tpu_custom_call.1}
  #allocation0 [shape = 'u32[]', space=smem, size = 0x4, offset = 0x4, fixed_abs, tag = 'smem constant byte address 0x4 - core index']
  #allocation1 [shape = 'u32[144,128]{1,0:T(1,128)}', space=vmem, size = 0x12000, scoped, tag = 'internal scratch']
  #allocation2 [shape = 'f32[2,1024]{1,0:T(2,128)}', space=vmem, size = 0x2000, scoped, tag = 'scratch operand']
  #allocation3 [shape = 'bf16[1024,1024]{1,0:T(16,128)(2,1)}', space=vmem, size = 0x200000, scoped, tag = 'scratch operand']
  #allocation4 [shape = 's32[2]{0}', space=sflag, size = 0x8, scoped, tag = 'scratch operand']
  #allocation5 [shape = 's32[1]{0}', space=sflag, size = 0x4, scoped, tag = 'scoped memory for tpu_custom_call.1']
  #allocation6 [shape = 'u8[512]{0}', space=smem, size = 0x200, scoped, tag = 'prefetched SMEM operand 0']
  #allocation9 [shape = 's32[]', space=sflag, size = 0x4, offset = 0, fixed_abs, tag = 'sflag constant byte address 0x0 - dummy sync flag']
  #allocation11 [shape = 's32[]', space=sflag, size = 0x4, offset = 0, fixed_abs, tag = 'sflag constant byte address 0x0 - dummy sync flag']
  #allocation12 [shape = 's32[]', space=sflag, size = 0x4, offset = 0, fixed_abs, tag = 'sflag constant byte address 0x0 - dummy sync flag']
  #allocation13 [shape = 'u32[]', space=smem, size = 0x4, offset = 0x44, fixed_abs, tag = 'smem constant byte address 0x44 - assertion arg 0']
  #allocation14 [shape = 'u32[]', space=smem, size = 0x4, offset = 0x48, fixed_abs, tag = 'smem constant byte address 0x48 - assertion arg 1']
  %s0 = inlined_call_operand.hbm [shape: f32[8], index: 0, kind: input, shape index: {}]
  %s1 = inlined_call_operand.hbm [shape: f32[2,1024], index: 1, kind: input, shape index: {}]
  %s2 = inlined_call_operand.hbm [shape: bf16[1024,1024], index: 2, kind: input, shape index: {}]
  %s3 = inlined_call_operand.hbm [shape: f32[16,1024], index: 3, kind: output, shape index: {}]
  %s4 = sld [smem:[#allocation0]]
  $region22: #{tpu_custom_call.1} parent=0
    _
  %s6 = ssub.s32 1, %s4
  %s7 = scalar_select 0, %s6, %s4
  %9 = dma.hbm_to_smem %s0, 16, [#allocation6], [#allocation5]
  %10 = dma.done [#allocation5], 16
  %11 = sfence
  $region1: #{tpu_custom_call.1} parent=0
    #allocation7 [shape = 'u8[65536]{0}', space=vmem, size = 0x10000, scoped, tag = 'output window, operand 0, single buffered']
    #allocation8 [shape = 's32[1]{0}', space=sflag, size = 0x4, scoped, tag = 'scoped memory for tpu_custom_call.1']
    %12 = vsyncpa [#allocation8], 0
    %p13 = scmp.eq.s32.totalorder 0, 0
    // Predicated region
    $region2: #{tpu_custom_call.1} parent=1 // pred_check
      %p14 = pneg %p13
    $region3: #{tpu_custom_call.1} parent=1 // pred_check_branch
      %16 = sbr.rel (%p14) target = $region5
    $region4: #{tpu_custom_call.1} parent=1 // pred_region
      #allocation10 [shape = 'u32[9]{0}', space=smem, size = 0x24, scoped, tag = 'DMA stride descriptor']
      %s18 = sshll.u32 1, 14
      %s19 = sxor.u32 4294967295, %s18
      %s21 = sld [smem:[#allocation0]]
      %s22 = sadd.s32 2, %s21
      %s24 = sshll.u32 7, 26
      %s25 = sxor.u32 4294967295, %s24
      %s26 = sand.u32 0, %s25
      %s27 = sshll.u32 %s22, 26
      %s28 = sor.u32 %s26, %s27
      %s29 = sshll.u32 [#allocation3], 4
      %s30 = int_to_ptr.vmem [resolvable:$true] %s29
      %33 = sst [smem:[#allocation10]] 1024
      %s34 = scalar_lea.smem [#allocation10], 1
      %35 = sst [smem:[%s34]] 1024
      %s36 = scalar_lea.smem [#allocation10], 2
      %37 = sst [smem:[%s36]] 8
      %s38 = scalar_lea.smem [#allocation10], 3
      %39 = sst [smem:[%s38]] 64
      %s40 = scalar_lea.smem [#allocation10], 4
      %41 = sst [smem:[%s40]] 128
      %s42 = scalar_lea.smem [#allocation10], 5
      %43 = sst [smem:[%s42]] 2
      %s44 = scalar_lea.smem [#allocation10], 6
      %45 = sst [smem:[%s44]] 512
      %s46 = scalar_lea.smem [#allocation10], 7
      %47 = sst [smem:[%s46]] 64
      %s48 = scalar_lea.smem [#allocation10], 8
      %49 = sst [smem:[%s48]] 4
      %51 = dma.general %s2, 65536, %s30, [#allocation4], [#allocation9], [#allocation10], %s28, 0
      %s52 = scalar_lea.sflag [#allocation4], 1
      // Predicated region
      $region6: #{tpu_custom_call.1} parent=4 // pred_check
        _
      $region7: #{tpu_custom_call.1} parent=4 // pred_check_branch
        %54 = sbr.rel target = $region9
      $region8: #{tpu_custom_call.1} parent=4 // pred_region
        %55 = sst [smem:[#allocation13]] [#allocation12]
        %56 = sst [smem:[#allocation14]] [#allocation11]
      $region9: #{tpu_custom_call.1} parent=4 // pred_fallthru
        _
      %58 = shalt.err (0)
      %s60 = sshll.u32 [#allocation2], 4
      %s61 = int_to_ptr.vmem [resolvable:$true] %s60
      %63 = dma.hbm_to_vmem [thread:$0]  %s1, 256, %s61, %s52
    $region5: #{tpu_custom_call.1} parent=1 // pred_fallthru
      _
    %s64 = smul.u32 0, 8
    %s65 = sld [smem:[#allocation6 + %s64]]
    %s66 = sadd.s32 %s64, 1
    %s67 = sld [smem:[#allocation6 + %s66]]
    %s68 = sadd.s32 %s64, 2
    %s69 = sld [smem:[#allocation6 + %s68]]
    %s70 = sadd.s32 %s64, 3
    %s71 = sld [smem:[#allocation6 + %s70]]
    %s72 = sadd.s32 %s64, 4
    %s73 = sld [smem:[#allocation6 + %s72]]
    %s74 = sadd.s32 %s64, 5
    %s75 = sld [smem:[#allocation6 + %s74]]
    %s76 = sadd.s32 %s64, 6
    %s77 = sld [smem:[#allocation6 + %s76]]
    %s78 = sadd.s32 %s64, 7
    %s79 = sld [smem:[#allocation6 + %s78]]
    // Predicated region
    $region10: #{tpu_custom_call.1} parent=1 // pred_check
      %p80 = pneg %p13
    $region11: #{tpu_custom_call.1} parent=1 // pred_check_branch
      %82 = sbr.rel (%p80) target = $region13
    $region12: #{tpu_custom_call.1} parent=1 // pred_region
      %s83 = scalar_lea.sflag [#allocation4], 1
      %s84 = smul.u32 2, 1
      %s85 = smul.u32 %s84, 8
      %s86 = sshll.u32 %s85, 4
      %87 = dma.done %s83, %s86
      %s88 = smul.u32 4, 128
      %s89 = smul.u32 %s88, 8
      %s90 = sshll.u32 %s89, 4
      %91 = dma.done [#allocation4], %s90
    $region13: #{tpu_custom_call.1} parent=1 // pred_fallthru
      _
    %v92 = vld [vmem:[#allocation3] sm:$0xff]
    %v93 = vld [vmem:[#allocation3 + $0x8] sm:$0xff]
    %v94 = vld [vmem:[#allocation3 + $0x10] sm:$0xff]
    %v95 = vld [vmem:[#allocation3 + $0x18] sm:$0xff]
    %v96 = vld [vmem:[#allocation3 + $0x20] sm:$0xff]
    %v97 = vld [vmem:[#allocation3 + $0x28] sm:$0xff]
    %v98 = vld [vmem:[#allocation3 + $0x30] sm:$0xff]
    %v99 = vld [vmem:[#allocation3 + $0x38] sm:$0xff]
    %v100 = vld [vmem:[#allocation3 + $0x40] sm:$0xff]
    %v101 = vld [vmem:[#allocation3 + $0x48] sm:$0xff]
    %v102 = vld [vmem:[#allocation3 + $0x50] sm:$0xff]
    %v103 = vld [vmem:[#allocation3 + $0x58] sm:$0xff]
    %v104 = vld [vmem:[#allocation3 + $0x60] sm:$0xff]
    %v105 = vld [vmem:[#allocation3 + $0x68] sm:$0xff]
    %v106 = vld [vmem:[#allocation3 + $0x70] sm:$0xff]
    %v107 = vld [vmem:[#allocation3 + $0x78] sm:$0xff]
    %v108 = vld [vmem:[#allocation3 + $0x80] sm:$0xff]
    %v109 = vld [vmem:[#allocation3 + $0x88] sm:$0xff]
    %v110 = vld [vmem:[#allocation3 + $0x90] sm:$0xff]
    %v111 = vld [vmem:[#allocation3 + $0x98] sm:$0xff]
    %v112 = vld [vmem:[#allocation3 + $0xa0] sm:$0xff]
    %v113 = vld [vmem:[#allocation3 + $0xa8] sm:$0xff]
    %v114 = vld [vmem:[#allocation3 + $0xb0] sm:$0xff]
    %v115 = vld [vmem:[#allocation3 + $0xb8] sm:$0xff]
    %v116 = vld [vmem:[#allocation3 + $0xc0] sm:$0xff]
    %v117 = vld [vmem:[#allocation3 + $0xc8] sm:$0xff]
    %v118 = vld [vmem:[#allocation3 + $0xd0] sm:$0xff]
    %v119 = vld [vmem:[#allocation3 + $0xd8] sm:$0xff]
    %v120 = vld [vmem:[#allocation3 + $0xe0] sm:$0xff]
    %v121 = vld [vmem:[#allocation3 + $0xe8] sm:$0xff]
    %v122 = vld [vmem:[#allocation3 + $0xf0] sm:$0xff]
    %v123 = vld [vmem:[#allocation3 + $0xf8] sm:$0xff]
    %v124 = vld [vmem:[#allocation3 + $0x100] sm:$0xff]
    %v125 = vld [vmem:[#allocation3 + $0x108] sm:$0xff]
    %v126 = vld [vmem:[#allocation3 + $0x110] sm:$0xff]
    %v127 = vld [vmem:[#allocation3 + $0x118] sm:$0xff]
    %v128 = vld [vmem:[#allocation3 + $0x120] sm:$0xff]
    %v129 = vld [vmem:[#allocation3 + $0x128] sm:$0xff]
    %v130 = vld [vmem:[#allocation3 + $0x130] sm:$0xff]
    %v131 = vld [vmem:[#allocation3 + $0x138] sm:$0xff]
    %v132 = vld [vmem:[#allocation3 + $0x140] sm:$0xff]
    %v133 = vld [vmem:[#allocation3 + $0x148] sm:$0xff]
    %v134 = vld [vmem:[#allocation3 + $0x150] sm:$0xff]
    %v135 = vld [vmem:[#allocation3 + $0x158] sm:$0xff]
    %v136 = vld [vmem:[#allocation3 + $0x160] sm:$0xff]
    %v137 = vld [vmem:[#allocation3 + $0x168] sm:$0xff]
    %v138 = vld [vmem:[#allocation3 + $0x170] sm:$0xff]
    %v139 = vld [vmem:[#allocation3 + $0x178] sm:$0xff]
    %v140 = vld [vmem:[#allocation3 + $0x180] sm:$0xff]
    %v141 = vld [vmem:[#allocation3 + $0x188] sm:$0xff]
    %v142 = vld [vmem:[#allocation3 + $0x190] sm:$0xff]
    %v143 = vld [vmem:[#allocation3 + $0x198] sm:$0xff]
    %v144 = vld [vmem:[#allocation3 + $0x1a0] sm:$0xff]
    %v145 = vld [vmem:[#allocation3 + $0x1a8] sm:$0xff]
    %v146 = vld [vmem:[#allocation3 + $0x1b0] sm:$0xff]
    %v147 = vld [vmem:[#allocation3 + $0x1b8] sm:$0xff]
    %v148 = vld [vmem:[#allocation3 + $0x1c0] sm:$0xff]
    %v149 = vld [vmem:[#allocation3 + $0x1c8] sm:$0xff]
    %v150 = vld [vmem:[#allocation3 + $0x1d0] sm:$0xff]
    %v151 = vld [vmem:[#allocation3 + $0x1d8] sm:$0xff]
    %v152 = vld [vmem:[#allocation3 + $0x1e0] sm:$0xff]
    %v153 = vld [vmem:[#allocation3 + $0x1e8] sm:$0xff]
    %v154 = vld [vmem:[#allocation3 + $0x1f0] sm:$0xff]
    %v155 = vld [vmem:[#allocation3 + $0x1f8] sm:$0xff]
    %v156 = vld [vmem:[#allocation3 + $0x200] sm:$0xff]
    %v157 = vld [vmem:[#allocation3 + $0x208] sm:$0xff]
    %v158 = vld [vmem:[#allocation3 + $0x210] sm:$0xff]
    %v159 = vld [vmem:[#allocation3 + $0x218] sm:$0xff]
    %v160 = vld [vmem:[#allocation3 + $0x220] sm:$0xff]
    %v161 = vld [vmem:[#allocation3 + $0x228] sm:$0xff]
    %v162 = vld [vmem:[#allocation3 + $0x230] sm:$0xff]
    %v163 = vld [vmem:[#allocation3 + $0x238] sm:$0xff]
    %v164 = vld [vmem:[#allocation3 + $0x240] sm:$0xff]
    %v165 = vld [vmem:[#allocation3 + $0x248] sm:$0xff]
    %v166 = vld [vmem:[#allocation3 + $0x250] sm:$0xff]
    %v167 = vld [vmem:[#allocation3 + $0x258] sm:$0xff]
    %v168 = vld [vmem:[#allocation3 + $0x260] sm:$0xff]
    %v169 = vld [vmem:[#allocation3 + $0x268] sm:$0xff]
    %v170 = vld [vmem:[#allocation3 + $0x270] sm:$0xff]
    %v171 = vld [vmem:[#allocation3 + $0x278] sm:$0xff]
    %v172 = vld [vmem:[#allocation3 + $0x280] sm:$0xff]
    %v173 = vld [vmem:[#allocation3 + $0x288] sm:$0xff]
    %v174 = vld [vmem:[#allocation3 + $0x290] sm:$0xff]
    %v175 = vld [vmem:[#allocation3 + $0x298] sm:$0xff]
    %v176 = vld [vmem:[#allocation3 + $0x2a0] sm:$0xff]
    %v177 = vld [vmem:[#allocation3 + $0x2a8] sm:$0xff]
    %v178 = vld [vmem:[#allocation3 + $0x2b0] sm:$0xff]
    %v179 = vld [vmem:[#allocation3 + $0x2b8] sm:$0xff]
    %v180 = vld [vmem:[#allocation3 + $0x2c0] sm:$0xff]
    %v181 = vld [vmem:[#allocation3 + $0x2c8] sm:$0xff]
    %v182 = vld [vmem:[#allocation3 + $0x2d0] sm:$0xff]
    %v183 = vld [vmem:[#allocation3 + $0x2d8] sm:$0xff]
    %v184 = vld [vmem:[#allocation3 + $0x2e0] sm:$0xff]
    %v185 = vld [vmem:[#allocation3 + $0x2e8] sm:$0xff]
    %v186 = vld [vmem:[#allocation3 + $0x2f0] sm:$0xff]
    %v187 = vld [vmem:[#allocation3 + $0x2f8] sm:$0xff]
    %v188 = vld [vmem:[#allocation3 + $0x300] sm:$0xff]
    %v189 = vld [vmem:[#allocation3 + $0x308] sm:$0xff]
    %v190 = vld [vmem:[#allocation3 + $0x310] sm:$0xff]
    %v191 = vld [vmem:[#allocation3 + $0x318] sm:$0xff]
    %v192 = vld [vmem:[#allocation3 + $0x320] sm:$0xff]
    %v193 = vld [vmem:[#allocation3 + $0x328] sm:$0xff]
    %v194 = vld [vmem:[#allocation3 + $0x330] sm:$0xff]
    %v195 = vld [vmem:[#allocation3 + $0x338] sm:$0xff]
    %v196 = vld [vmem:[#allocation3 + $0x340] sm:$0xff]
    %v197 = vld [vmem:[#allocation3 + $0x348] sm:$0xff]
    %v198 = vld [vmem:[#allocation3 + $0x350] sm:$0xff]
    %v199 = vld [vmem:[#allocation3 + $0x358] sm:$0xff]
    %v200 = vld [vmem:[#allocation3 + $0x360] sm:$0xff]
    %v201 = vld [vmem:[#allocation3 + $0x368] sm:$0xff]
    %v202 = vld [vmem:[#allocation3 + $0x370] sm:$0xff]
    %v203 = vld [vmem:[#allocation3 + $0x378] sm:$0xff]
    %v204 = vld [vmem:[#allocation3 + $0x380] sm:$0xff]
    %v205 = vld [vmem:[#allocation3 + $0x388] sm:$0xff]
    %v206 = vld [vmem:[#allocation3 + $0x390] sm:$0xff]
    %v207 = vld [vmem:[#allocation3 + $0x398] sm:$0xff]
    %v208 = vld [vmem:[#allocation3 + $0x3a0] sm:$0xff]
    %v209 = vld [vmem:[#allocation3 + $0x3a8] sm:$0xff]
    %v210 = vld [vmem:[#allocation3 + $0x3b0] sm:$0xff]
    %v211 = vld [vmem:[#allocation3 + $0x3b8] sm:$0xff]
    %v212 = vld [vmem:[#allocation3 + $0x3c0] sm:$0xff]
    %v213 = vld [vmem:[#allocation3 + $0x3c8] sm:$0xff]
    %v214 = vld [vmem:[#allocation3 + $0x3d0] sm:$0xff]
    %v215 = vld [vmem:[#allocation3 + $0x3d8] sm:$0xff]
    %v216 = vld [vmem:[#allocation3 + $0x3e0] sm:$0xff]
    %v217 = vld [vmem:[#allocation3 + $0x3e8] sm:$0xff]
    %v218 = vld [vmem:[#allocation3 + $0x3f0] sm:$0xff]
    %v219 = vld [vmem:[#allocation3 + $0x3f8] sm:$0xff]
    %v220 = vld [vmem:[#allocation3 + $0x400] sm:$0xff]
    %v221 = vld [vmem:[#allocation3 + $0x408] sm:$0xff]
    %v222 = vld [vmem:[#allocation3 + $0x410] sm:$0xff]
    %v223 = vld [vmem:[#allocation3 + $0x418] sm:$0xff]
    %v224 = vld [vmem:[#allocation3 + $0x420] sm:$0xff]
    %v225 = vld [vmem:[#allocation3 + $0x428] sm:$0xff]
    %v226 = vld [vmem:[#allocation3 + $0x430] sm:$0xff]
    %v227 = vld [vmem:[#allocation3 + $0x438] sm:$0xff]
    %v228 = vld [vmem:[#allocation3 + $0x440] sm:$0xff]
    %v229 = vld [vmem:[#allocation3 + $0x448] sm:$0xff]
    %v230 = vld [vmem:[#allocation3 + $0x450] sm:$0xff]
    %v231 = vld [vmem:[#allocation3 + $0x458] sm:$0xff]
    %v232 = vld [vmem:[#allocation3 + $0x460] sm:$0xff]
    %v233 = vld [vmem:[#allocation3 + $0x468] sm:$0xff]
    %v234 = vld [vmem:[#allocation3 + $0x470] sm:$0xff]
    %v235 = vld [vmem:[#allocation3 + $0x478] sm:$0xff]
    %v236 = vld [vmem:[#allocation3 + $0x480] sm:$0xff]
    %v237 = vld [vmem:[#allocation3 + $0x488] sm:$0xff]
    %v238 = vld [vmem:[#allocation3 + $0x490] sm:$0xff]
    %v239 = vld [vmem:[#allocation3 + $0x498] sm:$0xff]
    %v240 = vld [vmem:[#allocation3 + $0x4a0] sm:$0xff]
    %v241 = vld [vmem:[#allocation3 + $0x4a8] sm:$0xff]
    %v242 = vld [vmem:[#allocation3 + $0x4b0] sm:$0xff]
    %v243 = vld [vmem:[#allocation3 + $0x4b8] sm:$0xff]
    %v244 = vld [vmem:[#allocation3 + $0x4c0] sm:$0xff]
    %v245 = vld [vmem:[#allocation3 + $0x4c8] sm:$0xff]
    %v246 = vld [vmem:[#allocation3 + $0x4d0] sm:$0xff]
    %v247 = vld [vmem:[#allocation3 + $0x4d8] sm:$0xff]
    %v248 = vld [vmem:[#allocation3 + $0x4e0] sm:$0xff]
    %v249 = vld [vmem:[#allocation3 + $0x4e8] sm:$0xff]
    %v250 = vld [vmem:[#allocation3 + $0x4f0] sm:$0xff]
    %v251 = vld [vmem:[#allocation3 + $0x4f8] sm:$0xff]
    %v252 = vld [vmem:[#allocation3 + $0x500] sm:$0xff]
    %v253 = vld [vmem:[#allocation3 + $0x508] sm:$0xff]
    %v254 = vld [vmem:[#allocation3 + $0x510] sm:$0xff]
    %v255 = vld [vmem:[#allocation3 + $0x518] sm:$0xff]
    %v256 = vld [vmem:[#allocation3 + $0x520] sm:$0xff]
    %v257 = vld [vmem:[#allocation3 + $0x528] sm:$0xff]
    %v258 = vld [vmem:[#allocation3 + $0x530] sm:$0xff]
    %v259 = vld [vmem:[#allocation3 + $0x538] sm:$0xff]
    %v260 = vld [vmem:[#allocation3 + $0x540] sm:$0xff]
    %v261 = vld [vmem:[#allocation3 + $0x548] sm:$0xff]
    %v262 = vld [vmem:[#allocation3 + $0x550] sm:$0xff]
    %v263 = vld [vmem:[#allocation3 + $0x558] sm:$0xff]
    %v264 = vld [vmem:[#allocation3 + $0x560] sm:$0xff]
    %v265 = vld [vmem:[#allocation3 + $0x568] sm:$0xff]
    %v266 = vld [vmem:[#allocation3 + $0x570] sm:$0xff]
    %v267 = vld [vmem:[#allocation3 + $0x578] sm:$0xff]
    %v268 = vld [vmem:[#allocation3 + $0x580] sm:$0xff]
    %v269 = vld [vmem:[#allocation3 + $0x588] sm:$0xff]
    %v270 = vld [vmem:[#allocation3 + $0x590] sm:$0xff]
    %v271 = vld [vmem:[#allocation3 + $0x598] sm:$0xff]
    %v272 = vld [vmem:[#allocation3 + $0x5a0] sm:$0xff]
    %v273 = vld [vmem:[#allocation3 + $0x5a8] sm:$0xff]
    %v274 = vld [vmem:[#allocation3 + $0x5b0] sm:$0xff]
    %v275 = vld [vmem:[#allocation3 + $0x5b8] sm:$0xff]
    %v276 = vld [vmem:[#allocation3 + $0x5c0] sm:$0xff]
    %v277 = vld [vmem:[#allocation3 + $0x5c8] sm:$0xff]
    %v278 = vld [vmem:[#allocation3 + $0x5d0] sm:$0xff]
    %v279 = vld [vmem:[#allocation3 + $0x5d8] sm:$0xff]
    %v280 = vld [vmem:[#allocation3 + $0x5e0] sm:$0xff]
    %v281 = vld [vmem:[#allocation3 + $0x5e8] sm:$0xff]
    %v282 = vld [vmem:[#allocation3 + $0x5f0] sm:$0xff]
    %v283 = vld [vmem:[#allocation3 + $0x5f8] sm:$0xff]
    %v284 = vld [vmem:[#allocation3 + $0x600] sm:$0xff]
    %v285 = vld [vmem:[#allocation3 + $0x608] sm:$0xff]
    %v286 = vld [vmem:[#allocation3 + $0x610] sm:$0xff]
    %v287 = vld [vmem:[#allocation3 + $0x618] sm:$0xff]
    %v288 = vld [vmem:[#allocation3 + $0x620] sm:$0xff]
    %v289 = vld [vmem:[#allocation3 + $0x628] sm:$0xff]
    %v290 = vld [vmem:[#allocation3 + $0x630] sm:$0xff]
    %v291 = vld [vmem:[#allocation3 + $0x638] sm:$0xff]
    %v292 = vld [vmem:[#allocation3 + $0x640] sm:$0xff]
    %v293 = vld [vmem:[#allocation3 + $0x648] sm:$0xff]
    %v294 = vld [vmem:[#allocation3 + $0x650] sm:$0xff]
    %v295 = vld [vmem:[#allocation3 + $0x658] sm:$0xff]
    %v296 = vld [vmem:[#allocation3 + $0x660] sm:$0xff]
    %v297 = vld [vmem:[#allocation3 + $0x668] sm:$0xff]
    %v298 = vld [vmem:[#allocation3 + $0x670] sm:$0xff]
    %v299 = vld [vmem:[#allocation3 + $0x678] sm:$0xff]
    %v300 = vld [vmem:[#allocation3 + $0x680] sm:$0xff]
    %v301 = vld [vmem:[#allocation3 + $0x688] sm:$0xff]
    %v302 = vld [vmem:[#allocation3 + $0x690] sm:$0xff]
    %v303 = vld [vmem:[#allocation3 + $0x698] sm:$0xff]
    %v304 = vld [vmem:[#allocation3 + $0x6a0] sm:$0xff]
    %v305 = vld [vmem:[#allocation3 + $0x6a8] sm:$0xff]
    %v306 = vld [vmem:[#allocation3 + $0x6b0] sm:$0xff]
    %v307 = vld [vmem:[#allocation3 + $0x6b8] sm:$0xff]
    %v308 = vld [vmem:[#allocation3 + $0x6c0] sm:$0xff]
    %v309 = vld [vmem:[#allocation3 + $0x6c8] sm:$0xff]
    %v310 = vld [vmem:[#allocation3 + $0x6d0] sm:$0xff]
    %v311 = vld [vmem:[#allocation3 + $0x6d8] sm:$0xff]
    %v312 = vld [vmem:[#allocation3 + $0x6e0] sm:$0xff]
    %v313 = vld [vmem:[#allocation3 + $0x6e8] sm:$0xff]
    %v314 = vld [vmem:[#allocation3 + $0x6f0] sm:$0xff]
    %v315 = vld [vmem:[#allocation3 + $0x6f8] sm:$0xff]
    %v316 = vld [vmem:[#allocation3 + $0x700] sm:$0xff]
    %v317 = vld [vmem:[#allocation3 + $0x708] sm:$0xff]
    %v318 = vld [vmem:[#allocation3 + $0x710] sm:$0xff]
    %v319 = vld [vmem:[#allocation3 + $0x718] sm:$0xff]
    %v320 = vld [vmem:[#allocation3 + $0x720] sm:$0xff]
    %v321 = vld [vmem:[#allocation3 + $0x728] sm:$0xff]
    %v322 = vld [vmem:[#allocation3 + $0x730] sm:$0xff]
    %v323 = vld [vmem:[#allocation3 + $0x738] sm:$0xff]
    %v324 = vld [vmem:[#allocation3 + $0x740] sm:$0xff]
    %v325 = vld [vmem:[#allocation3 + $0x748] sm:$0xff]
    %v326 = vld [vmem:[#allocation3 + $0x750] sm:$0xff]
    %v327 = vld [vmem:[#allocation3 + $0x758] sm:$0xff]
    %v328 = vld [vmem:[#allocation3 + $0x760] sm:$0xff]
    %v329 = vld [vmem:[#allocation3 + $0x768] sm:$0xff]
    %v330 = vld [vmem:[#allocation3 + $0x770] sm:$0xff]
    %v331 = vld [vmem:[#allocation3 + $0x778] sm:$0xff]
    %v332 = vld [vmem:[#allocation3 + $0x780] sm:$0xff]
    %v333 = vld [vmem:[#allocation3 + $0x788] sm:$0xff]
    %v334 = vld [vmem:[#allocation3 + $0x790] sm:$0xff]
    %v335 = vld [vmem:[#allocation3 + $0x798] sm:$0xff]
    %v336 = vld [vmem:[#allocation3 + $0x7a0] sm:$0xff]
    %v337 = vld [vmem:[#allocation3 + $0x7a8] sm:$0xff]
    %v338 = vld [vmem:[#allocation3 + $0x7b0] sm:$0xff]
    %v339 = vld [vmem:[#allocation3 + $0x7b8] sm:$0xff]
    %v340 = vld [vmem:[#allocation3 + $0x7c0] sm:$0xff]
    %v341 = vld [vmem:[#allocation3 + $0x7c8] sm:$0xff]
    %v342 = vld [vmem:[#allocation3 + $0x7d0] sm:$0xff]
    %v343 = vld [vmem:[#allocation3 + $0x7d8] sm:$0xff]
    %v344 = vld [vmem:[#allocation3 + $0x7e0] sm:$0xff]
    %v345 = vld [vmem:[#allocation3 + $0x7e8] sm:$0xff]
    %v346 = vld [vmem:[#allocation3 + $0x7f0] sm:$0xff]
    %v347 = vld [vmem:[#allocation3 + $0x7f8] sm:$0xff]
    %v348 = vld [vmem:[#allocation3 + $0x800] sm:$0xff]
    %v349 = vld [vmem:[#allocation3 + $0x808] sm:$0xff]
    %v350 = vld [vmem:[#allocation3 + $0x810] sm:$0xff]
    %v351 = vld [vmem:[#allocation3 + $0x818] sm:$0xff]
    %v352 = vld [vmem:[#allocation3 + $0x820] sm:$0xff]
    %v353 = vld [vmem:[#allocation3 + $0x828] sm:$0xff]
    %v354 = vld [vmem:[#allocation3 + $0x830] sm:$0xff]
    %v355 = vld [vmem:[#allocation3 + $0x838] sm:$0xff]
    %v356 = vld [vmem:[#allocation3 + $0x840] sm:$0xff]
    %v357 = vld [vmem:[#allocation3 + $0x848] sm:$0xff]
    %v358 = vld [vmem:[#allocation3 + $0x850] sm:$0xff]
    %v359 = vld [vmem:[#allocation3 + $0x858] sm:$0xff]
    %v360 = vld [vmem:[#allocation3 + $0x860] sm:$0xff]
    %v361 = vld [vmem:[#allocation3 + $0x868] sm:$0xff]
    %v362 = vld [vmem:[#allocation3 + $0x870] sm:$0xff]
    %v363 = vld [vmem:[#allocation3 + $0x878] sm:$0xff]
    %v364 = vld [vmem:[#allocation3 + $0x880] sm:$0xff]
    %v365 = vld [vmem:[#allocation3 + $0x888] sm:$0xff]
    %v366 = vld [vmem:[#allocation3 + $0x890] sm:$0xff]
    %v367 = vld [vmem:[#allocation3 + $0x898] sm:$0xff]
    %v368 = vld [vmem:[#allocation3 + $0x8a0] sm:$0xff]
    %v369 = vld [vmem:[#allocation3 + $0x8a8] sm:$0xff]
    %v370 = vld [vmem:[#allocation3 + $0x8b0] sm:$0xff]
    %v371 = vld [vmem:[#allocation3 + $0x8b8] sm:$0xff]
    %v372 = vld [vmem:[#allocation3 + $0x8c0] sm:$0xff]
    %v373 = vld [vmem:[#allocation3 + $0x8c8] sm:$0xff]
    %v374 = vld [vmem:[#allocation3 + $0x8d0] sm:$0xff]
    %v375 = vld [vmem:[#allocation3 + $0x8d8] sm:$0xff]
    %v376 = vld [vmem:[#allocation3 + $0x8e0] sm:$0xff]
    %v377 = vld [vmem:[#allocation3 + $0x8e8] sm:$0xff]
    %v378 = vld [vmem:[#allocation3 + $0x8f0] sm:$0xff]
    %v379 = vld [vmem:[#allocation3 + $0x8f8] sm:$0xff]
    %v380 = vld [vmem:[#allocation3 + $0x900] sm:$0xff]
    %v381 = vld [vmem:[#allocation3 + $0x908] sm:$0xff]
    %v382 = vld [vmem:[#allocation3 + $0x910] sm:$0xff]
    %v383 = vld [vmem:[#allocation3 + $0x918] sm:$0xff]
    %v384 = vld [vmem:[#allocation3 + $0x920] sm:$0xff]
    %v385 = vld [vmem:[#allocation3 + $0x928] sm:$0xff]
    %v386 = vld [vmem:[#allocation3 + $0x930] sm:$0xff]
    %v387 = vld [vmem:[#allocation3 + $0x938] sm:$0xff]
    %v388 = vld [vmem:[#allocation3 + $0x940] sm:$0xff]
    %v389 = vld [vmem:[#allocation3 + $0x948] sm:$0xff]
    %v390 = vld [vmem:[#allocation3 + $0x950] sm:$0xff]
    %v391 = vld [vmem:[#allocation3 + $0x958] sm:$0xff]
    %v392 = vld [vmem:[#allocation3 + $0x960] sm:$0xff]
    %v393 = vld [vmem:[#allocation3 + $0x968] sm:$0xff]
    %v394 = vld [vmem:[#allocation3 + $0x970] sm:$0xff]
    %v395 = vld [vmem:[#allocation3 + $0x978] sm:$0xff]
    %v396 = vld [vmem:[#allocation3 + $0x980] sm:$0xff]
    %v397 = vld [vmem:[#allocation3 + $0x988] sm:$0xff]
    %v398 = vld [vmem:[#allocation3 + $0x990] sm:$0xff]
    %v399 = vld [vmem:[#allocation3 + $0x998] sm:$0xff]
    %v400 = vld [vmem:[#allocation3 + $0x9a0] sm:$0xff]
    %v401 = vld [vmem:[#allocation3 + $0x9a8] sm:$0xff]
    %v402 = vld [vmem:[#allocation3 + $0x9b0] sm:$0xff]
    %v403 = vld [vmem:[#allocation3 + $0x9b8] sm:$0xff]
    %v404 = vld [vmem:[#allocation3 + $0x9c0] sm:$0xff]
    %v405 = vld [vmem:[#allocation3 + $0x9c8] sm:$0xff]
    %v406 = vld [vmem:[#allocation3 + $0x9d0] sm:$0xff]
    %v407 = vld [vmem:[#allocation3 + $0x9d8] sm:$0xff]
    %v408 = vld [vmem:[#allocation3 + $0x9e0] sm:$0xff]
    %v409 = vld [vmem:[#allocation3 + $0x9e8] sm:$0xff]
    %v410 = vld [vmem:[#allocation3 + $0x9f0] sm:$0xff]
    %v411 = vld [vmem:[#allocation3 + $0x9f8] sm:$0xff]
    %v412 = vld [vmem:[#allocation3 + $0xa00] sm:$0xff]
    %v413 = vld [vmem:[#allocation3 + $0xa08] sm:$0xff]
    %v414 = vld [vmem:[#allocation3 + $0xa10] sm:$0xff]
    %v415 = vld [vmem:[#allocation3 + $0xa18] sm:$0xff]
    %v416 = vld [vmem:[#allocation3 + $0xa20] sm:$0xff]
    %v417 = vld [vmem:[#allocation3 + $0xa28] sm:$0xff]
    %v418 = vld [vmem:[#allocation3 + $0xa30] sm:$0xff]
    %v419 = vld [vmem:[#allocation3 + $0xa38] sm:$0xff]
    %v420 = vld [vmem:[#allocation3 + $0xa40] sm:$0xff]
    %v421 = vld [vmem:[#allocation3 + $0xa48] sm:$0xff]
    %v422 = vld [vmem:[#allocation3 + $0xa50] sm:$0xff]
    %v423 = vld [vmem:[#allocation3 + $0xa58] sm:$0xff]
    %v424 = vld [vmem:[#allocation3 + $0xa60] sm:$0xff]
    %v425 = vld [vmem:[#allocation3 + $0xa68] sm:$0xff]
    %v426 = vld [vmem:[#allocation3 + $0xa70] sm:$0xff]
    %v427 = vld [vmem:[#allocation3 + $0xa78] sm:$0xff]
    %v428 = vld [vmem:[#allocation3 + $0xa80] sm:$0xff]
    %v429 = vld [vmem:[#allocation3 + $0xa88] sm:$0xff]
    %v430 = vld [vmem:[#allocation3 + $0xa90] sm:$0xff]
    %v431 = vld [vmem:[#allocation3 + $0xa98] sm:$0xff]
    %v432 = vld [vmem:[#allocation3 + $0xaa0] sm:$0xff]
    %v433 = vld [vmem:[#allocation3 + $0xaa8] sm:$0xff]
    %v434 = vld [vmem:[#allocation3 + $0xab0] sm:$0xff]
    %v435 = vld [vmem:[#allocation3 + $0xab8] sm:$0xff]
    %v436 = vld [vmem:[#allocation3 + $0xac0] sm:$0xff]
    %v437 = vld [vmem:[#allocation3 + $0xac8] sm:$0xff]
    %v438 = vld [vmem:[#allocation3 + $0xad0] sm:$0xff]
    %v439 = vld [vmem:[#allocation3 + $0xad8] sm:$0xff]
    %v440 = vld [vmem:[#allocation3 + $0xae0] sm:$0xff]
    %v441 = vld [vmem:[#allocation3 + $0xae8] sm:$0xff]
    %v442 = vld [vmem:[#allocation3 + $0xaf0] sm:$0xff]
    %v443 = vld [vmem:[#allocation3 + $0xaf8] sm:$0xff]
    %v444 = vld [vmem:[#allocation3 + $0xb00] sm:$0xff]
    %v445 = vld [vmem:[#allocation3 + $0xb08] sm:$0xff]
    %v446 = vld [vmem:[#allocation3 + $0xb10] sm:$0xff]
    %v447 = vld [vmem:[#allocation3 + $0xb18] sm:$0xff]
    %v448 = vld [vmem:[#allocation3 + $0xb20] sm:$0xff]
    %v449 = vld [vmem:[#allocation3 + $0xb28] sm:$0xff]
    %v450 = vld [vmem:[#allocation3 + $0xb30] sm:$0xff]
    %v451 = vld [vmem:[#allocation3 + $0xb38] sm:$0xff]
    %v452 = vld [vmem:[#allocation3 + $0xb40] sm:$0xff]
    %v453 = vld [vmem:[#allocation3 + $0xb48] sm:$0xff]
    %v454 = vld [vmem:[#allocation3 + $0xb50] sm:$0xff]
    %v455 = vld [vmem:[#allocation3 + $0xb58] sm:$0xff]
    %v456 = vld [vmem:[#allocation3 + $0xb60] sm:$0xff]
    %v457 = vld [vmem:[#allocation3 + $0xb68] sm:$0xff]
    %v458 = vld [vmem:[#allocation3 + $0xb70] sm:$0xff]
    %v459 = vld [vmem:[#allocation3 + $0xb78] sm:$0xff]
    %v460 = vld [vmem:[#allocation3 + $0xb80] sm:$0xff]
    %v461 = vld [vmem:[#allocation3 + $0xb88] sm:$0xff]
    %v462 = vld [vmem:[#allocation3 + $0xb90] sm:$0xff]
    %v463 = vld [vmem:[#allocation3 + $0xb98] sm:$0xff]
    %v464 = vld [vmem:[#allocation3 + $0xba0] sm:$0xff]
    %v465 = vld [vmem:[#allocation3 + $0xba8] sm:$0xff]
    %v466 = vld [vmem:[#allocation3 + $0xbb0] sm:$0xff]
    %v467 = vld [vmem:[#allocation3 + $0xbb8] sm:$0xff]
    %v468 = vld [vmem:[#allocation3 + $0xbc0] sm:$0xff]
    %v469 = vld [vmem:[#allocation3 + $0xbc8] sm:$0xff]
    %v470 = vld [vmem:[#allocation3 + $0xbd0] sm:$0xff]
    %v471 = vld [vmem:[#allocation3 + $0xbd8] sm:$0xff]
    %v472 = vld [vmem:[#allocation3 + $0xbe0] sm:$0xff]
    %v473 = vld [vmem:[#allocation3 + $0xbe8] sm:$0xff]
    %v474 = vld [vmem:[#allocation3 + $0xbf0] sm:$0xff]
    %v475 = vld [vmem:[#allocation3 + $0xbf8] sm:$0xff]
    %v476 = vld [vmem:[#allocation3 + $0xc00] sm:$0xff]
    %v477 = vld [vmem:[#allocation3 + $0xc08] sm:$0xff]
    %v478 = vld [vmem:[#allocation3 + $0xc10] sm:$0xff]
    %v479 = vld [vmem:[#allocation3 + $0xc18] sm:$0xff]
    %v480 = vld [vmem:[#allocation3 + $0xc20] sm:$0xff]
    %v481 = vld [vmem:[#allocation3 + $0xc28] sm:$0xff]
    %v482 = vld [vmem:[#allocation3 + $0xc30] sm:$0xff]
    %v483 = vld [vmem:[#allocation3 + $0xc38] sm:$0xff]
    %v484 = vld [vmem:[#allocation3 + $0xc40] sm:$0xff]
    %v485 = vld [vmem:[#allocation3 + $0xc48] sm:$0xff]
    %v486 = vld [vmem:[#allocation3 + $0xc50] sm:$0xff]
    %v487 = vld [vmem:[#allocation3 + $0xc58] sm:$0xff]
    %v488 = vld [vmem:[#allocation3 + $0xc60] sm:$0xff]
    %v489 = vld [vmem:[#allocation3 + $0xc68] sm:$0xff]
    %v490 = vld [vmem:[#allocation3 + $0xc70] sm:$0xff]
    %v491 = vld [vmem:[#allocation3 + $0xc78] sm:$0xff]
    %v492 = vld [vmem:[#allocation3 + $0xc80] sm:$0xff]
    %v493 = vld [vmem:[#allocation3 + $0xc88] sm:$0xff]
    %v494 = vld [vmem:[#allocation3 + $0xc90] sm:$0xff]
    %v495 = vld [vmem:[#allocation3 + $0xc98] sm:$0xff]
    %v496 = vld [vmem:[#allocation3 + $0xca0] sm:$0xff]
    %v497 = vld [vmem:[#allocation3 + $0xca8] sm:$0xff]
    %v498 = vld [vmem:[#allocation3 + $0xcb0] sm:$0xff]
    %v499 = vld [vmem:[#allocation3 + $0xcb8] sm:$0xff]
    %v500 = vld [vmem:[#allocation3 + $0xcc0] sm:$0xff]
    %v501 = vld [vmem:[#allocation3 + $0xcc8] sm:$0xff]
    %v502 = vld [vmem:[#allocation3 + $0xcd0] sm:$0xff]
    %v503 = vld [vmem:[#allocation3 + $0xcd8] sm:$0xff]
    %v504 = vld [vmem:[#allocation3 + $0xce0] sm:$0xff]
    %v505 = vld [vmem:[#allocation3 + $0xce8] sm:$0xff]
    %v506 = vld [vmem:[#allocation3 + $0xcf0] sm:$0xff]
    %v507 = vld [vmem:[#allocation3 + $0xcf8] sm:$0xff]
    %v508 = vld [vmem:[#allocation3 + $0xd00] sm:$0xff]
    %v509 = vld [vmem:[#allocation3 + $0xd08] sm:$0xff]
    %v510 = vld [vmem:[#allocation3 + $0xd10] sm:$0xff]
    %v511 = vld [vmem:[#allocation3 + $0xd18] sm:$0xff]
    %v512 = vld [vmem:[#allocation3 + $0xd20] sm:$0xff]
    %v513 = vld [vmem:[#allocation3 + $0xd28] sm:$0xff]
    %v514 = vld [vmem:[#allocation3 + $0xd30] sm:$0xff]
    %v515 = vld [vmem:[#allocation3 + $0xd38] sm:$0xff]
    %v516 = vld [vmem:[#allocation3 + $0xd40] sm:$0xff]
    %v517 = vld [vmem:[#allocation3 + $0xd48] sm:$0xff]
    %v518 = vld [vmem:[#allocation3 + $0xd50] sm:$0xff]
    %v519 = vld [vmem:[#allocation3 + $0xd58] sm:$0xff]
    %v520 = vld [vmem:[#allocation3 + $0xd60] sm:$0xff]
    %v521 = vld [vmem:[#allocation3 + $0xd68] sm:$0xff]
    %v522 = vld [vmem:[#allocation3 + $0xd70] sm:$0xff]
    %v523 = vld [vmem:[#allocation3 + $0xd78] sm:$0xff]
    %v524 = vld [vmem:[#allocation3 + $0xd80] sm:$0xff]
    %v525 = vld [vmem:[#allocation3 + $0xd88] sm:$0xff]
    %v526 = vld [vmem:[#allocation3 + $0xd90] sm:$0xff]
    %v527 = vld [vmem:[#allocation3 + $0xd98] sm:$0xff]
    %v528 = vld [vmem:[#allocation3 + $0xda0] sm:$0xff]
    %v529 = vld [vmem:[#allocation3 + $0xda8] sm:$0xff]
    %v530 = vld [vmem:[#allocation3 + $0xdb0] sm:$0xff]
    %v531 = vld [vmem:[#allocation3 + $0xdb8] sm:$0xff]
    %v532 = vld [vmem:[#allocation3 + $0xdc0] sm:$0xff]
    %v533 = vld [vmem:[#allocation3 + $0xdc8] sm:$0xff]
    %v534 = vld [vmem:[#allocation3 + $0xdd0] sm:$0xff]
    %v535 = vld [vmem:[#allocation3 + $0xdd8] sm:$0xff]
    %v536 = vld [vmem:[#allocation3 + $0xde0] sm:$0xff]
    %v537 = vld [vmem:[#allocation3 + $0xde8] sm:$0xff]
    %v538 = vld [vmem:[#allocation3 + $0xdf0] sm:$0xff]
    %v539 = vld [vmem:[#allocation3 + $0xdf8] sm:$0xff]
    %v540 = vld [vmem:[#allocation3 + $0xe00] sm:$0xff]
    %v541 = vld [vmem:[#allocation3 + $0xe08] sm:$0xff]
    %v542 = vld [vmem:[#allocation3 + $0xe10] sm:$0xff]
    %v543 = vld [vmem:[#allocation3 + $0xe18] sm:$0xff]
    %v544 = vld [vmem:[#allocation3 + $0xe20] sm:$0xff]
    %v545 = vld [vmem:[#allocation3 + $0xe28] sm:$0xff]
    %v546 = vld [vmem:[#allocation3 + $0xe30] sm:$0xff]
    %v547 = vld [vmem:[#allocation3 + $0xe38] sm:$0xff]
    %v548 = vld [vmem:[#allocation3 + $0xe40] sm:$0xff]
    %v549 = vld [vmem:[#allocation3 + $0xe48] sm:$0xff]
    %v550 = vld [vmem:[#allocation3 + $0xe50] sm:$0xff]
    %v551 = vld [vmem:[#allocation3 + $0xe58] sm:$0xff]
    %v552 = vld [vmem:[#allocation3 + $0xe60] sm:$0xff]
    %v553 = vld [vmem:[#allocation3 + $0xe68] sm:$0xff]
    %v554 = vld [vmem:[#allocation3 + $0xe70] sm:$0xff]
    %v555 = vld [vmem:[#allocation3 + $0xe78] sm:$0xff]
    %v556 = vld [vmem:[#allocation3 + $0xe80] sm:$0xff]
    %v557 = vld [vmem:[#allocation3 + $0xe88] sm:$0xff]
    %v558 = vld [vmem:[#allocation3 + $0xe90] sm:$0xff]
    %v559 = vld [vmem:[#allocation3 + $0xe98] sm:$0xff]
    %v560 = vld [vmem:[#allocation3 + $0xea0] sm:$0xff]
    %v561 = vld [vmem:[#allocation3 + $0xea8] sm:$0xff]
    %v562 = vld [vmem:[#allocation3 + $0xeb0] sm:$0xff]
    %v563 = vld [vmem:[#allocation3 + $0xeb8] sm:$0xff]
    %v564 = vld [vmem:[#allocation3 + $0xec0] sm:$0xff]
    %v565 = vld [vmem:[#allocation3 + $0xec8] sm:$0xff]
    %v566 = vld [vmem:[#allocation3 + $0xed0] sm:$0xff]
    %v567 = vld [vmem:[#allocation3 + $0xed8] sm:$0xff]
    %v568 = vld [vmem:[#allocation3 + $0xee0] sm:$0xff]
    %v569 = vld [vmem:[#allocation3 + $0xee8] sm:$0xff]
    %v570 = vld [vmem:[#allocation3 + $0xef0] sm:$0xff]
    %v571 = vld [vmem:[#allocation3 + $0xef8] sm:$0xff]
    %v572 = vld [vmem:[#allocation3 + $0xf00] sm:$0xff]
    %v573 = vld [vmem:[#allocation3 + $0xf08] sm:$0xff]
    %v574 = vld [vmem:[#allocation3 + $0xf10] sm:$0xff]
    %v575 = vld [vmem:[#allocation3 + $0xf18] sm:$0xff]
    %v576 = vld [vmem:[#allocation3 + $0xf20] sm:$0xff]
    %v577 = vld [vmem:[#allocation3 + $0xf28] sm:$0xff]
    %v578 = vld [vmem:[#allocation3 + $0xf30] sm:$0xff]
    %v579 = vld [vmem:[#allocation3 + $0xf38] sm:$0xff]
    %v580 = vld [vmem:[#allocation3 + $0xf40] sm:$0xff]
    %v581 = vld [vmem:[#allocation3 + $0xf48] sm:$0xff]
    %v582 = vld [vmem:[#allocation3 + $0xf50] sm:$0xff]
    %v583 = vld [vmem:[#allocation3 + $0xf58] sm:$0xff]
    %v584 = vld [vmem:[#allocation3 + $0xf60] sm:$0xff]
    %v585 = vld [vmem:[#allocation3 + $0xf68] sm:$0xff]
    %v586 = vld [vmem:[#allocation3 + $0xf70] sm:$0xff]
    %v587 = vld [vmem:[#allocation3 + $0xf78] sm:$0xff]
    %v588 = vld [vmem:[#allocation3 + $0xf80] sm:$0xff]
    %v589 = vld [vmem:[#allocation3 + $0xf88] sm:$0xff]
    %v590 = vld [vmem:[#allocation3 + $0xf90] sm:$0xff]
    %v591 = vld [vmem:[#allocation3 + $0xf98] sm:$0xff]
    %v592 = vld [vmem:[#allocation3 + $0xfa0] sm:$0xff]
    %v593 = vld [vmem:[#allocation3 + $0xfa8] sm:$0xff]
    %v594 = vld [vmem:[#allocation3 + $0xfb0] sm:$0xff]
    %v595 = vld [vmem:[#allocation3 + $0xfb8] sm:$0xff]
    %v596 = vld [vmem:[#allocation3 + $0xfc0] sm:$0xff]
    %v597 = vld [vmem:[#allocation3 + $0xfc8] sm:$0xff]
    %v598 = vld [vmem:[#allocation3 + $0xfd0] sm:$0xff]
    %v599 = vld [vmem:[#allocation3 + $0xfd8] sm:$0xff]
    %v600 = vld [vmem:[#allocation3 + $0xfe0] sm:$0xff]
    %v601 = vld [vmem:[#allocation3 + $0xfe8] sm:$0xff]
    %v602 = vld [vmem:[#allocation3 + $0xff0] sm:$0xff]
    %v603 = vld [vmem:[#allocation3 + $0xff8] sm:$0xff]
    %v604 = vld [vmem:[#allocation2] sm:$0xff]
    %v605 = vld [vmem:[#allocation2 + $0x8] sm:$0xff]
    %v608 = vcombine.high %v604, %v604
    %v610 = vunpack.c.l.s4 1983009808
    %v611 = vunpack.c.0.s8 %v610
    %v612 = vlaneseq
    %v613 = vshrl.u32 %v612, 7
    %v614 = vsub.s32 %v611, %v613
    %v615 = vrot.slane %v604, %v614
    %v617 = vunpack.c.l.s4 1983009808
    %v618 = vunpack.c.0.s8 %v617
    %v619 = vlaneseq
    %v620 = vshrl.u32 %v619, 7
    %v621 = vsub.s32 %v618, %v620
    %v622 = vrot.slane %v608, %v621
    %v623 = vcombine.high %v615, %v615
    %v624 = vcombine.high %v622, %v622
    %v625 = vcombine.high %v605, %v605
    %v627 = vunpack.c.l.s4 1983009808
    %v628 = vunpack.c.0.s8 %v627
    %v629 = vlaneseq
    %v630 = vshrl.u32 %v629, 7
    %v631 = vsub.s32 %v628, %v630
    %v632 = vrot.slane %v605, %v631
    %v634 = vunpack.c.l.s4 1983009808
    %v635 = vunpack.c.0.s8 %v634
    %v636 = vlaneseq
    %v637 = vshrl.u32 %v636, 7
    %v638 = vsub.s32 %v635, %v637
    %v639 = vrot.slane %v625, %v638
    %v640 = vcombine.high %v632, %v632
    %v641 = vcombine.high %v639, %v639
    %v650 = vpack.c.bf16 %v615, %v615
    %v651 = vpack.c.bf16 %v623, %v623
    %v652 = vpack.c.bf16 %v622, %v622
    %v653 = vpack.c.bf16 %v624, %v624
    %v654 = vpack.c.bf16 %v632, %v632
    %v655 = vpack.c.bf16 %v640, %v640
    %v656 = vpack.c.bf16 %v639, %v639
    %v657 = vpack.c.bf16 %v641, %v641
    %658 = vmatprep.subr.bf16.mxu0 %v93
    %659 = vmatpush1.bf16.msra.mxu0 %v92
    %660 = vmatprep.subr.bf16.mxu0 %v101
    %661 = vmatpush1.bf16.msra.mxu0 %v100
    %662 = vmatprep.subr.bf16.mxu0 %v109
    %663 = vmatpush1.bf16.msra.mxu0 %v108
    %664 = vmatprep.subr.bf16.mxu0 %v117
    %665 = vmatpush1.bf16.msra.mxu0 %v116
    %666 = vmatprep.subr.bf16.mxu0 %v125
    %667 = vmatpush1.bf16.msra.mxu0 %v124
    %668 = vmatprep.subr.bf16.mxu0 %v133
    %669 = vmatpush1.bf16.msra.mxu0 %v132
    %670 = vmatprep.subr.bf16.mxu0 %v141
    %671 = vmatpush1.bf16.msra.mxu0 %v140
    %672 = vmatprep.subr.bf16.mxu0 %v149
    %673 = vmatpush1.bf16.msra.mxu0 %v148
    %674 = vmatprep.subr.bf16.mxu0 %v157
    %675 = vmatpush1.bf16.msra.mxu0 %v156
    %676 = vmatprep.subr.bf16.mxu0 %v165
    %677 = vmatpush1.bf16.msra.mxu0 %v164
    %678 = vmatprep.subr.bf16.mxu0 %v173
    %679 = vmatpush1.bf16.msra.mxu0 %v172
    %680 = vmatprep.subr.bf16.mxu0 %v181
    %681 = vmatpush1.bf16.msra.mxu0 %v180
    %682 = vmatprep.subr.bf16.mxu0 %v189
    %683 = vmatpush1.bf16.msra.mxu0 %v188
    %684 = vmatprep.subr.bf16.mxu0 %v197
    %685 = vmatpush1.bf16.msra.mxu0 %v196
    %686 = vmatprep.subr.bf16.mxu0 %v205
    %687 = vmatpush1.bf16.msra.mxu0 %v204
    %688 = vmatprep.subr.bf16.mxu0 %v213
    %689 = vmatpush1.bf16.msra.mxu0 %v212
    %690 = vmatprep.mubr.bf16.mxu0 %v651
    %691 = vmatmul.mubr.bf16.gmra.mrb[0].mxu0 %v650
    %v692 = vpop.f32.mrb[0].mxu0
    %v693 = vadd.f32 0.0, %v692
    %v694 = vpop.f32.mrb[0].mxu0
    %v695 = vadd.f32 0.0, %v694
    %v696 = vpop.f32.mrb[0].mxu0
    %v697 = vpop.f32.mrb[0].mxu0
    %698 = vdwg.mxu0
    %699 = vmatprep.subr.bf16.mxu0 %v221
    %700 = vmatpush1.bf16.msra.mxu0 %v220
    %701 = vmatprep.subr.bf16.mxu0 %v229
    %702 = vmatpush1.bf16.msra.mxu0 %v228
    %703 = vmatprep.subr.bf16.mxu0 %v237
    %704 = vmatpush1.bf16.msra.mxu0 %v236
    %705 = vmatprep.subr.bf16.mxu0 %v245
    %706 = vmatpush1.bf16.msra.mxu0 %v244
    %707 = vmatprep.subr.bf16.mxu0 %v253
    %708 = vmatpush1.bf16.msra.mxu0 %v252
    %709 = vmatprep.subr.bf16.mxu0 %v261
    %710 = vmatpush1.bf16.msra.mxu0 %v260
    %711 = vmatprep.subr.bf16.mxu0 %v269
    %712 = vmatpush1.bf16.msra.mxu0 %v268
    %713 = vmatprep.subr.bf16.mxu0 %v277
    %714 = vmatpush1.bf16.msra.mxu0 %v276
    %715 = vmatprep.subr.bf16.mxu0 %v285
    %716 = vmatpush1.bf16.msra.mxu0 %v284
    %717 = vmatprep.subr.bf16.mxu0 %v293
    %718 = vmatpush1.bf16.msra.mxu0 %v292
    %719 = vmatprep.subr.bf16.mxu0 %v301
    %720 = vmatpush1.bf16.msra.mxu0 %v300
    %721 = vmatprep.subr.bf16.mxu0 %v309
    %722 = vmatpush1.bf16.msra.mxu0 %v308
    %723 = vmatprep.subr.bf16.mxu0 %v317
    %724 = vmatpush1.bf16.msra.mxu0 %v316
    %725 = vmatprep.subr.bf16.mxu0 %v325
    %726 = vmatpush1.bf16.msra.mxu0 %v324
    %727 = vmatprep.subr.bf16.mxu0 %v333
    %728 = vmatpush1.bf16.msra.mxu0 %v332
    %729 = vmatprep.subr.bf16.mxu0 %v341
    %730 = vmatpush1.bf16.msra.mxu0 %v340
    %731 = vmatprep.mubr.bf16.mxu0 %v653
    %732 = vmatmul.mubr.bf16.gmra.mrb[0].mxu0 %v652
    %v733 = vpop.f32.mrb[0].mxu0
    %v734 = vadd.f32 %v693, %v733
    %v735 = vpop.f32.mrb[0].mxu0
    %v736 = vadd.f32 %v695, %v735
    %v737 = vpop.f32.mrb[0].mxu0
    %v738 = vpop.f32.mrb[0].mxu0
    %739 = vdwg.mxu0
    %740 = vmatprep.subr.bf16.mxu0 %v349
    %741 = vmatpush1.bf16.msra.mxu0 %v348
    %742 = vmatprep.subr.bf16.mxu0 %v357
    %743 = vmatpush1.bf16.msra.mxu0 %v356
    %744 = vmatprep.subr.bf16.mxu0 %v365
    %745 = vmatpush1.bf16.msra.mxu0 %v364
    %746 = vmatprep.subr.bf16.mxu0 %v373
    %747 = vmatpush1.bf16.msra.mxu0 %v372
    %748 = vmatprep.subr.bf16.mxu0 %v381
    %749 = vmatpush1.bf16.msra.mxu0 %v380
    %750 = vmatprep.subr.bf16.mxu0 %v389
    %751 = vmatpush1.bf16.msra.mxu0 %v388
    %752 = vmatprep.subr.bf16.mxu0 %v397
    %753 = vmatpush1.bf16.msra.mxu0 %v396
    %754 = vmatprep.subr.bf16.mxu0 %v405
    %755 = vmatpush1.bf16.msra.mxu0 %v404
    %756 = vmatprep.subr.bf16.mxu0 %v413
    %757 = vmatpush1.bf16.msra.mxu0 %v412
    %758 = vmatprep.subr.bf16.mxu0 %v421
    %759 = vmatpush1.bf16.msra.mxu0 %v420
    %760 = vmatprep.subr.bf16.mxu0 %v429
    %761 = vmatpush1.bf16.msra.mxu0 %v428
    %762 = vmatprep.subr.bf16.mxu0 %v437
    %763 = vmatpush1.bf16.msra.mxu0 %v436
    %764 = vmatprep.subr.bf16.mxu0 %v445
    %765 = vmatpush1.bf16.msra.mxu0 %v444
    %766 = vmatprep.subr.bf16.mxu0 %v453
    %767 = vmatpush1.bf16.msra.mxu0 %v452
    %768 = vmatprep.subr.bf16.mxu0 %v461
    %769 = vmatpush1.bf16.msra.mxu0 %v460
    %770 = vmatprep.subr.bf16.mxu0 %v469
    %771 = vmatpush1.bf16.msra.mxu0 %v468
    %772 = vmatprep.mubr.bf16.mxu0 %v655
    %773 = vmatmul.mubr.bf16.gmra.mrb[0].mxu0 %v654
    %v774 = vpop.f32.mrb[0].mxu0
    %v775 = vadd.f32 %v734, %v774
    %v776 = vpop.f32.mrb[0].mxu0
    %v777 = vadd.f32 %v736, %v776
    %v778 = vpop.f32.mrb[0].mxu0
    %v779 = vpop.f32.mrb[0].mxu0
    %780 = vdwg.mxu0
    %781 = vmatprep.subr.bf16.mxu0 %v477
    %782 = vmatpush1.bf16.msra.mxu0 %v476
    %783 = vmatprep.subr.bf16.mxu0 %v485
    %784 = vmatpush1.bf16.msra.mxu0 %v484
    %785 = vmatprep.subr.bf16.mxu0 %v493
    %786 = vmatpush1.bf16.msra.mxu0 %v492
    %787 = vmatprep.subr.bf16.mxu0 %v501
    %788 = vmatpush1.bf16.msra.mxu0 %v500
    %789 = vmatprep.subr.bf16.mxu0 %v509
    %790 = vmatpush1.bf16.msra.mxu0 %v508
    %791 = vmatprep.subr.bf16.mxu0 %v517
    %792 = vmatpush1.bf16.msra.mxu0 %v516
    %793 = vmatprep.subr.bf16.mxu0 %v525
    %794 = vmatpush1.bf16.msra.mxu0 %v524
    %795 = vmatprep.subr.bf16.mxu0 %v533
    %796 = vmatpush1.bf16.msra.mxu0 %v532
    %797 = vmatprep.subr.bf16.mxu0 %v541
    %798 = vmatpush1.bf16.msra.mxu0 %v540
    %799 = vmatprep.subr.bf16.mxu0 %v549
    %800 = vmatpush1.bf16.msra.mxu0 %v548
    %801 = vmatprep.subr.bf16.mxu0 %v557
    %802 = vmatpush1.bf16.msra.mxu0 %v556
    %803 = vmatprep.subr.bf16.mxu0 %v565
    %804 = vmatpush1.bf16.msra.mxu0 %v564
    %805 = vmatprep.subr.bf16.mxu0 %v573
    %806 = vmatpush1.bf16.msra.mxu0 %v572
    %807 = vmatprep.subr.bf16.mxu0 %v581
    %808 = vmatpush1.bf16.msra.mxu0 %v580
    %809 = vmatprep.subr.bf16.mxu0 %v589
    %810 = vmatpush1.bf16.msra.mxu0 %v588
    %811 = vmatprep.subr.bf16.mxu0 %v597
    %812 = vmatpush1.bf16.msra.mxu0 %v596
    %813 = vmatprep.mubr.bf16.mxu0 %v657
    %814 = vmatmul.mubr.bf16.gmra.mrb[0].mxu0 %v656
    %v815 = vpop.f32.mrb[0].mxu0
    %v816 = vadd.f32 %v775, %v815
    %v817 = vpop.f32.mrb[0].mxu0
    %v818 = vadd.f32 %v777, %v817
    %v819 = vpop.f32.mrb[0].mxu0
    %v820 = vpop.f32.mrb[0].mxu0
    %821 = vdwg.mxu0
    %822 = vmatprep.subr.bf16.mxu0 %v95
    %823 = vmatpush1.bf16.msra.mxu0 %v94
    %824 = vmatprep.subr.bf16.mxu0 %v103
    %825 = vmatpush1.bf16.msra.mxu0 %v102
    %826 = vmatprep.subr.bf16.mxu0 %v111
    %827 = vmatpush1.bf16.msra.mxu0 %v110
    %828 = vmatprep.subr.bf16.mxu0 %v119
    %829 = vmatpush1.bf16.msra.mxu0 %v118
    %830 = vmatprep.subr.bf16.mxu0 %v127
    %831 = vmatpush1.bf16.msra.mxu0 %v126
    %832 = vmatprep.subr.bf16.mxu0 %v135
    %833 = vmatpush1.bf16.msra.mxu0 %v134
    %834 = vmatprep.subr.bf16.mxu0 %v143
    %835 = vmatpush1.bf16.msra.mxu0 %v142
    %836 = vmatprep.subr.bf16.mxu0 %v151
    %837 = vmatpush1.bf16.msra.mxu0 %v150
    %838 = vmatprep.subr.bf16.mxu0 %v159
    %839 = vmatpush1.bf16.msra.mxu0 %v158
    %840 = vmatprep.subr.bf16.mxu0 %v167
    %841 = vmatpush1.bf16.msra.mxu0 %v166
    %842 = vmatprep.subr.bf16.mxu0 %v175
    %843 = vmatpush1.bf16.msra.mxu0 %v174
    %844 = vmatprep.subr.bf16.mxu0 %v183
    %845 = vmatpush1.bf16.msra.mxu0 %v182
    %846 = vmatprep.subr.bf16.mxu0 %v191
    %847 = vmatpush1.bf16.msra.mxu0 %v190
    %848 = vmatprep.subr.bf16.mxu0 %v199
    %849 = vmatpush1.bf16.msra.mxu0 %v198
    %850 = vmatprep.subr.bf16.mxu0 %v207
    %851 = vmatpush1.bf16.msra.mxu0 %v206
    %852 = vmatprep.subr.bf16.mxu0 %v215
    %853 = vmatpush1.bf16.msra.mxu0 %v214
    %854 = vmatprep.mubr.bf16.mxu0 %v651
    %855 = vmatmul.mubr.bf16.gmra.mrb[0].mxu0 %v650
    %v856 = vpop.f32.mrb[0].mxu0
    %v857 = vadd.f32 0.0, %v856
    %v858 = vpop.f32.mrb[0].mxu0
    %v859 = vadd.f32 0.0, %v858
    %v860 = vpop.f32.mrb[0].mxu0
    %v861 = vpop.f32.mrb[0].mxu0
    %862 = vdwg.mxu0
    %863 = vmatprep.subr.bf16.mxu0 %v223
    %864 = vmatpush1.bf16.msra.mxu0 %v222
    %865 = vmatprep.subr.bf16.mxu0 %v231
    %866 = vmatpush1.bf16.msra.mxu0 %v230
    %867 = vmatprep.subr.bf16.mxu0 %v239
    %868 = vmatpush1.bf16.msra.mxu0 %v238
    %869 = vmatprep.subr.bf16.mxu0 %v247
    %870 = vmatpush1.bf16.msra.mxu0 %v246
    %871 = vmatprep.subr.bf16.mxu0 %v255
    %872 = vmatpush1.bf16.msra.mxu0 %v254
    %873 = vmatprep.subr.bf16.mxu0 %v263
    %874 = vmatpush1.bf16.msra.mxu0 %v262
    %875 = vmatprep.subr.bf16.mxu0 %v271
    %876 = vmatpush1.bf16.msra.mxu0 %v270
    %877 = vmatprep.subr.bf16.mxu0 %v279
    %878 = vmatpush1.bf16.msra.mxu0 %v278
    %879 = vmatprep.subr.bf16.mxu0 %v287
    %880 = vmatpush1.bf16.msra.mxu0 %v286
    %881 = vmatprep.subr.bf16.mxu0 %v295
    %882 = vmatpush1.bf16.msra.mxu0 %v294
    %883 = vmatprep.subr.bf16.mxu0 %v303
    %884 = vmatpush1.bf16.msra.mxu0 %v302
    %885 = vmatprep.subr.bf16.mxu0 %v311
    %886 = vmatpush1.bf16.msra.mxu0 %v310
    %887 = vmatprep.subr.bf16.mxu0 %v319
    %888 = vmatpush1.bf16.msra.mxu0 %v318
    %889 = vmatprep.subr.bf16.mxu0 %v327
    %890 = vmatpush1.bf16.msra.mxu0 %v326
    %891 = vmatprep.subr.bf16.mxu0 %v335
    %892 = vmatpush1.bf16.msra.mxu0 %v334
    %893 = vmatprep.subr.bf16.mxu0 %v343
    %894 = vmatpush1.bf16.msra.mxu0 %v342
    %895 = vmatprep.mubr.bf16.mxu0 %v653
    %896 = vmatmul.mubr.bf16.gmra.mrb[0].mxu0 %v652
    %v897 = vpop.f32.mrb[0].mxu0
    %v898 = vadd.f32 %v857, %v897
    %v899 = vpop.f32.mrb[0].mxu0
    %v900 = vadd.f32 %v859, %v899
    %v901 = vpop.f32.mrb[0].mxu0
    %v902 = vpop.f32.mrb[0].mxu0
    %903 = vdwg.mxu0
    %904 = vmatprep.subr.bf16.mxu0 %v351
    %905 = vmatpush1.bf16.msra.mxu0 %v350
    %906 = vmatprep.subr.bf16.mxu0 %v359
    %907 = vmatpush1.bf16.msra.mxu0 %v358
    %908 = vmatprep.subr.bf16.mxu0 %v367
    %909 = vmatpush1.bf16.msra.mxu0 %v366
    %910 = vmatprep.subr.bf16.mxu0 %v375
    %911 = vmatpush1.bf16.msra.mxu0 %v374
    %912 = vmatprep.subr.bf16.mxu0 %v383
    %913 = vmatpush1.bf16.msra.mxu0 %v382
    %914 = vmatprep.subr.bf16.mxu0 %v391
    %915 = vmatpush1.bf16.msra.mxu0 %v390
    %916 = vmatprep.subr.bf16.mxu0 %v399
    %917 = vmatpush1.bf16.msra.mxu0 %v398
    %918 = vmatprep.subr.bf16.mxu0 %v407
    %919 = vmatpush1.bf16.msra.mxu0 %v406
    %920 = vmatprep.subr.bf16.mxu0 %v415
    %921 = vmatpush1.bf16.msra.mxu0 %v414
    %922 = vmatprep.subr.bf16.mxu0 %v423
    %923 = vmatpush1.bf16.msra.mxu0 %v422
    %924 = vmatprep.subr.bf16.mxu0 %v431
    %925 = vmatpush1.bf16.msra.mxu0 %v430
    %926 = vmatprep.subr.bf16.mxu0 %v439
    %927 = vmatpush1.bf16.msra.mxu0 %v438
    %928 = vmatprep.subr.bf16.mxu0 %v447
    %929 = vmatpush1.bf16.msra.mxu0 %v446
    %930 = vmatprep.subr.bf16.mxu0 %v455
    %931 = vmatpush1.bf16.msra.mxu0 %v454
    %932 = vmatprep.subr.bf16.mxu0 %v463
    %933 = vmatpush1.bf16.msra.mxu0 %v462
    %934 = vmatprep.subr.bf16.mxu0 %v471
    %935 = vmatpush1.bf16.msra.mxu0 %v470
    %936 = vmatprep.mubr.bf16.mxu0 %v655
    %937 = vmatmul.mubr.bf16.gmra.mrb[0].mxu0 %v654
    %v938 = vpop.f32.mrb[0].mxu0
    %v939 = vadd.f32 %v898, %v938
    %v940 = vpop.f32.mrb[0].mxu0
    %v941 = vadd.f32 %v900, %v940
    %v942 = vpop.f32.mrb[0].mxu0
    %v943 = vpop.f32.mrb[0].mxu0
    %944 = vdwg.mxu0
    %945 = vmatprep.subr.bf16.mxu0 %v479
    %946 = vmatpush1.bf16.msra.mxu0 %v478
    %947 = vmatprep.subr.bf16.mxu0 %v487
    %948 = vmatpush1.bf16.msra.mxu0 %v486
    %949 = vmatprep.subr.bf16.mxu0 %v495
    %950 = vmatpush1.bf16.msra.mxu0 %v494
    %951 = vmatprep.subr.bf16.mxu0 %v503
    %952 = vmatpush1.bf16.msra.mxu0 %v502
    %953 = vmatprep.subr.bf16.mxu0 %v511
    %954 = vmatpush1.bf16.msra.mxu0 %v510
    %955 = vmatprep.subr.bf16.mxu0 %v519
    %956 = vmatpush1.bf16.msra.mxu0 %v518
    %957 = vmatprep.subr.bf16.mxu0 %v527
    %958 = vmatpush1.bf16.msra.mxu0 %v526
    %959 = vmatprep.subr.bf16.mxu0 %v535
    %960 = vmatpush1.bf16.msra.mxu0 %v534
    %961 = vmatprep.subr.bf16.mxu0 %v543
    %962 = vmatpush1.bf16.msra.mxu0 %v542
    %963 = vmatprep.subr.bf16.mxu0 %v551
    %964 = vmatpush1.bf16.msra.mxu0 %v550
    %965 = vmatprep.subr.bf16.mxu0 %v559
    %966 = vmatpush1.bf16.msra.mxu0 %v558
    %967 = vmatprep.subr.bf16.mxu0 %v567
    %968 = vmatpush1.bf16.msra.mxu0 %v566
    %969 = vmatprep.subr.bf16.mxu0 %v575
    %970 = vmatpush1.bf16.msra.mxu0 %v574
    %971 = vmatprep.subr.bf16.mxu0 %v583
    %972 = vmatpush1.bf16.msra.mxu0 %v582
    %973 = vmatprep.subr.bf16.mxu0 %v591
    %974 = vmatpush1.bf16.msra.mxu0 %v590
    %975 = vmatprep.subr.bf16.mxu0 %v599
    %976 = vmatpush1.bf16.msra.mxu0 %v598
    %977 = vmatprep.mubr.bf16.mxu0 %v657
    %978 = vmatmul.mubr.bf16.gmra.mrb[0].mxu0 %v656
    %v979 = vpop.f32.mrb[0].mxu0
    %v980 = vadd.f32 %v939, %v979
    %v981 = vpop.f32.mrb[0].mxu0
    %v982 = vadd.f32 %v941, %v981
    %v983 = vpop.f32.mrb[0].mxu0
    %v984 = vpop.f32.mrb[0].mxu0
    %985 = vdwg.mxu0
    %986 = vmatprep.subr.bf16.mxu0 %v97
    %987 = vmatpush1.bf16.msra.mxu0 %v96
    %988 = vmatprep.subr.bf16.mxu0 %v105
    %989 = vmatpush1.bf16.msra.mxu0 %v104
    %990 = vmatprep.subr.bf16.mxu0 %v113
    %991 = vmatpush1.bf16.msra.mxu0 %v112
    %992 = vmatprep.subr.bf16.mxu0 %v121
    %993 = vmatpush1.bf16.msra.mxu0 %v120
    %994 = vmatprep.subr.bf16.mxu0 %v129
    %995 = vmatpush1.bf16.msra.mxu0 %v128
    %996 = vmatprep.subr.bf16.mxu0 %v137
    %997 = vmatpush1.bf16.msra.mxu0 %v136
    %998 = vmatprep.subr.bf16.mxu0 %v145
    %999 = vmatpush1.bf16.msra.mxu0 %v144
    %1000 = vmatprep.subr.bf16.mxu0 %v153
    %1001 = vmatpush1.bf16.msra.mxu0 %v152
    %1002 = vmatprep.subr.bf16.mxu0 %v161
    %1003 = vmatpush1.bf16.msra.mxu0 %v160
    %1004 = vmatprep.subr.bf16.mxu0 %v169
    %1005 = vmatpush1.bf16.msra.mxu0 %v168
    %1006 = vmatprep.subr.bf16.mxu0 %v177
    %1007 = vmatpush1.bf16.msra.mxu0 %v176
    %1008 = vmatprep.subr.bf16.mxu0 %v185
    %1009 = vmatpush1.bf16.msra.mxu0 %v184
    %1010 = vmatprep.subr.bf16.mxu0 %v193
    %1011 = vmatpush1.bf16.msra.mxu0 %v192
    %1012 = vmatprep.subr.bf16.mxu0 %v201
    %1013 = vmatpush1.bf16.msra.mxu0 %v200
    %1014 = vmatprep.subr.bf16.mxu0 %v209
    %1015 = vmatpush1.bf16.msra.mxu0 %v208
    %1016 = vmatprep.subr.bf16.mxu0 %v217
    %1017 = vmatpush1.bf16.msra.mxu0 %v216
    %1018 = vmatprep.mubr.bf16.mxu0 %v651
    %1019 = vmatmul.mubr.bf16.gmra.mrb[0].mxu0 %v650
    %v1020 = vpop.f32.mrb[0].mxu0
    %v1021 = vadd.f32 0.0, %v1020
    %v1022 = vpop.f32.mrb[0].mxu0
    %v1023 = vadd.f32 0.0, %v1022
    %v1024 = vpop.f32.mrb[0].mxu0
    %v1025 = vpop.f32.mrb[0].mxu0
    %1026 = vdwg.mxu0
    %1027 = vmatprep.subr.bf16.mxu0 %v225
    %1028 = vmatpush1.bf16.msra.mxu0 %v224
    %1029 = vmatprep.subr.bf16.mxu0 %v233
    %1030 = vmatpush1.bf16.msra.mxu0 %v232
    %1031 = vmatprep.subr.bf16.mxu0 %v241
    %1032 = vmatpush1.bf16.msra.mxu0 %v240
    %1033 = vmatprep.subr.bf16.mxu0 %v249
    %1034 = vmatpush1.bf16.msra.mxu0 %v248
    %1035 = vmatprep.subr.bf16.mxu0 %v257
    %1036 = vmatpush1.bf16.msra.mxu0 %v256
    %1037 = vmatprep.subr.bf16.mxu0 %v265
    %1038 = vmatpush1.bf16.msra.mxu0 %v264
    %1039 = vmatprep.subr.bf16.mxu0 %v273
    %1040 = vmatpush1.bf16.msra.mxu0 %v272
    %1041 = vmatprep.subr.bf16.mxu0 %v281
    %1042 = vmatpush1.bf16.msra.mxu0 %v280
    %1043 = vmatprep.subr.bf16.mxu0 %v289
    %1044 = vmatpush1.bf16.msra.mxu0 %v288
    %1045 = vmatprep.subr.bf16.mxu0 %v297
    %1046 = vmatpush1.bf16.msra.mxu0 %v296
    %1047 = vmatprep.subr.bf16.mxu0 %v305
    %1048 = vmatpush1.bf16.msra.mxu0 %v304
    %1049 = vmatprep.subr.bf16.mxu0 %v313
    %1050 = vmatpush1.bf16.msra.mxu0 %v312
    %1051 = vmatprep.subr.bf16.mxu0 %v321
    %1052 = vmatpush1.bf16.msra.mxu0 %v320
    %1053 = vmatprep.subr.bf16.mxu0 %v329
    %1054 = vmatpush1.bf16.msra.mxu0 %v328
    %1055 = vmatprep.subr.bf16.mxu0 %v337
    %1056 = vmatpush1.bf16.msra.mxu0 %v336
    %1057 = vmatprep.subr.bf16.mxu0 %v345
    %1058 = vmatpush1.bf16.msra.mxu0 %v344
    %1059 = vmatprep.mubr.bf16.mxu0 %v653
    %1060 = vmatmul.mubr.bf16.gmra.mrb[0].mxu0 %v652
    %v1061 = vpop.f32.mrb[0].mxu0
    %v1062 = vadd.f32 %v1021, %v1061
    %v1063 = vpop.f32.mrb[0].mxu0
    %v1064 = vadd.f32 %v1023, %v1063
    %v1065 = vpop.f32.mrb[0].mxu0
    %v1066 = vpop.f32.mrb[0].mxu0
    %1067 = vdwg.mxu0
    %1068 = vmatprep.subr.bf16.mxu0 %v353
    %1069 = vmatpush1.bf16.msra.mxu0 %v352
    %1070 = vmatprep.subr.bf16.mxu0 %v361
    %1071 = vmatpush1.bf16.msra.mxu0 %v360
    %1072 = vmatprep.subr.bf16.mxu0 %v369
    %1073 = vmatpush1.bf16.msra.mxu0 %v368
    %1074 = vmatprep.subr.bf16.mxu0 %v377
    %1075 = vmatpush1.bf16.msra.mxu0 %v376
    %1076 = vmatprep.subr.bf16.mxu0 %v385
    %1077 = vmatpush1.bf16.msra.mxu0 %v384
    %1078 = vmatprep.subr.bf16.mxu0 %v393
    %1079 = vmatpush1.bf16.msra.mxu0 %v392
    %1080 = vmatprep.subr.bf16.mxu0 %v401
    %1081 = vmatpush1.bf16.msra.mxu0 %v400
    %1082 = vmatprep.subr.bf16.mxu0 %v409
    %1083 = vmatpush1.bf16.msra.mxu0 %v408
    %1084 = vmatprep.subr.bf16.mxu0 %v417
    %1085 = vmatpush1.bf16.msra.mxu0 %v416
    %1086 = vmatprep.subr.bf16.mxu0 %v425
    %1087 = vmatpush1.bf16.msra.mxu0 %v424
    %1088 = vmatprep.subr.bf16.mxu0 %v433
    %1089 = vmatpush1.bf16.msra.mxu0 %v432
    %1090 = vmatprep.subr.bf16.mxu0 %v441
    %1091 = vmatpush1.bf16.msra.mxu0 %v440
    %1092 = vmatprep.subr.bf16.mxu0 %v449
    %1093 = vmatpush1.bf16.msra.mxu0 %v448
    %1094 = vmatprep.subr.bf16.mxu0 %v457
    %1095 = vmatpush1.bf16.msra.mxu0 %v456
    %1096 = vmatprep.subr.bf16.mxu0 %v465
    %1097 = vmatpush1.bf16.msra.mxu0 %v464
    %1098 = vmatprep.subr.bf16.mxu0 %v473
    %1099 = vmatpush1.bf16.msra.mxu0 %v472
    %1100 = vmatprep.mubr.bf16.mxu0 %v655
    %1101 = vmatmul.mubr.bf16.gmra.mrb[0].mxu0 %v654
    %v1102 = vpop.f32.mrb[0].mxu0
    %v1103 = vadd.f32 %v1062, %v1102
    %v1104 = vpop.f32.mrb[0].mxu0
    %v1105 = vadd.f32 %v1064, %v1104
    %v1106 = vpop.f32.mrb[0].mxu0
    %v1107 = vpop.f32.mrb[0].mxu0
    %1108 = vdwg.mxu0
    %1109 = vmatprep.subr.bf16.mxu0 %v481
    %1110 = vmatpush1.bf16.msra.mxu0 %v480
    %1111 = vmatprep.subr.bf16.mxu0 %v489
    %1112 = vmatpush1.bf16.msra.mxu0 %v488
    %1113 = vmatprep.subr.bf16.mxu0 %v497
    %1114 = vmatpush1.bf16.msra.mxu0 %v496
    %1115 = vmatprep.subr.bf16.mxu0 %v505
    %1116 = vmatpush1.bf16.msra.mxu0 %v504
    %1117 = vmatprep.subr.bf16.mxu0 %v513
    %1118 = vmatpush1.bf16.msra.mxu0 %v512
    %1119 = vmatprep.subr.bf16.mxu0 %v521
    %1120 = vmatpush1.bf16.msra.mxu0 %v520
    %1121 = vmatprep.subr.bf16.mxu0 %v529
    %1122 = vmatpush1.bf16.msra.mxu0 %v528
    %1123 = vmatprep.subr.bf16.mxu0 %v537
    %1124 = vmatpush1.bf16.msra.mxu0 %v536
    %1125 = vmatprep.subr.bf16.mxu0 %v545
    %1126 = vmatpush1.bf16.msra.mxu0 %v544
    %1127 = vmatprep.subr.bf16.mxu0 %v553
    %1128 = vmatpush1.bf16.msra.mxu0 %v552
    %1129 = vmatprep.subr.bf16.mxu0 %v561
    %1130 = vmatpush1.bf16.msra.mxu0 %v560
    %1131 = vmatprep.subr.bf16.mxu0 %v569
    %1132 = vmatpush1.bf16.msra.mxu0 %v568
    %1133 = vmatprep.subr.bf16.mxu0 %v577
    %1134 = vmatpush1.bf16.msra.mxu0 %v576
    %1135 = vmatprep.subr.bf16.mxu0 %v585
    %1136 = vmatpush1.bf16.msra.mxu0 %v584
    %1137 = vmatprep.subr.bf16.mxu0 %v593
    %1138 = vmatpush1.bf16.msra.mxu0 %v592
    %1139 = vmatprep.subr.bf16.mxu0 %v601
    %1140 = vmatpush1.bf16.msra.mxu0 %v600
    %1141 = vmatprep.mubr.bf16.mxu0 %v657
    %1142 = vmatmul.mubr.bf16.gmra.mrb[0].mxu0 %v656
    %v1143 = vpop.f32.mrb[0].mxu0
    %v1144 = vadd.f32 %v1103, %v1143
    %v1145 = vpop.f32.mrb[0].mxu0
    %v1146 = vadd.f32 %v1105, %v1145
    %v1147 = vpop.f32.mrb[0].mxu0
    %v1148 = vpop.f32.mrb[0].mxu0
    %1149 = vdwg.mxu0
    %1150 = vmatprep.subr.bf16.mxu0 %v99
    %1151 = vmatpush1.bf16.msra.mxu0 %v98
    %1152 = vmatprep.subr.bf16.mxu0 %v107
    %1153 = vmatpush1.bf16.msra.mxu0 %v106
    %1154 = vmatprep.subr.bf16.mxu0 %v115
    %1155 = vmatpush1.bf16.msra.mxu0 %v114
    %1156 = vmatprep.subr.bf16.mxu0 %v123
    %1157 = vmatpush1.bf16.msra.mxu0 %v122
    %1158 = vmatprep.subr.bf16.mxu0 %v131
    %1159 = vmatpush1.bf16.msra.mxu0 %v130
    %1160 = vmatprep.subr.bf16.mxu0 %v139
    %1161 = vmatpush1.bf16.msra.mxu0 %v138
    %1162 = vmatprep.subr.bf16.mxu0 %v147
    %1163 = vmatpush1.bf16.msra.mxu0 %v146
    %1164 = vmatprep.subr.bf16.mxu0 %v155
    %1165 = vmatpush1.bf16.msra.mxu0 %v154
    %1166 = vmatprep.subr.bf16.mxu0 %v163
    %1167 = vmatpush1.bf16.msra.mxu0 %v162
    %1168 = vmatprep.subr.bf16.mxu0 %v171
    %1169 = vmatpush1.bf16.msra.mxu0 %v170
    %1170 = vmatprep.subr.bf16.mxu0 %v179
    %1171 = vmatpush1.bf16.msra.mxu0 %v178
    %1172 = vmatprep.subr.bf16.mxu0 %v187
    %1173 = vmatpush1.bf16.msra.mxu0 %v186
    %1174 = vmatprep.subr.bf16.mxu0 %v195
    %1175 = vmatpush1.bf16.msra.mxu0 %v194
    %1176 = vmatprep.subr.bf16.mxu0 %v203
    %1177 = vmatpush1.bf16.msra.mxu0 %v202
    %1178 = vmatprep.subr.bf16.mxu0 %v211
    %1179 = vmatpush1.bf16.msra.mxu0 %v210
    %1180 = vmatprep.subr.bf16.mxu0 %v219
    %1181 = vmatpush1.bf16.msra.mxu0 %v218
    %1182 = vmatprep.mubr.bf16.mxu0 %v651
    %1183 = vmatmul.mubr.bf16.gmra.mrb[0].mxu0 %v650
    %v1184 = vpop.f32.mrb[0].mxu0
    %v1185 = vadd.f32 0.0, %v1184
    %v1186 = vpop.f32.mrb[0].mxu0
    %v1187 = vadd.f32 0.0, %v1186
    %v1188 = vpop.f32.mrb[0].mxu0
    %v1189 = vpop.f32.mrb[0].mxu0
    %1190 = vdwg.mxu0
    %1191 = vmatprep.subr.bf16.mxu0 %v227
    %1192 = vmatpush1.bf16.msra.mxu0 %v226
    %1193 = vmatprep.subr.bf16.mxu0 %v235
    %1194 = vmatpush1.bf16.msra.mxu0 %v234
    %1195 = vmatprep.subr.bf16.mxu0 %v243
    %1196 = vmatpush1.bf16.msra.mxu0 %v242
    %1197 = vmatprep.subr.bf16.mxu0 %v251
    %1198 = vmatpush1.bf16.msra.mxu0 %v250
    %1199 = vmatprep.subr.bf16.mxu0 %v259
    %1200 = vmatpush1.bf16.msra.mxu0 %v258
    %1201 = vmatprep.subr.bf16.mxu0 %v267
    %1202 = vmatpush1.bf16.msra.mxu0 %v266
    %1203 = vmatprep.subr.bf16.mxu0 %v275
    %1204 = vmatpush1.bf16.msra.mxu0 %v274
    %1205 = vmatprep.subr.bf16.mxu0 %v283
    %1206 = vmatpush1.bf16.msra.mxu0 %v282
    %1207 = vmatprep.subr.bf16.mxu0 %v291
    %1208 = vmatpush1.bf16.msra.mxu0 %v290
    %1209 = vmatprep.subr.bf16.mxu0 %v299
    %1210 = vmatpush1.bf16.msra.mxu0 %v298
    %1211 = vmatprep.subr.bf16.mxu0 %v307
    %1212 = vmatpush1.bf16.msra.mxu0 %v306
    %1213 = vmatprep.subr.bf16.mxu0 %v315
    %1214 = vmatpush1.bf16.msra.mxu0 %v314
    %1215 = vmatprep.subr.bf16.mxu0 %v323
    %1216 = vmatpush1.bf16.msra.mxu0 %v322
    %1217 = vmatprep.subr.bf16.mxu0 %v331
    %1218 = vmatpush1.bf16.msra.mxu0 %v330
    %1219 = vmatprep.subr.bf16.mxu0 %v339
    %1220 = vmatpush1.bf16.msra.mxu0 %v338
    %1221 = vmatprep.subr.bf16.mxu0 %v347
    %1222 = vmatpush1.bf16.msra.mxu0 %v346
    %1223 = vmatprep.mubr.bf16.mxu0 %v653
    %1224 = vmatmul.mubr.bf16.gmra.mrb[0].mxu0 %v652
    %v1225 = vpop.f32.mrb[0].mxu0
    %v1226 = vadd.f32 %v1185, %v1225
    %v1227 = vpop.f32.mrb[0].mxu0
    %v1228 = vadd.f32 %v1187, %v1227
    %v1229 = vpop.f32.mrb[0].mxu0
    %v1230 = vpop.f32.mrb[0].mxu0
    %1231 = vdwg.mxu0
    %1232 = vmatprep.subr.bf16.mxu0 %v355
    %1233 = vmatpush1.bf16.msra.mxu0 %v354
    %1234 = vmatprep.subr.bf16.mxu0 %v363
    %1235 = vmatpush1.bf16.msra.mxu0 %v362
    %1236 = vmatprep.subr.bf16.mxu0 %v371
    %1237 = vmatpush1.bf16.msra.mxu0 %v370
    %1238 = vmatprep.subr.bf16.mxu0 %v379
    %1239 = vmatpush1.bf16.msra.mxu0 %v378
    %1240 = vmatprep.subr.bf16.mxu0 %v387
    %1241 = vmatpush1.bf16.msra.mxu0 %v386
    %1242 = vmatprep.subr.bf16.mxu0 %v395
    %1243 = vmatpush1.bf16.msra.mxu0 %v394
    %1244 = vmatprep.subr.bf16.mxu0 %v403
    %1245 = vmatpush1.bf16.msra.mxu0 %v402
    %1246 = vmatprep.subr.bf16.mxu0 %v411
    %1247 = vmatpush1.bf16.msra.mxu0 %v410
    %1248 = vmatprep.subr.bf16.mxu0 %v419
    %1249 = vmatpush1.bf16.msra.mxu0 %v418
    %1250 = vmatprep.subr.bf16.mxu0 %v427
    %1251 = vmatpush1.bf16.msra.mxu0 %v426
    %1252 = vmatprep.subr.bf16.mxu0 %v435
    %1253 = vmatpush1.bf16.msra.mxu0 %v434
    %1254 = vmatprep.subr.bf16.mxu0 %v443
    %1255 = vmatpush1.bf16.msra.mxu0 %v442
    %1256 = vmatprep.subr.bf16.mxu0 %v451
    %1257 = vmatpush1.bf16.msra.mxu0 %v450
    %1258 = vmatprep.subr.bf16.mxu0 %v459
    %1259 = vmatpush1.bf16.msra.mxu0 %v458
    %1260 = vmatprep.subr.bf16.mxu0 %v467
    %1261 = vmatpush1.bf16.msra.mxu0 %v466
    %1262 = vmatprep.subr.bf16.mxu0 %v475
    %1263 = vmatpush1.bf16.msra.mxu0 %v474
    %1264 = vmatprep.mubr.bf16.mxu0 %v655
    %1265 = vmatmul.mubr.bf16.gmra.mrb[0].mxu0 %v654
    %v1266 = vpop.f32.mrb[0].mxu0
    %v1267 = vadd.f32 %v1226, %v1266
    %v1268 = vpop.f32.mrb[0].mxu0
    %v1269 = vadd.f32 %v1228, %v1268
    %v1270 = vpop.f32.mrb[0].mxu0
    %v1271 = vpop.f32.mrb[0].mxu0
    %1272 = vdwg.mxu0
    %1273 = vmatprep.subr.bf16.mxu0 %v483
    %1274 = vmatpush1.bf16.msra.mxu0 %v482
    %1275 = vmatprep.subr.bf16.mxu0 %v491
    %1276 = vmatpush1.bf16.msra.mxu0 %v490
    %1277 = vmatprep.subr.bf16.mxu0 %v499
    %1278 = vmatpush1.bf16.msra.mxu0 %v498
    %1279 = vmatprep.subr.bf16.mxu0 %v507
    %1280 = vmatpush1.bf16.msra.mxu0 %v506
    %1281 = vmatprep.subr.bf16.mxu0 %v515
    %1282 = vmatpush1.bf16.msra.mxu0 %v514
    %1283 = vmatprep.subr.bf16.mxu0 %v523
    %1284 = vmatpush1.bf16.msra.mxu0 %v522
    %1285 = vmatprep.subr.bf16.mxu0 %v531
    %1286 = vmatpush1.bf16.msra.mxu0 %v530
    %1287 = vmatprep.subr.bf16.mxu0 %v539
    %1288 = vmatpush1.bf16.msra.mxu0 %v538
    %1289 = vmatprep.subr.bf16.mxu0 %v547
    %1290 = vmatpush1.bf16.msra.mxu0 %v546
    %1291 = vmatprep.subr.bf16.mxu0 %v555
    %1292 = vmatpush1.bf16.msra.mxu0 %v554
    %1293 = vmatprep.subr.bf16.mxu0 %v563
    %1294 = vmatpush1.bf16.msra.mxu0 %v562
    %1295 = vmatprep.subr.bf16.mxu0 %v571
    %1296 = vmatpush1.bf16.msra.mxu0 %v570
    %1297 = vmatprep.subr.bf16.mxu0 %v579
    %1298 = vmatpush1.bf16.msra.mxu0 %v578
    %1299 = vmatprep.subr.bf16.mxu0 %v587
    %1300 = vmatpush1.bf16.msra.mxu0 %v586
    %1301 = vmatprep.subr.bf16.mxu0 %v595
    %1302 = vmatpush1.bf16.msra.mxu0 %v594
    %1303 = vmatprep.subr.bf16.mxu0 %v603
    %1304 = vmatpush1.bf16.msra.mxu0 %v602
    %1305 = vmatprep.mubr.bf16.mxu0 %v657
    %1306 = vmatmul.mubr.bf16.gmra.mrb[0].mxu0 %v656
    %v1307 = vpop.f32.mrb[0].mxu0
    %v1308 = vadd.f32 %v1267, %v1307
    %v1309 = vpop.f32.mrb[0].mxu0
    %v1310 = vadd.f32 %v1269, %v1309
    %v1311 = vpop.f32.mrb[0].mxu0
    %v1312 = vpop.f32.mrb[0].mxu0
    %1313 = vdwg.mxu0
    %v1314 = vtanh.pop %v816
    %v1315 = vtanh.pop %v818
    %v1316 = vtanh.pop %v980
    %v1317 = vtanh.pop %v982
    %v1318 = vtanh.pop %v1144
    %v1319 = vtanh.pop %v1146
    %v1320 = vtanh.pop %v1308
    %v1321 = vtanh.pop %v1310
    %s1322 = sadd.f32 %s65, 1.0
    %v1323 = vstv %s1322
    %v1324 = vmul.f32 %v604, %v1323
    %v1325 = vmul.f32 %v605, %v1323
    %v1326 = vstv %s65
    %v1327 = vmul.f32 %v1326, %v1314
    %v1328 = vmul.f32 %v1326, %v1315
    %v1329 = vmul.f32 %v1326, %v1316
    %v1330 = vmul.f32 %v1326, %v1317
    %v1331 = vmul.f32 %v1326, %v1318
    %v1332 = vmul.f32 %v1326, %v1319
    %v1333 = vmul.f32 %v1326, %v1320
    %v1334 = vmul.f32 %v1326, %v1321
    %v1343 = vcombine.low %v1327, %v1328
    %v1344 = vcombine.low %v1329, %v1330
    %v1346 = vunpack.c.l.s4 1983009808
    %v1347 = vunpack.c.0.s8 %v1346
    %v1348 = vlaneseq
    %v1349 = vshrl.u32 %v1348, 7
    %v1350 = vsub.s32 %v1347, %v1349
    %v1351 = vrot.slane %v1343, %v1350
    %v1353 = vunpack.c.l.s4 1983009808
    %v1354 = vunpack.c.0.s8 %v1353
    %v1355 = vlaneseq
    %v1356 = vshrl.u32 %v1355, 7
    %v1357 = vsub.s32 %v1354, %v1356
    %v1358 = vrot.slane %v1344, %v1357
    %v1359 = vcombine.low %v1351, %v1358
    %v1360 = vcombine.low %v1331, %v1332
    %v1361 = vcombine.low %v1333, %v1334
    %v1363 = vunpack.c.l.s4 1983009808
    %v1364 = vunpack.c.0.s8 %v1363
    %v1365 = vlaneseq
    %v1366 = vshrl.u32 %v1365, 7
    %v1367 = vsub.s32 %v1364, %v1366
    %v1368 = vrot.slane %v1360, %v1367
    %v1370 = vunpack.c.l.s4 1983009808
    %v1371 = vunpack.c.0.s8 %v1370
    %v1372 = vlaneseq
    %v1373 = vshrl.u32 %v1372, 7
    %v1374 = vsub.s32 %v1371, %v1373
    %v1375 = vrot.slane %v1361, %v1374
    %v1376 = vcombine.low %v1368, %v1375
    %v1379 = vadd.f32 %v1324, %v1359
    %v1380 = vadd.f32 %v1325, %v1376
    %v1383 = vcombine.high %v1379, %v1379
    %v1385 = vunpack.c.l.s4 1983009808
    %v1386 = vunpack.c.0.s8 %v1385
    %v1387 = vlaneseq
    %v1388 = vshrl.u32 %v1387, 7
    %v1389 = vsub.s32 %v1386, %v1388
    %v1390 = vrot.slane %v1379, %v1389
    %v1392 = vunpack.c.l.s4 1983009808
    %v1393 = vunpack.c.0.s8 %v1392
    %v1394 = vlaneseq
    %v1395 = vshrl.u32 %v1394, 7
    %v1396 = vsub.s32 %v1393, %v1395
    %v1397 = vrot.slane %v1383, %v1396
    %v1398 = vcombine.high %v1390, %v1390
    %v1399 = vcombine.high %v1397, %v1397
    %v1400 = vcombine.high %v1380, %v1380
    %v1402 = vunpack.c.l.s4 1983009808
    %v1403 = vunpack.c.0.s8 %v1402
    %v1404 = vlaneseq
    %v1405 = vshrl.u32 %v1404, 7
    %v1406 = vsub.s32 %v1403, %v1405
    %v1407 = vrot.slane %v1380, %v1406
    %v1409 = vunpack.c.l.s4 1983009808
    %v1410 = vunpack.c.0.s8 %v1409
    %v1411 = vlaneseq
    %v1412 = vshrl.u32 %v1411, 7
    %v1413 = vsub.s32 %v1410, %v1412
    %v1414 = vrot.slane %v1400, %v1413
    %v1415 = vcombine.high %v1407, %v1407
    %v1416 = vcombine.high %v1414, %v1414
    %v1425 = vpack.c.bf16 %v1390, %v1390
    %v1426 = vpack.c.bf16 %v1398, %v1398
    %v1427 = vpack.c.bf16 %v1397, %v1397
    %v1428 = vpack.c.bf16 %v1399, %v1399
    %v1429 = vpack.c.bf16 %v1407, %v1407
    %v1430 = vpack.c.bf16 %v1415, %v1415
    %v1431 = vpack.c.bf16 %v1414, %v1414
    %v1432 = vpack.c.bf16 %v1416, %v1416
    %1433 = vmatprep.subr.bf16.mxu0 %v93
    %1434 = vmatpush1.bf16.msra.mxu0 %v92
    %1435 = vmatprep.subr.bf16.mxu0 %v101
    %1436 = vmatpush1.bf16.msra.mxu0 %v100
    %1437 = vmatprep.subr.bf16.mxu0 %v109
    %1438 = vmatpush1.bf16.msra.mxu0 %v108
    %1439 = vmatprep.subr.bf16.mxu0 %v117
    %1440 = vmatpush1.bf16.msra.mxu0 %v116
    %1441 = vmatprep.subr.bf16.mxu0 %v125
    %1442 = vmatpush1.bf16.msra.mxu0 %v124
    %1443 = vmatprep.subr.bf16.mxu0 %v133
    %1444 = vmatpush1.bf16.msra.mxu0 %v132
    %1445 = vmatprep.subr.bf16.mxu0 %v141
    %1446 = vmatpush1.bf16.msra.mxu0 %v140
    %1447 = vmatprep.subr.bf16.mxu0 %v149
    %1448 = vmatpush1.bf16.msra.mxu0 %v148
    %1449 = vmatprep.subr.bf16.mxu0 %v157
    %1450 = vmatpush1.bf16.msra.mxu0 %v156
    %1451 = vmatprep.subr.bf16.mxu0 %v165
    %1452 = vmatpush1.bf16.msra.mxu0 %v164
    %1453 = vmatprep.subr.bf16.mxu0 %v173
    %1454 = vmatpush1.bf16.msra.mxu0 %v172
    %1455 = vmatprep.subr.bf16.mxu0 %v181
    %1456 = vmatpush1.bf16.msra.mxu0 %v180
    %1457 = vmatprep.subr.bf16.mxu0 %v189
    %1458 = vmatpush1.bf16.msra.mxu0 %v188
    %1459 = vmatprep.subr.bf16.mxu0 %v197
    %1460 = vmatpush1.bf16.msra.mxu0 %v196
    %1461 = vmatprep.subr.bf16.mxu0 %v205
    %1462 = vmatpush1.bf16.msra.mxu0 %v204
    %1463 = vmatprep.subr.bf16.mxu0 %v213
    %1464 = vmatpush1.bf16.msra.mxu0 %v212
    %1465 = vmatprep.mubr.bf16.mxu0 %v1426
    %1466 = vmatmul.mubr.bf16.gmra.mrb[0].mxu0 %v1425
    %v1467 = vpop.f32.mrb[0].mxu0
    %v1468 = vadd.f32 0.0, %v1467
    %v1469 = vpop.f32.mrb[0].mxu0
    %v1470 = vadd.f32 0.0, %v1469
    %v1471 = vpop.f32.mrb[0].mxu0
    %v1472 = vpop.f32.mrb[0].mxu0
    %1473 = vdwg.mxu0
    %1474 = vmatprep.subr.bf16.mxu0 %v221
    %1475 = vmatpush1.bf16.msra.mxu0 %v220
    %1476 = vmatprep.subr.bf16.mxu0 %v229
    %1477 = vmatpush1.bf16.msra.mxu0 %v228
    %1478 = vmatprep.subr.bf16.mxu0 %v237
    %1479 = vmatpush1.bf16.msra.mxu0 %v236
    %1480 = vmatprep.subr.bf16.mxu0 %v245
    %1481 = vmatpush1.bf16.msra.mxu0 %v244
    %1482 = vmatprep.subr.bf16.mxu0 %v253
    %1483 = vmatpush1.bf16.msra.mxu0 %v252
    %1484 = vmatprep.subr.bf16.mxu0 %v261
    %1485 = vmatpush1.bf16.msra.mxu0 %v260
    %1486 = vmatprep.subr.bf16.mxu0 %v269
    %1487 = vmatpush1.bf16.msra.mxu0 %v268
    %1488 = vmatprep.subr.bf16.mxu0 %v277
    %1489 = vmatpush1.bf16.msra.mxu0 %v276
    %1490 = vmatprep.subr.bf16.mxu0 %v285
    %1491 = vmatpush1.bf16.msra.mxu0 %v284
    %1492 = vmatprep.subr.bf16.mxu0 %v293
    %1493 = vmatpush1.bf16.msra.mxu0 %v292
    %1494 = vmatprep.subr.bf16.mxu0 %v301
    %1495 = vmatpush1.bf16.msra.mxu0 %v300
    %1496 = vmatprep.subr.bf16.mxu0 %v309
    %1497 = vmatpush1.bf16.msra.mxu0 %v308
    %1498 = vmatprep.subr.bf16.mxu0 %v317
    %1499 = vmatpush1.bf16.msra.mxu0 %v316
    %1500 = vmatprep.subr.bf16.mxu0 %v325
    %1501 = vmatpush1.bf16.msra.mxu0 %v324
    %1502 = vmatprep.subr.bf16.mxu0 %v333
    %1503 = vmatpush1.bf16.msra.mxu0 %v332
    %1504 = vmatprep.subr.bf16.mxu0 %v341
    %1505 = vmatpush1.bf16.msra.mxu0 %v340
    %1506 = vmatprep.mubr.bf16.mxu0 %v1428
    %1507 = vmatmul.mubr.bf16.gmra.mrb[0].mxu0 %v1427
    %v1508 = vpop.f32.mrb[0].mxu0
    %v1509 = vadd.f32 %v1468, %v1508
    %v1510 = vpop.f32.mrb[0].mxu0
    %v1511 = vadd.f32 %v1470, %v1510
    %v1512 = vpop.f32.mrb[0].mxu0
    %v1513 = vpop.f32.mrb[0].mxu0
    %1514 = vdwg.mxu0
    %1515 = vmatprep.subr.bf16.mxu0 %v349
    %1516 = vmatpush1.bf16.msra.mxu0 %v348
    %1517 = vmatprep.subr.bf16.mxu0 %v357
    %1518 = vmatpush1.bf16.msra.mxu0 %v356
    %1519 = vmatprep.subr.bf16.mxu0 %v365
    %1520 = vmatpush1.bf16.msra.mxu0 %v364
    %1521 = vmatprep.subr.bf16.mxu0 %v373
    %1522 = vmatpush1.bf16.msra.mxu0 %v372
    %1523 = vmatprep.subr.bf16.mxu0 %v381
    %1524 = vmatpush1.bf16.msra.mxu0 %v380
    %1525 = vmatprep.subr.bf16.mxu0 %v389
    %1526 = vmatpush1.bf16.msra.mxu0 %v388
    %1527 = vmatprep.subr.bf16.mxu0 %v397
    %1528 = vmatpush1.bf16.msra.mxu0 %v396
    %1529 = vmatprep.subr.bf16.mxu0 %v405
    %1530 = vmatpush1.bf16.msra.mxu0 %v404
    %1531 = vmatprep.subr.bf16.mxu0 %v413
    %1532 = vmatpush1.bf16.msra.mxu0 %v412
    %1533 = vmatprep.subr.bf16.mxu0 %v421
    %1534 = vmatpush1.bf16.msra.mxu0 %v420
    %1535 = vmatprep.subr.bf16.mxu0 %v429
    %1536 = vmatpush1.bf16.msra.mxu0 %v428
    %1537 = vmatprep.subr.bf16.mxu0 %v437
    %1538 = vmatpush1.bf16.msra.mxu0 %v436
    %1539 = vmatprep.subr.bf16.mxu0 %v445
    %1540 = vmatpush1.bf16.msra.mxu0 %v444
    %1541 = vmatprep.subr.bf16.mxu0 %v453
    %1542 = vmatpush1.bf16.msra.mxu0 %v452
    %1543 = vmatprep.subr.bf16.mxu0 %v461
    %1544 = vmatpush1.bf16.msra.mxu0 %v460
    %1545 = vmatprep.subr.bf16.mxu0 %v469
    %1546 = vmatpush1.bf16.msra.mxu0 %v468
    %1547 = vmatprep.mubr.bf16.mxu0 %v1430
    %1548 = vmatmul.mubr.bf16.gmra.mrb[0].mxu0 %v1429
    %v1549 = vpop.f32.mrb[0].mxu0
    %v1550 = vadd.f32 %v1509, %v1549
    %v1551 = vpop.f32.mrb[0].mxu0
    %v1552 = vadd.f32 %v1511, %v1551
    %v1553 = vpop.f32.mrb[0].mxu0
    %v1554 = vpop.f32.mrb[0].mxu0
    %1555 = vdwg.mxu0
    %1556 = vmatprep.subr.bf16.mxu0 %v477
    %1557 = vmatpush1.bf16.msra.mxu0 %v476
    %1558 = vmatprep.subr.bf16.mxu0 %v485
    %1559 = vmatpush1.bf16.msra.mxu0 %v484
    %1560 = vmatprep.subr.bf16.mxu0 %v493
    %1561 = vmatpush1.bf16.msra.mxu0 %v492
    %1562 = vmatprep.subr.bf16.mxu0 %v501
    %1563 = vmatpush1.bf16.msra.mxu0 %v500
    %1564 = vmatprep.subr.bf16.mxu0 %v509
    %1565 = vmatpush1.bf16.msra.mxu0 %v508
    %1566 = vmatprep.subr.bf16.mxu0 %v517
    %1567 = vmatpush1.bf16.msra.mxu0 %v516
    %1568 = vmatprep.subr.bf16.mxu0 %v525
    %1569 = vmatpush1.bf16.msra.mxu0 %v524
    %1570 = vmatprep.subr.bf16.mxu0 %v533
    %1571 = vmatpush1.bf16.msra.mxu0 %v532
    %1572 = vmatprep.subr.bf16.mxu0 %v541
    %1573 = vmatpush1.bf16.msra.mxu0 %v540
    %1574 = vmatprep.subr.bf16.mxu0 %v549
    %1575 = vmatpush1.bf16.msra.mxu0 %v548
    %1576 = vmatprep.subr.bf16.mxu0 %v557
    %1577 = vmatpush1.bf16.msra.mxu0 %v556
    %1578 = vmatprep.subr.bf16.mxu0 %v565
    %1579 = vmatpush1.bf16.msra.mxu0 %v564
    %1580 = vmatprep.subr.bf16.mxu0 %v573
    %1581 = vmatpush1.bf16.msra.mxu0 %v572
    %1582 = vmatprep.subr.bf16.mxu0 %v581
    %1583 = vmatpush1.bf16.msra.mxu0 %v580
    %1584 = vmatprep.subr.bf16.mxu0 %v589
    %1585 = vmatpush1.bf16.msra.mxu0 %v588
    %1586 = vmatprep.subr.bf16.mxu0 %v597
    %1587 = vmatpush1.bf16.msra.mxu0 %v596
    %1588 = vmatprep.mubr.bf16.mxu0 %v1432
    %1589 = vmatmul.mubr.bf16.gmra.mrb[0].mxu0 %v1431
    %v1590 = vpop.f32.mrb[0].mxu0
    %v1591 = vadd.f32 %v1550, %v1590
    %v1592 = vpop.f32.mrb[0].mxu0
    %v1593 = vadd.f32 %v1552, %v1592
    %v1594 = vpop.f32.mrb[0].mxu0
    %v1595 = vpop.f32.mrb[0].mxu0
    %1596 = vdwg.mxu0
    %1597 = vmatprep.subr.bf16.mxu0 %v95
    %1598 = vmatpush1.bf16.msra.mxu0 %v94
    %1599 = vmatprep.subr.bf16.mxu0 %v103
    %1600 = vmatpush1.bf16.msra.mxu0 %v102
    %1601 = vmatprep.subr.bf16.mxu0 %v111
    %1602 = vmatpush1.bf16.msra.mxu0 %v110
    %1603 = vmatprep.subr.bf16.mxu0 %v119
    %1604 = vmatpush1.bf16.msra.mxu0 %v118
    %1605 = vmatprep.subr.bf16.mxu0 %v127
    %1606 = vmatpush1.bf16.msra.mxu0 %v126
    %1607 = vmatprep.subr.bf16.mxu0 %v135
    %1608 = vmatpush1.bf16.msra.mxu0 %v134
    %1609 = vmatprep.subr.bf16.mxu0 %v143
    %1610 = vmatpush1.bf16.msra.mxu0 %v142
    %1611 = vmatprep.subr.bf16.mxu0 %v151
    %1612 = vmatpush1.bf16.msra.mxu0 %v150
    %1613 = vmatprep.subr.bf16.mxu0 %v159
    %1614 = vmatpush1.bf16.msra.mxu0 %v158
    %1615 = vmatprep.subr.bf16.mxu0 %v167
    %1616 = vmatpush1.bf16.msra.mxu0 %v166
    %1617 = vmatprep.subr.bf16.mxu0 %v175
    %1618 = vmatpush1.bf16.msra.mxu0 %v174
    %1619 = vmatprep.subr.bf16.mxu0 %v183
    %1620 = vmatpush1.bf16.msra.mxu0 %v182
    %1621 = vmatprep.subr.bf16.mxu0 %v191
    %1622 = vmatpush1.bf16.msra.mxu0 %v190
    %1623 = vmatprep.subr.bf16.mxu0 %v199
    %1624 = vmatpush1.bf16.msra.mxu0 %v198
    %1625 = vmatprep.subr.bf16.mxu0 %v207
    %1626 = vmatpush1.bf16.msra.mxu0 %v206
    %1627 = vmatprep.subr.bf16.mxu0 %v215
    %1628 = vmatpush1.bf16.msra.mxu0 %v214
    %1629 = vmatprep.mubr.bf16.mxu0 %v1426
    %1630 = vmatmul.mubr.bf16.gmra.mrb[0].mxu0 %v1425
    %v1631 = vpop.f32.mrb[0].mxu0
    %v1632 = vadd.f32 0.0, %v1631
    %v1633 = vpop.f32.mrb[0].mxu0
    %v1634 = vadd.f32 0.0, %v1633
    %v1635 = vpop.f32.mrb[0].mxu0
    %v1636 = vpop.f32.mrb[0].mxu0
    %1637 = vdwg.mxu0
    %1638 = vmatprep.subr.bf16.mxu0 %v223
    %1639 = vmatpush1.bf16.msra.mxu0 %v222
    %1640 = vmatprep.subr.bf16.mxu0 %v231
    %1641 = vmatpush1.bf16.msra.mxu0 %v230
    %1642 = vmatprep.subr.bf16.mxu0 %v239
    %1643 = vmatpush1.bf16.msra.mxu0 %v238
    %1644 = vmatprep.subr.bf16.mxu0 %v247
    %1645 = vmatpush1.bf16.msra.mxu0 %v246
    %1646 = vmatprep.subr.bf16.mxu0 %v255
    %1647 = vmatpush1.bf16.msra.mxu0 %v254
    %1648 = vmatprep.subr.bf16.mxu0 %v263
    %1649 = vmatpush1.bf16.msra.mxu0 %v262
    %1650 = vmatprep.subr.bf16.mxu0 %v271
    %1651 = vmatpush1.bf16.msra.mxu0 %v270
    %1652 = vmatprep.subr.bf16.mxu0 %v279
    %1653 = vmatpush1.bf16.msra.mxu0 %v278
    %1654 = vmatprep.subr.bf16.mxu0 %v287
    %1655 = vmatpush1.bf16.msra.mxu0 %v286
    %1656 = vmatprep.subr.bf16.mxu0 %v295
    %1657 = vmatpush1.bf16.msra.mxu0 %v294
    %1658 = vmatprep.subr.bf16.mxu0 %v303
    %1659 = vmatpush1.bf16.msra.mxu0 %v302
    %1660 = vmatprep.subr.bf16.mxu0 %v311
    %1661 = vmatpush1.bf16.msra.mxu0 %v310
    %1662 = vmatprep.subr.bf16.mxu0 %v319
    %1663 = vmatpush1.bf16.msra.mxu0 %v318
    %1664 = vmatprep.subr.bf16.mxu0 %v327
    %1665 = vmatpush1.bf16.msra.mxu0 %v326
    %1666 = vmatprep.subr.bf16.mxu0 %v335
    %1667 = vmatpush1.bf16.msra.mxu0 %v334
    %1668 = vmatprep.subr.bf16.mxu0 %v343
    %1669 = vmatpush1.bf16.msra.mxu0 %v342
    %1670 = vmatprep.mubr.bf16.mxu0 %v1428
    %1671 = vmatmul.mubr.bf16.gmra.mrb[0].mxu0 %v1427
    %v1672 = vpop.f32.mrb[0].mxu0
    %v1673 = vadd.f32 %v1632, %v1672
    %v1674 = vpop.f32.mrb[0].mxu0
    %v1675 = vadd.f32 %v1634, %v1674
    %v1676 = vpop.f32.mrb[0].mxu0
    %v1677 = vpop.f32.mrb[0].mxu0
    %1678 = vdwg.mxu0
    %1679 = vmatprep.subr.bf16.mxu0 %v351
    %1680 = vmatpush1.bf16.msra.mxu0 %v350
    %1681 = vmatprep.subr.bf16.mxu0 %v359
    %1682 = vmatpush1.bf16.msra.mxu0 %v358
    %1683 = vmatprep.subr.bf16.mxu0 %v367
    %1684 = vmatpush1.bf16.msra.mxu0 %v366
    %1685 = vmatprep.subr.bf16.mxu0 %v375
    %1686 = vmatpush1.bf16.msra.mxu0 %v374
    %1687 = vmatprep.subr.bf16.mxu0 %v383
    %1688 = vmatpush1.bf16.msra.mxu0 %v382
    %1689 = vmatprep.subr.bf16.mxu0 %v391
    %1690 = vmatpush1.bf16.msra.mxu0 %v390
    %1691 = vmatprep.subr.bf16.mxu0 %v399
    %1692 = vmatpush1.bf16.msra.mxu0 %v398
    %1693 = vmatprep.subr.bf16.mxu0 %v407
    %1694 = vmatpush1.bf16.msra.mxu0 %v406
    %1695 = vmatprep.subr.bf16.mxu0 %v415
    %1696 = vmatpush1.bf16.msra.mxu0 %v414
    %1697 = vmatprep.subr.bf16.mxu0 %v423
    %1698 = vmatpush1.bf16.msra.mxu0 %v422
    %1699 = vmatprep.subr.bf16.mxu0 %v431
    %1700 = vmatpush1.bf16.msra.mxu0 %v430
    %1701 = vmatprep.subr.bf16.mxu0 %v439
    %1702 = vmatpush1.bf16.msra.mxu0 %v438
    %1703 = vmatprep.subr.bf16.mxu0 %v447
    %1704 = vmatpush1.bf16.msra.mxu0 %v446
    %1705 = vmatprep.subr.bf16.mxu0 %v455
    %1706 = vmatpush1.bf16.msra.mxu0 %v454
    %1707 = vmatprep.subr.bf16.mxu0 %v463
    %1708 = vmatpush1.bf16.msra.mxu0 %v462
    %1709 = vmatprep.subr.bf16.mxu0 %v471
    %1710 = vmatpush1.bf16.msra.mxu0 %v470
    %1711 = vmatprep.mubr.bf16.mxu0 %v1430
    %1712 = vmatmul.mubr.bf16.gmra.mrb[0].mxu0 %v1429
    %v1713 = vpop.f32.mrb[0].mxu0
    %v1714 = vadd.f32 %v1673, %v1713
    %v1715 = vpop.f32.mrb[0].mxu0
    %v1716 = vadd.f32 %v1675, %v1715
    %v1717 = vpop.f32.mrb[0].mxu0
    %v1718 = vpop.f32.mrb[0].mxu0
    %1719 = vdwg.mxu0
    %1720 = vmatprep.subr.bf16.mxu0 %v479
    %1721 = vmatpush1.bf16.msra.mxu0 %v478
    %1722 = vmatprep.subr.bf16.mxu0 %v487
    %1723 = vmatpush1.bf16.msra.mxu0 %v486
    %1724 = vmatprep.subr.bf16.mxu0 %v495
    %1725 = vmatpush1.bf16.msra.mxu0 %v494
    %1726 = vmatprep.subr.bf16.mxu0 %v503
    %1727 = vmatpush1.bf16.msra.mxu0 %v502
    %1728 = vmatprep.subr.bf16.mxu0 %v511
    %1729 = vmatpush1.bf16.msra.mxu0 %v510
    %1730 = vmatprep.subr.bf16.mxu0 %v519
    %1731 = vmatpush1.bf16.msra.mxu0 %v518
    %1732 = vmatprep.subr.bf16.mxu0 %v527
    %1733 = vmatpush1.bf16.msra.mxu0 %v526
    %1734 = vmatprep.subr.bf16.mxu0 %v535
    %1735 = vmatpush1.bf16.msra.mxu0 %v534
    %1736 = vmatprep.subr.bf16.mxu0 %v543
    %1737 = vmatpush1.bf16.msra.mxu0 %v542
    %1738 = vmatprep.subr.bf16.mxu0 %v551
    %1739 = vmatpush1.bf16.msra.mxu0 %v550
    %1740 = vmatprep.subr.bf16.mxu0 %v559
    %1741 = vmatpush1.bf16.msra.mxu0 %v558
    %1742 = vmatprep.subr.bf16.mxu0 %v567
    %1743 = vmatpush1.bf16.msra.mxu0 %v566
    %1744 = vmatprep.subr.bf16.mxu0 %v575
    %1745 = vmatpush1.bf16.msra.mxu0 %v574
    %1746 = vmatprep.subr.bf16.mxu0 %v583
    %1747 = vmatpush1.bf16.msra.mxu0 %v582
    %1748 = vmatprep.subr.bf16.mxu0 %v591
    %1749 = vmatpush1.bf16.msra.mxu0 %v590
    %1750 = vmatprep.subr.bf16.mxu0 %v599
    %1751 = vmatpush1.bf16.msra.mxu0 %v598
    %1752 = vmatprep.mubr.bf16.mxu0 %v1432
    %1753 = vmatmul.mubr.bf16.gmra.mrb[0].mxu0 %v1431
    %v1754 = vpop.f32.mrb[0].mxu0
    %v1755 = vadd.f32 %v1714, %v1754
    %v1756 = vpop.f32.mrb[0].mxu0
    %v1757 = vadd.f32 %v1716, %v1756
    %v1758 = vpop.f32.mrb[0].mxu0
    %v1759 = vpop.f32.mrb[0].mxu0
    %1760 = vdwg.mxu0
    %1761 = vmatprep.subr.bf16.mxu0 %v97
    %1762 = vmatpush1.bf16.msra.mxu0 %v96
    %1763 = vmatprep.subr.bf16.mxu0 %v105
    %1764 = vmatpush1.bf16.msra.mxu0 %v104
    %1765 = vmatprep.subr.bf16.mxu0 %v113
    %1766 = vmatpush1.bf16.msra.mxu0 %v112
    %1767 = vmatprep.subr.bf16.mxu0 %v121
    %1768 = vmatpush1.bf16.msra.mxu0 %v120
    %1769 = vmatprep.subr.bf16.mxu0 %v129
    %1770 = vmatpush1.bf16.msra.mxu0 %v128
    %1771 = vmatprep.subr.bf16.mxu0 %v137
    %1772 = vmatpush1.bf16.msra.mxu0 %v136
    %1773 = vmatprep.subr.bf16.mxu0 %v145
    %1774 = vmatpush1.bf16.msra.mxu0 %v144
    %1775 = vmatprep.subr.bf16.mxu0 %v153
    %1776 = vmatpush1.bf16.msra.mxu0 %v152
    %1777 = vmatprep.subr.bf16.mxu0 %v161
    %1778 = vmatpush1.bf16.msra.mxu0 %v160
    %1779 = vmatprep.subr.bf16.mxu0 %v169
    %1780 = vmatpush1.bf16.msra.mxu0 %v168
    %1781 = vmatprep.subr.bf16.mxu0 %v177
    %1782 = vmatpush1.bf16.msra.mxu0 %v176
    %1783 = vmatprep.subr.bf16.mxu0 %v185
    %1784 = vmatpush1.bf16.msra.mxu0 %v184
    %1785 = vmatprep.subr.bf16.mxu0 %v193
    %1786 = vmatpush1.bf16.msra.mxu0 %v192
    %1787 = vmatprep.subr.bf16.mxu0 %v201
    %1788 = vmatpush1.bf16.msra.mxu0 %v200
    %1789 = vmatprep.subr.bf16.mxu0 %v209
    %1790 = vmatpush1.bf16.msra.mxu0 %v208
    %1791 = vmatprep.subr.bf16.mxu0 %v217
    %1792 = vmatpush1.bf16.msra.mxu0 %v216
    %1793 = vmatprep.mubr.bf16.mxu0 %v1426
    %1794 = vmatmul.mubr.bf16.gmra.mrb[0].mxu0 %v1425
    %v1795 = vpop.f32.mrb[0].mxu0
    %v1796 = vadd.f32 0.0, %v1795
    %v1797 = vpop.f32.mrb[0].mxu0
    %v1798 = vadd.f32 0.0, %v1797
    %v1799 = vpop.f32.mrb[0].mxu0
    %v1800 = vpop.f32.mrb[0].mxu0
    %1801 = vdwg.mxu0
    %1802 = vmatprep.subr.bf16.mxu0 %v225
    %1803 = vmatpush1.bf16.msra.mxu0 %v224
    %1804 = vmatprep.subr.bf16.mxu0 %v233
    %1805 = vmatpush1.bf16.msra.mxu0 %v232
    %1806 = vmatprep.subr.bf16.mxu0 %v241
    %1807 = vmatpush1.bf16.msra.mxu0 %v240
    %1808 = vmatprep.subr.bf16.mxu0 %v249
    %1809 = vmatpush1.bf16.msra.mxu0 %v248
    %1810 = vmatprep.subr.bf16.mxu0 %v257
    %1811 = vmatpush1.bf16.msra.mxu0 %v256
    %1812 = vmatprep.subr.bf16.mxu0 %v265
    %1813 = vmatpush1.bf16.msra.mxu0 %v264
    %1814 = vmatprep.subr.bf16.mxu0 %v273
    %1815 = vmatpush1.bf16.msra.mxu0 %v272
    %1816 = vmatprep.subr.bf16.mxu0 %v281
    %1817 = vmatpush1.bf16.msra.mxu0 %v280
    %1818 = vmatprep.subr.bf16.mxu0 %v289
    %1819 = vmatpush1.bf16.msra.mxu0 %v288
    %1820 = vmatprep.subr.bf16.mxu0 %v297
    %1821 = vmatpush1.bf16.msra.mxu0 %v296
    %1822 = vmatprep.subr.bf16.mxu0 %v305
    %1823 = vmatpush1.bf16.msra.mxu0 %v304
    %1824 = vmatprep.subr.bf16.mxu0 %v313
    %1825 = vmatpush1.bf16.msra.mxu0 %v312
    %1826 = vmatprep.subr.bf16.mxu0 %v321
    %1827 = vmatpush1.bf16.msra.mxu0 %v320
    %1828 = vmatprep.subr.bf16.mxu0 %v329
    %1829 = vmatpush1.bf16.msra.mxu0 %v328
    %1830 = vmatprep.subr.bf16.mxu0 %v337
    %1831 = vmatpush1.bf16.msra.mxu0 %v336
    %1832 = vmatprep.subr.bf16.mxu0 %v345
    %1833 = vmatpush1.bf16.msra.mxu0 %v344
    %1834 = vmatprep.mubr.bf16.mxu0 %v1428
    %1835 = vmatmul.mubr.bf16.gmra.mrb[0].mxu0 %v1427
    %v1836 = vpop.f32.mrb[0].mxu0
    %v1837 = vadd.f32 %v1796, %v1836
    %v1838 = vpop.f32.mrb[0].mxu0
    %v1839 = vadd.f32 %v1798, %v1838
    %v1840 = vpop.f32.mrb[0].mxu0
    %v1841 = vpop.f32.mrb[0].mxu0
    %1842 = vdwg.mxu0
    %1843 = vmatprep.subr.bf16.mxu0 %v353
    %1844 = vmatpush1.bf16.msra.mxu0 %v352
    %1845 = vmatprep.subr.bf16.mxu0 %v361
    %1846 = vmatpush1.bf16.msra.mxu0 %v360
    %1847 = vmatprep.subr.bf16.mxu0 %v369
    %1848 = vmatpush1.bf16.msra.mxu0 %v368
    %1849 = vmatprep.subr.bf16.mxu0 %v377
    %1850 = vmatpush1.bf16.msra.mxu0 %v376
    %1851 = vmatprep.subr.bf16.mxu0 %v385
    %1852 = vmatpush1.bf16.msra.mxu0 %v384
    %1853 = vmatprep.subr.bf16.mxu0 %v393
    %1854 = vmatpush1.bf16.msra.mxu0 %v392
    %1855 = vmatprep.subr.bf16.mxu0 %v401
    %1856 = vmatpush1.bf16.msra.mxu0 %v400
    %1857 = vmatprep.subr.bf16.mxu0 %v409
    %1858 = vmatpush1.bf16.msra.mxu0 %v408
    %1859 = vmatprep.subr.bf16.mxu0 %v417
    %1860 = vmatpush1.bf16.msra.mxu0 %v416
    %1861 = vmatprep.subr.bf16.mxu0 %v425
    %1862 = vmatpush1.bf16.msra.mxu0 %v424
    %1863 = vmatprep.subr.bf16.mxu0 %v433
    %1864 = vmatpush1.bf16.msra.mxu0 %v432
    %1865 = vmatprep.subr.bf16.mxu0 %v441
    %1866 = vmatpush1.bf16.msra.mxu0 %v440
    %1867 = vmatprep.subr.bf16.mxu0 %v449
    %1868 = vmatpush1.bf16.msra.mxu0 %v448
    %1869 = vmatprep.subr.bf16.mxu0 %v457
    %1870 = vmatpush1.bf16.msra.mxu0 %v456
    %1871 = vmatprep.subr.bf16.mxu0 %v465
    %1872 = vmatpush1.bf16.msra.mxu0 %v464
    %1873 = vmatprep.subr.bf16.mxu0 %v473
    %1874 = vmatpush1.bf16.msra.mxu0 %v472
    %1875 = vmatprep.mubr.bf16.mxu0 %v1430
    %1876 = vmatmul.mubr.bf16.gmra.mrb[0].mxu0 %v1429
    %v1877 = vpop.f32.mrb[0].mxu0
    %v1878 = vadd.f32 %v1837, %v1877
    %v1879 = vpop.f32.mrb[0].mxu0
    %v1880 = vadd.f32 %v1839, %v1879
    %v1881 = vpop.f32.mrb[0].mxu0
    %v1882 = vpop.f32.mrb[0].mxu0
    %1883 = vdwg.mxu0
    %1884 = vmatprep.subr.bf16.mxu0 %v481
    %1885 = vmatpush1.bf16.msra.mxu0 %v480
    %1886 = vmatprep.subr.bf16.mxu0 %v489
    %1887 = vmatpush1.bf16.msra.mxu0 %v488
    %1888 = vmatprep.subr.bf16.mxu0 %v497
    %1889 = vmatpush1.bf16.msra.mxu0 %v496
    %1890 = vmatprep.subr.bf16.mxu0 %v505
    %1891 = vmatpush1.bf16.msra.mxu0 %v504
    %1892 = vmatprep.subr.bf16.mxu0 %v513
    %1893 = vmatpush1.bf16.msra.mxu0 %v512
    %1894 = vmatprep.subr.bf16.mxu0 %v521
    %1895 = vmatpush1.bf16.msra.mxu0 %v520
    %1896 = vmatprep.subr.bf16.mxu0 %v529
    %1897 = vmatpush1.bf16.msra.mxu0 %v528
    %1898 = vmatprep.subr.bf16.mxu0 %v537
    %1899 = vmatpush1.bf16.msra.mxu0 %v536
    %1900 = vmatprep.subr.bf16.mxu0 %v545
    %1901 = vmatpush1.bf16.msra.mxu0 %v544
    %1902 = vmatprep.subr.bf16.mxu0 %v553
    %1903 = vmatpush1.bf16.msra.mxu0 %v552
    %1904 = vmatprep.subr.bf16.mxu0 %v561
    %1905 = vmatpush1.bf16.msra.mxu0 %v560
    %1906 = vmatprep.subr.bf16.mxu0 %v569
    %1907 = vmatpush1.bf16.msra.mxu0 %v568
    %1908 = vmatprep.subr.bf16.mxu0 %v577
    %1909 = vmatpush1.bf16.msra.mxu0 %v576
    %1910 = vmatprep.subr.bf16.mxu0 %v585
    %1911 = vmatpush1.bf16.msra.mxu0 %v584
    %1912 = vmatprep.subr.bf16.mxu0 %v593
    %1913 = vmatpush1.bf16.msra.mxu0 %v592
    %1914 = vmatprep.subr.bf16.mxu0 %v601
    %1915 = vmatpush1.bf16.msra.mxu0 %v600
    %1916 = vmatprep.mubr.bf16.mxu0 %v1432
    %1917 = vmatmul.mubr.bf16.gmra.mrb[0].mxu0 %v1431
    %v1918 = vpop.f32.mrb[0].mxu0
    %v1919 = vadd.f32 %v1878, %v1918
    %v1920 = vpop.f32.mrb[0].mxu0
    %v1921 = vadd.f32 %v1880, %v1920
    %v1922 = vpop.f32.mrb[0].mxu0
    %v1923 = vpop.f32.mrb[0].mxu0
    %1924 = vdwg.mxu0
    %1925 = vmatprep.subr.bf16.mxu0 %v99
    %1926 = vmatpush1.bf16.msra.mxu0 %v98
    %1927 = vmatprep.subr.bf16.mxu0 %v107
    %1928 = vmatpush1.bf16.msra.mxu0 %v106
    %1929 = vmatprep.subr.bf16.mxu0 %v115
    %1930 = vmatpush1.bf16.msra.mxu0 %v114
    %1931 = vmatprep.subr.bf16.mxu0 %v123
    %1932 = vmatpush1.bf16.msra.mxu0 %v122
    %1933 = vmatprep.subr.bf16.mxu0 %v131
    %1934 = vmatpush1.bf16.msra.mxu0 %v130
    %1935 = vmatprep.subr.bf16.mxu0 %v139
    %1936 = vmatpush1.bf16.msra.mxu0 %v138
    %1937 = vmatprep.subr.bf16.mxu0 %v147
    %1938 = vmatpush1.bf16.msra.mxu0 %v146
    %1939 = vmatprep.subr.bf16.mxu0 %v155
    %1940 = vmatpush1.bf16.msra.mxu0 %v154
    %1941 = vmatprep.subr.bf16.mxu0 %v163
    %1942 = vmatpush1.bf16.msra.mxu0 %v162
    %1943 = vmatprep.subr.bf16.mxu0 %v171
    %1944 = vmatpush1.bf16.msra.mxu0 %v170
    %1945 = vmatprep.subr.bf16.mxu0 %v179
    %1946 = vmatpush1.bf16.msra.mxu0 %v178
    %1947 = vmatprep.subr.bf16.mxu0 %v187
    %1948 = vmatpush1.bf16.msra.mxu0 %v186
    %1949 = vmatprep.subr.bf16.mxu0 %v195
    %1950 = vmatpush1.bf16.msra.mxu0 %v194
    %1951 = vmatprep.subr.bf16.mxu0 %v203
    %1952 = vmatpush1.bf16.msra.mxu0 %v202
    %1953 = vmatprep.subr.bf16.mxu0 %v211
    %1954 = vmatpush1.bf16.msra.mxu0 %v210
    %1955 = vmatprep.subr.bf16.mxu0 %v219
    %1956 = vmatpush1.bf16.msra.mxu0 %v218
    %1957 = vmatprep.mubr.bf16.mxu0 %v1426
    %1958 = vmatmul.mubr.bf16.gmra.mrb[0].mxu0 %v1425
    %v1959 = vpop.f32.mrb[0].mxu0
    %v1960 = vadd.f32 0.0, %v1959
    %v1961 = vpop.f32.mrb[0].mxu0
    %v1962 = vadd.f32 0.0, %v1961
    %v1963 = vpop.f32.mrb[0].mxu0
    %v1964 = vpop.f32.mrb[0].mxu0
    %1965 = vdwg.mxu0
    %1966 = vmatprep.subr.bf16.mxu0 %v227
    %1967 = vmatpush1.bf16.msra.mxu0 %v226
    %1968 = vmatprep.subr.bf16.mxu0 %v235
    %1969 = vmatpush1.bf16.msra.mxu0 %v234
    %1970 = vmatprep.subr.bf16.mxu0 %v243
    %1971 = vmatpush1.bf16.msra.mxu0 %v242
    %1972 = vmatprep.subr.bf16.mxu0 %v251
    %1973 = vmatpush1.bf16.msra.mxu0 %v250
    %1974 = vmatprep.subr.bf16.mxu0 %v259
    %1975 = vmatpush1.bf16.msra.mxu0 %v258
    %1976 = vmatprep.subr.bf16.mxu0 %v267
    %1977 = vmatpush1.bf16.msra.mxu0 %v266
    %1978 = vmatprep.subr.bf16.mxu0 %v275
    %1979 = vmatpush1.bf16.msra.mxu0 %v274
    %1980 = vmatprep.subr.bf16.mxu0 %v283
    %1981 = vmatpush1.bf16.msra.mxu0 %v282
    %1982 = vmatprep.subr.bf16.mxu0 %v291
    %1983 = vmatpush1.bf16.msra.mxu0 %v290
    %1984 = vmatprep.subr.bf16.mxu0 %v299
    %1985 = vmatpush1.bf16.msra.mxu0 %v298
    %1986 = vmatprep.subr.bf16.mxu0 %v307
    %1987 = vmatpush1.bf16.msra.mxu0 %v306
    %1988 = vmatprep.subr.bf16.mxu0 %v315
    %1989 = vmatpush1.bf16.msra.mxu0 %v314
    %1990 = vmatprep.subr.bf16.mxu0 %v323
    %1991 = vmatpush1.bf16.msra.mxu0 %v322
    %1992 = vmatprep.subr.bf16.mxu0 %v331
    %1993 = vmatpush1.bf16.msra.mxu0 %v330
    %1994 = vmatprep.subr.bf16.mxu0 %v339
    %1995 = vmatpush1.bf16.msra.mxu0 %v338
    %1996 = vmatprep.subr.bf16.mxu0 %v347
    %1997 = vmatpush1.bf16.msra.mxu0 %v346
    %1998 = vmatprep.mubr.bf16.mxu0 %v1428
    %1999 = vmatmul.mubr.bf16.gmra.mrb[0].mxu0 %v1427
    %v2000 = vpop.f32.mrb[0].mxu0
    %v2001 = vadd.f32 %v1960, %v2000
    %v2002 = vpop.f32.mrb[0].mxu0
    %v2003 = vadd.f32 %v1962, %v2002
    %v2004 = vpop.f32.mrb[0].mxu0
    %v2005 = vpop.f32.mrb[0].mxu0
    %2006 = vdwg.mxu0
    %2007 = vmatprep.subr.bf16.mxu0 %v355
    %2008 = vmatpush1.bf16.msra.mxu0 %v354
    %2009 = vmatprep.subr.bf16.mxu0 %v363
    %2010 = vmatpush1.bf16.msra.mxu0 %v362
    %2011 = vmatprep.subr.bf16.mxu0 %v371
    %2012 = vmatpush1.bf16.msra.mxu0 %v370
    %2013 = vmatprep.subr.bf16.mxu0 %v379
    %2014 = vmatpush1.bf16.msra.mxu0 %v378
    %2015 = vmatprep.subr.bf16.mxu0 %v387
    %2016 = vmatpush1.bf16.msra.mxu0 %v386
    %2017 = vmatprep.subr.bf16.mxu0 %v395
    %2018 = vmatpush1.bf16.msra.mxu0 %v394
    %2019 = vmatprep.subr.bf16.mxu0 %v403
    %2020 = vmatpush1.bf16.msra.mxu0 %v402
    %2021 = vmatprep.subr.bf16.mxu0 %v411
    %2022 = vmatpush1.bf16.msra.mxu0 %v410
    %2023 = vmatprep.subr.bf16.mxu0 %v419
    %2024 = vmatpush1.bf16.msra.mxu0 %v418
    %2025 = vmatprep.subr.bf16.mxu0 %v427
    %2026 = vmatpush1.bf16.msra.mxu0 %v426
    %2027 = vmatprep.subr.bf16.mxu0 %v435
    %2028 = vmatpush1.bf16.msra.mxu0 %v434
    %2029 = vmatprep.subr.bf16.mxu0 %v443
    %2030 = vmatpush1.bf16.msra.mxu0 %v442
    %2031 = vmatprep.subr.bf16.mxu0 %v451
    %2032 = vmatpush1.bf16.msra.mxu0 %v450
    %2033 = vmatprep.subr.bf16.mxu0 %v459
    %2034 = vmatpush1.bf16.msra.mxu0 %v458
    %2035 = vmatprep.subr.bf16.mxu0 %v467
    %2036 = vmatpush1.bf16.msra.mxu0 %v466
    %2037 = vmatprep.subr.bf16.mxu0 %v475
    %2038 = vmatpush1.bf16.msra.mxu0 %v474
    %2039 = vmatprep.mubr.bf16.mxu0 %v1430
    %2040 = vmatmul.mubr.bf16.gmra.mrb[0].mxu0 %v1429
    %v2041 = vpop.f32.mrb[0].mxu0
    %v2042 = vadd.f32 %v2001, %v2041
    %v2043 = vpop.f32.mrb[0].mxu0
    %v2044 = vadd.f32 %v2003, %v2043
    %v2045 = vpop.f32.mrb[0].mxu0
    %v2046 = vpop.f32.mrb[0].mxu0
    %2047 = vdwg.mxu0
    %2048 = vmatprep.subr.bf16.mxu0 %v483
    %2049 = vmatpush1.bf16.msra.mxu0 %v482
    %2050 = vmatprep.subr.bf16.mxu0 %v491
    %2051 = vmatpush1.bf16.msra.mxu0 %v490
    %2052 = vmatprep.subr.bf16.mxu0 %v499
    %2053 = vmatpush1.bf16.msra.mxu0 %v498
    %2054 = vmatprep.subr.bf16.mxu0 %v507
    %2055 = vmatpush1.bf16.msra.mxu0 %v506
    %2056 = vmatprep.subr.bf16.mxu0 %v515
    %2057 = vmatpush1.bf16.msra.mxu0 %v514
    %2058 = vmatprep.subr.bf16.mxu0 %v523
    %2059 = vmatpush1.bf16.msra.mxu0 %v522
    %2060 = vmatprep.subr.bf16.mxu0 %v531
    %2061 = vmatpush1.bf16.msra.mxu0 %v530
    %2062 = vmatprep.subr.bf16.mxu0 %v539
    %2063 = vmatpush1.bf16.msra.mxu0 %v538
    %2064 = vmatprep.subr.bf16.mxu0 %v547
    %2065 = vmatpush1.bf16.msra.mxu0 %v546
    %2066 = vmatprep.subr.bf16.mxu0 %v555
    %2067 = vmatpush1.bf16.msra.mxu0 %v554
    %2068 = vmatprep.subr.bf16.mxu0 %v563
    %2069 = vmatpush1.bf16.msra.mxu0 %v562
    %2070 = vmatprep.subr.bf16.mxu0 %v571
    %2071 = vmatpush1.bf16.msra.mxu0 %v570
    %2072 = vmatprep.subr.bf16.mxu0 %v579
    %2073 = vmatpush1.bf16.msra.mxu0 %v578
    %2074 = vmatprep.subr.bf16.mxu0 %v587
    %2075 = vmatpush1.bf16.msra.mxu0 %v586
    %2076 = vmatprep.subr.bf16.mxu0 %v595
    %2077 = vmatpush1.bf16.msra.mxu0 %v594
    %2078 = vmatprep.subr.bf16.mxu0 %v603
    %2079 = vmatpush1.bf16.msra.mxu0 %v602
    %2080 = vmatprep.mubr.bf16.mxu0 %v1432
    %2081 = vmatmul.mubr.bf16.gmra.mrb[0].mxu0 %v1431
    %v2082 = vpop.f32.mrb[0].mxu0
    %v2083 = vadd.f32 %v2042, %v2082
    %v2084 = vpop.f32.mrb[0].mxu0
    %v2085 = vadd.f32 %v2044, %v2084
    %v2086 = vpop.f32.mrb[0].mxu0
    %v2087 = vpop.f32.mrb[0].mxu0
    %2088 = vdwg.mxu0
    %v2089 = vtanh.pop %v1591
    %v2090 = vtanh.pop %v1593
    %v2091 = vtanh.pop %v1755
    %v2092 = vtanh.pop %v1757
    %v2093 = vtanh.pop %v1919
    %v2094 = vtanh.pop %v1921
    %v2095 = vtanh.pop %v2083
    %v2096 = vtanh.pop %v2085
    %s2097 = sadd.f32 %s67, 1.0
    %v2098 = vstv %s2097
    %v2099 = vmul.f32 %v1379, %v2098
    %v2100 = vmul.f32 %v1380, %v2098
    %v2101 = vstv %s67
    %v2102 = vmul.f32 %v2101, %v2089
    %v2103 = vmul.f32 %v2101, %v2090
    %v2104 = vmul.f32 %v2101, %v2091
    %v2105 = vmul.f32 %v2101, %v2092
    %v2106 = vmul.f32 %v2101, %v2093
    %v2107 = vmul.f32 %v2101, %v2094
    %v2108 = vmul.f32 %v2101, %v2095
    %v2109 = vmul.f32 %v2101, %v2096
    %v2118 = vcombine.low %v2102, %v2103
    %v2119 = vcombine.low %v2104, %v2105
    %v2121 = vunpack.c.l.s4 1983009808
    %v2122 = vunpack.c.0.s8 %v2121
    %v2123 = vlaneseq
    %v2124 = vshrl.u32 %v2123, 7
    %v2125 = vsub.s32 %v2122, %v2124
    %v2126 = vrot.slane %v2118, %v2125
    %v2128 = vunpack.c.l.s4 1983009808
    %v2129 = vunpack.c.0.s8 %v2128
    %v2130 = vlaneseq
    %v2131 = vshrl.u32 %v2130, 7
    %v2132 = vsub.s32 %v2129, %v2131
    %v2133 = vrot.slane %v2119, %v2132
    %v2134 = vcombine.low %v2126, %v2133
    %v2135 = vcombine.low %v2106, %v2107
    %v2136 = vcombine.low %v2108, %v2109
    %v2138 = vunpack.c.l.s4 1983009808
    %v2139 = vunpack.c.0.s8 %v2138
    %v2140 = vlaneseq
    %v2141 = vshrl.u32 %v2140, 7
    %v2142 = vsub.s32 %v2139, %v2141
    %v2143 = vrot.slane %v2135, %v2142
    %v2145 = vunpack.c.l.s4 1983009808
    %v2146 = vunpack.c.0.s8 %v2145
    %v2147 = vlaneseq
    %v2148 = vshrl.u32 %v2147, 7
    %v2149 = vsub.s32 %v2146, %v2148
    %v2150 = vrot.slane %v2136, %v2149
    %v2151 = vcombine.low %v2143, %v2150
    %v2154 = vadd.f32 %v2099, %v2134
    %v2155 = vadd.f32 %v2100, %v2151
    %v2158 = vcombine.high %v2154, %v2154
    %v2160 = vunpack.c.l.s4 1983009808
    %v2161 = vunpack.c.0.s8 %v2160
    %v2162 = vlaneseq
    %v2163 = vshrl.u32 %v2162, 7
    %v2164 = vsub.s32 %v2161, %v2163
    %v2165 = vrot.slane %v2154, %v2164
    %v2167 = vunpack.c.l.s4 1983009808
    %v2168 = vunpack.c.0.s8 %v2167
    %v2169 = vlaneseq
    %v2170 = vshrl.u32 %v2169, 7
    %v2171 = vsub.s32 %v2168, %v2170
    %v2172 = vrot.slane %v2158, %v2171
    %v2173 = vcombine.high %v2165, %v2165
    %v2174 = vcombine.high %v2172, %v2172
    %v2175 = vcombine.high %v2155, %v2155
    %v2177 = vunpack.c.l.s4 1983009808
    %v2178 = vunpack.c.0.s8 %v2177
    %v2179 = vlaneseq
    %v2180 = vshrl.u32 %v2179, 7
    %v2181 = vsub.s32 %v2178, %v2180
    %v2182 = vrot.slane %v2155, %v2181
    %v2184 = vunpack.c.l.s4 1983009808
    %v2185 = vunpack.c.0.s8 %v2184
    %v2186 = vlaneseq
    %v2187 = vshrl.u32 %v2186, 7
    %v2188 = vsub.s32 %v2185, %v2187
    %v2189 = vrot.slane %v2175, %v2188
    %v2190 = vcombine.high %v2182, %v2182
    %v2191 = vcombine.high %v2189, %v2189
    %v2200 = vpack.c.bf16 %v2165, %v2165
    %v2201 = vpack.c.bf16 %v2173, %v2173
    %v2202 = vpack.c.bf16 %v2172, %v2172
    %v2203 = vpack.c.bf16 %v2174, %v2174
    %v2204 = vpack.c.bf16 %v2182, %v2182
    %v2205 = vpack.c.bf16 %v2190, %v2190
    %v2206 = vpack.c.bf16 %v2189, %v2189
    %v2207 = vpack.c.bf16 %v2191, %v2191
    %2208 = vmatprep.subr.bf16.mxu0 %v93
    %2209 = vmatpush1.bf16.msra.mxu0 %v92
    %2210 = vmatprep.subr.bf16.mxu0 %v101
    %2211 = vmatpush1.bf16.msra.mxu0 %v100
    %2212 = vmatprep.subr.bf16.mxu0 %v109
    %2213 = vmatpush1.bf16.msra.mxu0 %v108
    %2214 = vmatprep.subr.bf16.mxu0 %v117
    %2215 = vmatpush1.bf16.msra.mxu0 %v116
    %2216 = vmatprep.subr.bf16.mxu0 %v125
    %2217 = vmatpush1.bf16.msra.mxu0 %v124
    %2218 = vmatprep.subr.bf16.mxu0 %v133
    %2219 = vmatpush1.bf16.msra.mxu0 %v132
    %2220 = vmatprep.subr.bf16.mxu0 %v141
    %2221 = vmatpush1.bf16.msra.mxu0 %v140
    %2222 = vmatprep.subr.bf16.mxu0 %v149
    %2223 = vmatpush1.bf16.msra.mxu0 %v148
    %2224 = vmatprep.subr.bf16.mxu0 %v157
    %2225 = vmatpush1.bf16.msra.mxu0 %v156
    %2226 = vmatprep.subr.bf16.mxu0 %v165
    %2227 = vmatpush1.bf16.msra.mxu0 %v164
    %2228 = vmatprep.subr.bf16.mxu0 %v173
    %2229 = vmatpush1.bf16.msra.mxu0 %v172
    %2230 = vmatprep.subr.bf16.mxu0 %v181
    %2231 = vmatpush1.bf16.msra.mxu0 %v180
    %2232 = vmatprep.subr.bf16.mxu0 %v189
    %2233 = vmatpush1.bf16.msra.mxu0 %v188
    %2234 = vmatprep.subr.bf16.mxu0 %v197
    %2235 = vmatpush1.bf16.msra.mxu0 %v196
    %2236 = vmatprep.subr.bf16.mxu0 %v205
    %2237 = vmatpush1.bf16.msra.mxu0 %v204
    %2238 = vmatprep.subr.bf16.mxu0 %v213
    %2239 = vmatpush1.bf16.msra.mxu0 %v212
    %2240 = vmatprep.mubr.bf16.mxu0 %v2201
    %2241 = vmatmul.mubr.bf16.gmra.mrb[0].mxu0 %v2200
    %v2242 = vpop.f32.mrb[0].mxu0
    %v2243 = vadd.f32 0.0, %v2242
    %v2244 = vpop.f32.mrb[0].mxu0
    %v2245 = vadd.f32 0.0, %v2244
    %v2246 = vpop.f32.mrb[0].mxu0
    %v2247 = vpop.f32.mrb[0].mxu0
    %2248 = vdwg.mxu0
    %2249 = vmatprep.subr.bf16.mxu0 %v221
    %2250 = vmatpush1.bf16.msra.mxu0 %v220
    %2251 = vmatprep.subr.bf16.mxu0 %v229
    %2252 = vmatpush1.bf16.msra.mxu0 %v228
    %2253 = vmatprep.subr.bf16.mxu0 %v237
    %2254 = vmatpush1.bf16.msra.mxu0 %v236
    %2255 = vmatprep.subr.bf16.mxu0 %v245
    %2256 = vmatpush1.bf16.msra.mxu0 %v244
    %2257 = vmatprep.subr.bf16.mxu0 %v253
    %2258 = vmatpush1.bf16.msra.mxu0 %v252
    %2259 = vmatprep.subr.bf16.mxu0 %v261
    %2260 = vmatpush1.bf16.msra.mxu0 %v260
    %2261 = vmatprep.subr.bf16.mxu0 %v269
    %2262 = vmatpush1.bf16.msra.mxu0 %v268
    %2263 = vmatprep.subr.bf16.mxu0 %v277
    %2264 = vmatpush1.bf16.msra.mxu0 %v276
    %2265 = vmatprep.subr.bf16.mxu0 %v285
    %2266 = vmatpush1.bf16.msra.mxu0 %v284
    %2267 = vmatprep.subr.bf16.mxu0 %v293
    %2268 = vmatpush1.bf16.msra.mxu0 %v292
    %2269 = vmatprep.subr.bf16.mxu0 %v301
    %2270 = vmatpush1.bf16.msra.mxu0 %v300
    %2271 = vmatprep.subr.bf16.mxu0 %v309
    %2272 = vmatpush1.bf16.msra.mxu0 %v308
    %2273 = vmatprep.subr.bf16.mxu0 %v317
    %2274 = vmatpush1.bf16.msra.mxu0 %v316
    %2275 = vmatprep.subr.bf16.mxu0 %v325
    %2276 = vmatpush1.bf16.msra.mxu0 %v324
    %2277 = vmatprep.subr.bf16.mxu0 %v333
    %2278 = vmatpush1.bf16.msra.mxu0 %v332
    %2279 = vmatprep.subr.bf16.mxu0 %v341
    %2280 = vmatpush1.bf16.msra.mxu0 %v340
    %2281 = vmatprep.mubr.bf16.mxu0 %v2203
    %2282 = vmatmul.mubr.bf16.gmra.mrb[0].mxu0 %v2202
    %v2283 = vpop.f32.mrb[0].mxu0
    %v2284 = vadd.f32 %v2243, %v2283
    %v2285 = vpop.f32.mrb[0].mxu0
    %v2286 = vadd.f32 %v2245, %v2285
    %v2287 = vpop.f32.mrb[0].mxu0
    %v2288 = vpop.f32.mrb[0].mxu0
    %2289 = vdwg.mxu0
    %2290 = vmatprep.subr.bf16.mxu0 %v349
    %2291 = vmatpush1.bf16.msra.mxu0 %v348
    %2292 = vmatprep.subr.bf16.mxu0 %v357
    %2293 = vmatpush1.bf16.msra.mxu0 %v356
    %2294 = vmatprep.subr.bf16.mxu0 %v365
    %2295 = vmatpush1.bf16.msra.mxu0 %v364
    %2296 = vmatprep.subr.bf16.mxu0 %v373
    %2297 = vmatpush1.bf16.msra.mxu0 %v372
    %2298 = vmatprep.subr.bf16.mxu0 %v381
    %2299 = vmatpush1.bf16.msra.mxu0 %v380
    %2300 = vmatprep.subr.bf16.mxu0 %v389
    %2301 = vmatpush1.bf16.msra.mxu0 %v388
    %2302 = vmatprep.subr.bf16.mxu0 %v397
    %2303 = vmatpush1.bf16.msra.mxu0 %v396
    %2304 = vmatprep.subr.bf16.mxu0 %v405
    %2305 = vmatpush1.bf16.msra.mxu0 %v404
    %2306 = vmatprep.subr.bf16.mxu0 %v413
    %2307 = vmatpush1.bf16.msra.mxu0 %v412
    %2308 = vmatprep.subr.bf16.mxu0 %v421
    %2309 = vmatpush1.bf16.msra.mxu0 %v420
    %2310 = vmatprep.subr.bf16.mxu0 %v429
    %2311 = vmatpush1.bf16.msra.mxu0 %v428
    %2312 = vmatprep.subr.bf16.mxu0 %v437
    %2313 = vmatpush1.bf16.msra.mxu0 %v436
    %2314 = vmatprep.subr.bf16.mxu0 %v445
    %2315 = vmatpush1.bf16.msra.mxu0 %v444
    %2316 = vmatprep.subr.bf16.mxu0 %v453
    %2317 = vmatpush1.bf16.msra.mxu0 %v452
    %2318 = vmatprep.subr.bf16.mxu0 %v461
    %2319 = vmatpush1.bf16.msra.mxu0 %v460
    %2320 = vmatprep.subr.bf16.mxu0 %v469
    %2321 = vmatpush1.bf16.msra.mxu0 %v468
    %2322 = vmatprep.mubr.bf16.mxu0 %v2205
    %2323 = vmatmul.mubr.bf16.gmra.mrb[0].mxu0 %v2204
    %v2324 = vpop.f32.mrb[0].mxu0
    %v2325 = vadd.f32 %v2284, %v2324
    %v2326 = vpop.f32.mrb[0].mxu0
    %v2327 = vadd.f32 %v2286, %v2326
    %v2328 = vpop.f32.mrb[0].mxu0
    %v2329 = vpop.f32.mrb[0].mxu0
    %2330 = vdwg.mxu0
    %2331 = vmatprep.subr.bf16.mxu0 %v477
    %2332 = vmatpush1.bf16.msra.mxu0 %v476
    %2333 = vmatprep.subr.bf16.mxu0 %v485
    %2334 = vmatpush1.bf16.msra.mxu0 %v484
    %2335 = vmatprep.subr.bf16.mxu0 %v493
    %2336 = vmatpush1.bf16.msra.mxu0 %v492
    %2337 = vmatprep.subr.bf16.mxu0 %v501
    %2338 = vmatpush1.bf16.msra.mxu0 %v500
    %2339 = vmatprep.subr.bf16.mxu0 %v509
    %2340 = vmatpush1.bf16.msra.mxu0 %v508
    %2341 = vmatprep.subr.bf16.mxu0 %v517
    %2342 = vmatpush1.bf16.msra.mxu0 %v516
    %2343 = vmatprep.subr.bf16.mxu0 %v525
    %2344 = vmatpush1.bf16.msra.mxu0 %v524
    %2345 = vmatprep.subr.bf16.mxu0 %v533
    %2346 = vmatpush1.bf16.msra.mxu0 %v532
    %2347 = vmatprep.subr.bf16.mxu0 %v541
    %2348 = vmatpush1.bf16.msra.mxu0 %v540
    %2349 = vmatprep.subr.bf16.mxu0 %v549
    %2350 = vmatpush1.bf16.msra.mxu0 %v548
    %2351 = vmatprep.subr.bf16.mxu0 %v557
    %2352 = vmatpush1.bf16.msra.mxu0 %v556
    %2353 = vmatprep.subr.bf16.mxu0 %v565
    %2354 = vmatpush1.bf16.msra.mxu0 %v564
    %2355 = vmatprep.subr.bf16.mxu0 %v573
    %2356 = vmatpush1.bf16.msra.mxu0 %v572
    %2357 = vmatprep.subr.bf16.mxu0 %v581
    %2358 = vmatpush1.bf16.msra.mxu0 %v580
    %2359 = vmatprep.subr.bf16.mxu0 %v589
    %2360 = vmatpush1.bf16.msra.mxu0 %v588
    %2361 = vmatprep.subr.bf16.mxu0 %v597
    %2362 = vmatpush1.bf16.msra.mxu0 %v596
    %2363 = vmatprep.mubr.bf16.mxu0 %v2207
    %2364 = vmatmul.mubr.bf16.gmra.mrb[0].mxu0 %v2206
    %v2365 = vpop.f32.mrb[0].mxu0
    %v2366 = vadd.f32 %v2325, %v2365
    %v2367 = vpop.f32.mrb[0].mxu0
    %v2368 = vadd.f32 %v2327, %v2367
    %v2369 = vpop.f32.mrb[0].mxu0
    %v2370 = vpop.f32.mrb[0].mxu0
    %2371 = vdwg.mxu0
    %2372 = vmatprep.subr.bf16.mxu0 %v95
    %2373 = vmatpush1.bf16.msra.mxu0 %v94
    %2374 = vmatprep.subr.bf16.mxu0 %v103
    %2375 = vmatpush1.bf16.msra.mxu0 %v102
    %2376 = vmatprep.subr.bf16.mxu0 %v111
    %2377 = vmatpush1.bf16.msra.mxu0 %v110
    %2378 = vmatprep.subr.bf16.mxu0 %v119
    %2379 = vmatpush1.bf16.msra.mxu0 %v118
    %2380 = vmatprep.subr.bf16.mxu0 %v127
    %2381 = vmatpush1.bf16.msra.mxu0 %v126
    %2382 = vmatprep.subr.bf16.mxu0 %v135
    %2383 = vmatpush1.bf16.msra.mxu0 %v134
    %2384 = vmatprep.subr.bf16.mxu0 %v143
    %2385 = vmatpush1.bf16.msra.mxu0 %v142
    %2386 = vmatprep.subr.bf16.mxu0 %v151
    %2387 = vmatpush1.bf16.msra.mxu0 %v150
    %2388 = vmatprep.subr.bf16.mxu0 %v159
    %2389 = vmatpush1.bf16.msra.mxu0 %v158
    %2390 = vmatprep.subr.bf16.mxu0 %v167
    %2391 = vmatpush1.bf16.msra.mxu0 %v166
    %2392 = vmatprep.subr.bf16.mxu0 %v175
    %2393 = vmatpush1.bf16.msra.mxu0 %v174
    %2394 = vmatprep.subr.bf16.mxu0 %v183
    %2395 = vmatpush1.bf16.msra.mxu0 %v182
    %2396 = vmatprep.subr.bf16.mxu0 %v191
    %2397 = vmatpush1.bf16.msra.mxu0 %v190
    %2398 = vmatprep.subr.bf16.mxu0 %v199
    %2399 = vmatpush1.bf16.msra.mxu0 %v198
    %2400 = vmatprep.subr.bf16.mxu0 %v207
    %2401 = vmatpush1.bf16.msra.mxu0 %v206
    %2402 = vmatprep.subr.bf16.mxu0 %v215
    %2403 = vmatpush1.bf16.msra.mxu0 %v214
    %2404 = vmatprep.mubr.bf16.mxu0 %v2201
    %2405 = vmatmul.mubr.bf16.gmra.mrb[0].mxu0 %v2200
    %v2406 = vpop.f32.mrb[0].mxu0
    %v2407 = vadd.f32 0.0, %v2406
    %v2408 = vpop.f32.mrb[0].mxu0
    %v2409 = vadd.f32 0.0, %v2408
    %v2410 = vpop.f32.mrb[0].mxu0
    %v2411 = vpop.f32.mrb[0].mxu0
    %2412 = vdwg.mxu0
    %2413 = vmatprep.subr.bf16.mxu0 %v223
    %2414 = vmatpush1.bf16.msra.mxu0 %v222
    %2415 = vmatprep.subr.bf16.mxu0 %v231
    %2416 = vmatpush1.bf16.msra.mxu0 %v230
    %2417 = vmatprep.subr.bf16.mxu0 %v239
    %2418 = vmatpush1.bf16.msra.mxu0 %v238
    %2419 = vmatprep.subr.bf16.mxu0 %v247
    %2420 = vmatpush1.bf16.msra.mxu0 %v246
    %2421 = vmatprep.subr.bf16.mxu0 %v255
    %2422 = vmatpush1.bf16.msra.mxu0 %v254
    %2423 = vmatprep.subr.bf16.mxu0 %v263
    %2424 = vmatpush1.bf16.msra.mxu0 %v262
    %2425 = vmatprep.subr.bf16.mxu0 %v271
    %2426 = vmatpush1.bf16.msra.mxu0 %v270
    %2427 = vmatprep.subr.bf16.mxu0 %v279
    %2428 = vmatpush1.bf16.msra.mxu0 %v278
    %2429 = vmatprep.subr.bf16.mxu0 %v287
    %2430 = vmatpush1.bf16.msra.mxu0 %v286
    %2431 = vmatprep.subr.bf16.mxu0 %v295
    %2432 = vmatpush1.bf16.msra.mxu0 %v294
    %2433 = vmatprep.subr.bf16.mxu0 %v303
    %2434 = vmatpush1.bf16.msra.mxu0 %v302
    %2435 = vmatprep.subr.bf16.mxu0 %v311
    %2436 = vmatpush1.bf16.msra.mxu0 %v310
    %2437 = vmatprep.subr.bf16.mxu0 %v319
    %2438 = vmatpush1.bf16.msra.mxu0 %v318
    %2439 = vmatprep.subr.bf16.mxu0 %v327
    %2440 = vmatpush1.bf16.msra.mxu0 %v326
    %2441 = vmatprep.subr.bf16.mxu0 %v335
    %2442 = vmatpush1.bf16.msra.mxu0 %v334
    %2443 = vmatprep.subr.bf16.mxu0 %v343
    %2444 = vmatpush1.bf16.msra.mxu0 %v342
    %2445 = vmatprep.mubr.bf16.mxu0 %v2203
    %2446 = vmatmul.mubr.bf16.gmra.mrb[0].mxu0 %v2202
    %v2447 = vpop.f32.mrb[0].mxu0
    %v2448 = vadd.f32 %v2407, %v2447
    %v2449 = vpop.f32.mrb[0].mxu0
    %v2450 = vadd.f32 %v2409, %v2449
    %v2451 = vpop.f32.mrb[0].mxu0
    %v2452 = vpop.f32.mrb[0].mxu0
    %2453 = vdwg.mxu0
    %2454 = vmatprep.subr.bf16.mxu0 %v351
    %2455 = vmatpush1.bf16.msra.mxu0 %v350
    %2456 = vmatprep.subr.bf16.mxu0 %v359
    %2457 = vmatpush1.bf16.msra.mxu0 %v358
    %2458 = vmatprep.subr.bf16.mxu0 %v367
    %2459 = vmatpush1.bf16.msra.mxu0 %v366
    %2460 = vmatprep.subr.bf16.mxu0 %v375
    %2461 = vmatpush1.bf16.msra.mxu0 %v374
    %2462 = vmatprep.subr.bf16.mxu0 %v383
    %2463 = vmatpush1.bf16.msra.mxu0 %v382
    %2464 = vmatprep.subr.bf16.mxu0 %v391
    %2465 = vmatpush1.bf16.msra.mxu0 %v390
    %2466 = vmatprep.subr.bf16.mxu0 %v399
    %2467 = vmatpush1.bf16.msra.mxu0 %v398
    %2468 = vmatprep.subr.bf16.mxu0 %v407
    %2469 = vmatpush1.bf16.msra.mxu0 %v406
    %2470 = vmatprep.subr.bf16.mxu0 %v415
    %2471 = vmatpush1.bf16.msra.mxu0 %v414
    %2472 = vmatprep.subr.bf16.mxu0 %v423
    %2473 = vmatpush1.bf16.msra.mxu0 %v422
    %2474 = vmatprep.subr.bf16.mxu0 %v431
    %2475 = vmatpush1.bf16.msra.mxu0 %v430
    %2476 = vmatprep.subr.bf16.mxu0 %v439
    %2477 = vmatpush1.bf16.msra.mxu0 %v438
    %2478 = vmatprep.subr.bf16.mxu0 %v447
    %2479 = vmatpush1.bf16.msra.mxu0 %v446
    %2480 = vmatprep.subr.bf16.mxu0 %v455
    %2481 = vmatpush1.bf16.msra.mxu0 %v454
    %2482 = vmatprep.subr.bf16.mxu0 %v463
    %2483 = vmatpush1.bf16.msra.mxu0 %v462
    %2484 = vmatprep.subr.bf16.mxu0 %v471
    %2485 = vmatpush1.bf16.msra.mxu0 %v470
    %2486 = vmatprep.mubr.bf16.mxu0 %v2205
    %2487 = vmatmul.mubr.bf16.gmra.mrb[0].mxu0 %v2204
    %v2488 = vpop.f32.mrb[0].mxu0
    %v2489 = vadd.f32 %v2448, %v2488
    %v2490 = vpop.f32.mrb[0].mxu0
    %v2491 = vadd.f32 %v2450, %v2490
    %v2492 = vpop.f32.mrb[0].mxu0
    %v2493 = vpop.f32.mrb[0].mxu0
    %2494 = vdwg.mxu0
    %2495 = vmatprep.subr.bf16.mxu0 %v479
    %2496 = vmatpush1.bf16.msra.mxu0 %v478
    %2497 = vmatprep.subr.bf16.mxu0 %v487
    %2498 = vmatpush1.bf16.msra.mxu0 %v486
    %2499 = vmatprep.subr.bf16.mxu0 %v495
    %2500 = vmatpush1.bf16.msra.mxu0 %v494
    %2501 = vmatprep.subr.bf16.mxu0 %v503
    %2502 = vmatpush1.bf16.msra.mxu0 %v502
    %2503 = vmatprep.subr.bf16.mxu0 %v511
    %2504 = vmatpush1.bf16.msra.mxu0 %v510
    %2505 = vmatprep.subr.bf16.mxu0 %v519
    %2506 = vmatpush1.bf16.msra.mxu0 %v518
    %2507 = vmatprep.subr.bf16.mxu0 %v527
    %2508 = vmatpush1.bf16.msra.mxu0 %v526
    %2509 = vmatprep.subr.bf16.mxu0 %v535
    %2510 = vmatpush1.bf16.msra.mxu0 %v534
    %2511 = vmatprep.subr.bf16.mxu0 %v543
    %2512 = vmatpush1.bf16.msra.mxu0 %v542
    %2513 = vmatprep.subr.bf16.mxu0 %v551
    %2514 = vmatpush1.bf16.msra.mxu0 %v550
    %2515 = vmatprep.subr.bf16.mxu0 %v559
    %2516 = vmatpush1.bf16.msra.mxu0 %v558
    %2517 = vmatprep.subr.bf16.mxu0 %v567
    %2518 = vmatpush1.bf16.msra.mxu0 %v566
    %2519 = vmatprep.subr.bf16.mxu0 %v575
    %2520 = vmatpush1.bf16.msra.mxu0 %v574
    %2521 = vmatprep.subr.bf16.mxu0 %v583
    %2522 = vmatpush1.bf16.msra.mxu0 %v582
    %2523 = vmatprep.subr.bf16.mxu0 %v591
    %2524 = vmatpush1.bf16.msra.mxu0 %v590
    %2525 = vmatprep.subr.bf16.mxu0 %v599
    %2526 = vmatpush1.bf16.msra.mxu0 %v598
    %2527 = vmatprep.mubr.bf16.mxu0 %v2207
    %2528 = vmatmul.mubr.bf16.gmra.mrb[0].mxu0 %v2206
    %v2529 = vpop.f32.mrb[0].mxu0
    %v2530 = vadd.f32 %v2489, %v2529
    %v2531 = vpop.f32.mrb[0].mxu0
    %v2532 = vadd.f32 %v2491, %v2531
    %v2533 = vpop.f32.mrb[0].mxu0
    %v2534 = vpop.f32.mrb[0].mxu0
    %2535 = vdwg.mxu0
    %2536 = vmatprep.subr.bf16.mxu0 %v97
    %2537 = vmatpush1.bf16.msra.mxu0 %v96
    %2538 = vmatprep.subr.bf16.mxu0 %v105
    %2539 = vmatpush1.bf16.msra.mxu0 %v104
    %2540 = vmatprep.subr.bf16.mxu0 %v113
    %2541 = vmatpush1.bf16.msra.mxu0 %v112
    %2542 = vmatprep.subr.bf16.mxu0 %v121
    %2543 = vmatpush1.bf16.msra.mxu0 %v120
    %2544 = vmatprep.subr.bf16.mxu0 %v129
    %2545 = vmatpush1.bf16.msra.mxu0 %v128
    %2546 = vmatprep.subr.bf16.mxu0 %v137
    %2547 = vmatpush1.bf16.msra.mxu0 %v136
    %2548 = vmatprep.subr.bf16.mxu0 %v145
    %2549 = vmatpush1.bf16.msra.mxu0 %v144
    %2550 = vmatprep.subr.bf16.mxu0 %v153
    %2551 = vmatpush1.bf16.msra.mxu0 %v152
    %2552 = vmatprep.subr.bf16.mxu0 %v161
    %2553 = vmatpush1.bf16.msra.mxu0 %v160
    %2554 = vmatprep.subr.bf16.mxu0 %v169
    %2555 = vmatpush1.bf16.msra.mxu0 %v168
    %2556 = vmatprep.subr.bf16.mxu0 %v177
    %2557 = vmatpush1.bf16.msra.mxu0 %v176
    %2558 = vmatprep.subr.bf16.mxu0 %v185
    %2559 = vmatpush1.bf16.msra.mxu0 %v184
    %2560 = vmatprep.subr.bf16.mxu0 %v193
    %2561 = vmatpush1.bf16.msra.mxu0 %v192
    %2562 = vmatprep.subr.bf16.mxu0 %v201
    %2563 = vmatpush1.bf16.msra.mxu0 %v200
    %2564 = vmatprep.subr.bf16.mxu0 %v209
    %2565 = vmatpush1.bf16.msra.mxu0 %v208
    %2566 = vmatprep.subr.bf16.mxu0 %v217
    %2567 = vmatpush1.bf16.msra.mxu0 %v216
    %2568 = vmatprep.mubr.bf16.mxu0 %v2201
    %2569 = vmatmul.mubr.bf16.gmra.mrb[0].mxu0 %v2200
    %v2570 = vpop.f32.mrb[0].mxu0
    %v2571 = vadd.f32 0.0, %v2570
    %v2572 = vpop.f32.mrb[0].mxu0
    %v2573 = vadd.f32 0.0, %v2572
    %v2574 = vpop.f32.mrb[0].mxu0
    %v2575 = vpop.f32.mrb[0].mxu0
    %2576 = vdwg.mxu0
    %2577 = vmatprep.subr.bf16.mxu0 %v225
    %2578 = vmatpush1.bf16.msra.mxu0 %v224
    %2579 = vmatprep.subr.bf16.mxu0 %v233
    %2580 = vmatpush1.bf16.msra.mxu0 %v232
    %2581 = vmatprep.subr.bf16.mxu0 %v241
    %2582 = vmatpush1.bf16.msra.mxu0 %v240
    %2583 = vmatprep.subr.bf16.mxu0 %v249
    %2584 = vmatpush1.bf16.msra.mxu0 %v248
    %2585 = vmatprep.subr.bf16.mxu0 %v257
    %2586 = vmatpush1.bf16.msra.mxu0 %v256
    %2587 = vmatprep.subr.bf16.mxu0 %v265
    %2588 = vmatpush1.bf16.msra.mxu0 %v264
    %2589 = vmatprep.subr.bf16.mxu0 %v273
    %2590 = vmatpush1.bf16.msra.mxu0 %v272
    %2591 = vmatprep.subr.bf16.mxu0 %v281
    %2592 = vmatpush1.bf16.msra.mxu0 %v280
    %2593 = vmatprep.subr.bf16.mxu0 %v289
    %2594 = vmatpush1.bf16.msra.mxu0 %v288
    %2595 = vmatprep.subr.bf16.mxu0 %v297
    %2596 = vmatpush1.bf16.msra.mxu0 %v296
    %2597 = vmatprep.subr.bf16.mxu0 %v305
    %2598 = vmatpush1.bf16.msra.mxu0 %v304
    %2599 = vmatprep.subr.bf16.mxu0 %v313
    %2600 = vmatpush1.bf16.msra.mxu0 %v312
    %2601 = vmatprep.subr.bf16.mxu0 %v321
    %2602 = vmatpush1.bf16.msra.mxu0 %v320
    %2603 = vmatprep.subr.bf16.mxu0 %v329
    %2604 = vmatpush1.bf16.msra.mxu0 %v328
    %2605 = vmatprep.subr.bf16.mxu0 %v337
    %2606 = vmatpush1.bf16.msra.mxu0 %v336
    %2607 = vmatprep.subr.bf16.mxu0 %v345
    %2608 = vmatpush1.bf16.msra.mxu0 %v344
    %2609 = vmatprep.mubr.bf16.mxu0 %v2203
    %2610 = vmatmul.mubr.bf16.gmra.mrb[0].mxu0 %v2202
    %v2611 = vpop.f32.mrb[0].mxu0
    %v2612 = vadd.f32 %v2571, %v2611
    %v2613 = vpop.f32.mrb[0].mxu0
    %v2614 = vadd.f32 %v2573, %v2613
    %v2615 = vpop.f32.mrb[0].mxu0
    %v2616 = vpop.f32.mrb[0].mxu0
    %2617 = vdwg.mxu0
    %2618 = vmatprep.subr.bf16.mxu0 %v353
    %2619 = vmatpush1.bf16.msra.mxu0 %v352
    %2620 = vmatprep.subr.bf16.mxu0 %v361
    %2621 = vmatpush1.bf16.msra.mxu0 %v360
    %2622 = vmatprep.subr.bf16.mxu0 %v369
    %2623 = vmatpush1.bf16.msra.mxu0 %v368
    %2624 = vmatprep.subr.bf16.mxu0 %v377
    %2625 = vmatpush1.bf16.msra.mxu0 %v376
    %2626 = vmatprep.subr.bf16.mxu0 %v385
    %2627 = vmatpush1.bf16.msra.mxu0 %v384
    %2628 = vmatprep.subr.bf16.mxu0 %v393
    %2629 = vmatpush1.bf16.msra.mxu0 %v392
    %2630 = vmatprep.subr.bf16.mxu0 %v401
    %2631 = vmatpush1.bf16.msra.mxu0 %v400
    %2632 = vmatprep.subr.bf16.mxu0 %v409
    %2633 = vmatpush1.bf16.msra.mxu0 %v408
    %2634 = vmatprep.subr.bf16.mxu0 %v417
    %2635 = vmatpush1.bf16.msra.mxu0 %v416
    %2636 = vmatprep.subr.bf16.mxu0 %v425
    %2637 = vmatpush1.bf16.msra.mxu0 %v424
    %2638 = vmatprep.subr.bf16.mxu0 %v433
    %2639 = vmatpush1.bf16.msra.mxu0 %v432
    %2640 = vmatprep.subr.bf16.mxu0 %v441
    %2641 = vmatpush1.bf16.msra.mxu0 %v440
    %2642 = vmatprep.subr.bf16.mxu0 %v449
    %2643 = vmatpush1.bf16.msra.mxu0 %v448
    %2644 = vmatprep.subr.bf16.mxu0 %v457
    %2645 = vmatpush1.bf16.msra.mxu0 %v456
    %2646 = vmatprep.subr.bf16.mxu0 %v465
    %2647 = vmatpush1.bf16.msra.mxu0 %v464
    %2648 = vmatprep.subr.bf16.mxu0 %v473
    %2649 = vmatpush1.bf16.msra.mxu0 %v472
    %2650 = vmatprep.mubr.bf16.mxu0 %v2205
    %2651 = vmatmul.mubr.bf16.gmra.mrb[0].mxu0 %v2204
    %v2652 = vpop.f32.mrb[0].mxu0
    %v2653 = vadd.f32 %v2612, %v2652
    %v2654 = vpop.f32.mrb[0].mxu0
    %v2655 = vadd.f32 %v2614, %v2654
    %v2656 = vpop.f32.mrb[0].mxu0
    %v2657 = vpop.f32.mrb[0].mxu0
    %2658 = vdwg.mxu0
    %2659 = vmatprep.subr.bf16.mxu0 %v481
    %2660 = vmatpush1.bf16.msra.mxu0 %v480
    %2661 = vmatprep.subr.bf16.mxu0 %v489
    %2662 = vmatpush1.bf16.msra.mxu0 %v488
    %2663 = vmatprep.subr.bf16.mxu0 %v497
    %2664 = vmatpush1.bf16.msra.mxu0 %v496
    %2665 = vmatprep.subr.bf16.mxu0 %v505
    %2666 = vmatpush1.bf16.msra.mxu0 %v504
    %2667 = vmatprep.subr.bf16.mxu0 %v513
    %2668 = vmatpush1.bf16.msra.mxu0 %v512
    %2669 = vmatprep.subr.bf16.mxu0 %v521
    %2670 = vmatpush1.bf16.msra.mxu0 %v520
    %2671 = vmatprep.subr.bf16.mxu0 %v529
    %2672 = vmatpush1.bf16.msra.mxu0 %v528
    %2673 = vmatprep.subr.bf16.mxu0 %v537
    %2674 = vmatpush1.bf16.msra.mxu0 %v536
    %2675 = vmatprep.subr.bf16.mxu0 %v545
    %2676 = vmatpush1.bf16.msra.mxu0 %v544
    %2677 = vmatprep.subr.bf16.mxu0 %v553
    %2678 = vmatpush1.bf16.msra.mxu0 %v552
    %2679 = vmatprep.subr.bf16.mxu0 %v561
    %2680 = vmatpush1.bf16.msra.mxu0 %v560
    %2681 = vmatprep.subr.bf16.mxu0 %v569
    %2682 = vmatpush1.bf16.msra.mxu0 %v568
    %2683 = vmatprep.subr.bf16.mxu0 %v577
    %2684 = vmatpush1.bf16.msra.mxu0 %v576
    %2685 = vmatprep.subr.bf16.mxu0 %v585
    %2686 = vmatpush1.bf16.msra.mxu0 %v584
    %2687 = vmatprep.subr.bf16.mxu0 %v593
    %2688 = vmatpush1.bf16.msra.mxu0 %v592
    %2689 = vmatprep.subr.bf16.mxu0 %v601
    %2690 = vmatpush1.bf16.msra.mxu0 %v600
    %2691 = vmatprep.mubr.bf16.mxu0 %v2207
    %2692 = vmatmul.mubr.bf16.gmra.mrb[0].mxu0 %v2206
    %v2693 = vpop.f32.mrb[0].mxu0
    %v2694 = vadd.f32 %v2653, %v2693
    %v2695 = vpop.f32.mrb[0].mxu0
    %v2696 = vadd.f32 %v2655, %v2695
    %v2697 = vpop.f32.mrb[0].mxu0
    %v2698 = vpop.f32.mrb[0].mxu0
    %2699 = vdwg.mxu0
    %2700 = vmatprep.subr.bf16.mxu0 %v99
    %2701 = vmatpush1.bf16.msra.mxu0 %v98
    %2702 = vmatprep.subr.bf16.mxu0 %v107
    %2703 = vmatpush1.bf16.msra.mxu0 %v106
    %2704 = vmatprep.subr.bf16.mxu0 %v115
    %2705 = vmatpush1.bf16.msra.mxu0 %v114
    %2706 = vmatprep.subr.bf16.mxu0 %v123
    %2707 = vmatpush1.bf16.msra.mxu0 %v122
    %2708 = vmatprep.subr.bf16.mxu0 %v131
    %2709 = vmatpush1.bf16.msra.mxu0 %v130
    %2710 = vmatprep.subr.bf16.mxu0 %v139
    %2711 = vmatpush1.bf16.msra.mxu0 %v138
    %2712 = vmatprep.subr.bf16.mxu0 %v147
    %2713 = vmatpush1.bf16.msra.mxu0 %v146
    %2714 = vmatprep.subr.bf16.mxu0 %v155
    %2715 = vmatpush1.bf16.msra.mxu0 %v154
    %2716 = vmatprep.subr.bf16.mxu0 %v163
    %2717 = vmatpush1.bf16.msra.mxu0 %v162
    %2718 = vmatprep.subr.bf16.mxu0 %v171
    %2719 = vmatpush1.bf16.msra.mxu0 %v170
    %2720 = vmatprep.subr.bf16.mxu0 %v179
    %2721 = vmatpush1.bf16.msra.mxu0 %v178
    %2722 = vmatprep.subr.bf16.mxu0 %v187
    %2723 = vmatpush1.bf16.msra.mxu0 %v186
    %2724 = vmatprep.subr.bf16.mxu0 %v195
    %2725 = vmatpush1.bf16.msra.mxu0 %v194
    %2726 = vmatprep.subr.bf16.mxu0 %v203
    %2727 = vmatpush1.bf16.msra.mxu0 %v202
    %2728 = vmatprep.subr.bf16.mxu0 %v211
    %2729 = vmatpush1.bf16.msra.mxu0 %v210
    %2730 = vmatprep.subr.bf16.mxu0 %v219
    %2731 = vmatpush1.bf16.msra.mxu0 %v218
    %2732 = vmatprep.mubr.bf16.mxu0 %v2201
    %2733 = vmatmul.mubr.bf16.gmra.mrb[0].mxu0 %v2200
    %v2734 = vpop.f32.mrb[0].mxu0
    %v2735 = vadd.f32 0.0, %v2734
    %v2736 = vpop.f32.mrb[0].mxu0
    %v2737 = vadd.f32 0.0, %v2736
    %v2738 = vpop.f32.mrb[0].mxu0
    %v2739 = vpop.f32.mrb[0].mxu0
    %2740 = vdwg.mxu0
    %2741 = vmatprep.subr.bf16.mxu0 %v227
    %2742 = vmatpush1.bf16.msra.mxu0 %v226
    %2743 = vmatprep.subr.bf16.mxu0 %v235
    %2744 = vmatpush1.bf16.msra.mxu0 %v234
    %2745 = vmatprep.subr.bf16.mxu0 %v243
    %2746 = vmatpush1.bf16.msra.mxu0 %v242
    %2747 = vmatprep.subr.bf16.mxu0 %v251
    %2748 = vmatpush1.bf16.msra.mxu0 %v250
    %2749 = vmatprep.subr.bf16.mxu0 %v259
    %2750 = vmatpush1.bf16.msra.mxu0 %v258
    %2751 = vmatprep.subr.bf16.mxu0 %v267
    %2752 = vmatpush1.bf16.msra.mxu0 %v266
    %2753 = vmatprep.subr.bf16.mxu0 %v275
    %2754 = vmatpush1.bf16.msra.mxu0 %v274
    %2755 = vmatprep.subr.bf16.mxu0 %v283
    %2756 = vmatpush1.bf16.msra.mxu0 %v282
    %2757 = vmatprep.subr.bf16.mxu0 %v291
    %2758 = vmatpush1.bf16.msra.mxu0 %v290
    %2759 = vmatprep.subr.bf16.mxu0 %v299
    %2760 = vmatpush1.bf16.msra.mxu0 %v298
    %2761 = vmatprep.subr.bf16.mxu0 %v307
    %2762 = vmatpush1.bf16.msra.mxu0 %v306
    %2763 = vmatprep.subr.bf16.mxu0 %v315
    %2764 = vmatpush1.bf16.msra.mxu0 %v314
    %2765 = vmatprep.subr.bf16.mxu0 %v323
    %2766 = vmatpush1.bf16.msra.mxu0 %v322
    %2767 = vmatprep.subr.bf16.mxu0 %v331
    %2768 = vmatpush1.bf16.msra.mxu0 %v330
    %2769 = vmatprep.subr.bf16.mxu0 %v339
    %2770 = vmatpush1.bf16.msra.mxu0 %v338
    %2771 = vmatprep.subr.bf16.mxu0 %v347
    %2772 = vmatpush1.bf16.msra.mxu0 %v346
    %2773 = vmatprep.mubr.bf16.mxu0 %v2203
    %2774 = vmatmul.mubr.bf16.gmra.mrb[0].mxu0 %v2202
    %v2775 = vpop.f32.mrb[0].mxu0
    %v2776 = vadd.f32 %v2735, %v2775
    %v2777 = vpop.f32.mrb[0].mxu0
    %v2778 = vadd.f32 %v2737, %v2777
    %v2779 = vpop.f32.mrb[0].mxu0
    %v2780 = vpop.f32.mrb[0].mxu0
    %2781 = vdwg.mxu0
    %2782 = vmatprep.subr.bf16.mxu0 %v355
    %2783 = vmatpush1.bf16.msra.mxu0 %v354
    %2784 = vmatprep.subr.bf16.mxu0 %v363
    %2785 = vmatpush1.bf16.msra.mxu0 %v362
    %2786 = vmatprep.subr.bf16.mxu0 %v371
    %2787 = vmatpush1.bf16.msra.mxu0 %v370
    %2788 = vmatprep.subr.bf16.mxu0 %v379
    %2789 = vmatpush1.bf16.msra.mxu0 %v378
    %2790 = vmatprep.subr.bf16.mxu0 %v387
    %2791 = vmatpush1.bf16.msra.mxu0 %v386
    %2792 = vmatprep.subr.bf16.mxu0 %v395
    %2793 = vmatpush1.bf16.msra.mxu0 %v394
    %2794 = vmatprep.subr.bf16.mxu0 %v403
    %2795 = vmatpush1.bf16.msra.mxu0 %v402
    %2796 = vmatprep.subr.bf16.mxu0 %v411
    %2797 = vmatpush1.bf16.msra.mxu0 %v410
    %2798 = vmatprep.subr.bf16.mxu0 %v419
    %2799 = vmatpush1.bf16.msra.mxu0 %v418
    %2800 = vmatprep.subr.bf16.mxu0 %v427
    %2801 = vmatpush1.bf16.msra.mxu0 %v426
    %2802 = vmatprep.subr.bf16.mxu0 %v435
    %2803 = vmatpush1.bf16.msra.mxu0 %v434
    %2804 = vmatprep.subr.bf16.mxu0 %v443
    %2805 = vmatpush1.bf16.msra.mxu0 %v442
    %2806 = vmatprep.subr.bf16.mxu0 %v451
    %2807 = vmatpush1.bf16.msra.mxu0 %v450
    %2808 = vmatprep.subr.bf16.mxu0 %v459
    %2809 = vmatpush1.bf16.msra.mxu0 %v458
    %2810 = vmatprep.subr.bf16.mxu0 %v467
    %2811 = vmatpush1.bf16.msra.mxu0 %v466
    %2812 = vmatprep.subr.bf16.mxu0 %v475
    %2813 = vmatpush1.bf16.msra.mxu0 %v474
    %2814 = vmatprep.mubr.bf16.mxu0 %v2205
    %2815 = vmatmul.mubr.bf16.gmra.mrb[0].mxu0 %v2204
    %v2816 = vpop.f32.mrb[0].mxu0
    %v2817 = vadd.f32 %v2776, %v2816
    %v2818 = vpop.f32.mrb[0].mxu0
    %v2819 = vadd.f32 %v2778, %v2818
    %v2820 = vpop.f32.mrb[0].mxu0
    %v2821 = vpop.f32.mrb[0].mxu0
    %2822 = vdwg.mxu0
    %2823 = vmatprep.subr.bf16.mxu0 %v483
    %2824 = vmatpush1.bf16.msra.mxu0 %v482
    %2825 = vmatprep.subr.bf16.mxu0 %v491
    %2826 = vmatpush1.bf16.msra.mxu0 %v490
    %2827 = vmatprep.subr.bf16.mxu0 %v499
    %2828 = vmatpush1.bf16.msra.mxu0 %v498
    %2829 = vmatprep.subr.bf16.mxu0 %v507
    %2830 = vmatpush1.bf16.msra.mxu0 %v506
    %2831 = vmatprep.subr.bf16.mxu0 %v515
    %2832 = vmatpush1.bf16.msra.mxu0 %v514
    %2833 = vmatprep.subr.bf16.mxu0 %v523
    %2834 = vmatpush1.bf16.msra.mxu0 %v522
    %2835 = vmatprep.subr.bf16.mxu0 %v531
    %2836 = vmatpush1.bf16.msra.mxu0 %v530
    %2837 = vmatprep.subr.bf16.mxu0 %v539
    %2838 = vmatpush1.bf16.msra.mxu0 %v538
    %2839 = vmatprep.subr.bf16.mxu0 %v547
    %2840 = vmatpush1.bf16.msra.mxu0 %v546
    %2841 = vmatprep.subr.bf16.mxu0 %v555
    %2842 = vmatpush1.bf16.msra.mxu0 %v554
    %2843 = vmatprep.subr.bf16.mxu0 %v563
    %2844 = vmatpush1.bf16.msra.mxu0 %v562
    %2845 = vmatprep.subr.bf16.mxu0 %v571
    %2846 = vmatpush1.bf16.msra.mxu0 %v570
    %2847 = vmatprep.subr.bf16.mxu0 %v579
    %2848 = vmatpush1.bf16.msra.mxu0 %v578
    %2849 = vmatprep.subr.bf16.mxu0 %v587
    %2850 = vmatpush1.bf16.msra.mxu0 %v586
    %2851 = vmatprep.subr.bf16.mxu0 %v595
    %2852 = vmatpush1.bf16.msra.mxu0 %v594
    %2853 = vmatprep.subr.bf16.mxu0 %v603
    %2854 = vmatpush1.bf16.msra.mxu0 %v602
    %2855 = vmatprep.mubr.bf16.mxu0 %v2207
    %2856 = vmatmul.mubr.bf16.gmra.mrb[0].mxu0 %v2206
    %v2857 = vpop.f32.mrb[0].mxu0
    %v2858 = vadd.f32 %v2817, %v2857
    %v2859 = vpop.f32.mrb[0].mxu0
    %v2860 = vadd.f32 %v2819, %v2859
    %v2861 = vpop.f32.mrb[0].mxu0
    %v2862 = vpop.f32.mrb[0].mxu0
    %2863 = vdwg.mxu0
    %v2864 = vtanh.pop %v2366
    %v2865 = vtanh.pop %v2368
    %v2866 = vtanh.pop %v2530
    %v2867 = vtanh.pop %v2532
    %v2868 = vtanh.pop %v2694
    %v2869 = vtanh.pop %v2696
    %v2870 = vtanh.pop %v2858
    %v2871 = vtanh.pop %v2860
    %s2872 = sadd.f32 %s69, 1.0
    %v2873 = vstv %s2872
    %v2874 = vmul.f32 %v2154, %v2873
    %v2875 = vmul.f32 %v2155, %v2873
    %v2876 = vstv %s69
    %v2877 = vmul.f32 %v2876, %v2864
    %v2878 = vmul.f32 %v2876, %v2865
    %v2879 = vmul.f32 %v2876, %v2866
    %v2880 = vmul.f32 %v2876, %v2867
    %v2881 = vmul.f32 %v2876, %v2868
    %v2882 = vmul.f32 %v2876, %v2869
    %v2883 = vmul.f32 %v2876, %v2870
    %v2884 = vmul.f32 %v2876, %v2871
    %v2893 = vcombine.low %v2877, %v2878
    %v2894 = vcombine.low %v2879, %v2880
    %v2896 = vunpack.c.l.s4 1983009808
    %v2897 = vunpack.c.0.s8 %v2896
    %v2898 = vlaneseq
    %v2899 = vshrl.u32 %v2898, 7
    %v2900 = vsub.s32 %v2897, %v2899
    %v2901 = vrot.slane %v2893, %v2900
    %v2903 = vunpack.c.l.s4 1983009808
    %v2904 = vunpack.c.0.s8 %v2903
    %v2905 = vlaneseq
    %v2906 = vshrl.u32 %v2905, 7
    %v2907 = vsub.s32 %v2904, %v2906
    %v2908 = vrot.slane %v2894, %v2907
    %v2909 = vcombine.low %v2901, %v2908
    %v2910 = vcombine.low %v2881, %v2882
    %v2911 = vcombine.low %v2883, %v2884
    %v2913 = vunpack.c.l.s4 1983009808
    %v2914 = vunpack.c.0.s8 %v2913
    %v2915 = vlaneseq
    %v2916 = vshrl.u32 %v2915, 7
    %v2917 = vsub.s32 %v2914, %v2916
    %v2918 = vrot.slane %v2910, %v2917
    %v2920 = vunpack.c.l.s4 1983009808
    %v2921 = vunpack.c.0.s8 %v2920
    %v2922 = vlaneseq
    %v2923 = vshrl.u32 %v2922, 7
    %v2924 = vsub.s32 %v2921, %v2923
    %v2925 = vrot.slane %v2911, %v2924
    %v2926 = vcombine.low %v2918, %v2925
    %v2929 = vadd.f32 %v2874, %v2909
    %v2930 = vadd.f32 %v2875, %v2926
    %v2933 = vcombine.high %v2929, %v2929
    %v2935 = vunpack.c.l.s4 1983009808
    %v2936 = vunpack.c.0.s8 %v2935
    %v2937 = vlaneseq
    %v2938 = vshrl.u32 %v2937, 7
    %v2939 = vsub.s32 %v2936, %v2938
    %v2940 = vrot.slane %v2929, %v2939
    %v2942 = vunpack.c.l.s4 1983009808
    %v2943 = vunpack.c.0.s8 %v2942
    %v2944 = vlaneseq
    %v2945 = vshrl.u32 %v2944, 7
    %v2946 = vsub.s32 %v2943, %v2945
    %v2947 = vrot.slane %v2933, %v2946
    %v2948 = vcombine.high %v2940, %v2940
    %v2949 = vcombine.high %v2947, %v2947
    %v2950 = vcombine.high %v2930, %v2930
    %v2952 = vunpack.c.l.s4 1983009808
    %v2953 = vunpack.c.0.s8 %v2952
    %v2954 = vlaneseq
    %v2955 = vshrl.u32 %v2954, 7
    %v2956 = vsub.s32 %v2953, %v2955
    %v2957 = vrot.slane %v2930, %v2956
    %v2959 = vunpack.c.l.s4 1983009808
    %v2960 = vunpack.c.0.s8 %v2959
    %v2961 = vlaneseq
    %v2962 = vshrl.u32 %v2961, 7
    %v2963 = vsub.s32 %v2960, %v2962
    %v2964 = vrot.slane %v2950, %v2963
    %v2965 = vcombine.high %v2957, %v2957
    %v2966 = vcombine.high %v2964, %v2964
    %v2975 = vpack.c.bf16 %v2940, %v2940
    %v2976 = vpack.c.bf16 %v2948, %v2948
    %v2977 = vpack.c.bf16 %v2947, %v2947
    %v2978 = vpack.c.bf16 %v2949, %v2949
    %v2979 = vpack.c.bf16 %v2957, %v2957
    %v2980 = vpack.c.bf16 %v2965, %v2965
    %v2981 = vpack.c.bf16 %v2964, %v2964
    %v2982 = vpack.c.bf16 %v2966, %v2966
    %2983 = vmatprep.subr.bf16.mxu0 %v93
    %2984 = vmatpush1.bf16.msra.mxu0 %v92
    %2985 = vmatprep.subr.bf16.mxu0 %v101
    %2986 = vmatpush1.bf16.msra.mxu0 %v100
    %2987 = vmatprep.subr.bf16.mxu0 %v109
    %2988 = vmatpush1.bf16.msra.mxu0 %v108
    %2989 = vmatprep.subr.bf16.mxu0 %v117
    %2990 = vmatpush1.bf16.msra.mxu0 %v116
    %2991 = vmatprep.subr.bf16.mxu0 %v125
    %2992 = vmatpush1.bf16.msra.mxu0 %v124
    %2993 = vmatprep.subr.bf16.mxu0 %v133
    %2994 = vmatpush1.bf16.msra.mxu0 %v132
    %2995 = vmatprep.subr.bf16.mxu0 %v141
    %2996 = vmatpush1.bf16.msra.mxu0 %v140
    %2997 = vmatprep.subr.bf16.mxu0 %v149
    %2998 = vmatpush1.bf16.msra.mxu0 %v148
    %2999 = vmatprep.subr.bf16.mxu0 %v157
    %3000 = vmatpush1.bf16.msra.mxu0 %v156
    %3001 = vmatprep.subr.bf16.mxu0 %v165
    %3002 = vmatpush1.bf16.msra.mxu0 %v164
    %3003 = vmatprep.subr.bf16.mxu0 %v173
    %3004 = vmatpush1.bf16.msra.mxu0 %v172
    %3005 = vmatprep.subr.bf16.mxu0 %v181
    %3006 = vmatpush1.bf16.msra.mxu0 %v180
    %3007 = vmatprep.subr.bf16.mxu0 %v189
    %3008 = vmatpush1.bf16.msra.mxu0 %v188
    %3009 = vmatprep.subr.bf16.mxu0 %v197
    %3010 = vmatpush1.bf16.msra.mxu0 %v196
    %3011 = vmatprep.subr.bf16.mxu0 %v205
    %3012 = vmatpush1.bf16.msra.mxu0 %v204
    %3013 = vmatprep.subr.bf16.mxu0 %v213
    %3014 = vmatpush1.bf16.msra.mxu0 %v212
    %3015 = vmatprep.mubr.bf16.mxu0 %v2976
    %3016 = vmatmul.mubr.bf16.gmra.mrb[0].mxu0 %v2975
    %v3017 = vpop.f32.mrb[0].mxu0
    %v3018 = vadd.f32 0.0, %v3017
    %v3019 = vpop.f32.mrb[0].mxu0
    %v3020 = vadd.f32 0.0, %v3019
    %v3021 = vpop.f32.mrb[0].mxu0
    %v3022 = vpop.f32.mrb[0].mxu0
    %3023 = vdwg.mxu0
    %3024 = vmatprep.subr.bf16.mxu0 %v221
    %3025 = vmatpush1.bf16.msra.mxu0 %v220
    %3026 = vmatprep.subr.bf16.mxu0 %v229
    %3027 = vmatpush1.bf16.msra.mxu0 %v228
    %3028 = vmatprep.subr.bf16.mxu0 %v237
    %3029 = vmatpush1.bf16.msra.mxu0 %v236
    %3030 = vmatprep.subr.bf16.mxu0 %v245
    %3031 = vmatpush1.bf16.msra.mxu0 %v244
    %3032 = vmatprep.subr.bf16.mxu0 %v253
    %3033 = vmatpush1.bf16.msra.mxu0 %v252
    %3034 = vmatprep.subr.bf16.mxu0 %v261
    %3035 = vmatpush1.bf16.msra.mxu0 %v260
    %3036 = vmatprep.subr.bf16.mxu0 %v269
    %3037 = vmatpush1.bf16.msra.mxu0 %v268
    %3038 = vmatprep.subr.bf16.mxu0 %v277
    %3039 = vmatpush1.bf16.msra.mxu0 %v276
    %3040 = vmatprep.subr.bf16.mxu0 %v285
    %3041 = vmatpush1.bf16.msra.mxu0 %v284
    %3042 = vmatprep.subr.bf16.mxu0 %v293
    %3043 = vmatpush1.bf16.msra.mxu0 %v292
    %3044 = vmatprep.subr.bf16.mxu0 %v301
    %3045 = vmatpush1.bf16.msra.mxu0 %v300
    %3046 = vmatprep.subr.bf16.mxu0 %v309
    %3047 = vmatpush1.bf16.msra.mxu0 %v308
    %3048 = vmatprep.subr.bf16.mxu0 %v317
    %3049 = vmatpush1.bf16.msra.mxu0 %v316
    %3050 = vmatprep.subr.bf16.mxu0 %v325
    %3051 = vmatpush1.bf16.msra.mxu0 %v324
    %3052 = vmatprep.subr.bf16.mxu0 %v333
    %3053 = vmatpush1.bf16.msra.mxu0 %v332
    %3054 = vmatprep.subr.bf16.mxu0 %v341
    %3055 = vmatpush1.bf16.msra.mxu0 %v340
    %3056 = vmatprep.mubr.bf16.mxu0 %v2978
    %3057 = vmatmul.mubr.bf16.gmra.mrb[0].mxu0 %v2977
    %v3058 = vpop.f32.mrb[0].mxu0
    %v3059 = vadd.f32 %v3018, %v3058
    %v3060 = vpop.f32.mrb[0].mxu0
    %v3061 = vadd.f32 %v3020, %v3060
    %v3062 = vpop.f32.mrb[0].mxu0
    %v3063 = vpop.f32.mrb[0].mxu0
    %3064 = vdwg.mxu0
    %3065 = vmatprep.subr.bf16.mxu0 %v349
    %3066 = vmatpush1.bf16.msra.mxu0 %v348
    %3067 = vmatprep.subr.bf16.mxu0 %v357
    %3068 = vmatpush1.bf16.msra.mxu0 %v356
    %3069 = vmatprep.subr.bf16.mxu0 %v365
    %3070 = vmatpush1.bf16.msra.mxu0 %v364
    %3071 = vmatprep.subr.bf16.mxu0 %v373
    %3072 = vmatpush1.bf16.msra.mxu0 %v372
    %3073 = vmatprep.subr.bf16.mxu0 %v381
    %3074 = vmatpush1.bf16.msra.mxu0 %v380
    %3075 = vmatprep.subr.bf16.mxu0 %v389
    %3076 = vmatpush1.bf16.msra.mxu0 %v388
    %3077 = vmatprep.subr.bf16.mxu0 %v397
    %3078 = vmatpush1.bf16.msra.mxu0 %v396
    %3079 = vmatprep.subr.bf16.mxu0 %v405
    %3080 = vmatpush1.bf16.msra.mxu0 %v404
    %3081 = vmatprep.subr.bf16.mxu0 %v413
    %3082 = vmatpush1.bf16.msra.mxu0 %v412
    %3083 = vmatprep.subr.bf16.mxu0 %v421
    %3084 = vmatpush1.bf16.msra.mxu0 %v420
    %3085 = vmatprep.subr.bf16.mxu0 %v429
    %3086 = vmatpush1.bf16.msra.mxu0 %v428
    %3087 = vmatprep.subr.bf16.mxu0 %v437
    %3088 = vmatpush1.bf16.msra.mxu0 %v436
    %3089 = vmatprep.subr.bf16.mxu0 %v445
    %3090 = vmatpush1.bf16.msra.mxu0 %v444
    %3091 = vmatprep.subr.bf16.mxu0 %v453
    %3092 = vmatpush1.bf16.msra.mxu0 %v452
    %3093 = vmatprep.subr.bf16.mxu0 %v461
    %3094 = vmatpush1.bf16.msra.mxu0 %v460
    %3095 = vmatprep.subr.bf16.mxu0 %v469
    %3096 = vmatpush1.bf16.msra.mxu0 %v468
    %3097 = vmatprep.mubr.bf16.mxu0 %v2980
    %3098 = vmatmul.mubr.bf16.gmra.mrb[0].mxu0 %v2979
    %v3099 = vpop.f32.mrb[0].mxu0
    %v3100 = vadd.f32 %v3059, %v3099
    %v3101 = vpop.f32.mrb[0].mxu0
    %v3102 = vadd.f32 %v3061, %v3101
    %v3103 = vpop.f32.mrb[0].mxu0
    %v3104 = vpop.f32.mrb[0].mxu0
    %3105 = vdwg.mxu0
    %3106 = vmatprep.subr.bf16.mxu0 %v477
    %3107 = vmatpush1.bf16.msra.mxu0 %v476
    %3108 = vmatprep.subr.bf16.mxu0 %v485
    %3109 = vmatpush1.bf16.msra.mxu0 %v484
    %3110 = vmatprep.subr.bf16.mxu0 %v493
    %3111 = vmatpush1.bf16.msra.mxu0 %v492
    %3112 = vmatprep.subr.bf16.mxu0 %v501
    %3113 = vmatpush1.bf16.msra.mxu0 %v500
    %3114 = vmatprep.subr.bf16.mxu0 %v509
    %3115 = vmatpush1.bf16.msra.mxu0 %v508
    %3116 = vmatprep.subr.bf16.mxu0 %v517
    %3117 = vmatpush1.bf16.msra.mxu0 %v516
    %3118 = vmatprep.subr.bf16.mxu0 %v525
    %3119 = vmatpush1.bf16.msra.mxu0 %v524
    %3120 = vmatprep.subr.bf16.mxu0 %v533
    %3121 = vmatpush1.bf16.msra.mxu0 %v532
    %3122 = vmatprep.subr.bf16.mxu0 %v541
    %3123 = vmatpush1.bf16.msra.mxu0 %v540
    %3124 = vmatprep.subr.bf16.mxu0 %v549
    %3125 = vmatpush1.bf16.msra.mxu0 %v548
    %3126 = vmatprep.subr.bf16.mxu0 %v557
    %3127 = vmatpush1.bf16.msra.mxu0 %v556
    %3128 = vmatprep.subr.bf16.mxu0 %v565
    %3129 = vmatpush1.bf16.msra.mxu0 %v564
    %3130 = vmatprep.subr.bf16.mxu0 %v573
    %3131 = vmatpush1.bf16.msra.mxu0 %v572
    %3132 = vmatprep.subr.bf16.mxu0 %v581
    %3133 = vmatpush1.bf16.msra.mxu0 %v580
    %3134 = vmatprep.subr.bf16.mxu0 %v589
    %3135 = vmatpush1.bf16.msra.mxu0 %v588
    %3136 = vmatprep.subr.bf16.mxu0 %v597
    %3137 = vmatpush1.bf16.msra.mxu0 %v596
    %3138 = vmatprep.mubr.bf16.mxu0 %v2982
    %3139 = vmatmul.mubr.bf16.gmra.mrb[0].mxu0 %v2981
    %v3140 = vpop.f32.mrb[0].mxu0
    %v3141 = vadd.f32 %v3100, %v3140
    %v3142 = vpop.f32.mrb[0].mxu0
    %v3143 = vadd.f32 %v3102, %v3142
    %v3144 = vpop.f32.mrb[0].mxu0
    %v3145 = vpop.f32.mrb[0].mxu0
    %3146 = vdwg.mxu0
    %3147 = vmatprep.subr.bf16.mxu0 %v95
    %3148 = vmatpush1.bf16.msra.mxu0 %v94
    %3149 = vmatprep.subr.bf16.mxu0 %v103
    %3150 = vmatpush1.bf16.msra.mxu0 %v102
    %3151 = vmatprep.subr.bf16.mxu0 %v111
    %3152 = vmatpush1.bf16.msra.mxu0 %v110
    %3153 = vmatprep.subr.bf16.mxu0 %v119
    %3154 = vmatpush1.bf16.msra.mxu0 %v118
    %3155 = vmatprep.subr.bf16.mxu0 %v127
    %3156 = vmatpush1.bf16.msra.mxu0 %v126
    %3157 = vmatprep.subr.bf16.mxu0 %v135
    %3158 = vmatpush1.bf16.msra.mxu0 %v134
    %3159 = vmatprep.subr.bf16.mxu0 %v143
    %3160 = vmatpush1.bf16.msra.mxu0 %v142
    %3161 = vmatprep.subr.bf16.mxu0 %v151
    %3162 = vmatpush1.bf16.msra.mxu0 %v150
    %3163 = vmatprep.subr.bf16.mxu0 %v159
    %3164 = vmatpush1.bf16.msra.mxu0 %v158
    %3165 = vmatprep.subr.bf16.mxu0 %v167
    %3166 = vmatpush1.bf16.msra.mxu0 %v166
    %3167 = vmatprep.subr.bf16.mxu0 %v175
    %3168 = vmatpush1.bf16.msra.mxu0 %v174
    %3169 = vmatprep.subr.bf16.mxu0 %v183
    %3170 = vmatpush1.bf16.msra.mxu0 %v182
    %3171 = vmatprep.subr.bf16.mxu0 %v191
    %3172 = vmatpush1.bf16.msra.mxu0 %v190
    %3173 = vmatprep.subr.bf16.mxu0 %v199
    %3174 = vmatpush1.bf16.msra.mxu0 %v198
    %3175 = vmatprep.subr.bf16.mxu0 %v207
    %3176 = vmatpush1.bf16.msra.mxu0 %v206
    %3177 = vmatprep.subr.bf16.mxu0 %v215
    %3178 = vmatpush1.bf16.msra.mxu0 %v214
    %3179 = vmatprep.mubr.bf16.mxu0 %v2976
    %3180 = vmatmul.mubr.bf16.gmra.mrb[0].mxu0 %v2975
    %v3181 = vpop.f32.mrb[0].mxu0
    %v3182 = vadd.f32 0.0, %v3181
    %v3183 = vpop.f32.mrb[0].mxu0
    %v3184 = vadd.f32 0.0, %v3183
    %v3185 = vpop.f32.mrb[0].mxu0
    %v3186 = vpop.f32.mrb[0].mxu0
    %3187 = vdwg.mxu0
    %3188 = vmatprep.subr.bf16.mxu0 %v223
    %3189 = vmatpush1.bf16.msra.mxu0 %v222
    %3190 = vmatprep.subr.bf16.mxu0 %v231
    %3191 = vmatpush1.bf16.msra.mxu0 %v230
    %3192 = vmatprep.subr.bf16.mxu0 %v239
    %3193 = vmatpush1.bf16.msra.mxu0 %v238
    %3194 = vmatprep.subr.bf16.mxu0 %v247
    %3195 = vmatpush1.bf16.msra.mxu0 %v246
    %3196 = vmatprep.subr.bf16.mxu0 %v255
    %3197 = vmatpush1.bf16.msra.mxu0 %v254
    %3198 = vmatprep.subr.bf16.mxu0 %v263
    %3199 = vmatpush1.bf16.msra.mxu0 %v262
    %3200 = vmatprep.subr.bf16.mxu0 %v271
    %3201 = vmatpush1.bf16.msra.mxu0 %v270
    %3202 = vmatprep.subr.bf16.mxu0 %v279
    %3203 = vmatpush1.bf16.msra.mxu0 %v278
    %3204 = vmatprep.subr.bf16.mxu0 %v287
    %3205 = vmatpush1.bf16.msra.mxu0 %v286
    %3206 = vmatprep.subr.bf16.mxu0 %v295
    %3207 = vmatpush1.bf16.msra.mxu0 %v294
    %3208 = vmatprep.subr.bf16.mxu0 %v303
    %3209 = vmatpush1.bf16.msra.mxu0 %v302
    %3210 = vmatprep.subr.bf16.mxu0 %v311
    %3211 = vmatpush1.bf16.msra.mxu0 %v310
    %3212 = vmatprep.subr.bf16.mxu0 %v319
    %3213 = vmatpush1.bf16.msra.mxu0 %v318
    %3214 = vmatprep.subr.bf16.mxu0 %v327
    %3215 = vmatpush1.bf16.msra.mxu0 %v326
    %3216 = vmatprep.subr.bf16.mxu0 %v335
    %3217 = vmatpush1.bf16.msra.mxu0 %v334
    %3218 = vmatprep.subr.bf16.mxu0 %v343
    %3219 = vmatpush1.bf16.msra.mxu0 %v342
    %3220 = vmatprep.mubr.bf16.mxu0 %v2978
    %3221 = vmatmul.mubr.bf16.gmra.mrb[0].mxu0 %v2977
    %v3222 = vpop.f32.mrb[0].mxu0
    %v3223 = vadd.f32 %v3182, %v3222
    %v3224 = vpop.f32.mrb[0].mxu0
    %v3225 = vadd.f32 %v3184, %v3224
    %v3226 = vpop.f32.mrb[0].mxu0
    %v3227 = vpop.f32.mrb[0].mxu0
    %3228 = vdwg.mxu0
    %3229 = vmatprep.subr.bf16.mxu0 %v351
    %3230 = vmatpush1.bf16.msra.mxu0 %v350
    %3231 = vmatprep.subr.bf16.mxu0 %v359
    %3232 = vmatpush1.bf16.msra.mxu0 %v358
    %3233 = vmatprep.subr.bf16.mxu0 %v367
    %3234 = vmatpush1.bf16.msra.mxu0 %v366
    %3235 = vmatprep.subr.bf16.mxu0 %v375
    %3236 = vmatpush1.bf16.msra.mxu0 %v374
    %3237 = vmatprep.subr.bf16.mxu0 %v383
    %3238 = vmatpush1.bf16.msra.mxu0 %v382
    %3239 = vmatprep.subr.bf16.mxu0 %v391
    %3240 = vmatpush1.bf16.msra.mxu0 %v390
    %3241 = vmatprep.subr.bf16.mxu0 %v399
    %3242 = vmatpush1.bf16.msra.mxu0 %v398
    %3243 = vmatprep.subr.bf16.mxu0 %v407
    %3244 = vmatpush1.bf16.msra.mxu0 %v406
    %3245 = vmatprep.subr.bf16.mxu0 %v415
    %3246 = vmatpush1.bf16.msra.mxu0 %v414
    %3247 = vmatprep.subr.bf16.mxu0 %v423
    %3248 = vmatpush1.bf16.msra.mxu0 %v422
    %3249 = vmatprep.subr.bf16.mxu0 %v431
    %3250 = vmatpush1.bf16.msra.mxu0 %v430
    %3251 = vmatprep.subr.bf16.mxu0 %v439
    %3252 = vmatpush1.bf16.msra.mxu0 %v438
    %3253 = vmatprep.subr.bf16.mxu0 %v447
    %3254 = vmatpush1.bf16.msra.mxu0 %v446
    %3255 = vmatprep.subr.bf16.mxu0 %v455
    %3256 = vmatpush1.bf16.msra.mxu0 %v454
    %3257 = vmatprep.subr.bf16.mxu0 %v463
    %3258 = vmatpush1.bf16.msra.mxu0 %v462
    %3259 = vmatprep.subr.bf16.mxu0 %v471
    %3260 = vmatpush1.bf16.msra.mxu0 %v470
    %3261 = vmatprep.mubr.bf16.mxu0 %v2980
    %3262 = vmatmul.mubr.bf16.gmra.mrb[0].mxu0 %v2979
    %v3263 = vpop.f32.mrb[0].mxu0
    %v3264 = vadd.f32 %v3223, %v3263
    %v3265 = vpop.f32.mrb[0].mxu0
    %v3266 = vadd.f32 %v3225, %v3265
    %v3267 = vpop.f32.mrb[0].mxu0
    %v3268 = vpop.f32.mrb[0].mxu0
    %3269 = vdwg.mxu0
    %3270 = vmatprep.subr.bf16.mxu0 %v479
    %3271 = vmatpush1.bf16.msra.mxu0 %v478
    %3272 = vmatprep.subr.bf16.mxu0 %v487
    %3273 = vmatpush1.bf16.msra.mxu0 %v486
    %3274 = vmatprep.subr.bf16.mxu0 %v495
    %3275 = vmatpush1.bf16.msra.mxu0 %v494
    %3276 = vmatprep.subr.bf16.mxu0 %v503
    %3277 = vmatpush1.bf16.msra.mxu0 %v502
    %3278 = vmatprep.subr.bf16.mxu0 %v511
    %3279 = vmatpush1.bf16.msra.mxu0 %v510
    %3280 = vmatprep.subr.bf16.mxu0 %v519
    %3281 = vmatpush1.bf16.msra.mxu0 %v518
    %3282 = vmatprep.subr.bf16.mxu0 %v527
    %3283 = vmatpush1.bf16.msra.mxu0 %v526
    %3284 = vmatprep.subr.bf16.mxu0 %v535
    %3285 = vmatpush1.bf16.msra.mxu0 %v534
    %3286 = vmatprep.subr.bf16.mxu0 %v543
    %3287 = vmatpush1.bf16.msra.mxu0 %v542
    %3288 = vmatprep.subr.bf16.mxu0 %v551
    %3289 = vmatpush1.bf16.msra.mxu0 %v550
    %3290 = vmatprep.subr.bf16.mxu0 %v559
    %3291 = vmatpush1.bf16.msra.mxu0 %v558
    %3292 = vmatprep.subr.bf16.mxu0 %v567
    %3293 = vmatpush1.bf16.msra.mxu0 %v566
    %3294 = vmatprep.subr.bf16.mxu0 %v575
    %3295 = vmatpush1.bf16.msra.mxu0 %v574
    %3296 = vmatprep.subr.bf16.mxu0 %v583
    %3297 = vmatpush1.bf16.msra.mxu0 %v582
    %3298 = vmatprep.subr.bf16.mxu0 %v591
    %3299 = vmatpush1.bf16.msra.mxu0 %v590
    %3300 = vmatprep.subr.bf16.mxu0 %v599
    %3301 = vmatpush1.bf16.msra.mxu0 %v598
    %3302 = vmatprep.mubr.bf16.mxu0 %v2982
    %3303 = vmatmul.mubr.bf16.gmra.mrb[0].mxu0 %v2981
    %v3304 = vpop.f32.mrb[0].mxu0
    %v3305 = vadd.f32 %v3264, %v3304
    %v3306 = vpop.f32.mrb[0].mxu0
    %v3307 = vadd.f32 %v3266, %v3306
    %v3308 = vpop.f32.mrb[0].mxu0
    %v3309 = vpop.f32.mrb[0].mxu0
    %3310 = vdwg.mxu0
    %3311 = vmatprep.subr.bf16.mxu0 %v97
    %3312 = vmatpush1.bf16.msra.mxu0 %v96
    %3313 = vmatprep.subr.bf16.mxu0 %v105
    %3314 = vmatpush1.bf16.msra.mxu0 %v104
    %3315 = vmatprep.subr.bf16.mxu0 %v113
    %3316 = vmatpush1.bf16.msra.mxu0 %v112
    %3317 = vmatprep.subr.bf16.mxu0 %v121
    %3318 = vmatpush1.bf16.msra.mxu0 %v120
    %3319 = vmatprep.subr.bf16.mxu0 %v129
    %3320 = vmatpush1.bf16.msra.mxu0 %v128
    %3321 = vmatprep.subr.bf16.mxu0 %v137
    %3322 = vmatpush1.bf16.msra.mxu0 %v136
    %3323 = vmatprep.subr.bf16.mxu0 %v145
    %3324 = vmatpush1.bf16.msra.mxu0 %v144
    %3325 = vmatprep.subr.bf16.mxu0 %v153
    %3326 = vmatpush1.bf16.msra.mxu0 %v152
    %3327 = vmatprep.subr.bf16.mxu0 %v161
    %3328 = vmatpush1.bf16.msra.mxu0 %v160
    %3329 = vmatprep.subr.bf16.mxu0 %v169
    %3330 = vmatpush1.bf16.msra.mxu0 %v168
    %3331 = vmatprep.subr.bf16.mxu0 %v177
    %3332 = vmatpush1.bf16.msra.mxu0 %v176
    %3333 = vmatprep.subr.bf16.mxu0 %v185
    %3334 = vmatpush1.bf16.msra.mxu0 %v184
    %3335 = vmatprep.subr.bf16.mxu0 %v193
    %3336 = vmatpush1.bf16.msra.mxu0 %v192
    %3337 = vmatprep.subr.bf16.mxu0 %v201
    %3338 = vmatpush1.bf16.msra.mxu0 %v200
    %3339 = vmatprep.subr.bf16.mxu0 %v209
    %3340 = vmatpush1.bf16.msra.mxu0 %v208
    %3341 = vmatprep.subr.bf16.mxu0 %v217
    %3342 = vmatpush1.bf16.msra.mxu0 %v216
    %3343 = vmatprep.mubr.bf16.mxu0 %v2976
    %3344 = vmatmul.mubr.bf16.gmra.mrb[0].mxu0 %v2975
    %v3345 = vpop.f32.mrb[0].mxu0
    %v3346 = vadd.f32 0.0, %v3345
    %v3347 = vpop.f32.mrb[0].mxu0
    %v3348 = vadd.f32 0.0, %v3347
    %v3349 = vpop.f32.mrb[0].mxu0
    %v3350 = vpop.f32.mrb[0].mxu0
    %3351 = vdwg.mxu0
    %3352 = vmatprep.subr.bf16.mxu0 %v225
    %3353 = vmatpush1.bf16.msra.mxu0 %v224
    %3354 = vmatprep.subr.bf16.mxu0 %v233
    %3355 = vmatpush1.bf16.msra.mxu0 %v232
    %3356 = vmatprep.subr.bf16.mxu0 %v241
    %3357 = vmatpush1.bf16.msra.mxu0 %v240
    %3358 = vmatprep.subr.bf16.mxu0 %v249
    %3359 = vmatpush1.bf16.msra.mxu0 %v248
    %3360 = vmatprep.subr.bf16.mxu0 %v257
    %3361 = vmatpush1.bf16.msra.mxu0 %v256
    %3362 = vmatprep.subr.bf16.mxu0 %v265
    %3363 = vmatpush1.bf16.msra.mxu0 %v264
    %3364 = vmatprep.subr.bf16.mxu0 %v273
    %3365 = vmatpush1.bf16.msra.mxu0 %v272
    %3366 = vmatprep.subr.bf16.mxu0 %v281
    %3367 = vmatpush1.bf16.msra.mxu0 %v280
    %3368 = vmatprep.subr.bf16.mxu0 %v289
    %3369 = vmatpush1.bf16.msra.mxu0 %v288
    %3370 = vmatprep.subr.bf16.mxu0 %v297
    %3371 = vmatpush1.bf16.msra.mxu0 %v296
    %3372 = vmatprep.subr.bf16.mxu0 %v305
    %3373 = vmatpush1.bf16.msra.mxu0 %v304
    %3374 = vmatprep.subr.bf16.mxu0 %v313
    %3375 = vmatpush1.bf16.msra.mxu0 %v312
    %3376 = vmatprep.subr.bf16.mxu0 %v321
    %3377 = vmatpush1.bf16.msra.mxu0 %v320
    %3378 = vmatprep.subr.bf16.mxu0 %v329
    %3379 = vmatpush1.bf16.msra.mxu0 %v328
    %3380 = vmatprep.subr.bf16.mxu0 %v337
    %3381 = vmatpush1.bf16.msra.mxu0 %v336
    %3382 = vmatprep.subr.bf16.mxu0 %v345
    %3383 = vmatpush1.bf16.msra.mxu0 %v344
    %3384 = vmatprep.mubr.bf16.mxu0 %v2978
    %3385 = vmatmul.mubr.bf16.gmra.mrb[0].mxu0 %v2977
    %v3386 = vpop.f32.mrb[0].mxu0
    %v3387 = vadd.f32 %v3346, %v3386
    %v3388 = vpop.f32.mrb[0].mxu0
    %v3389 = vadd.f32 %v3348, %v3388
    %v3390 = vpop.f32.mrb[0].mxu0
    %v3391 = vpop.f32.mrb[0].mxu0
    %3392 = vdwg.mxu0
    %3393 = vmatprep.subr.bf16.mxu0 %v353
    %3394 = vmatpush1.bf16.msra.mxu0 %v352
    %3395 = vmatprep.subr.bf16.mxu0 %v361
    %3396 = vmatpush1.bf16.msra.mxu0 %v360
    %3397 = vmatprep.subr.bf16.mxu0 %v369
    %3398 = vmatpush1.bf16.msra.mxu0 %v368
    %3399 = vmatprep.subr.bf16.mxu0 %v377
    %3400 = vmatpush1.bf16.msra.mxu0 %v376
    %3401 = vmatprep.subr.bf16.mxu0 %v385
    %3402 = vmatpush1.bf16.msra.mxu0 %v384
    %3403 = vmatprep.subr.bf16.mxu0 %v393
    %3404 = vmatpush1.bf16.msra.mxu0 %v392
    %3405 = vmatprep.subr.bf16.mxu0 %v401
    %3406 = vmatpush1.bf16.msra.mxu0 %v400
    %3407 = vmatprep.subr.bf16.mxu0 %v409
    %3408 = vmatpush1.bf16.msra.mxu0 %v408
    %3409 = vmatprep.subr.bf16.mxu0 %v417
    %3410 = vmatpush1.bf16.msra.mxu0 %v416
    %3411 = vmatprep.subr.bf16.mxu0 %v425
    %3412 = vmatpush1.bf16.msra.mxu0 %v424
    %3413 = vmatprep.subr.bf16.mxu0 %v433
    %3414 = vmatpush1.bf16.msra.mxu0 %v432
    %3415 = vmatprep.subr.bf16.mxu0 %v441
    %3416 = vmatpush1.bf16.msra.mxu0 %v440
    %3417 = vmatprep.subr.bf16.mxu0 %v449
    %3418 = vmatpush1.bf16.msra.mxu0 %v448
    %3419 = vmatprep.subr.bf16.mxu0 %v457
    %3420 = vmatpush1.bf16.msra.mxu0 %v456
    %3421 = vmatprep.subr.bf16.mxu0 %v465
    %3422 = vmatpush1.bf16.msra.mxu0 %v464
    %3423 = vmatprep.subr.bf16.mxu0 %v473
    %3424 = vmatpush1.bf16.msra.mxu0 %v472
    %3425 = vmatprep.mubr.bf16.mxu0 %v2980
    %3426 = vmatmul.mubr.bf16.gmra.mrb[0].mxu0 %v2979
    %v3427 = vpop.f32.mrb[0].mxu0
    %v3428 = vadd.f32 %v3387, %v3427
    %v3429 = vpop.f32.mrb[0].mxu0
    %v3430 = vadd.f32 %v3389, %v3429
    %v3431 = vpop.f32.mrb[0].mxu0
    %v3432 = vpop.f32.mrb[0].mxu0
    %3433 = vdwg.mxu0
    %3434 = vmatprep.subr.bf16.mxu0 %v481
    %3435 = vmatpush1.bf16.msra.mxu0 %v480
    %3436 = vmatprep.subr.bf16.mxu0 %v489
    %3437 = vmatpush1.bf16.msra.mxu0 %v488
    %3438 = vmatprep.subr.bf16.mxu0 %v497
    %3439 = vmatpush1.bf16.msra.mxu0 %v496
    %3440 = vmatprep.subr.bf16.mxu0 %v505
    %3441 = vmatpush1.bf16.msra.mxu0 %v504
    %3442 = vmatprep.subr.bf16.mxu0 %v513
    %3443 = vmatpush1.bf16.msra.mxu0 %v512
    %3444 = vmatprep.subr.bf16.mxu0 %v521
    %3445 = vmatpush1.bf16.msra.mxu0 %v520
    %3446 = vmatprep.subr.bf16.mxu0 %v529
    %3447 = vmatpush1.bf16.msra.mxu0 %v528
    %3448 = vmatprep.subr.bf16.mxu0 %v537
    %3449 = vmatpush1.bf16.msra.mxu0 %v536
    %3450 = vmatprep.subr.bf16.mxu0 %v545
    %3451 = vmatpush1.bf16.msra.mxu0 %v544
    %3452 = vmatprep.subr.bf16.mxu0 %v553
    %3453 = vmatpush1.bf16.msra.mxu0 %v552
    %3454 = vmatprep.subr.bf16.mxu0 %v561
    %3455 = vmatpush1.bf16.msra.mxu0 %v560
    %3456 = vmatprep.subr.bf16.mxu0 %v569
    %3457 = vmatpush1.bf16.msra.mxu0 %v568
    %3458 = vmatprep.subr.bf16.mxu0 %v577
    %3459 = vmatpush1.bf16.msra.mxu0 %v576
    %3460 = vmatprep.subr.bf16.mxu0 %v585
    %3461 = vmatpush1.bf16.msra.mxu0 %v584
    %3462 = vmatprep.subr.bf16.mxu0 %v593
    %3463 = vmatpush1.bf16.msra.mxu0 %v592
    %3464 = vmatprep.subr.bf16.mxu0 %v601
    %3465 = vmatpush1.bf16.msra.mxu0 %v600
    %3466 = vmatprep.mubr.bf16.mxu0 %v2982
    %3467 = vmatmul.mubr.bf16.gmra.mrb[0].mxu0 %v2981
    %v3468 = vpop.f32.mrb[0].mxu0
    %v3469 = vadd.f32 %v3428, %v3468
    %v3470 = vpop.f32.mrb[0].mxu0
    %v3471 = vadd.f32 %v3430, %v3470
    %v3472 = vpop.f32.mrb[0].mxu0
    %v3473 = vpop.f32.mrb[0].mxu0
    %3474 = vdwg.mxu0
    %3475 = vmatprep.subr.bf16.mxu0 %v99
    %3476 = vmatpush1.bf16.msra.mxu0 %v98
    %3477 = vmatprep.subr.bf16.mxu0 %v107
    %3478 = vmatpush1.bf16.msra.mxu0 %v106
    %3479 = vmatprep.subr.bf16.mxu0 %v115
    %3480 = vmatpush1.bf16.msra.mxu0 %v114
    %3481 = vmatprep.subr.bf16.mxu0 %v123
    %3482 = vmatpush1.bf16.msra.mxu0 %v122
    %3483 = vmatprep.subr.bf16.mxu0 %v131
    %3484 = vmatpush1.bf16.msra.mxu0 %v130
    %3485 = vmatprep.subr.bf16.mxu0 %v139
    %3486 = vmatpush1.bf16.msra.mxu0 %v138
    %3487 = vmatprep.subr.bf16.mxu0 %v147
    %3488 = vmatpush1.bf16.msra.mxu0 %v146
    %3489 = vmatprep.subr.bf16.mxu0 %v155
    %3490 = vmatpush1.bf16.msra.mxu0 %v154
    %3491 = vmatprep.subr.bf16.mxu0 %v163
    %3492 = vmatpush1.bf16.msra.mxu0 %v162
    %3493 = vmatprep.subr.bf16.mxu0 %v171
    %3494 = vmatpush1.bf16.msra.mxu0 %v170
    %3495 = vmatprep.subr.bf16.mxu0 %v179
    %3496 = vmatpush1.bf16.msra.mxu0 %v178
    %3497 = vmatprep.subr.bf16.mxu0 %v187
    %3498 = vmatpush1.bf16.msra.mxu0 %v186
    %3499 = vmatprep.subr.bf16.mxu0 %v195
    %3500 = vmatpush1.bf16.msra.mxu0 %v194
    %3501 = vmatprep.subr.bf16.mxu0 %v203
    %3502 = vmatpush1.bf16.msra.mxu0 %v202
    %3503 = vmatprep.subr.bf16.mxu0 %v211
    %3504 = vmatpush1.bf16.msra.mxu0 %v210
    %3505 = vmatprep.subr.bf16.mxu0 %v219
    %3506 = vmatpush1.bf16.msra.mxu0 %v218
    %3507 = vmatprep.mubr.bf16.mxu0 %v2976
    %3508 = vmatmul.mubr.bf16.gmra.mrb[0].mxu0 %v2975
    %v3509 = vpop.f32.mrb[0].mxu0
    %v3510 = vadd.f32 0.0, %v3509
    %v3511 = vpop.f32.mrb[0].mxu0
    %v3512 = vadd.f32 0.0, %v3511
    %v3513 = vpop.f32.mrb[0].mxu0
    %v3514 = vpop.f32.mrb[0].mxu0
    %3515 = vdwg.mxu0
    %3516 = vmatprep.subr.bf16.mxu0 %v227
    %3517 = vmatpush1.bf16.msra.mxu0 %v226
    %3518 = vmatprep.subr.bf16.mxu0 %v235
    %3519 = vmatpush1.bf16.msra.mxu0 %v234
    %3520 = vmatprep.subr.bf16.mxu0 %v243
    %3521 = vmatpush1.bf16.msra.mxu0 %v242
    %3522 = vmatprep.subr.bf16.mxu0 %v251
    %3523 = vmatpush1.bf16.msra.mxu0 %v250
    %3524 = vmatprep.subr.bf16.mxu0 %v259
    %3525 = vmatpush1.bf16.msra.mxu0 %v258
    %3526 = vmatprep.subr.bf16.mxu0 %v267
    %3527 = vmatpush1.bf16.msra.mxu0 %v266
    %3528 = vmatprep.subr.bf16.mxu0 %v275
    %3529 = vmatpush1.bf16.msra.mxu0 %v274
    %3530 = vmatprep.subr.bf16.mxu0 %v283
    %3531 = vmatpush1.bf16.msra.mxu0 %v282
    %3532 = vmatprep.subr.bf16.mxu0 %v291
    %3533 = vmatpush1.bf16.msra.mxu0 %v290
    %3534 = vmatprep.subr.bf16.mxu0 %v299
    %3535 = vmatpush1.bf16.msra.mxu0 %v298
    %3536 = vmatprep.subr.bf16.mxu0 %v307
    %3537 = vmatpush1.bf16.msra.mxu0 %v306
    %3538 = vmatprep.subr.bf16.mxu0 %v315
    %3539 = vmatpush1.bf16.msra.mxu0 %v314
    %3540 = vmatprep.subr.bf16.mxu0 %v323
    %3541 = vmatpush1.bf16.msra.mxu0 %v322
    %3542 = vmatprep.subr.bf16.mxu0 %v331
    %3543 = vmatpush1.bf16.msra.mxu0 %v330
    %3544 = vmatprep.subr.bf16.mxu0 %v339
    %3545 = vmatpush1.bf16.msra.mxu0 %v338
    %3546 = vmatprep.subr.bf16.mxu0 %v347
    %3547 = vmatpush1.bf16.msra.mxu0 %v346
    %3548 = vmatprep.mubr.bf16.mxu0 %v2978
    %3549 = vmatmul.mubr.bf16.gmra.mrb[0].mxu0 %v2977
    %v3550 = vpop.f32.mrb[0].mxu0
    %v3551 = vadd.f32 %v3510, %v3550
    %v3552 = vpop.f32.mrb[0].mxu0
    %v3553 = vadd.f32 %v3512, %v3552
    %v3554 = vpop.f32.mrb[0].mxu0
    %v3555 = vpop.f32.mrb[0].mxu0
    %3556 = vdwg.mxu0
    %3557 = vmatprep.subr.bf16.mxu0 %v355
    %3558 = vmatpush1.bf16.msra.mxu0 %v354
    %3559 = vmatprep.subr.bf16.mxu0 %v363
    %3560 = vmatpush1.bf16.msra.mxu0 %v362
    %3561 = vmatprep.subr.bf16.mxu0 %v371
    %3562 = vmatpush1.bf16.msra.mxu0 %v370
    %3563 = vmatprep.subr.bf16.mxu0 %v379
    %3564 = vmatpush1.bf16.msra.mxu0 %v378
    %3565 = vmatprep.subr.bf16.mxu0 %v387
    %3566 = vmatpush1.bf16.msra.mxu0 %v386
    %3567 = vmatprep.subr.bf16.mxu0 %v395
    %3568 = vmatpush1.bf16.msra.mxu0 %v394
    %3569 = vmatprep.subr.bf16.mxu0 %v403
    %3570 = vmatpush1.bf16.msra.mxu0 %v402
    %3571 = vmatprep.subr.bf16.mxu0 %v411
    %3572 = vmatpush1.bf16.msra.mxu0 %v410
    %3573 = vmatprep.subr.bf16.mxu0 %v419
    %3574 = vmatpush1.bf16.msra.mxu0 %v418
    %3575 = vmatprep.subr.bf16.mxu0 %v427
    %3576 = vmatpush1.bf16.msra.mxu0 %v426
    %3577 = vmatprep.subr.bf16.mxu0 %v435
    %3578 = vmatpush1.bf16.msra.mxu0 %v434
    %3579 = vmatprep.subr.bf16.mxu0 %v443
    %3580 = vmatpush1.bf16.msra.mxu0 %v442
    %3581 = vmatprep.subr.bf16.mxu0 %v451
    %3582 = vmatpush1.bf16.msra.mxu0 %v450
    %3583 = vmatprep.subr.bf16.mxu0 %v459
    %3584 = vmatpush1.bf16.msra.mxu0 %v458
    %3585 = vmatprep.subr.bf16.mxu0 %v467
    %3586 = vmatpush1.bf16.msra.mxu0 %v466
    %3587 = vmatprep.subr.bf16.mxu0 %v475
    %3588 = vmatpush1.bf16.msra.mxu0 %v474
    %3589 = vmatprep.mubr.bf16.mxu0 %v2980
    %3590 = vmatmul.mubr.bf16.gmra.mrb[0].mxu0 %v2979
    %v3591 = vpop.f32.mrb[0].mxu0
    %v3592 = vadd.f32 %v3551, %v3591
    %v3593 = vpop.f32.mrb[0].mxu0
    %v3594 = vadd.f32 %v3553, %v3593
    %v3595 = vpop.f32.mrb[0].mxu0
    %v3596 = vpop.f32.mrb[0].mxu0
    %3597 = vdwg.mxu0
    %3598 = vmatprep.subr.bf16.mxu0 %v483
    %3599 = vmatpush1.bf16.msra.mxu0 %v482
    %3600 = vmatprep.subr.bf16.mxu0 %v491
    %3601 = vmatpush1.bf16.msra.mxu0 %v490
    %3602 = vmatprep.subr.bf16.mxu0 %v499
    %3603 = vmatpush1.bf16.msra.mxu0 %v498
    %3604 = vmatprep.subr.bf16.mxu0 %v507
    %3605 = vmatpush1.bf16.msra.mxu0 %v506
    %3606 = vmatprep.subr.bf16.mxu0 %v515
    %3607 = vmatpush1.bf16.msra.mxu0 %v514
    %3608 = vmatprep.subr.bf16.mxu0 %v523
    %3609 = vmatpush1.bf16.msra.mxu0 %v522
    %3610 = vmatprep.subr.bf16.mxu0 %v531
    %3611 = vmatpush1.bf16.msra.mxu0 %v530
    %3612 = vmatprep.subr.bf16.mxu0 %v539
    %3613 = vmatpush1.bf16.msra.mxu0 %v538
    %3614 = vmatprep.subr.bf16.mxu0 %v547
    %3615 = vmatpush1.bf16.msra.mxu0 %v546
    %3616 = vmatprep.subr.bf16.mxu0 %v555
    %3617 = vmatpush1.bf16.msra.mxu0 %v554
    %3618 = vmatprep.subr.bf16.mxu0 %v563
    %3619 = vmatpush1.bf16.msra.mxu0 %v562
    %3620 = vmatprep.subr.bf16.mxu0 %v571
    %3621 = vmatpush1.bf16.msra.mxu0 %v570
    %3622 = vmatprep.subr.bf16.mxu0 %v579
    %3623 = vmatpush1.bf16.msra.mxu0 %v578
    %3624 = vmatprep.subr.bf16.mxu0 %v587
    %3625 = vmatpush1.bf16.msra.mxu0 %v586
    %3626 = vmatprep.subr.bf16.mxu0 %v595
    %3627 = vmatpush1.bf16.msra.mxu0 %v594
    %3628 = vmatprep.subr.bf16.mxu0 %v603
    %3629 = vmatpush1.bf16.msra.mxu0 %v602
    %3630 = vmatprep.mubr.bf16.mxu0 %v2982
    %3631 = vmatmul.mubr.bf16.gmra.mrb[0].mxu0 %v2981
    %v3632 = vpop.f32.mrb[0].mxu0
    %v3633 = vadd.f32 %v3592, %v3632
    %v3634 = vpop.f32.mrb[0].mxu0
    %v3635 = vadd.f32 %v3594, %v3634
    %v3636 = vpop.f32.mrb[0].mxu0
    %v3637 = vpop.f32.mrb[0].mxu0
    %3638 = vdwg.mxu0
    %v3639 = vtanh.pop %v3141
    %v3640 = vtanh.pop %v3143
    %v3641 = vtanh.pop %v3305
    %v3642 = vtanh.pop %v3307
    %v3643 = vtanh.pop %v3469
    %v3644 = vtanh.pop %v3471
    %v3645 = vtanh.pop %v3633
    %v3646 = vtanh.pop %v3635
    %s3647 = sadd.f32 %s71, 1.0
    %v3648 = vstv %s3647
    %v3649 = vmul.f32 %v2929, %v3648
    %v3650 = vmul.f32 %v2930, %v3648
    %v3651 = vstv %s71
    %v3652 = vmul.f32 %v3651, %v3639
    %v3653 = vmul.f32 %v3651, %v3640
    %v3654 = vmul.f32 %v3651, %v3641
    %v3655 = vmul.f32 %v3651, %v3642
    %v3656 = vmul.f32 %v3651, %v3643
    %v3657 = vmul.f32 %v3651, %v3644
    %v3658 = vmul.f32 %v3651, %v3645
    %v3659 = vmul.f32 %v3651, %v3646
    %v3668 = vcombine.low %v3652, %v3653
    %v3669 = vcombine.low %v3654, %v3655
    %v3671 = vunpack.c.l.s4 1983009808
    %v3672 = vunpack.c.0.s8 %v3671
    %v3673 = vlaneseq
    %v3674 = vshrl.u32 %v3673, 7
    %v3675 = vsub.s32 %v3672, %v3674
    %v3676 = vrot.slane %v3668, %v3675
    %v3678 = vunpack.c.l.s4 1983009808
    %v3679 = vunpack.c.0.s8 %v3678
    %v3680 = vlaneseq
    %v3681 = vshrl.u32 %v3680, 7
    %v3682 = vsub.s32 %v3679, %v3681
    %v3683 = vrot.slane %v3669, %v3682
    %v3684 = vcombine.low %v3676, %v3683
    %v3685 = vcombine.low %v3656, %v3657
    %v3686 = vcombine.low %v3658, %v3659
    %v3688 = vunpack.c.l.s4 1983009808
    %v3689 = vunpack.c.0.s8 %v3688
    %v3690 = vlaneseq
    %v3691 = vshrl.u32 %v3690, 7
    %v3692 = vsub.s32 %v3689, %v3691
    %v3693 = vrot.slane %v3685, %v3692
    %v3695 = vunpack.c.l.s4 1983009808
    %v3696 = vunpack.c.0.s8 %v3695
    %v3697 = vlaneseq
    %v3698 = vshrl.u32 %v3697, 7
    %v3699 = vsub.s32 %v3696, %v3698
    %v3700 = vrot.slane %v3686, %v3699
    %v3701 = vcombine.low %v3693, %v3700
    %v3704 = vadd.f32 %v3649, %v3684
    %v3705 = vadd.f32 %v3650, %v3701
    %v3706 = vcombine.low %v2154, %v2154
    %v3708 = vunpack.c.l.s4 1983009808
    %v3709 = vunpack.c.0.s8 %v3708
    %v3710 = vlaneseq
    %v3711 = vshrl.u32 %v3710, 7
    %v3712 = vsub.s32 %v3709, %v3711
    %v3713 = vrot.slane %v3706, %v3712
    %v3714 = vcombine.high %v3713, %v3713
    %v3715 = vcombine.low %v2155, %v2155
    %v3717 = vunpack.c.l.s4 1983009808
    %v3718 = vunpack.c.0.s8 %v3717
    %v3719 = vlaneseq
    %v3720 = vshrl.u32 %v3719, 7
    %v3721 = vsub.s32 %v3718, %v3720
    %v3722 = vrot.slane %v3715, %v3721
    %v3723 = vcombine.high %v3722, %v3722
    %v3728 = vcombine.low %v2940, %v2940
    %v3729 = vcombine.low %v2947, %v2947
    %v3730 = vcombine.low %v2957, %v2957
    %v3731 = vcombine.low %v2964, %v2964
    %v3738 = vcombine.low %v3704, %v3704
    %v3740 = vunpack.c.l.s4 1983009808
    %v3741 = vunpack.c.0.s8 %v3740
    %v3742 = vlaneseq
    %v3743 = vshrl.u32 %v3742, 7
    %v3744 = vsub.s32 %v3741, %v3743
    %v3745 = vrot.slane %v3738, %v3744
    %v3747 = vunpack.c.l.s4 1983009808
    %v3748 = vunpack.c.0.s8 %v3747
    %v3749 = vlaneseq
    %v3750 = vshrl.u32 %v3749, 7
    %v3751 = vsub.s32 %v3748, %v3750
    %v3752 = vrot.slane %v3704, %v3751
    %v3753 = vcombine.low %v3745, %v3745
    %v3754 = vcombine.low %v3752, %v3752
    %v3755 = vcombine.low %v3705, %v3705
    %v3757 = vunpack.c.l.s4 1983009808
    %v3758 = vunpack.c.0.s8 %v3757
    %v3759 = vlaneseq
    %v3760 = vshrl.u32 %v3759, 7
    %v3761 = vsub.s32 %v3758, %v3760
    %v3762 = vrot.slane %v3755, %v3761
    %v3764 = vunpack.c.l.s4 1983009808
    %v3765 = vunpack.c.0.s8 %v3764
    %v3766 = vlaneseq
    %v3767 = vshrl.u32 %v3766, 7
    %v3768 = vsub.s32 %v3765, %v3767
    %v3769 = vrot.slane %v3705, %v3768
    %v3770 = vcombine.low %v3762, %v3762
    %v3771 = vcombine.low %v3769, %v3769
    %vm3780 = vcmask 1041408
    %v3781 = vsel %vm3780, %v1390, %v3713
    %v3782 = vsel %vm3780, %v1398, %v3714
    %v3783 = vsel %vm3780, %v1397, %v2165
    %v3784 = vsel %vm3780, %v1399, %v2173
    %v3785 = vsel %vm3780, %v1407, %v3722
    %v3786 = vsel %vm3780, %v1415, %v3723
    %v3787 = vsel %vm3780, %v1414, %v2182
    %v3788 = vsel %vm3780, %v1416, %v2190
    %vm3789 = vcmask 1043456
    %v3790 = vsel %vm3789, %v3781, %v3728
    %v3791 = vsel %vm3789, %v3782, %v2940
    %v3792 = vsel %vm3789, %v3783, %v3729
    %v3793 = vsel %vm3789, %v3784, %v2947
    %v3794 = vsel %vm3789, %v3785, %v3730
    %v3795 = vsel %vm3789, %v3786, %v2957
    %v3796 = vsel %vm3789, %v3787, %v3731
    %v3797 = vsel %vm3789, %v3788, %v2964
    %vm3798 = vcmask 1045504
    %v3799 = vsel %vm3798, %v3790, %v3753
    %v3800 = vsel %vm3798, %v3791, %v3745
    %v3801 = vsel %vm3798, %v3792, %v3754
    %v3802 = vsel %vm3798, %v3793, %v3752
    %v3803 = vsel %vm3798, %v3794, %v3770
    %v3804 = vsel %vm3798, %v3795, %v3762
    %v3805 = vsel %vm3798, %v3796, %v3771
    %v3806 = vsel %vm3798, %v3797, %v3769
    %3807 = vst [vmem:[#allocation7] sm:$0xff] %v3799
    %3808 = vst [vmem:[#allocation7 + $0x8] sm:$0xff] %v3800
    %3809 = vst [vmem:[#allocation7 + $0x10] sm:$0xff] %v3801
    %3810 = vst [vmem:[#allocation7 + $0x18] sm:$0xff] %v3802
    %3811 = vst [vmem:[#allocation7 + $0x20] sm:$0xff] %v3803
    %3812 = vst [vmem:[#allocation7 + $0x28] sm:$0xff] %v3804
    %3813 = vst [vmem:[#allocation7 + $0x30] sm:$0xff] %v3805
    %3814 = vst [vmem:[#allocation7 + $0x38] sm:$0xff] %v3806
    %v3815 = vcombine.high %v3704, %v3704
    %v3817 = vunpack.c.l.s4 1983009808
    %v3818 = vunpack.c.0.s8 %v3817
    %v3819 = vlaneseq
    %v3820 = vshrl.u32 %v3819, 7
    %v3821 = vsub.s32 %v3818, %v3820
    %v3822 = vrot.slane %v3815, %v3821
    %v3823 = vcombine.high %v3752, %v3752
    %v3824 = vcombine.high %v3822, %v3822
    %v3825 = vcombine.high %v3705, %v3705
    %v3827 = vunpack.c.l.s4 1983009808
    %v3828 = vunpack.c.0.s8 %v3827
    %v3829 = vlaneseq
    %v3830 = vshrl.u32 %v3829, 7
    %v3831 = vsub.s32 %v3828, %v3830
    %v3832 = vrot.slane %v3825, %v3831
    %v3833 = vcombine.high %v3769, %v3769
    %v3834 = vcombine.high %v3832, %v3832
    %v3841 = vpack.c.bf16 %v3752, %v3752
    %v3842 = vpack.c.bf16 %v3823, %v3823
    %v3843 = vpack.c.bf16 %v3822, %v3822
    %v3844 = vpack.c.bf16 %v3824, %v3824
    %v3845 = vpack.c.bf16 %v3769, %v3769
    %v3846 = vpack.c.bf16 %v3833, %v3833
    %v3847 = vpack.c.bf16 %v3832, %v3832
    %v3848 = vpack.c.bf16 %v3834, %v3834
    %3849 = vmatprep.subr.bf16.mxu0 %v93
    %3850 = vmatpush1.bf16.msra.mxu0 %v92
    %3851 = vmatprep.subr.bf16.mxu0 %v101
    %3852 = vmatpush1.bf16.msra.mxu0 %v100
    %3853 = vmatprep.subr.bf16.mxu0 %v109
    %3854 = vmatpush1.bf16.msra.mxu0 %v108
    %3855 = vmatprep.subr.bf16.mxu0 %v117
    %3856 = vmatpush1.bf16.msra.mxu0 %v116
    %3857 = vmatprep.subr.bf16.mxu0 %v125
    %3858 = vmatpush1.bf16.msra.mxu0 %v124
    %3859 = vmatprep.subr.bf16.mxu0 %v133
    %3860 = vmatpush1.bf16.msra.mxu0 %v132
    %3861 = vmatprep.subr.bf16.mxu0 %v141
    %3862 = vmatpush1.bf16.msra.mxu0 %v140
    %3863 = vmatprep.subr.bf16.mxu0 %v149
    %3864 = vmatpush1.bf16.msra.mxu0 %v148
    %3865 = vmatprep.subr.bf16.mxu0 %v157
    %3866 = vmatpush1.bf16.msra.mxu0 %v156
    %3867 = vmatprep.subr.bf16.mxu0 %v165
    %3868 = vmatpush1.bf16.msra.mxu0 %v164
    %3869 = vmatprep.subr.bf16.mxu0 %v173
    %3870 = vmatpush1.bf16.msra.mxu0 %v172
    %3871 = vmatprep.subr.bf16.mxu0 %v181
    %3872 = vmatpush1.bf16.msra.mxu0 %v180
    %3873 = vmatprep.subr.bf16.mxu0 %v189
    %3874 = vmatpush1.bf16.msra.mxu0 %v188
    %3875 = vmatprep.subr.bf16.mxu0 %v197
    %3876 = vmatpush1.bf16.msra.mxu0 %v196
    %3877 = vmatprep.subr.bf16.mxu0 %v205
    %3878 = vmatpush1.bf16.msra.mxu0 %v204
    %3879 = vmatprep.subr.bf16.mxu0 %v213
    %3880 = vmatpush1.bf16.msra.mxu0 %v212
    %3881 = vmatprep.mubr.bf16.mxu0 %v3842
    %3882 = vmatmul.mubr.bf16.gmra.mrb[0].mxu0 %v3841
    %v3883 = vpop.f32.mrb[0].mxu0
    %v3884 = vadd.f32 0.0, %v3883
    %v3885 = vpop.f32.mrb[0].mxu0
    %v3886 = vadd.f32 0.0, %v3885
    %v3887 = vpop.f32.mrb[0].mxu0
    %v3888 = vpop.f32.mrb[0].mxu0
    %3889 = vdwg.mxu0
    %3890 = vmatprep.subr.bf16.mxu0 %v221
    %3891 = vmatpush1.bf16.msra.mxu0 %v220
    %3892 = vmatprep.subr.bf16.mxu0 %v229
    %3893 = vmatpush1.bf16.msra.mxu0 %v228
    %3894 = vmatprep.subr.bf16.mxu0 %v237
    %3895 = vmatpush1.bf16.msra.mxu0 %v236
    %3896 = vmatprep.subr.bf16.mxu0 %v245
    %3897 = vmatpush1.bf16.msra.mxu0 %v244
    %3898 = vmatprep.subr.bf16.mxu0 %v253
    %3899 = vmatpush1.bf16.msra.mxu0 %v252
    %3900 = vmatprep.subr.bf16.mxu0 %v261
    %3901 = vmatpush1.bf16.msra.mxu0 %v260
    %3902 = vmatprep.subr.bf16.mxu0 %v269
    %3903 = vmatpush1.bf16.msra.mxu0 %v268
    %3904 = vmatprep.subr.bf16.mxu0 %v277
    %3905 = vmatpush1.bf16.msra.mxu0 %v276
    %3906 = vmatprep.subr.bf16.mxu0 %v285
    %3907 = vmatpush1.bf16.msra.mxu0 %v284
    %3908 = vmatprep.subr.bf16.mxu0 %v293
    %3909 = vmatpush1.bf16.msra.mxu0 %v292
    %3910 = vmatprep.subr.bf16.mxu0 %v301
    %3911 = vmatpush1.bf16.msra.mxu0 %v300
    %3912 = vmatprep.subr.bf16.mxu0 %v309
    %3913 = vmatpush1.bf16.msra.mxu0 %v308
    %3914 = vmatprep.subr.bf16.mxu0 %v317
    %3915 = vmatpush1.bf16.msra.mxu0 %v316
    %3916 = vmatprep.subr.bf16.mxu0 %v325
    %3917 = vmatpush1.bf16.msra.mxu0 %v324
    %3918 = vmatprep.subr.bf16.mxu0 %v333
    %3919 = vmatpush1.bf16.msra.mxu0 %v332
    %3920 = vmatprep.subr.bf16.mxu0 %v341
    %3921 = vmatpush1.bf16.msra.mxu0 %v340
    %3922 = vmatprep.mubr.bf16.mxu0 %v3844
    %3923 = vmatmul.mubr.bf16.gmra.mrb[0].mxu0 %v3843
    %v3924 = vpop.f32.mrb[0].mxu0
    %v3925 = vadd.f32 %v3884, %v3924
    %v3926 = vpop.f32.mrb[0].mxu0
    %v3927 = vadd.f32 %v3886, %v3926
    %v3928 = vpop.f32.mrb[0].mxu0
    %v3929 = vpop.f32.mrb[0].mxu0
    %3930 = vdwg.mxu0
    %3931 = vmatprep.subr.bf16.mxu0 %v349
    %3932 = vmatpush1.bf16.msra.mxu0 %v348
    %3933 = vmatprep.subr.bf16.mxu0 %v357
    %3934 = vmatpush1.bf16.msra.mxu0 %v356
    %3935 = vmatprep.subr.bf16.mxu0 %v365
    %3936 = vmatpush1.bf16.msra.mxu0 %v364
    %3937 = vmatprep.subr.bf16.mxu0 %v373
    %3938 = vmatpush1.bf16.msra.mxu0 %v372
    %3939 = vmatprep.subr.bf16.mxu0 %v381
    %3940 = vmatpush1.bf16.msra.mxu0 %v380
    %3941 = vmatprep.subr.bf16.mxu0 %v389
    %3942 = vmatpush1.bf16.msra.mxu0 %v388
    %3943 = vmatprep.subr.bf16.mxu0 %v397
    %3944 = vmatpush1.bf16.msra.mxu0 %v396
    %3945 = vmatprep.subr.bf16.mxu0 %v405
    %3946 = vmatpush1.bf16.msra.mxu0 %v404
    %3947 = vmatprep.subr.bf16.mxu0 %v413
    %3948 = vmatpush1.bf16.msra.mxu0 %v412
    %3949 = vmatprep.subr.bf16.mxu0 %v421
    %3950 = vmatpush1.bf16.msra.mxu0 %v420
    %3951 = vmatprep.subr.bf16.mxu0 %v429
    %3952 = vmatpush1.bf16.msra.mxu0 %v428
    %3953 = vmatprep.subr.bf16.mxu0 %v437
    %3954 = vmatpush1.bf16.msra.mxu0 %v436
    %3955 = vmatprep.subr.bf16.mxu0 %v445
    %3956 = vmatpush1.bf16.msra.mxu0 %v444
    %3957 = vmatprep.subr.bf16.mxu0 %v453
    %3958 = vmatpush1.bf16.msra.mxu0 %v452
    %3959 = vmatprep.subr.bf16.mxu0 %v461
    %3960 = vmatpush1.bf16.msra.mxu0 %v460
    %3961 = vmatprep.subr.bf16.mxu0 %v469
    %3962 = vmatpush1.bf16.msra.mxu0 %v468
    %3963 = vmatprep.mubr.bf16.mxu0 %v3846
    %3964 = vmatmul.mubr.bf16.gmra.mrb[0].mxu0 %v3845
    %v3965 = vpop.f32.mrb[0].mxu0
    %v3966 = vadd.f32 %v3925, %v3965
    %v3967 = vpop.f32.mrb[0].mxu0
    %v3968 = vadd.f32 %v3927, %v3967
    %v3969 = vpop.f32.mrb[0].mxu0
    %v3970 = vpop.f32.mrb[0].mxu0
    %3971 = vdwg.mxu0
    %3972 = vmatprep.subr.bf16.mxu0 %v477
    %3973 = vmatpush1.bf16.msra.mxu0 %v476
    %3974 = vmatprep.subr.bf16.mxu0 %v485
    %3975 = vmatpush1.bf16.msra.mxu0 %v484
    %3976 = vmatprep.subr.bf16.mxu0 %v493
    %3977 = vmatpush1.bf16.msra.mxu0 %v492
    %3978 = vmatprep.subr.bf16.mxu0 %v501
    %3979 = vmatpush1.bf16.msra.mxu0 %v500
    %3980 = vmatprep.subr.bf16.mxu0 %v509
    %3981 = vmatpush1.bf16.msra.mxu0 %v508
    %3982 = vmatprep.subr.bf16.mxu0 %v517
    %3983 = vmatpush1.bf16.msra.mxu0 %v516
    %3984 = vmatprep.subr.bf16.mxu0 %v525
    %3985 = vmatpush1.bf16.msra.mxu0 %v524
    %3986 = vmatprep.subr.bf16.mxu0 %v533
    %3987 = vmatpush1.bf16.msra.mxu0 %v532
    %3988 = vmatprep.subr.bf16.mxu0 %v541
    %3989 = vmatpush1.bf16.msra.mxu0 %v540
    %3990 = vmatprep.subr.bf16.mxu0 %v549
    %3991 = vmatpush1.bf16.msra.mxu0 %v548
    %3992 = vmatprep.subr.bf16.mxu0 %v557
    %3993 = vmatpush1.bf16.msra.mxu0 %v556
    %3994 = vmatprep.subr.bf16.mxu0 %v565
    %3995 = vmatpush1.bf16.msra.mxu0 %v564
    %3996 = vmatprep.subr.bf16.mxu0 %v573
    %3997 = vmatpush1.bf16.msra.mxu0 %v572
    %3998 = vmatprep.subr.bf16.mxu0 %v581
    %3999 = vmatpush1.bf16.msra.mxu0 %v580
    %4000 = vmatprep.subr.bf16.mxu0 %v589
    %4001 = vmatpush1.bf16.msra.mxu0 %v588
    %4002 = vmatprep.subr.bf16.mxu0 %v597
    %4003 = vmatpush1.bf16.msra.mxu0 %v596
    %4004 = vmatprep.mubr.bf16.mxu0 %v3848
    %4005 = vmatmul.mubr.bf16.gmra.mrb[0].mxu0 %v3847
    %v4006 = vpop.f32.mrb[0].mxu0
    %v4007 = vadd.f32 %v3966, %v4006
    %v4008 = vpop.f32.mrb[0].mxu0
    %v4009 = vadd.f32 %v3968, %v4008
    %v4010 = vpop.f32.mrb[0].mxu0
    %v4011 = vpop.f32.mrb[0].mxu0
    %4012 = vdwg.mxu0
    %4013 = vmatprep.subr.bf16.mxu0 %v95
    %4014 = vmatpush1.bf16.msra.mxu0 %v94
    %4015 = vmatprep.subr.bf16.mxu0 %v103
    %4016 = vmatpush1.bf16.msra.mxu0 %v102
    %4017 = vmatprep.subr.bf16.mxu0 %v111
    %4018 = vmatpush1.bf16.msra.mxu0 %v110
    %4019 = vmatprep.subr.bf16.mxu0 %v119
    %4020 = vmatpush1.bf16.msra.mxu0 %v118
    %4021 = vmatprep.subr.bf16.mxu0 %v127
    %4022 = vmatpush1.bf16.msra.mxu0 %v126
    %4023 = vmatprep.subr.bf16.mxu0 %v135
    %4024 = vmatpush1.bf16.msra.mxu0 %v134
    %4025 = vmatprep.subr.bf16.mxu0 %v143
    %4026 = vmatpush1.bf16.msra.mxu0 %v142
    %4027 = vmatprep.subr.bf16.mxu0 %v151
    %4028 = vmatpush1.bf16.msra.mxu0 %v150
    %4029 = vmatprep.subr.bf16.mxu0 %v159
    %4030 = vmatpush1.bf16.msra.mxu0 %v158
    %4031 = vmatprep.subr.bf16.mxu0 %v167
    %4032 = vmatpush1.bf16.msra.mxu0 %v166
    %4033 = vmatprep.subr.bf16.mxu0 %v175
    %4034 = vmatpush1.bf16.msra.mxu0 %v174
    %4035 = vmatprep.subr.bf16.mxu0 %v183
    %4036 = vmatpush1.bf16.msra.mxu0 %v182
    %4037 = vmatprep.subr.bf16.mxu0 %v191
    %4038 = vmatpush1.bf16.msra.mxu0 %v190
    %4039 = vmatprep.subr.bf16.mxu0 %v199
    %4040 = vmatpush1.bf16.msra.mxu0 %v198
    %4041 = vmatprep.subr.bf16.mxu0 %v207
    %4042 = vmatpush1.bf16.msra.mxu0 %v206
    %4043 = vmatprep.subr.bf16.mxu0 %v215
    %4044 = vmatpush1.bf16.msra.mxu0 %v214
    %4045 = vmatprep.mubr.bf16.mxu0 %v3842
    %4046 = vmatmul.mubr.bf16.gmra.mrb[0].mxu0 %v3841
    %v4047 = vpop.f32.mrb[0].mxu0
    %v4048 = vadd.f32 0.0, %v4047
    %v4049 = vpop.f32.mrb[0].mxu0
    %v4050 = vadd.f32 0.0, %v4049
    %v4051 = vpop.f32.mrb[0].mxu0
    %v4052 = vpop.f32.mrb[0].mxu0
    %4053 = vdwg.mxu0
    %4054 = vmatprep.subr.bf16.mxu0 %v223
    %4055 = vmatpush1.bf16.msra.mxu0 %v222
    %4056 = vmatprep.subr.bf16.mxu0 %v231
    %4057 = vmatpush1.bf16.msra.mxu0 %v230
    %4058 = vmatprep.subr.bf16.mxu0 %v239
    %4059 = vmatpush1.bf16.msra.mxu0 %v238
    %4060 = vmatprep.subr.bf16.mxu0 %v247
    %4061 = vmatpush1.bf16.msra.mxu0 %v246
    %4062 = vmatprep.subr.bf16.mxu0 %v255
    %4063 = vmatpush1.bf16.msra.mxu0 %v254
    %4064 = vmatprep.subr.bf16.mxu0 %v263
    %4065 = vmatpush1.bf16.msra.mxu0 %v262
    %4066 = vmatprep.subr.bf16.mxu0 %v271
    %4067 = vmatpush1.bf16.msra.mxu0 %v270
    %4068 = vmatprep.subr.bf16.mxu0 %v279
    %4069 = vmatpush1.bf16.msra.mxu0 %v278
    %4070 = vmatprep.subr.bf16.mxu0 %v287
    %4071 = vmatpush1.bf16.msra.mxu0 %v286
    %4072 = vmatprep.subr.bf16.mxu0 %v295
    %4073 = vmatpush1.bf16.msra.mxu0 %v294
    %4074 = vmatprep.subr.bf16.mxu0 %v303
    %4075 = vmatpush1.bf16.msra.mxu0 %v302
    %4076 = vmatprep.subr.bf16.mxu0 %v311
    %4077 = vmatpush1.bf16.msra.mxu0 %v310
    %4078 = vmatprep.subr.bf16.mxu0 %v319
    %4079 = vmatpush1.bf16.msra.mxu0 %v318
    %4080 = vmatprep.subr.bf16.mxu0 %v327
    %4081 = vmatpush1.bf16.msra.mxu0 %v326
    %4082 = vmatprep.subr.bf16.mxu0 %v335
    %4083 = vmatpush1.bf16.msra.mxu0 %v334
    %4084 = vmatprep.subr.bf16.mxu0 %v343
    %4085 = vmatpush1.bf16.msra.mxu0 %v342
    %4086 = vmatprep.mubr.bf16.mxu0 %v3844
    %4087 = vmatmul.mubr.bf16.gmra.mrb[0].mxu0 %v3843
    %v4088 = vpop.f32.mrb[0].mxu0
    %v4089 = vadd.f32 %v4048, %v4088
    %v4090 = vpop.f32.mrb[0].mxu0
    %v4091 = vadd.f32 %v4050, %v4090
    %v4092 = vpop.f32.mrb[0].mxu0
    %v4093 = vpop.f32.mrb[0].mxu0
    %4094 = vdwg.mxu0
    %4095 = vmatprep.subr.bf16.mxu0 %v351
    %4096 = vmatpush1.bf16.msra.mxu0 %v350
    %4097 = vmatprep.subr.bf16.mxu0 %v359
    %4098 = vmatpush1.bf16.msra.mxu0 %v358
    %4099 = vmatprep.subr.bf16.mxu0 %v367
    %4100 = vmatpush1.bf16.msra.mxu0 %v366
    %4101 = vmatprep.subr.bf16.mxu0 %v375
    %4102 = vmatpush1.bf16.msra.mxu0 %v374
    %4103 = vmatprep.subr.bf16.mxu0 %v383
    %4104 = vmatpush1.bf16.msra.mxu0 %v382
    %4105 = vmatprep.subr.bf16.mxu0 %v391
    %4106 = vmatpush1.bf16.msra.mxu0 %v390
    %4107 = vmatprep.subr.bf16.mxu0 %v399
    %4108 = vmatpush1.bf16.msra.mxu0 %v398
    %4109 = vmatprep.subr.bf16.mxu0 %v407
    %4110 = vmatpush1.bf16.msra.mxu0 %v406
    %4111 = vmatprep.subr.bf16.mxu0 %v415
    %4112 = vmatpush1.bf16.msra.mxu0 %v414
    %4113 = vmatprep.subr.bf16.mxu0 %v423
    %4114 = vmatpush1.bf16.msra.mxu0 %v422
    %4115 = vmatprep.subr.bf16.mxu0 %v431
    %4116 = vmatpush1.bf16.msra.mxu0 %v430
    %4117 = vmatprep.subr.bf16.mxu0 %v439
    %4118 = vmatpush1.bf16.msra.mxu0 %v438
    %4119 = vmatprep.subr.bf16.mxu0 %v447
    %4120 = vmatpush1.bf16.msra.mxu0 %v446
    %4121 = vmatprep.subr.bf16.mxu0 %v455
    %4122 = vmatpush1.bf16.msra.mxu0 %v454
    %4123 = vmatprep.subr.bf16.mxu0 %v463
    %4124 = vmatpush1.bf16.msra.mxu0 %v462
    %4125 = vmatprep.subr.bf16.mxu0 %v471
    %4126 = vmatpush1.bf16.msra.mxu0 %v470
    %4127 = vmatprep.mubr.bf16.mxu0 %v3846
    %4128 = vmatmul.mubr.bf16.gmra.mrb[0].mxu0 %v3845
    %v4129 = vpop.f32.mrb[0].mxu0
    %v4130 = vadd.f32 %v4089, %v4129
    %v4131 = vpop.f32.mrb[0].mxu0
    %v4132 = vadd.f32 %v4091, %v4131
    %v4133 = vpop.f32.mrb[0].mxu0
    %v4134 = vpop.f32.mrb[0].mxu0
    %4135 = vdwg.mxu0
    %4136 = vmatprep.subr.bf16.mxu0 %v479
    %4137 = vmatpush1.bf16.msra.mxu0 %v478
    %4138 = vmatprep.subr.bf16.mxu0 %v487
    %4139 = vmatpush1.bf16.msra.mxu0 %v486
    %4140 = vmatprep.subr.bf16.mxu0 %v495
    %4141 = vmatpush1.bf16.msra.mxu0 %v494
    %4142 = vmatprep.subr.bf16.mxu0 %v503
    %4143 = vmatpush1.bf16.msra.mxu0 %v502
    %4144 = vmatprep.subr.bf16.mxu0 %v511
    %4145 = vmatpush1.bf16.msra.mxu0 %v510
    %4146 = vmatprep.subr.bf16.mxu0 %v519
    %4147 = vmatpush1.bf16.msra.mxu0 %v518
    %4148 = vmatprep.subr.bf16.mxu0 %v527
    %4149 = vmatpush1.bf16.msra.mxu0 %v526
    %4150 = vmatprep.subr.bf16.mxu0 %v535
    %4151 = vmatpush1.bf16.msra.mxu0 %v534
    %4152 = vmatprep.subr.bf16.mxu0 %v543
    %4153 = vmatpush1.bf16.msra.mxu0 %v542
    %4154 = vmatprep.subr.bf16.mxu0 %v551
    %4155 = vmatpush1.bf16.msra.mxu0 %v550
    %4156 = vmatprep.subr.bf16.mxu0 %v559
    %4157 = vmatpush1.bf16.msra.mxu0 %v558
    %4158 = vmatprep.subr.bf16.mxu0 %v567
    %4159 = vmatpush1.bf16.msra.mxu0 %v566
    %4160 = vmatprep.subr.bf16.mxu0 %v575
    %4161 = vmatpush1.bf16.msra.mxu0 %v574
    %4162 = vmatprep.subr.bf16.mxu0 %v583
    %4163 = vmatpush1.bf16.msra.mxu0 %v582
    %4164 = vmatprep.subr.bf16.mxu0 %v591
    %4165 = vmatpush1.bf16.msra.mxu0 %v590
    %4166 = vmatprep.subr.bf16.mxu0 %v599
    %4167 = vmatpush1.bf16.msra.mxu0 %v598
    %4168 = vmatprep.mubr.bf16.mxu0 %v3848
    %4169 = vmatmul.mubr.bf16.gmra.mrb[0].mxu0 %v3847
    %v4170 = vpop.f32.mrb[0].mxu0
    %v4171 = vadd.f32 %v4130, %v4170
    %v4172 = vpop.f32.mrb[0].mxu0
    %v4173 = vadd.f32 %v4132, %v4172
    %v4174 = vpop.f32.mrb[0].mxu0
    %v4175 = vpop.f32.mrb[0].mxu0
    %4176 = vdwg.mxu0
    %4177 = vmatprep.subr.bf16.mxu0 %v97
    %4178 = vmatpush1.bf16.msra.mxu0 %v96
    %4179 = vmatprep.subr.bf16.mxu0 %v105
    %4180 = vmatpush1.bf16.msra.mxu0 %v104
    %4181 = vmatprep.subr.bf16.mxu0 %v113
    %4182 = vmatpush1.bf16.msra.mxu0 %v112
    %4183 = vmatprep.subr.bf16.mxu0 %v121
    %4184 = vmatpush1.bf16.msra.mxu0 %v120
    %4185 = vmatprep.subr.bf16.mxu0 %v129
    %4186 = vmatpush1.bf16.msra.mxu0 %v128
    %4187 = vmatprep.subr.bf16.mxu0 %v137
    %4188 = vmatpush1.bf16.msra.mxu0 %v136
    %4189 = vmatprep.subr.bf16.mxu0 %v145
    %4190 = vmatpush1.bf16.msra.mxu0 %v144
    %4191 = vmatprep.subr.bf16.mxu0 %v153
    %4192 = vmatpush1.bf16.msra.mxu0 %v152
    %4193 = vmatprep.subr.bf16.mxu0 %v161
    %4194 = vmatpush1.bf16.msra.mxu0 %v160
    %4195 = vmatprep.subr.bf16.mxu0 %v169
    %4196 = vmatpush1.bf16.msra.mxu0 %v168
    %4197 = vmatprep.subr.bf16.mxu0 %v177
    %4198 = vmatpush1.bf16.msra.mxu0 %v176
    %4199 = vmatprep.subr.bf16.mxu0 %v185
    %4200 = vmatpush1.bf16.msra.mxu0 %v184
    %4201 = vmatprep.subr.bf16.mxu0 %v193
    %4202 = vmatpush1.bf16.msra.mxu0 %v192
    %4203 = vmatprep.subr.bf16.mxu0 %v201
    %4204 = vmatpush1.bf16.msra.mxu0 %v200
    %4205 = vmatprep.subr.bf16.mxu0 %v209
    %4206 = vmatpush1.bf16.msra.mxu0 %v208
    %4207 = vmatprep.subr.bf16.mxu0 %v217
    %4208 = vmatpush1.bf16.msra.mxu0 %v216
    %4209 = vmatprep.mubr.bf16.mxu0 %v3842
    %4210 = vmatmul.mubr.bf16.gmra.mrb[0].mxu0 %v3841
    %v4211 = vpop.f32.mrb[0].mxu0
    %v4212 = vadd.f32 0.0, %v4211
    %v4213 = vpop.f32.mrb[0].mxu0
    %v4214 = vadd.f32 0.0, %v4213
    %v4215 = vpop.f32.mrb[0].mxu0
    %v4216 = vpop.f32.mrb[0].mxu0
    %4217 = vdwg.mxu0
    %4218 = vmatprep.subr.bf16.mxu0 %v225
    %4219 = vmatpush1.bf16.msra.mxu0 %v224
    %4220 = vmatprep.subr.bf16.mxu0 %v233
    %4221 = vmatpush1.bf16.msra.mxu0 %v232
    %4222 = vmatprep.subr.bf16.mxu0 %v241
    %4223 = vmatpush1.bf16.msra.mxu0 %v240
    %4224 = vmatprep.subr.bf16.mxu0 %v249
    %4225 = vmatpush1.bf16.msra.mxu0 %v248
    %4226 = vmatprep.subr.bf16.mxu0 %v257
    %4227 = vmatpush1.bf16.msra.mxu0 %v256
    %4228 = vmatprep.subr.bf16.mxu0 %v265
    %4229 = vmatpush1.bf16.msra.mxu0 %v264
    %4230 = vmatprep.subr.bf16.mxu0 %v273
    %4231 = vmatpush1.bf16.msra.mxu0 %v272
    %4232 = vmatprep.subr.bf16.mxu0 %v281
    %4233 = vmatpush1.bf16.msra.mxu0 %v280
    %4234 = vmatprep.subr.bf16.mxu0 %v289
    %4235 = vmatpush1.bf16.msra.mxu0 %v288
    %4236 = vmatprep.subr.bf16.mxu0 %v297
    %4237 = vmatpush1.bf16.msra.mxu0 %v296
    %4238 = vmatprep.subr.bf16.mxu0 %v305
    %4239 = vmatpush1.bf16.msra.mxu0 %v304
    %4240 = vmatprep.subr.bf16.mxu0 %v313
    %4241 = vmatpush1.bf16.msra.mxu0 %v312
    %4242 = vmatprep.subr.bf16.mxu0 %v321
    %4243 = vmatpush1.bf16.msra.mxu0 %v320
    %4244 = vmatprep.subr.bf16.mxu0 %v329
    %4245 = vmatpush1.bf16.msra.mxu0 %v328
    %4246 = vmatprep.subr.bf16.mxu0 %v337
    %4247 = vmatpush1.bf16.msra.mxu0 %v336
    %4248 = vmatprep.subr.bf16.mxu0 %v345
    %4249 = vmatpush1.bf16.msra.mxu0 %v344
    %4250 = vmatprep.mubr.bf16.mxu0 %v3844
    %4251 = vmatmul.mubr.bf16.gmra.mrb[0].mxu0 %v3843
    %v4252 = vpop.f32.mrb[0].mxu0
    %v4253 = vadd.f32 %v4212, %v4252
    %v4254 = vpop.f32.mrb[0].mxu0
    %v4255 = vadd.f32 %v4214, %v4254
    %v4256 = vpop.f32.mrb[0].mxu0
    %v4257 = vpop.f32.mrb[0].mxu0
    %4258 = vdwg.mxu0
    %4259 = vmatprep.subr.bf16.mxu0 %v353
    %4260 = vmatpush1.bf16.msra.mxu0 %v352
    %4261 = vmatprep.subr.bf16.mxu0 %v361
    %4262 = vmatpush1.bf16.msra.mxu0 %v360
    %4263 = vmatprep.subr.bf16.mxu0 %v369
    %4264 = vmatpush1.bf16.msra.mxu0 %v368
    %4265 = vmatprep.subr.bf16.mxu0 %v377
    %4266 = vmatpush1.bf16.msra.mxu0 %v376
    %4267 = vmatprep.subr.bf16.mxu0 %v385
    %4268 = vmatpush1.bf16.msra.mxu0 %v384
    %4269 = vmatprep.subr.bf16.mxu0 %v393
    %4270 = vmatpush1.bf16.msra.mxu0 %v392
    %4271 = vmatprep.subr.bf16.mxu0 %v401
    %4272 = vmatpush1.bf16.msra.mxu0 %v400
    %4273 = vmatprep.subr.bf16.mxu0 %v409
    %4274 = vmatpush1.bf16.msra.mxu0 %v408
    %4275 = vmatprep.subr.bf16.mxu0 %v417
    %4276 = vmatpush1.bf16.msra.mxu0 %v416
    %4277 = vmatprep.subr.bf16.mxu0 %v425
    %4278 = vmatpush1.bf16.msra.mxu0 %v424
    %4279 = vmatprep.subr.bf16.mxu0 %v433
    %4280 = vmatpush1.bf16.msra.mxu0 %v432
    %4281 = vmatprep.subr.bf16.mxu0 %v441
    %4282 = vmatpush1.bf16.msra.mxu0 %v440
    %4283 = vmatprep.subr.bf16.mxu0 %v449
    %4284 = vmatpush1.bf16.msra.mxu0 %v448
    %4285 = vmatprep.subr.bf16.mxu0 %v457
    %4286 = vmatpush1.bf16.msra.mxu0 %v456
    %4287 = vmatprep.subr.bf16.mxu0 %v465
    %4288 = vmatpush1.bf16.msra.mxu0 %v464
    %4289 = vmatprep.subr.bf16.mxu0 %v473
    %4290 = vmatpush1.bf16.msra.mxu0 %v472
    %4291 = vmatprep.mubr.bf16.mxu0 %v3846
    %4292 = vmatmul.mubr.bf16.gmra.mrb[0].mxu0 %v3845
    %v4293 = vpop.f32.mrb[0].mxu0
    %v4294 = vadd.f32 %v4253, %v4293
    %v4295 = vpop.f32.mrb[0].mxu0
    %v4296 = vadd.f32 %v4255, %v4295
    %v4297 = vpop.f32.mrb[0].mxu0
    %v4298 = vpop.f32.mrb[0].mxu0
    %4299 = vdwg.mxu0
    %4300 = vmatprep.subr.bf16.mxu0 %v481
    %4301 = vmatpush1.bf16.msra.mxu0 %v480
    %4302 = vmatprep.subr.bf16.mxu0 %v489
    %4303 = vmatpush1.bf16.msra.mxu0 %v488
    %4304 = vmatprep.subr.bf16.mxu0 %v497
    %4305 = vmatpush1.bf16.msra.mxu0 %v496
    %4306 = vmatprep.subr.bf16.mxu0 %v505
    %4307 = vmatpush1.bf16.msra.mxu0 %v504
    %4308 = vmatprep.subr.bf16.mxu0 %v513
    %4309 = vmatpush1.bf16.msra.mxu0 %v512
    %4310 = vmatprep.subr.bf16.mxu0 %v521
    %4311 = vmatpush1.bf16.msra.mxu0 %v520
    %4312 = vmatprep.subr.bf16.mxu0 %v529
    %4313 = vmatpush1.bf16.msra.mxu0 %v528
    %4314 = vmatprep.subr.bf16.mxu0 %v537
    %4315 = vmatpush1.bf16.msra.mxu0 %v536
    %4316 = vmatprep.subr.bf16.mxu0 %v545
    %4317 = vmatpush1.bf16.msra.mxu0 %v544
    %4318 = vmatprep.subr.bf16.mxu0 %v553
    %4319 = vmatpush1.bf16.msra.mxu0 %v552
    %4320 = vmatprep.subr.bf16.mxu0 %v561
    %4321 = vmatpush1.bf16.msra.mxu0 %v560
    %4322 = vmatprep.subr.bf16.mxu0 %v569
    %4323 = vmatpush1.bf16.msra.mxu0 %v568
    %4324 = vmatprep.subr.bf16.mxu0 %v577
    %4325 = vmatpush1.bf16.msra.mxu0 %v576
    %4326 = vmatprep.subr.bf16.mxu0 %v585
    %4327 = vmatpush1.bf16.msra.mxu0 %v584
    %4328 = vmatprep.subr.bf16.mxu0 %v593
    %4329 = vmatpush1.bf16.msra.mxu0 %v592
    %4330 = vmatprep.subr.bf16.mxu0 %v601
    %4331 = vmatpush1.bf16.msra.mxu0 %v600
    %4332 = vmatprep.mubr.bf16.mxu0 %v3848
    %4333 = vmatmul.mubr.bf16.gmra.mrb[0].mxu0 %v3847
    %v4334 = vpop.f32.mrb[0].mxu0
    %v4335 = vadd.f32 %v4294, %v4334
    %v4336 = vpop.f32.mrb[0].mxu0
    %v4337 = vadd.f32 %v4296, %v4336
    %v4338 = vpop.f32.mrb[0].mxu0
    %v4339 = vpop.f32.mrb[0].mxu0
    %4340 = vdwg.mxu0
    %4341 = vmatprep.subr.bf16.mxu0 %v99
    %4342 = vmatpush1.bf16.msra.mxu0 %v98
    %4343 = vmatprep.subr.bf16.mxu0 %v107
    %4344 = vmatpush1.bf16.msra.mxu0 %v106
    %4345 = vmatprep.subr.bf16.mxu0 %v115
    %4346 = vmatpush1.bf16.msra.mxu0 %v114
    %4347 = vmatprep.subr.bf16.mxu0 %v123
    %4348 = vmatpush1.bf16.msra.mxu0 %v122
    %4349 = vmatprep.subr.bf16.mxu0 %v131
    %4350 = vmatpush1.bf16.msra.mxu0 %v130
    %4351 = vmatprep.subr.bf16.mxu0 %v139
    %4352 = vmatpush1.bf16.msra.mxu0 %v138
    %4353 = vmatprep.subr.bf16.mxu0 %v147
    %4354 = vmatpush1.bf16.msra.mxu0 %v146
    %4355 = vmatprep.subr.bf16.mxu0 %v155
    %4356 = vmatpush1.bf16.msra.mxu0 %v154
    %4357 = vmatprep.subr.bf16.mxu0 %v163
    %4358 = vmatpush1.bf16.msra.mxu0 %v162
    %4359 = vmatprep.subr.bf16.mxu0 %v171
    %4360 = vmatpush1.bf16.msra.mxu0 %v170
    %4361 = vmatprep.subr.bf16.mxu0 %v179
    %4362 = vmatpush1.bf16.msra.mxu0 %v178
    %4363 = vmatprep.subr.bf16.mxu0 %v187
    %4364 = vmatpush1.bf16.msra.mxu0 %v186
    %4365 = vmatprep.subr.bf16.mxu0 %v195
    %4366 = vmatpush1.bf16.msra.mxu0 %v194
    %4367 = vmatprep.subr.bf16.mxu0 %v203
    %4368 = vmatpush1.bf16.msra.mxu0 %v202
    %4369 = vmatprep.subr.bf16.mxu0 %v211
    %4370 = vmatpush1.bf16.msra.mxu0 %v210
    %4371 = vmatprep.subr.bf16.mxu0 %v219
    %4372 = vmatpush1.bf16.msra.mxu0 %v218
    %4373 = vmatprep.mubr.bf16.mxu0 %v3842
    %4374 = vmatmul.mubr.bf16.gmra.mrb[0].mxu0 %v3841
    %v4375 = vpop.f32.mrb[0].mxu0
    %v4376 = vadd.f32 0.0, %v4375
    %v4377 = vpop.f32.mrb[0].mxu0
    %v4378 = vadd.f32 0.0, %v4377
    %v4379 = vpop.f32.mrb[0].mxu0
    %v4380 = vpop.f32.mrb[0].mxu0
    %4381 = vdwg.mxu0
    %4382 = vmatprep.subr.bf16.mxu0 %v227
    %4383 = vmatpush1.bf16.msra.mxu0 %v226
    %4384 = vmatprep.subr.bf16.mxu0 %v235
    %4385 = vmatpush1.bf16.msra.mxu0 %v234
    %4386 = vmatprep.subr.bf16.mxu0 %v243
    %4387 = vmatpush1.bf16.msra.mxu0 %v242
    %4388 = vmatprep.subr.bf16.mxu0 %v251
    %4389 = vmatpush1.bf16.msra.mxu0 %v250
    %4390 = vmatprep.subr.bf16.mxu0 %v259
    %4391 = vmatpush1.bf16.msra.mxu0 %v258
    %4392 = vmatprep.subr.bf16.mxu0 %v267
    %4393 = vmatpush1.bf16.msra.mxu0 %v266
    %4394 = vmatprep.subr.bf16.mxu0 %v275
    %4395 = vmatpush1.bf16.msra.mxu0 %v274
    %4396 = vmatprep.subr.bf16.mxu0 %v283
    %4397 = vmatpush1.bf16.msra.mxu0 %v282
    %4398 = vmatprep.subr.bf16.mxu0 %v291
    %4399 = vmatpush1.bf16.msra.mxu0 %v290
    %4400 = vmatprep.subr.bf16.mxu0 %v299
    %4401 = vmatpush1.bf16.msra.mxu0 %v298
    %4402 = vmatprep.subr.bf16.mxu0 %v307
    %4403 = vmatpush1.bf16.msra.mxu0 %v306
    %4404 = vmatprep.subr.bf16.mxu0 %v315
    %4405 = vmatpush1.bf16.msra.mxu0 %v314
    %4406 = vmatprep.subr.bf16.mxu0 %v323
    %4407 = vmatpush1.bf16.msra.mxu0 %v322
    %4408 = vmatprep.subr.bf16.mxu0 %v331
    %4409 = vmatpush1.bf16.msra.mxu0 %v330
    %4410 = vmatprep.subr.bf16.mxu0 %v339
    %4411 = vmatpush1.bf16.msra.mxu0 %v338
    %4412 = vmatprep.subr.bf16.mxu0 %v347
    %4413 = vmatpush1.bf16.msra.mxu0 %v346
    %4414 = vmatprep.mubr.bf16.mxu0 %v3844
    %4415 = vmatmul.mubr.bf16.gmra.mrb[0].mxu0 %v3843
    %v4416 = vpop.f32.mrb[0].mxu0
    %v4417 = vadd.f32 %v4376, %v4416
    %v4418 = vpop.f32.mrb[0].mxu0
    %v4419 = vadd.f32 %v4378, %v4418
    %v4420 = vpop.f32.mrb[0].mxu0
    %v4421 = vpop.f32.mrb[0].mxu0
    %4422 = vdwg.mxu0
    %4423 = vmatprep.subr.bf16.mxu0 %v355
    %4424 = vmatpush1.bf16.msra.mxu0 %v354
    %4425 = vmatprep.subr.bf16.mxu0 %v363
    %4426 = vmatpush1.bf16.msra.mxu0 %v362
    %4427 = vmatprep.subr.bf16.mxu0 %v371
    %4428 = vmatpush1.bf16.msra.mxu0 %v370
    %4429 = vmatprep.subr.bf16.mxu0 %v379
    %4430 = vmatpush1.bf16.msra.mxu0 %v378
    %4431 = vmatprep.subr.bf16.mxu0 %v387
    %4432 = vmatpush1.bf16.msra.mxu0 %v386
    %4433 = vmatprep.subr.bf16.mxu0 %v395
    %4434 = vmatpush1.bf16.msra.mxu0 %v394
    %4435 = vmatprep.subr.bf16.mxu0 %v403
    %4436 = vmatpush1.bf16.msra.mxu0 %v402
    %4437 = vmatprep.subr.bf16.mxu0 %v411
    %4438 = vmatpush1.bf16.msra.mxu0 %v410
    %4439 = vmatprep.subr.bf16.mxu0 %v419
    %4440 = vmatpush1.bf16.msra.mxu0 %v418
    %4441 = vmatprep.subr.bf16.mxu0 %v427
    %4442 = vmatpush1.bf16.msra.mxu0 %v426
    %4443 = vmatprep.subr.bf16.mxu0 %v435
    %4444 = vmatpush1.bf16.msra.mxu0 %v434
    %4445 = vmatprep.subr.bf16.mxu0 %v443
    %4446 = vmatpush1.bf16.msra.mxu0 %v442
    %4447 = vmatprep.subr.bf16.mxu0 %v451
    %4448 = vmatpush1.bf16.msra.mxu0 %v450
    %4449 = vmatprep.subr.bf16.mxu0 %v459
    %4450 = vmatpush1.bf16.msra.mxu0 %v458
    %4451 = vmatprep.subr.bf16.mxu0 %v467
    %4452 = vmatpush1.bf16.msra.mxu0 %v466
    %4453 = vmatprep.subr.bf16.mxu0 %v475
    %4454 = vmatpush1.bf16.msra.mxu0 %v474
    %4455 = vmatprep.mubr.bf16.mxu0 %v3846
    %4456 = vmatmul.mubr.bf16.gmra.mrb[0].mxu0 %v3845
    %v4457 = vpop.f32.mrb[0].mxu0
    %v4458 = vadd.f32 %v4417, %v4457
    %v4459 = vpop.f32.mrb[0].mxu0
    %v4460 = vadd.f32 %v4419, %v4459
    %v4461 = vpop.f32.mrb[0].mxu0
    %v4462 = vpop.f32.mrb[0].mxu0
    %4463 = vdwg.mxu0
    %4464 = vmatprep.subr.bf16.mxu0 %v483
    %4465 = vmatpush1.bf16.msra.mxu0 %v482
    %4466 = vmatprep.subr.bf16.mxu0 %v491
    %4467 = vmatpush1.bf16.msra.mxu0 %v490
    %4468 = vmatprep.subr.bf16.mxu0 %v499
    %4469 = vmatpush1.bf16.msra.mxu0 %v498
    %4470 = vmatprep.subr.bf16.mxu0 %v507
    %4471 = vmatpush1.bf16.msra.mxu0 %v506
    %4472 = vmatprep.subr.bf16.mxu0 %v515
    %4473 = vmatpush1.bf16.msra.mxu0 %v514
    %4474 = vmatprep.subr.bf16.mxu0 %v523
    %4475 = vmatpush1.bf16.msra.mxu0 %v522
    %4476 = vmatprep.subr.bf16.mxu0 %v531
    %4477 = vmatpush1.bf16.msra.mxu0 %v530
    %4478 = vmatprep.subr.bf16.mxu0 %v539
    %4479 = vmatpush1.bf16.msra.mxu0 %v538
    %4480 = vmatprep.subr.bf16.mxu0 %v547
    %4481 = vmatpush1.bf16.msra.mxu0 %v546
    %4482 = vmatprep.subr.bf16.mxu0 %v555
    %4483 = vmatpush1.bf16.msra.mxu0 %v554
    %4484 = vmatprep.subr.bf16.mxu0 %v563
    %4485 = vmatpush1.bf16.msra.mxu0 %v562
    %4486 = vmatprep.subr.bf16.mxu0 %v571
    %4487 = vmatpush1.bf16.msra.mxu0 %v570
    %4488 = vmatprep.subr.bf16.mxu0 %v579
    %4489 = vmatpush1.bf16.msra.mxu0 %v578
    %4490 = vmatprep.subr.bf16.mxu0 %v587
    %4491 = vmatpush1.bf16.msra.mxu0 %v586
    %4492 = vmatprep.subr.bf16.mxu0 %v595
    %4493 = vmatpush1.bf16.msra.mxu0 %v594
    %4494 = vmatprep.subr.bf16.mxu0 %v603
    %4495 = vmatpush1.bf16.msra.mxu0 %v602
    %4496 = vmatprep.mubr.bf16.mxu0 %v3848
    %4497 = vmatmul.mubr.bf16.gmra.mrb[0].mxu0 %v3847
    %v4498 = vpop.f32.mrb[0].mxu0
    %v4499 = vadd.f32 %v4458, %v4498
    %v4500 = vpop.f32.mrb[0].mxu0
    %v4501 = vadd.f32 %v4460, %v4500
    %v4502 = vpop.f32.mrb[0].mxu0
    %v4503 = vpop.f32.mrb[0].mxu0
    %4504 = vdwg.mxu0
    %v4505 = vtanh.pop %v4007
    %v4506 = vtanh.pop %v4009
    %v4507 = vtanh.pop %v4171
    %v4508 = vtanh.pop %v4173
    %v4509 = vtanh.pop %v4335
    %v4510 = vtanh.pop %v4337
    %v4511 = vtanh.pop %v4499
    %v4512 = vtanh.pop %v4501
    %s4513 = sadd.f32 %s73, 1.0
    %v4514 = vstv %s4513
    %v4515 = vmul.f32 %v3704, %v4514
    %v4516 = vmul.f32 %v3705, %v4514
    %v4517 = vstv %s73
    %v4518 = vmul.f32 %v4517, %v4505
    %v4519 = vmul.f32 %v4517, %v4506
    %v4520 = vmul.f32 %v4517, %v4507
    %v4521 = vmul.f32 %v4517, %v4508
    %v4522 = vmul.f32 %v4517, %v4509
    %v4523 = vmul.f32 %v4517, %v4510
    %v4524 = vmul.f32 %v4517, %v4511
    %v4525 = vmul.f32 %v4517, %v4512
    %v4534 = vcombine.low %v4518, %v4519
    %v4535 = vcombine.low %v4520, %v4521
    %v4537 = vunpack.c.l.s4 1983009808
    %v4538 = vunpack.c.0.s8 %v4537
    %v4539 = vlaneseq
    %v4540 = vshrl.u32 %v4539, 7
    %v4541 = vsub.s32 %v4538, %v4540
    %v4542 = vrot.slane %v4534, %v4541
    %v4544 = vunpack.c.l.s4 1983009808
    %v4545 = vunpack.c.0.s8 %v4544
    %v4546 = vlaneseq
    %v4547 = vshrl.u32 %v4546, 7
    %v4548 = vsub.s32 %v4545, %v4547
    %v4549 = vrot.slane %v4535, %v4548
    %v4550 = vcombine.low %v4542, %v4549
    %v4551 = vcombine.low %v4522, %v4523
    %v4552 = vcombine.low %v4524, %v4525
    %v4554 = vunpack.c.l.s4 1983009808
    %v4555 = vunpack.c.0.s8 %v4554
    %v4556 = vlaneseq
    %v4557 = vshrl.u32 %v4556, 7
    %v4558 = vsub.s32 %v4555, %v4557
    %v4559 = vrot.slane %v4551, %v4558
    %v4561 = vunpack.c.l.s4 1983009808
    %v4562 = vunpack.c.0.s8 %v4561
    %v4563 = vlaneseq
    %v4564 = vshrl.u32 %v4563, 7
    %v4565 = vsub.s32 %v4562, %v4564
    %v4566 = vrot.slane %v4552, %v4565
    %v4567 = vcombine.low %v4559, %v4566
    %v4570 = vadd.f32 %v4515, %v4550
    %v4571 = vadd.f32 %v4516, %v4567
    %v4574 = vcombine.high %v4570, %v4570
    %v4576 = vunpack.c.l.s4 1983009808
    %v4577 = vunpack.c.0.s8 %v4576
    %v4578 = vlaneseq
    %v4579 = vshrl.u32 %v4578, 7
    %v4580 = vsub.s32 %v4577, %v4579
    %v4581 = vrot.slane %v4570, %v4580
    %v4583 = vunpack.c.l.s4 1983009808
    %v4584 = vunpack.c.0.s8 %v4583
    %v4585 = vlaneseq
    %v4586 = vshrl.u32 %v4585, 7
    %v4587 = vsub.s32 %v4584, %v4586
    %v4588 = vrot.slane %v4574, %v4587
    %v4589 = vcombine.high %v4581, %v4581
    %v4590 = vcombine.high %v4588, %v4588
    %v4591 = vcombine.high %v4571, %v4571
    %v4593 = vunpack.c.l.s4 1983009808
    %v4594 = vunpack.c.0.s8 %v4593
    %v4595 = vlaneseq
    %v4596 = vshrl.u32 %v4595, 7
    %v4597 = vsub.s32 %v4594, %v4596
    %v4598 = vrot.slane %v4571, %v4597
    %v4600 = vunpack.c.l.s4 1983009808
    %v4601 = vunpack.c.0.s8 %v4600
    %v4602 = vlaneseq
    %v4603 = vshrl.u32 %v4602, 7
    %v4604 = vsub.s32 %v4601, %v4603
    %v4605 = vrot.slane %v4591, %v4604
    %v4606 = vcombine.high %v4598, %v4598
    %v4607 = vcombine.high %v4605, %v4605
    %v4616 = vpack.c.bf16 %v4581, %v4581
    %v4617 = vpack.c.bf16 %v4589, %v4589
    %v4618 = vpack.c.bf16 %v4588, %v4588
    %v4619 = vpack.c.bf16 %v4590, %v4590
    %v4620 = vpack.c.bf16 %v4598, %v4598
    %v4621 = vpack.c.bf16 %v4606, %v4606
    %v4622 = vpack.c.bf16 %v4605, %v4605
    %v4623 = vpack.c.bf16 %v4607, %v4607
    %4624 = vmatprep.subr.bf16.mxu0 %v93
    %4625 = vmatpush1.bf16.msra.mxu0 %v92
    %4626 = vmatprep.subr.bf16.mxu0 %v101
    %4627 = vmatpush1.bf16.msra.mxu0 %v100
    %4628 = vmatprep.subr.bf16.mxu0 %v109
    %4629 = vmatpush1.bf16.msra.mxu0 %v108
    %4630 = vmatprep.subr.bf16.mxu0 %v117
    %4631 = vmatpush1.bf16.msra.mxu0 %v116
    %4632 = vmatprep.subr.bf16.mxu0 %v125
    %4633 = vmatpush1.bf16.msra.mxu0 %v124
    %4634 = vmatprep.subr.bf16.mxu0 %v133
    %4635 = vmatpush1.bf16.msra.mxu0 %v132
    %4636 = vmatprep.subr.bf16.mxu0 %v141
    %4637 = vmatpush1.bf16.msra.mxu0 %v140
    %4638 = vmatprep.subr.bf16.mxu0 %v149
    %4639 = vmatpush1.bf16.msra.mxu0 %v148
    %4640 = vmatprep.subr.bf16.mxu0 %v157
    %4641 = vmatpush1.bf16.msra.mxu0 %v156
    %4642 = vmatprep.subr.bf16.mxu0 %v165
    %4643 = vmatpush1.bf16.msra.mxu0 %v164
    %4644 = vmatprep.subr.bf16.mxu0 %v173
    %4645 = vmatpush1.bf16.msra.mxu0 %v172
    %4646 = vmatprep.subr.bf16.mxu0 %v181
    %4647 = vmatpush1.bf16.msra.mxu0 %v180
    %4648 = vmatprep.subr.bf16.mxu0 %v189
    %4649 = vmatpush1.bf16.msra.mxu0 %v188
    %4650 = vmatprep.subr.bf16.mxu0 %v197
    %4651 = vmatpush1.bf16.msra.mxu0 %v196
    %4652 = vmatprep.subr.bf16.mxu0 %v205
    %4653 = vmatpush1.bf16.msra.mxu0 %v204
    %4654 = vmatprep.subr.bf16.mxu0 %v213
    %4655 = vmatpush1.bf16.msra.mxu0 %v212
    %4656 = vmatprep.mubr.bf16.mxu0 %v4617
    %4657 = vmatmul.mubr.bf16.gmra.mrb[0].mxu0 %v4616
    %v4658 = vpop.f32.mrb[0].mxu0
    %v4659 = vadd.f32 0.0, %v4658
    %v4660 = vpop.f32.mrb[0].mxu0
    %v4661 = vadd.f32 0.0, %v4660
    %v4662 = vpop.f32.mrb[0].mxu0
    %v4663 = vpop.f32.mrb[0].mxu0
    %4664 = vdwg.mxu0
    %4665 = vmatprep.subr.bf16.mxu0 %v221
    %4666 = vmatpush1.bf16.msra.mxu0 %v220
    %4667 = vmatprep.subr.bf16.mxu0 %v229
    %4668 = vmatpush1.bf16.msra.mxu0 %v228
    %4669 = vmatprep.subr.bf16.mxu0 %v237
    %4670 = vmatpush1.bf16.msra.mxu0 %v236
    %4671 = vmatprep.subr.bf16.mxu0 %v245
    %4672 = vmatpush1.bf16.msra.mxu0 %v244
    %4673 = vmatprep.subr.bf16.mxu0 %v253
    %4674 = vmatpush1.bf16.msra.mxu0 %v252
    %4675 = vmatprep.subr.bf16.mxu0 %v261
    %4676 = vmatpush1.bf16.msra.mxu0 %v260
    %4677 = vmatprep.subr.bf16.mxu0 %v269
    %4678 = vmatpush1.bf16.msra.mxu0 %v268
    %4679 = vmatprep.subr.bf16.mxu0 %v277
    %4680 = vmatpush1.bf16.msra.mxu0 %v276
    %4681 = vmatprep.subr.bf16.mxu0 %v285
    %4682 = vmatpush1.bf16.msra.mxu0 %v284
    %4683 = vmatprep.subr.bf16.mxu0 %v293
    %4684 = vmatpush1.bf16.msra.mxu0 %v292
    %4685 = vmatprep.subr.bf16.mxu0 %v301
    %4686 = vmatpush1.bf16.msra.mxu0 %v300
    %4687 = vmatprep.subr.bf16.mxu0 %v309
    %4688 = vmatpush1.bf16.msra.mxu0 %v308
    %4689 = vmatprep.subr.bf16.mxu0 %v317
    %4690 = vmatpush1.bf16.msra.mxu0 %v316
    %4691 = vmatprep.subr.bf16.mxu0 %v325
    %4692 = vmatpush1.bf16.msra.mxu0 %v324
    %4693 = vmatprep.subr.bf16.mxu0 %v333
    %4694 = vmatpush1.bf16.msra.mxu0 %v332
    %4695 = vmatprep.subr.bf16.mxu0 %v341
    %4696 = vmatpush1.bf16.msra.mxu0 %v340
    %4697 = vmatprep.mubr.bf16.mxu0 %v4619
    %4698 = vmatmul.mubr.bf16.gmra.mrb[0].mxu0 %v4618
    %v4699 = vpop.f32.mrb[0].mxu0
    %v4700 = vadd.f32 %v4659, %v4699
    %v4701 = vpop.f32.mrb[0].mxu0
    %v4702 = vadd.f32 %v4661, %v4701
    %v4703 = vpop.f32.mrb[0].mxu0
    %v4704 = vpop.f32.mrb[0].mxu0
    %4705 = vdwg.mxu0
    %4706 = vmatprep.subr.bf16.mxu0 %v349
    %4707 = vmatpush1.bf16.msra.mxu0 %v348
    %4708 = vmatprep.subr.bf16.mxu0 %v357
    %4709 = vmatpush1.bf16.msra.mxu0 %v356
    %4710 = vmatprep.subr.bf16.mxu0 %v365
    %4711 = vmatpush1.bf16.msra.mxu0 %v364
    %4712 = vmatprep.subr.bf16.mxu0 %v373
    %4713 = vmatpush1.bf16.msra.mxu0 %v372
    %4714 = vmatprep.subr.bf16.mxu0 %v381
    %4715 = vmatpush1.bf16.msra.mxu0 %v380
    %4716 = vmatprep.subr.bf16.mxu0 %v389
    %4717 = vmatpush1.bf16.msra.mxu0 %v388
    %4718 = vmatprep.subr.bf16.mxu0 %v397
    %4719 = vmatpush1.bf16.msra.mxu0 %v396
    %4720 = vmatprep.subr.bf16.mxu0 %v405
    %4721 = vmatpush1.bf16.msra.mxu0 %v404
    %4722 = vmatprep.subr.bf16.mxu0 %v413
    %4723 = vmatpush1.bf16.msra.mxu0 %v412
    %4724 = vmatprep.subr.bf16.mxu0 %v421
    %4725 = vmatpush1.bf16.msra.mxu0 %v420
    %4726 = vmatprep.subr.bf16.mxu0 %v429
    %4727 = vmatpush1.bf16.msra.mxu0 %v428
    %4728 = vmatprep.subr.bf16.mxu0 %v437
    %4729 = vmatpush1.bf16.msra.mxu0 %v436
    %4730 = vmatprep.subr.bf16.mxu0 %v445
    %4731 = vmatpush1.bf16.msra.mxu0 %v444
    %4732 = vmatprep.subr.bf16.mxu0 %v453
    %4733 = vmatpush1.bf16.msra.mxu0 %v452
    %4734 = vmatprep.subr.bf16.mxu0 %v461
    %4735 = vmatpush1.bf16.msra.mxu0 %v460
    %4736 = vmatprep.subr.bf16.mxu0 %v469
    %4737 = vmatpush1.bf16.msra.mxu0 %v468
    %4738 = vmatprep.mubr.bf16.mxu0 %v4621
    %4739 = vmatmul.mubr.bf16.gmra.mrb[0].mxu0 %v4620
    %v4740 = vpop.f32.mrb[0].mxu0
    %v4741 = vadd.f32 %v4700, %v4740
    %v4742 = vpop.f32.mrb[0].mxu0
    %v4743 = vadd.f32 %v4702, %v4742
    %v4744 = vpop.f32.mrb[0].mxu0
    %v4745 = vpop.f32.mrb[0].mxu0
    %4746 = vdwg.mxu0
    %4747 = vmatprep.subr.bf16.mxu0 %v477
    %4748 = vmatpush1.bf16.msra.mxu0 %v476
    %4749 = vmatprep.subr.bf16.mxu0 %v485
    %4750 = vmatpush1.bf16.msra.mxu0 %v484
    %4751 = vmatprep.subr.bf16.mxu0 %v493
    %4752 = vmatpush1.bf16.msra.mxu0 %v492
    %4753 = vmatprep.subr.bf16.mxu0 %v501
    %4754 = vmatpush1.bf16.msra.mxu0 %v500
    %4755 = vmatprep.subr.bf16.mxu0 %v509
    %4756 = vmatpush1.bf16.msra.mxu0 %v508
    %4757 = vmatprep.subr.bf16.mxu0 %v517
    %4758 = vmatpush1.bf16.msra.mxu0 %v516
    %4759 = vmatprep.subr.bf16.mxu0 %v525
    %4760 = vmatpush1.bf16.msra.mxu0 %v524
    %4761 = vmatprep.subr.bf16.mxu0 %v533
    %4762 = vmatpush1.bf16.msra.mxu0 %v532
    %4763 = vmatprep.subr.bf16.mxu0 %v541
    %4764 = vmatpush1.bf16.msra.mxu0 %v540
    %4765 = vmatprep.subr.bf16.mxu0 %v549
    %4766 = vmatpush1.bf16.msra.mxu0 %v548
    %4767 = vmatprep.subr.bf16.mxu0 %v557
    %4768 = vmatpush1.bf16.msra.mxu0 %v556
    %4769 = vmatprep.subr.bf16.mxu0 %v565
    %4770 = vmatpush1.bf16.msra.mxu0 %v564
    %4771 = vmatprep.subr.bf16.mxu0 %v573
    %4772 = vmatpush1.bf16.msra.mxu0 %v572
    %4773 = vmatprep.subr.bf16.mxu0 %v581
    %4774 = vmatpush1.bf16.msra.mxu0 %v580
    %4775 = vmatprep.subr.bf16.mxu0 %v589
    %4776 = vmatpush1.bf16.msra.mxu0 %v588
    %4777 = vmatprep.subr.bf16.mxu0 %v597
    %4778 = vmatpush1.bf16.msra.mxu0 %v596
    %4779 = vmatprep.mubr.bf16.mxu0 %v4623
    %4780 = vmatmul.mubr.bf16.gmra.mrb[0].mxu0 %v4622
    %v4781 = vpop.f32.mrb[0].mxu0
    %v4782 = vadd.f32 %v4741, %v4781
    %v4783 = vpop.f32.mrb[0].mxu0
    %v4784 = vadd.f32 %v4743, %v4783
    %v4785 = vpop.f32.mrb[0].mxu0
    %v4786 = vpop.f32.mrb[0].mxu0
    %4787 = vdwg.mxu0
    %4788 = vmatprep.subr.bf16.mxu0 %v95
    %4789 = vmatpush1.bf16.msra.mxu0 %v94
    %4790 = vmatprep.subr.bf16.mxu0 %v103
    %4791 = vmatpush1.bf16.msra.mxu0 %v102
    %4792 = vmatprep.subr.bf16.mxu0 %v111
    %4793 = vmatpush1.bf16.msra.mxu0 %v110
    %4794 = vmatprep.subr.bf16.mxu0 %v119
    %4795 = vmatpush1.bf16.msra.mxu0 %v118
    %4796 = vmatprep.subr.bf16.mxu0 %v127
    %4797 = vmatpush1.bf16.msra.mxu0 %v126
    %4798 = vmatprep.subr.bf16.mxu0 %v135
    %4799 = vmatpush1.bf16.msra.mxu0 %v134
    %4800 = vmatprep.subr.bf16.mxu0 %v143
    %4801 = vmatpush1.bf16.msra.mxu0 %v142
    %4802 = vmatprep.subr.bf16.mxu0 %v151
    %4803 = vmatpush1.bf16.msra.mxu0 %v150
    %4804 = vmatprep.subr.bf16.mxu0 %v159
    %4805 = vmatpush1.bf16.msra.mxu0 %v158
    %4806 = vmatprep.subr.bf16.mxu0 %v167
    %4807 = vmatpush1.bf16.msra.mxu0 %v166
    %4808 = vmatprep.subr.bf16.mxu0 %v175
    %4809 = vmatpush1.bf16.msra.mxu0 %v174
    %4810 = vmatprep.subr.bf16.mxu0 %v183
    %4811 = vmatpush1.bf16.msra.mxu0 %v182
    %4812 = vmatprep.subr.bf16.mxu0 %v191
    %4813 = vmatpush1.bf16.msra.mxu0 %v190
    %4814 = vmatprep.subr.bf16.mxu0 %v199
    %4815 = vmatpush1.bf16.msra.mxu0 %v198
    %4816 = vmatprep.subr.bf16.mxu0 %v207
    %4817 = vmatpush1.bf16.msra.mxu0 %v206
    %4818 = vmatprep.subr.bf16.mxu0 %v215
    %4819 = vmatpush1.bf16.msra.mxu0 %v214
    %4820 = vmatprep.mubr.bf16.mxu0 %v4617
    %4821 = vmatmul.mubr.bf16.gmra.mrb[0].mxu0 %v4616
    %v4822 = vpop.f32.mrb[0].mxu0
    %v4823 = vadd.f32 0.0, %v4822
    %v4824 = vpop.f32.mrb[0].mxu0
    %v4825 = vadd.f32 0.0, %v4824
    %v4826 = vpop.f32.mrb[0].mxu0
    %v4827 = vpop.f32.mrb[0].mxu0
    %4828 = vdwg.mxu0
    %4829 = vmatprep.subr.bf16.mxu0 %v223
    %4830 = vmatpush1.bf16.msra.mxu0 %v222
    %4831 = vmatprep.subr.bf16.mxu0 %v231
    %4832 = vmatpush1.bf16.msra.mxu0 %v230
    %4833 = vmatprep.subr.bf16.mxu0 %v239
    %4834 = vmatpush1.bf16.msra.mxu0 %v238
    %4835 = vmatprep.subr.bf16.mxu0 %v247
    %4836 = vmatpush1.bf16.msra.mxu0 %v246
    %4837 = vmatprep.subr.bf16.mxu0 %v255
    %4838 = vmatpush1.bf16.msra.mxu0 %v254
    %4839 = vmatprep.subr.bf16.mxu0 %v263
    %4840 = vmatpush1.bf16.msra.mxu0 %v262
    %4841 = vmatprep.subr.bf16.mxu0 %v271
    %4842 = vmatpush1.bf16.msra.mxu0 %v270
    %4843 = vmatprep.subr.bf16.mxu0 %v279
    %4844 = vmatpush1.bf16.msra.mxu0 %v278
    %4845 = vmatprep.subr.bf16.mxu0 %v287
    %4846 = vmatpush1.bf16.msra.mxu0 %v286
    %4847 = vmatprep.subr.bf16.mxu0 %v295
    %4848 = vmatpush1.bf16.msra.mxu0 %v294
    %4849 = vmatprep.subr.bf16.mxu0 %v303
    %4850 = vmatpush1.bf16.msra.mxu0 %v302
    %4851 = vmatprep.subr.bf16.mxu0 %v311
    %4852 = vmatpush1.bf16.msra.mxu0 %v310
    %4853 = vmatprep.subr.bf16.mxu0 %v319
    %4854 = vmatpush1.bf16.msra.mxu0 %v318
    %4855 = vmatprep.subr.bf16.mxu0 %v327
    %4856 = vmatpush1.bf16.msra.mxu0 %v326
    %4857 = vmatprep.subr.bf16.mxu0 %v335
    %4858 = vmatpush1.bf16.msra.mxu0 %v334
    %4859 = vmatprep.subr.bf16.mxu0 %v343
    %4860 = vmatpush1.bf16.msra.mxu0 %v342
    %4861 = vmatprep.mubr.bf16.mxu0 %v4619
    %4862 = vmatmul.mubr.bf16.gmra.mrb[0].mxu0 %v4618
    %v4863 = vpop.f32.mrb[0].mxu0
    %v4864 = vadd.f32 %v4823, %v4863
    %v4865 = vpop.f32.mrb[0].mxu0
    %v4866 = vadd.f32 %v4825, %v4865
    %v4867 = vpop.f32.mrb[0].mxu0
    %v4868 = vpop.f32.mrb[0].mxu0
    %4869 = vdwg.mxu0
    %4870 = vmatprep.subr.bf16.mxu0 %v351
    %4871 = vmatpush1.bf16.msra.mxu0 %v350
    %4872 = vmatprep.subr.bf16.mxu0 %v359
    %4873 = vmatpush1.bf16.msra.mxu0 %v358
    %4874 = vmatprep.subr.bf16.mxu0 %v367
    %4875 = vmatpush1.bf16.msra.mxu0 %v366
    %4876 = vmatprep.subr.bf16.mxu0 %v375
    %4877 = vmatpush1.bf16.msra.mxu0 %v374
    %4878 = vmatprep.subr.bf16.mxu0 %v383
    %4879 = vmatpush1.bf16.msra.mxu0 %v382
    %4880 = vmatprep.subr.bf16.mxu0 %v391
    %4881 = vmatpush1.bf16.msra.mxu0 %v390
    %4882 = vmatprep.subr.bf16.mxu0 %v399
    %4883 = vmatpush1.bf16.msra.mxu0 %v398
    %4884 = vmatprep.subr.bf16.mxu0 %v407
    %4885 = vmatpush1.bf16.msra.mxu0 %v406
    %4886 = vmatprep.subr.bf16.mxu0 %v415
    %4887 = vmatpush1.bf16.msra.mxu0 %v414
    %4888 = vmatprep.subr.bf16.mxu0 %v423
    %4889 = vmatpush1.bf16.msra.mxu0 %v422
    %4890 = vmatprep.subr.bf16.mxu0 %v431
    %4891 = vmatpush1.bf16.msra.mxu0 %v430
    %4892 = vmatprep.subr.bf16.mxu0 %v439
    %4893 = vmatpush1.bf16.msra.mxu0 %v438
    %4894 = vmatprep.subr.bf16.mxu0 %v447
    %4895 = vmatpush1.bf16.msra.mxu0 %v446
    %4896 = vmatprep.subr.bf16.mxu0 %v455
    %4897 = vmatpush1.bf16.msra.mxu0 %v454
    %4898 = vmatprep.subr.bf16.mxu0 %v463
    %4899 = vmatpush1.bf16.msra.mxu0 %v462
    %4900 = vmatprep.subr.bf16.mxu0 %v471
    %4901 = vmatpush1.bf16.msra.mxu0 %v470
    %4902 = vmatprep.mubr.bf16.mxu0 %v4621
    %4903 = vmatmul.mubr.bf16.gmra.mrb[0].mxu0 %v4620
    %v4904 = vpop.f32.mrb[0].mxu0
    %v4905 = vadd.f32 %v4864, %v4904
    %v4906 = vpop.f32.mrb[0].mxu0
    %v4907 = vadd.f32 %v4866, %v4906
    %v4908 = vpop.f32.mrb[0].mxu0
    %v4909 = vpop.f32.mrb[0].mxu0
    %4910 = vdwg.mxu0
    %4911 = vmatprep.subr.bf16.mxu0 %v479
    %4912 = vmatpush1.bf16.msra.mxu0 %v478
    %4913 = vmatprep.subr.bf16.mxu0 %v487
    %4914 = vmatpush1.bf16.msra.mxu0 %v486
    %4915 = vmatprep.subr.bf16.mxu0 %v495
    %4916 = vmatpush1.bf16.msra.mxu0 %v494
    %4917 = vmatprep.subr.bf16.mxu0 %v503
    %4918 = vmatpush1.bf16.msra.mxu0 %v502
    %4919 = vmatprep.subr.bf16.mxu0 %v511
    %4920 = vmatpush1.bf16.msra.mxu0 %v510
    %4921 = vmatprep.subr.bf16.mxu0 %v519
    %4922 = vmatpush1.bf16.msra.mxu0 %v518
    %4923 = vmatprep.subr.bf16.mxu0 %v527
    %4924 = vmatpush1.bf16.msra.mxu0 %v526
    %4925 = vmatprep.subr.bf16.mxu0 %v535
    %4926 = vmatpush1.bf16.msra.mxu0 %v534
    %4927 = vmatprep.subr.bf16.mxu0 %v543
    %4928 = vmatpush1.bf16.msra.mxu0 %v542
    %4929 = vmatprep.subr.bf16.mxu0 %v551
    %4930 = vmatpush1.bf16.msra.mxu0 %v550
    %4931 = vmatprep.subr.bf16.mxu0 %v559
    %4932 = vmatpush1.bf16.msra.mxu0 %v558
    %4933 = vmatprep.subr.bf16.mxu0 %v567
    %4934 = vmatpush1.bf16.msra.mxu0 %v566
    %4935 = vmatprep.subr.bf16.mxu0 %v575
    %4936 = vmatpush1.bf16.msra.mxu0 %v574
    %4937 = vmatprep.subr.bf16.mxu0 %v583
    %4938 = vmatpush1.bf16.msra.mxu0 %v582
    %4939 = vmatprep.subr.bf16.mxu0 %v591
    %4940 = vmatpush1.bf16.msra.mxu0 %v590
    %4941 = vmatprep.subr.bf16.mxu0 %v599
    %4942 = vmatpush1.bf16.msra.mxu0 %v598
    %4943 = vmatprep.mubr.bf16.mxu0 %v4623
    %4944 = vmatmul.mubr.bf16.gmra.mrb[0].mxu0 %v4622
    %v4945 = vpop.f32.mrb[0].mxu0
    %v4946 = vadd.f32 %v4905, %v4945
    %v4947 = vpop.f32.mrb[0].mxu0
    %v4948 = vadd.f32 %v4907, %v4947
    %v4949 = vpop.f32.mrb[0].mxu0
    %v4950 = vpop.f32.mrb[0].mxu0
    %4951 = vdwg.mxu0
    %4952 = vmatprep.subr.bf16.mxu0 %v97
    %4953 = vmatpush1.bf16.msra.mxu0 %v96
    %4954 = vmatprep.subr.bf16.mxu0 %v105
    %4955 = vmatpush1.bf16.msra.mxu0 %v104
    %4956 = vmatprep.subr.bf16.mxu0 %v113
    %4957 = vmatpush1.bf16.msra.mxu0 %v112
    %4958 = vmatprep.subr.bf16.mxu0 %v121
    %4959 = vmatpush1.bf16.msra.mxu0 %v120
    %4960 = vmatprep.subr.bf16.mxu0 %v129
    %4961 = vmatpush1.bf16.msra.mxu0 %v128
    %4962 = vmatprep.subr.bf16.mxu0 %v137
    %4963 = vmatpush1.bf16.msra.mxu0 %v136
    %4964 = vmatprep.subr.bf16.mxu0 %v145
    %4965 = vmatpush1.bf16.msra.mxu0 %v144
    %4966 = vmatprep.subr.bf16.mxu0 %v153
    %4967 = vmatpush1.bf16.msra.mxu0 %v152
    %4968 = vmatprep.subr.bf16.mxu0 %v161
    %4969 = vmatpush1.bf16.msra.mxu0 %v160
    %4970 = vmatprep.subr.bf16.mxu0 %v169
    %4971 = vmatpush1.bf16.msra.mxu0 %v168
    %4972 = vmatprep.subr.bf16.mxu0 %v177
    %4973 = vmatpush1.bf16.msra.mxu0 %v176
    %4974 = vmatprep.subr.bf16.mxu0 %v185
    %4975 = vmatpush1.bf16.msra.mxu0 %v184
    %4976 = vmatprep.subr.bf16.mxu0 %v193
    %4977 = vmatpush1.bf16.msra.mxu0 %v192
    %4978 = vmatprep.subr.bf16.mxu0 %v201
    %4979 = vmatpush1.bf16.msra.mxu0 %v200
    %4980 = vmatprep.subr.bf16.mxu0 %v209
    %4981 = vmatpush1.bf16.msra.mxu0 %v208
    %4982 = vmatprep.subr.bf16.mxu0 %v217
    %4983 = vmatpush1.bf16.msra.mxu0 %v216
    %4984 = vmatprep.mubr.bf16.mxu0 %v4617
    %4985 = vmatmul.mubr.bf16.gmra.mrb[0].mxu0 %v4616
    %v4986 = vpop.f32.mrb[0].mxu0
    %v4987 = vadd.f32 0.0, %v4986
    %v4988 = vpop.f32.mrb[0].mxu0
    %v4989 = vadd.f32 0.0, %v4988
    %v4990 = vpop.f32.mrb[0].mxu0
    %v4991 = vpop.f32.mrb[0].mxu0
    %4992 = vdwg.mxu0
    %4993 = vmatprep.subr.bf16.mxu0 %v225
    %4994 = vmatpush1.bf16.msra.mxu0 %v224
    %4995 = vmatprep.subr.bf16.mxu0 %v233
    %4996 = vmatpush1.bf16.msra.mxu0 %v232
    %4997 = vmatprep.subr.bf16.mxu0 %v241
    %4998 = vmatpush1.bf16.msra.mxu0 %v240
    %4999 = vmatprep.subr.bf16.mxu0 %v249
    %5000 = vmatpush1.bf16.msra.mxu0 %v248
    %5001 = vmatprep.subr.bf16.mxu0 %v257
    %5002 = vmatpush1.bf16.msra.mxu0 %v256
    %5003 = vmatprep.subr.bf16.mxu0 %v265
    %5004 = vmatpush1.bf16.msra.mxu0 %v264
    %5005 = vmatprep.subr.bf16.mxu0 %v273
    %5006 = vmatpush1.bf16.msra.mxu0 %v272
    %5007 = vmatprep.subr.bf16.mxu0 %v281
    %5008 = vmatpush1.bf16.msra.mxu0 %v280
    %5009 = vmatprep.subr.bf16.mxu0 %v289
    %5010 = vmatpush1.bf16.msra.mxu0 %v288
    %5011 = vmatprep.subr.bf16.mxu0 %v297
    %5012 = vmatpush1.bf16.msra.mxu0 %v296
    %5013 = vmatprep.subr.bf16.mxu0 %v305
    %5014 = vmatpush1.bf16.msra.mxu0 %v304
    %5015 = vmatprep.subr.bf16.mxu0 %v313
    %5016 = vmatpush1.bf16.msra.mxu0 %v312
    %5017 = vmatprep.subr.bf16.mxu0 %v321
    %5018 = vmatpush1.bf16.msra.mxu0 %v320
    %5019 = vmatprep.subr.bf16.mxu0 %v329
    %5020 = vmatpush1.bf16.msra.mxu0 %v328
    %5021 = vmatprep.subr.bf16.mxu0 %v337
    %5022 = vmatpush1.bf16.msra.mxu0 %v336
    %5023 = vmatprep.subr.bf16.mxu0 %v345
    %5024 = vmatpush1.bf16.msra.mxu0 %v344
    %5025 = vmatprep.mubr.bf16.mxu0 %v4619
    %5026 = vmatmul.mubr.bf16.gmra.mrb[0].mxu0 %v4618
    %v5027 = vpop.f32.mrb[0].mxu0
    %v5028 = vadd.f32 %v4987, %v5027
    %v5029 = vpop.f32.mrb[0].mxu0
    %v5030 = vadd.f32 %v4989, %v5029
    %v5031 = vpop.f32.mrb[0].mxu0
    %v5032 = vpop.f32.mrb[0].mxu0
    %5033 = vdwg.mxu0
    %5034 = vmatprep.subr.bf16.mxu0 %v353
    %5035 = vmatpush1.bf16.msra.mxu0 %v352
    %5036 = vmatprep.subr.bf16.mxu0 %v361
    %5037 = vmatpush1.bf16.msra.mxu0 %v360
    %5038 = vmatprep.subr.bf16.mxu0 %v369
    %5039 = vmatpush1.bf16.msra.mxu0 %v368
    %5040 = vmatprep.subr.bf16.mxu0 %v377
    %5041 = vmatpush1.bf16.msra.mxu0 %v376
    %5042 = vmatprep.subr.bf16.mxu0 %v385
    %5043 = vmatpush1.bf16.msra.mxu0 %v384
    %5044 = vmatprep.subr.bf16.mxu0 %v393
    %5045 = vmatpush1.bf16.msra.mxu0 %v392
    %5046 = vmatprep.subr.bf16.mxu0 %v401
    %5047 = vmatpush1.bf16.msra.mxu0 %v400
    %5048 = vmatprep.subr.bf16.mxu0 %v409
    %5049 = vmatpush1.bf16.msra.mxu0 %v408
    %5050 = vmatprep.subr.bf16.mxu0 %v417
    %5051 = vmatpush1.bf16.msra.mxu0 %v416
    %5052 = vmatprep.subr.bf16.mxu0 %v425
    %5053 = vmatpush1.bf16.msra.mxu0 %v424
    %5054 = vmatprep.subr.bf16.mxu0 %v433
    %5055 = vmatpush1.bf16.msra.mxu0 %v432
    %5056 = vmatprep.subr.bf16.mxu0 %v441
    %5057 = vmatpush1.bf16.msra.mxu0 %v440
    %5058 = vmatprep.subr.bf16.mxu0 %v449
    %5059 = vmatpush1.bf16.msra.mxu0 %v448
    %5060 = vmatprep.subr.bf16.mxu0 %v457
    %5061 = vmatpush1.bf16.msra.mxu0 %v456
    %5062 = vmatprep.subr.bf16.mxu0 %v465
    %5063 = vmatpush1.bf16.msra.mxu0 %v464
    %5064 = vmatprep.subr.bf16.mxu0 %v473
    %5065 = vmatpush1.bf16.msra.mxu0 %v472
    %5066 = vmatprep.mubr.bf16.mxu0 %v4621
    %5067 = vmatmul.mubr.bf16.gmra.mrb[0].mxu0 %v4620
    %v5068 = vpop.f32.mrb[0].mxu0
    %v5069 = vadd.f32 %v5028, %v5068
    %v5070 = vpop.f32.mrb[0].mxu0
    %v5071 = vadd.f32 %v5030, %v5070
    %v5072 = vpop.f32.mrb[0].mxu0
    %v5073 = vpop.f32.mrb[0].mxu0
    %5074 = vdwg.mxu0
    %5075 = vmatprep.subr.bf16.mxu0 %v481
    %5076 = vmatpush1.bf16.msra.mxu0 %v480
    %5077 = vmatprep.subr.bf16.mxu0 %v489
    %5078 = vmatpush1.bf16.msra.mxu0 %v488
    %5079 = vmatprep.subr.bf16.mxu0 %v497
    %5080 = vmatpush1.bf16.msra.mxu0 %v496
    %5081 = vmatprep.subr.bf16.mxu0 %v505
    %5082 = vmatpush1.bf16.msra.mxu0 %v504
    %5083 = vmatprep.subr.bf16.mxu0 %v513
    %5084 = vmatpush1.bf16.msra.mxu0 %v512
    %5085 = vmatprep.subr.bf16.mxu0 %v521
    %5086 = vmatpush1.bf16.msra.mxu0 %v520
    %5087 = vmatprep.subr.bf16.mxu0 %v529
    %5088 = vmatpush1.bf16.msra.mxu0 %v528
    %5089 = vmatprep.subr.bf16.mxu0 %v537
    %5090 = vmatpush1.bf16.msra.mxu0 %v536
    %5091 = vmatprep.subr.bf16.mxu0 %v545
    %5092 = vmatpush1.bf16.msra.mxu0 %v544
    %5093 = vmatprep.subr.bf16.mxu0 %v553
    %5094 = vmatpush1.bf16.msra.mxu0 %v552
    %5095 = vmatprep.subr.bf16.mxu0 %v561
    %5096 = vmatpush1.bf16.msra.mxu0 %v560
    %5097 = vmatprep.subr.bf16.mxu0 %v569
    %5098 = vmatpush1.bf16.msra.mxu0 %v568
    %5099 = vmatprep.subr.bf16.mxu0 %v577
    %5100 = vmatpush1.bf16.msra.mxu0 %v576
    %5101 = vmatprep.subr.bf16.mxu0 %v585
    %5102 = vmatpush1.bf16.msra.mxu0 %v584
    %5103 = vmatprep.subr.bf16.mxu0 %v593
    %5104 = vmatpush1.bf16.msra.mxu0 %v592
    %5105 = vmatprep.subr.bf16.mxu0 %v601
    %5106 = vmatpush1.bf16.msra.mxu0 %v600
    %5107 = vmatprep.mubr.bf16.mxu0 %v4623
    %5108 = vmatmul.mubr.bf16.gmra.mrb[0].mxu0 %v4622
    %v5109 = vpop.f32.mrb[0].mxu0
    %v5110 = vadd.f32 %v5069, %v5109
    %v5111 = vpop.f32.mrb[0].mxu0
    %v5112 = vadd.f32 %v5071, %v5111
    %v5113 = vpop.f32.mrb[0].mxu0
    %v5114 = vpop.f32.mrb[0].mxu0
    %5115 = vdwg.mxu0
    %5116 = vmatprep.subr.bf16.mxu0 %v99
    %5117 = vmatpush1.bf16.msra.mxu0 %v98
    %5118 = vmatprep.subr.bf16.mxu0 %v107
    %5119 = vmatpush1.bf16.msra.mxu0 %v106
    %5120 = vmatprep.subr.bf16.mxu0 %v115
    %5121 = vmatpush1.bf16.msra.mxu0 %v114
    %5122 = vmatprep.subr.bf16.mxu0 %v123
    %5123 = vmatpush1.bf16.msra.mxu0 %v122
    %5124 = vmatprep.subr.bf16.mxu0 %v131
    %5125 = vmatpush1.bf16.msra.mxu0 %v130
    %5126 = vmatprep.subr.bf16.mxu0 %v139
    %5127 = vmatpush1.bf16.msra.mxu0 %v138
    %5128 = vmatprep.subr.bf16.mxu0 %v147
    %5129 = vmatpush1.bf16.msra.mxu0 %v146
    %5130 = vmatprep.subr.bf16.mxu0 %v155
    %5131 = vmatpush1.bf16.msra.mxu0 %v154
    %5132 = vmatprep.subr.bf16.mxu0 %v163
    %5133 = vmatpush1.bf16.msra.mxu0 %v162
    %5134 = vmatprep.subr.bf16.mxu0 %v171
    %5135 = vmatpush1.bf16.msra.mxu0 %v170
    %5136 = vmatprep.subr.bf16.mxu0 %v179
    %5137 = vmatpush1.bf16.msra.mxu0 %v178
    %5138 = vmatprep.subr.bf16.mxu0 %v187
    %5139 = vmatpush1.bf16.msra.mxu0 %v186
    %5140 = vmatprep.subr.bf16.mxu0 %v195
    %5141 = vmatpush1.bf16.msra.mxu0 %v194
    %5142 = vmatprep.subr.bf16.mxu0 %v203
    %5143 = vmatpush1.bf16.msra.mxu0 %v202
    %5144 = vmatprep.subr.bf16.mxu0 %v211
    %5145 = vmatpush1.bf16.msra.mxu0 %v210
    %5146 = vmatprep.subr.bf16.mxu0 %v219
    %5147 = vmatpush1.bf16.msra.mxu0 %v218
    %5148 = vmatprep.mubr.bf16.mxu0 %v4617
    %5149 = vmatmul.mubr.bf16.gmra.mrb[0].mxu0 %v4616
    %v5150 = vpop.f32.mrb[0].mxu0
    %v5151 = vadd.f32 0.0, %v5150
    %v5152 = vpop.f32.mrb[0].mxu0
    %v5153 = vadd.f32 0.0, %v5152
    %v5154 = vpop.f32.mrb[0].mxu0
    %v5155 = vpop.f32.mrb[0].mxu0
    %5156 = vdwg.mxu0
    %5157 = vmatprep.subr.bf16.mxu0 %v227
    %5158 = vmatpush1.bf16.msra.mxu0 %v226
    %5159 = vmatprep.subr.bf16.mxu0 %v235
    %5160 = vmatpush1.bf16.msra.mxu0 %v234
    %5161 = vmatprep.subr.bf16.mxu0 %v243
    %5162 = vmatpush1.bf16.msra.mxu0 %v242
    %5163 = vmatprep.subr.bf16.mxu0 %v251
    %5164 = vmatpush1.bf16.msra.mxu0 %v250
    %5165 = vmatprep.subr.bf16.mxu0 %v259
    %5166 = vmatpush1.bf16.msra.mxu0 %v258
    %5167 = vmatprep.subr.bf16.mxu0 %v267
    %5168 = vmatpush1.bf16.msra.mxu0 %v266
    %5169 = vmatprep.subr.bf16.mxu0 %v275
    %5170 = vmatpush1.bf16.msra.mxu0 %v274
    %5171 = vmatprep.subr.bf16.mxu0 %v283
    %5172 = vmatpush1.bf16.msra.mxu0 %v282
    %5173 = vmatprep.subr.bf16.mxu0 %v291
    %5174 = vmatpush1.bf16.msra.mxu0 %v290
    %5175 = vmatprep.subr.bf16.mxu0 %v299
    %5176 = vmatpush1.bf16.msra.mxu0 %v298
    %5177 = vmatprep.subr.bf16.mxu0 %v307
    %5178 = vmatpush1.bf16.msra.mxu0 %v306
    %5179 = vmatprep.subr.bf16.mxu0 %v315
    %5180 = vmatpush1.bf16.msra.mxu0 %v314
    %5181 = vmatprep.subr.bf16.mxu0 %v323
    %5182 = vmatpush1.bf16.msra.mxu0 %v322
    %5183 = vmatprep.subr.bf16.mxu0 %v331
    %5184 = vmatpush1.bf16.msra.mxu0 %v330
    %5185 = vmatprep.subr.bf16.mxu0 %v339
    %5186 = vmatpush1.bf16.msra.mxu0 %v338
    %5187 = vmatprep.subr.bf16.mxu0 %v347
    %5188 = vmatpush1.bf16.msra.mxu0 %v346
    %5189 = vmatprep.mubr.bf16.mxu0 %v4619
    %5190 = vmatmul.mubr.bf16.gmra.mrb[0].mxu0 %v4618
    %v5191 = vpop.f32.mrb[0].mxu0
    %v5192 = vadd.f32 %v5151, %v5191
    %v5193 = vpop.f32.mrb[0].mxu0
    %v5194 = vadd.f32 %v5153, %v5193
    %v5195 = vpop.f32.mrb[0].mxu0
    %v5196 = vpop.f32.mrb[0].mxu0
    %5197 = vdwg.mxu0
    %5198 = vmatprep.subr.bf16.mxu0 %v355
    %5199 = vmatpush1.bf16.msra.mxu0 %v354
    %5200 = vmatprep.subr.bf16.mxu0 %v363
    %5201 = vmatpush1.bf16.msra.mxu0 %v362
    %5202 = vmatprep.subr.bf16.mxu0 %v371
    %5203 = vmatpush1.bf16.msra.mxu0 %v370
    %5204 = vmatprep.subr.bf16.mxu0 %v379
    %5205 = vmatpush1.bf16.msra.mxu0 %v378
    %5206 = vmatprep.subr.bf16.mxu0 %v387
    %5207 = vmatpush1.bf16.msra.mxu0 %v386
    %5208 = vmatprep.subr.bf16.mxu0 %v395
    %5209 = vmatpush1.bf16.msra.mxu0 %v394
    %5210 = vmatprep.subr.bf16.mxu0 %v403
    %5211 = vmatpush1.bf16.msra.mxu0 %v402
    %5212 = vmatprep.subr.bf16.mxu0 %v411
    %5213 = vmatpush1.bf16.msra.mxu0 %v410
    %5214 = vmatprep.subr.bf16.mxu0 %v419
    %5215 = vmatpush1.bf16.msra.mxu0 %v418
    %5216 = vmatprep.subr.bf16.mxu0 %v427
    %5217 = vmatpush1.bf16.msra.mxu0 %v426
    %5218 = vmatprep.subr.bf16.mxu0 %v435
    %5219 = vmatpush1.bf16.msra.mxu0 %v434
    %5220 = vmatprep.subr.bf16.mxu0 %v443
    %5221 = vmatpush1.bf16.msra.mxu0 %v442
    %5222 = vmatprep.subr.bf16.mxu0 %v451
    %5223 = vmatpush1.bf16.msra.mxu0 %v450
    %5224 = vmatprep.subr.bf16.mxu0 %v459
    %5225 = vmatpush1.bf16.msra.mxu0 %v458
    %5226 = vmatprep.subr.bf16.mxu0 %v467
    %5227 = vmatpush1.bf16.msra.mxu0 %v466
    %5228 = vmatprep.subr.bf16.mxu0 %v475
    %5229 = vmatpush1.bf16.msra.mxu0 %v474
    %5230 = vmatprep.mubr.bf16.mxu0 %v4621
    %5231 = vmatmul.mubr.bf16.gmra.mrb[0].mxu0 %v4620
    %v5232 = vpop.f32.mrb[0].mxu0
    %v5233 = vadd.f32 %v5192, %v5232
    %v5234 = vpop.f32.mrb[0].mxu0
    %v5235 = vadd.f32 %v5194, %v5234
    %v5236 = vpop.f32.mrb[0].mxu0
    %v5237 = vpop.f32.mrb[0].mxu0
    %5238 = vdwg.mxu0
    %5239 = vmatprep.subr.bf16.mxu0 %v483
    %5240 = vmatpush1.bf16.msra.mxu0 %v482
    %5241 = vmatprep.subr.bf16.mxu0 %v491
    %5242 = vmatpush1.bf16.msra.mxu0 %v490
    %5243 = vmatprep.subr.bf16.mxu0 %v499
    %5244 = vmatpush1.bf16.msra.mxu0 %v498
    %5245 = vmatprep.subr.bf16.mxu0 %v507
    %5246 = vmatpush1.bf16.msra.mxu0 %v506
    %5247 = vmatprep.subr.bf16.mxu0 %v515
    %5248 = vmatpush1.bf16.msra.mxu0 %v514
    %5249 = vmatprep.subr.bf16.mxu0 %v523
    %5250 = vmatpush1.bf16.msra.mxu0 %v522
    %5251 = vmatprep.subr.bf16.mxu0 %v531
    %5252 = vmatpush1.bf16.msra.mxu0 %v530
    %5253 = vmatprep.subr.bf16.mxu0 %v539
    %5254 = vmatpush1.bf16.msra.mxu0 %v538
    %5255 = vmatprep.subr.bf16.mxu0 %v547
    %5256 = vmatpush1.bf16.msra.mxu0 %v546
    %5257 = vmatprep.subr.bf16.mxu0 %v555
    %5258 = vmatpush1.bf16.msra.mxu0 %v554
    %5259 = vmatprep.subr.bf16.mxu0 %v563
    %5260 = vmatpush1.bf16.msra.mxu0 %v562
    %5261 = vmatprep.subr.bf16.mxu0 %v571
    %5262 = vmatpush1.bf16.msra.mxu0 %v570
    %5263 = vmatprep.subr.bf16.mxu0 %v579
    %5264 = vmatpush1.bf16.msra.mxu0 %v578
    %5265 = vmatprep.subr.bf16.mxu0 %v587
    %5266 = vmatpush1.bf16.msra.mxu0 %v586
    %5267 = vmatprep.subr.bf16.mxu0 %v595
    %5268 = vmatpush1.bf16.msra.mxu0 %v594
    %5269 = vmatprep.subr.bf16.mxu0 %v603
    %5270 = vmatpush1.bf16.msra.mxu0 %v602
    %5271 = vmatprep.mubr.bf16.mxu0 %v4623
    %5272 = vmatmul.mubr.bf16.gmra.mrb[0].mxu0 %v4622
    %v5273 = vpop.f32.mrb[0].mxu0
    %v5274 = vadd.f32 %v5233, %v5273
    %v5275 = vpop.f32.mrb[0].mxu0
    %v5276 = vadd.f32 %v5235, %v5275
    %v5277 = vpop.f32.mrb[0].mxu0
    %v5278 = vpop.f32.mrb[0].mxu0
    %5279 = vdwg.mxu0
    %v5280 = vtanh.pop %v4782
    %v5281 = vtanh.pop %v4784
    %v5282 = vtanh.pop %v4946
    %v5283 = vtanh.pop %v4948
    %v5284 = vtanh.pop %v5110
    %v5285 = vtanh.pop %v5112
    %v5286 = vtanh.pop %v5274
    %v5287 = vtanh.pop %v5276
    %s5288 = sadd.f32 %s75, 1.0
    %v5289 = vstv %s5288
    %v5290 = vmul.f32 %v4570, %v5289
    %v5291 = vmul.f32 %v4571, %v5289
    %v5292 = vstv %s75
    %v5293 = vmul.f32 %v5292, %v5280
    %v5294 = vmul.f32 %v5292, %v5281
    %v5295 = vmul.f32 %v5292, %v5282
    %v5296 = vmul.f32 %v5292, %v5283
    %v5297 = vmul.f32 %v5292, %v5284
    %v5298 = vmul.f32 %v5292, %v5285
    %v5299 = vmul.f32 %v5292, %v5286
    %v5300 = vmul.f32 %v5292, %v5287
    %v5309 = vcombine.low %v5293, %v5294
    %v5310 = vcombine.low %v5295, %v5296
    %v5312 = vunpack.c.l.s4 1983009808
    %v5313 = vunpack.c.0.s8 %v5312
    %v5314 = vlaneseq
    %v5315 = vshrl.u32 %v5314, 7
    %v5316 = vsub.s32 %v5313, %v5315
    %v5317 = vrot.slane %v5309, %v5316
    %v5319 = vunpack.c.l.s4 1983009808
    %v5320 = vunpack.c.0.s8 %v5319
    %v5321 = vlaneseq
    %v5322 = vshrl.u32 %v5321, 7
    %v5323 = vsub.s32 %v5320, %v5322
    %v5324 = vrot.slane %v5310, %v5323
    %v5325 = vcombine.low %v5317, %v5324
    %v5326 = vcombine.low %v5297, %v5298
    %v5327 = vcombine.low %v5299, %v5300
    %v5329 = vunpack.c.l.s4 1983009808
    %v5330 = vunpack.c.0.s8 %v5329
    %v5331 = vlaneseq
    %v5332 = vshrl.u32 %v5331, 7
    %v5333 = vsub.s32 %v5330, %v5332
    %v5334 = vrot.slane %v5326, %v5333
    %v5336 = vunpack.c.l.s4 1983009808
    %v5337 = vunpack.c.0.s8 %v5336
    %v5338 = vlaneseq
    %v5339 = vshrl.u32 %v5338, 7
    %v5340 = vsub.s32 %v5337, %v5339
    %v5341 = vrot.slane %v5327, %v5340
    %v5342 = vcombine.low %v5334, %v5341
    %v5345 = vadd.f32 %v5290, %v5325
    %v5346 = vadd.f32 %v5291, %v5342
    %v5349 = vcombine.high %v5345, %v5345
    %v5351 = vunpack.c.l.s4 1983009808
    %v5352 = vunpack.c.0.s8 %v5351
    %v5353 = vlaneseq
    %v5354 = vshrl.u32 %v5353, 7
    %v5355 = vsub.s32 %v5352, %v5354
    %v5356 = vrot.slane %v5345, %v5355
    %v5358 = vunpack.c.l.s4 1983009808
    %v5359 = vunpack.c.0.s8 %v5358
    %v5360 = vlaneseq
    %v5361 = vshrl.u32 %v5360, 7
    %v5362 = vsub.s32 %v5359, %v5361
    %v5363 = vrot.slane %v5349, %v5362
    %v5364 = vcombine.high %v5356, %v5356
    %v5365 = vcombine.high %v5363, %v5363
    %v5366 = vcombine.high %v5346, %v5346
    %v5368 = vunpack.c.l.s4 1983009808
    %v5369 = vunpack.c.0.s8 %v5368
    %v5370 = vlaneseq
    %v5371 = vshrl.u32 %v5370, 7
    %v5372 = vsub.s32 %v5369, %v5371
    %v5373 = vrot.slane %v5346, %v5372
    %v5375 = vunpack.c.l.s4 1983009808
    %v5376 = vunpack.c.0.s8 %v5375
    %v5377 = vlaneseq
    %v5378 = vshrl.u32 %v5377, 7
    %v5379 = vsub.s32 %v5376, %v5378
    %v5380 = vrot.slane %v5366, %v5379
    %v5381 = vcombine.high %v5373, %v5373
    %v5382 = vcombine.high %v5380, %v5380
    %v5391 = vpack.c.bf16 %v5356, %v5356
    %v5392 = vpack.c.bf16 %v5364, %v5364
    %v5393 = vpack.c.bf16 %v5363, %v5363
    %v5394 = vpack.c.bf16 %v5365, %v5365
    %v5395 = vpack.c.bf16 %v5373, %v5373
    %v5396 = vpack.c.bf16 %v5381, %v5381
    %v5397 = vpack.c.bf16 %v5380, %v5380
    %v5398 = vpack.c.bf16 %v5382, %v5382
    %5399 = vmatprep.subr.bf16.mxu0 %v93
    %5400 = vmatpush1.bf16.msra.mxu0 %v92
    %5401 = vmatprep.subr.bf16.mxu0 %v101
    %5402 = vmatpush1.bf16.msra.mxu0 %v100
    %5403 = vmatprep.subr.bf16.mxu0 %v109
    %5404 = vmatpush1.bf16.msra.mxu0 %v108
    %5405 = vmatprep.subr.bf16.mxu0 %v117
    %5406 = vmatpush1.bf16.msra.mxu0 %v116
    %5407 = vmatprep.subr.bf16.mxu0 %v125
    %5408 = vmatpush1.bf16.msra.mxu0 %v124
    %5409 = vmatprep.subr.bf16.mxu0 %v133
    %5410 = vmatpush1.bf16.msra.mxu0 %v132
    %5411 = vmatprep.subr.bf16.mxu0 %v141
    %5412 = vmatpush1.bf16.msra.mxu0 %v140
    %5413 = vmatprep.subr.bf16.mxu0 %v149
    %5414 = vmatpush1.bf16.msra.mxu0 %v148
    %5415 = vmatprep.subr.bf16.mxu0 %v157
    %5416 = vmatpush1.bf16.msra.mxu0 %v156
    %5417 = vmatprep.subr.bf16.mxu0 %v165
    %5418 = vmatpush1.bf16.msra.mxu0 %v164
    %5419 = vmatprep.subr.bf16.mxu0 %v173
    %5420 = vmatpush1.bf16.msra.mxu0 %v172
    %5421 = vmatprep.subr.bf16.mxu0 %v181
    %5422 = vmatpush1.bf16.msra.mxu0 %v180
    %5423 = vmatprep.subr.bf16.mxu0 %v189
    %5424 = vmatpush1.bf16.msra.mxu0 %v188
    %5425 = vmatprep.subr.bf16.mxu0 %v197
    %5426 = vmatpush1.bf16.msra.mxu0 %v196
    %5427 = vmatprep.subr.bf16.mxu0 %v205
    %5428 = vmatpush1.bf16.msra.mxu0 %v204
    %5429 = vmatprep.subr.bf16.mxu0 %v213
    %5430 = vmatpush1.bf16.msra.mxu0 %v212
    %5431 = vmatprep.mubr.bf16.mxu0 %v5392
    %5432 = vmatmul.mubr.bf16.gmra.mrb[0].mxu0 %v5391
    %v5433 = vpop.f32.mrb[0].mxu0
    %v5434 = vadd.f32 0.0, %v5433
    %v5435 = vpop.f32.mrb[0].mxu0
    %v5436 = vadd.f32 0.0, %v5435
    %v5437 = vpop.f32.mrb[0].mxu0
    %v5438 = vpop.f32.mrb[0].mxu0
    %5439 = vdwg.mxu0
    %5440 = vmatprep.subr.bf16.mxu0 %v221
    %5441 = vmatpush1.bf16.msra.mxu0 %v220
    %5442 = vmatprep.subr.bf16.mxu0 %v229
    %5443 = vmatpush1.bf16.msra.mxu0 %v228
    %5444 = vmatprep.subr.bf16.mxu0 %v237
    %5445 = vmatpush1.bf16.msra.mxu0 %v236
    %5446 = vmatprep.subr.bf16.mxu0 %v245
    %5447 = vmatpush1.bf16.msra.mxu0 %v244
    %5448 = vmatprep.subr.bf16.mxu0 %v253
    %5449 = vmatpush1.bf16.msra.mxu0 %v252
    %5450 = vmatprep.subr.bf16.mxu0 %v261
    %5451 = vmatpush1.bf16.msra.mxu0 %v260
    %5452 = vmatprep.subr.bf16.mxu0 %v269
    %5453 = vmatpush1.bf16.msra.mxu0 %v268
    %5454 = vmatprep.subr.bf16.mxu0 %v277
    %5455 = vmatpush1.bf16.msra.mxu0 %v276
    %5456 = vmatprep.subr.bf16.mxu0 %v285
    %5457 = vmatpush1.bf16.msra.mxu0 %v284
    %5458 = vmatprep.subr.bf16.mxu0 %v293
    %5459 = vmatpush1.bf16.msra.mxu0 %v292
    %5460 = vmatprep.subr.bf16.mxu0 %v301
    %5461 = vmatpush1.bf16.msra.mxu0 %v300
    %5462 = vmatprep.subr.bf16.mxu0 %v309
    %5463 = vmatpush1.bf16.msra.mxu0 %v308
    %5464 = vmatprep.subr.bf16.mxu0 %v317
    %5465 = vmatpush1.bf16.msra.mxu0 %v316
    %5466 = vmatprep.subr.bf16.mxu0 %v325
    %5467 = vmatpush1.bf16.msra.mxu0 %v324
    %5468 = vmatprep.subr.bf16.mxu0 %v333
    %5469 = vmatpush1.bf16.msra.mxu0 %v332
    %5470 = vmatprep.subr.bf16.mxu0 %v341
    %5471 = vmatpush1.bf16.msra.mxu0 %v340
    %5472 = vmatprep.mubr.bf16.mxu0 %v5394
    %5473 = vmatmul.mubr.bf16.gmra.mrb[0].mxu0 %v5393
    %v5474 = vpop.f32.mrb[0].mxu0
    %v5475 = vadd.f32 %v5434, %v5474
    %v5476 = vpop.f32.mrb[0].mxu0
    %v5477 = vadd.f32 %v5436, %v5476
    %v5478 = vpop.f32.mrb[0].mxu0
    %v5479 = vpop.f32.mrb[0].mxu0
    %5480 = vdwg.mxu0
    %5481 = vmatprep.subr.bf16.mxu0 %v349
    %5482 = vmatpush1.bf16.msra.mxu0 %v348
    %5483 = vmatprep.subr.bf16.mxu0 %v357
    %5484 = vmatpush1.bf16.msra.mxu0 %v356
    %5485 = vmatprep.subr.bf16.mxu0 %v365
    %5486 = vmatpush1.bf16.msra.mxu0 %v364
    %5487 = vmatprep.subr.bf16.mxu0 %v373
    %5488 = vmatpush1.bf16.msra.mxu0 %v372
    %5489 = vmatprep.subr.bf16.mxu0 %v381
    %5490 = vmatpush1.bf16.msra.mxu0 %v380
    %5491 = vmatprep.subr.bf16.mxu0 %v389
    %5492 = vmatpush1.bf16.msra.mxu0 %v388
    %5493 = vmatprep.subr.bf16.mxu0 %v397
    %5494 = vmatpush1.bf16.msra.mxu0 %v396
    %5495 = vmatprep.subr.bf16.mxu0 %v405
    %5496 = vmatpush1.bf16.msra.mxu0 %v404
    %5497 = vmatprep.subr.bf16.mxu0 %v413
    %5498 = vmatpush1.bf16.msra.mxu0 %v412
    %5499 = vmatprep.subr.bf16.mxu0 %v421
    %5500 = vmatpush1.bf16.msra.mxu0 %v420
    %5501 = vmatprep.subr.bf16.mxu0 %v429
    %5502 = vmatpush1.bf16.msra.mxu0 %v428
    %5503 = vmatprep.subr.bf16.mxu0 %v437
    %5504 = vmatpush1.bf16.msra.mxu0 %v436
    %5505 = vmatprep.subr.bf16.mxu0 %v445
    %5506 = vmatpush1.bf16.msra.mxu0 %v444
    %5507 = vmatprep.subr.bf16.mxu0 %v453
    %5508 = vmatpush1.bf16.msra.mxu0 %v452
    %5509 = vmatprep.subr.bf16.mxu0 %v461
    %5510 = vmatpush1.bf16.msra.mxu0 %v460
    %5511 = vmatprep.subr.bf16.mxu0 %v469
    %5512 = vmatpush1.bf16.msra.mxu0 %v468
    %5513 = vmatprep.mubr.bf16.mxu0 %v5396
    %5514 = vmatmul.mubr.bf16.gmra.mrb[0].mxu0 %v5395
    %v5515 = vpop.f32.mrb[0].mxu0
    %v5516 = vadd.f32 %v5475, %v5515
    %v5517 = vpop.f32.mrb[0].mxu0
    %v5518 = vadd.f32 %v5477, %v5517
    %v5519 = vpop.f32.mrb[0].mxu0
    %v5520 = vpop.f32.mrb[0].mxu0
    %5521 = vdwg.mxu0
    %5522 = vmatprep.subr.bf16.mxu0 %v477
    %5523 = vmatpush1.bf16.msra.mxu0 %v476
    %5524 = vmatprep.subr.bf16.mxu0 %v485
    %5525 = vmatpush1.bf16.msra.mxu0 %v484
    %5526 = vmatprep.subr.bf16.mxu0 %v493
    %5527 = vmatpush1.bf16.msra.mxu0 %v492
    %5528 = vmatprep.subr.bf16.mxu0 %v501
    %5529 = vmatpush1.bf16.msra.mxu0 %v500
    %5530 = vmatprep.subr.bf16.mxu0 %v509
    %5531 = vmatpush1.bf16.msra.mxu0 %v508
    %5532 = vmatprep.subr.bf16.mxu0 %v517
    %5533 = vmatpush1.bf16.msra.mxu0 %v516
    %5534 = vmatprep.subr.bf16.mxu0 %v525
    %5535 = vmatpush1.bf16.msra.mxu0 %v524
    %5536 = vmatprep.subr.bf16.mxu0 %v533
    %5537 = vmatpush1.bf16.msra.mxu0 %v532
    %5538 = vmatprep.subr.bf16.mxu0 %v541
    %5539 = vmatpush1.bf16.msra.mxu0 %v540
    %5540 = vmatprep.subr.bf16.mxu0 %v549
    %5541 = vmatpush1.bf16.msra.mxu0 %v548
    %5542 = vmatprep.subr.bf16.mxu0 %v557
    %5543 = vmatpush1.bf16.msra.mxu0 %v556
    %5544 = vmatprep.subr.bf16.mxu0 %v565
    %5545 = vmatpush1.bf16.msra.mxu0 %v564
    %5546 = vmatprep.subr.bf16.mxu0 %v573
    %5547 = vmatpush1.bf16.msra.mxu0 %v572
    %5548 = vmatprep.subr.bf16.mxu0 %v581
    %5549 = vmatpush1.bf16.msra.mxu0 %v580
    %5550 = vmatprep.subr.bf16.mxu0 %v589
    %5551 = vmatpush1.bf16.msra.mxu0 %v588
    %5552 = vmatprep.subr.bf16.mxu0 %v597
    %5553 = vmatpush1.bf16.msra.mxu0 %v596
    %5554 = vmatprep.mubr.bf16.mxu0 %v5398
    %5555 = vmatmul.mubr.bf16.gmra.mrb[0].mxu0 %v5397
    %v5556 = vpop.f32.mrb[0].mxu0
    %v5557 = vadd.f32 %v5516, %v5556
    %v5558 = vpop.f32.mrb[0].mxu0
    %v5559 = vadd.f32 %v5518, %v5558
    %v5560 = vpop.f32.mrb[0].mxu0
    %v5561 = vpop.f32.mrb[0].mxu0
    %5562 = vdwg.mxu0
    %5563 = vmatprep.subr.bf16.mxu0 %v95
    %5564 = vmatpush1.bf16.msra.mxu0 %v94
    %5565 = vmatprep.subr.bf16.mxu0 %v103
    %5566 = vmatpush1.bf16.msra.mxu0 %v102
    %5567 = vmatprep.subr.bf16.mxu0 %v111
    %5568 = vmatpush1.bf16.msra.mxu0 %v110
    %5569 = vmatprep.subr.bf16.mxu0 %v119
    %5570 = vmatpush1.bf16.msra.mxu0 %v118
    %5571 = vmatprep.subr.bf16.mxu0 %v127
    %5572 = vmatpush1.bf16.msra.mxu0 %v126
    %5573 = vmatprep.subr.bf16.mxu0 %v135
    %5574 = vmatpush1.bf16.msra.mxu0 %v134
    %5575 = vmatprep.subr.bf16.mxu0 %v143
    %5576 = vmatpush1.bf16.msra.mxu0 %v142
    %5577 = vmatprep.subr.bf16.mxu0 %v151
    %5578 = vmatpush1.bf16.msra.mxu0 %v150
    %5579 = vmatprep.subr.bf16.mxu0 %v159
    %5580 = vmatpush1.bf16.msra.mxu0 %v158
    %5581 = vmatprep.subr.bf16.mxu0 %v167
    %5582 = vmatpush1.bf16.msra.mxu0 %v166
    %5583 = vmatprep.subr.bf16.mxu0 %v175
    %5584 = vmatpush1.bf16.msra.mxu0 %v174
    %5585 = vmatprep.subr.bf16.mxu0 %v183
    %5586 = vmatpush1.bf16.msra.mxu0 %v182
    %5587 = vmatprep.subr.bf16.mxu0 %v191
    %5588 = vmatpush1.bf16.msra.mxu0 %v190
    %5589 = vmatprep.subr.bf16.mxu0 %v199
    %5590 = vmatpush1.bf16.msra.mxu0 %v198
    %5591 = vmatprep.subr.bf16.mxu0 %v207
    %5592 = vmatpush1.bf16.msra.mxu0 %v206
    %5593 = vmatprep.subr.bf16.mxu0 %v215
    %5594 = vmatpush1.bf16.msra.mxu0 %v214
    %5595 = vmatprep.mubr.bf16.mxu0 %v5392
    %5596 = vmatmul.mubr.bf16.gmra.mrb[0].mxu0 %v5391
    %v5597 = vpop.f32.mrb[0].mxu0
    %v5598 = vadd.f32 0.0, %v5597
    %v5599 = vpop.f32.mrb[0].mxu0
    %v5600 = vadd.f32 0.0, %v5599
    %v5601 = vpop.f32.mrb[0].mxu0
    %v5602 = vpop.f32.mrb[0].mxu0
    %5603 = vdwg.mxu0
    %5604 = vmatprep.subr.bf16.mxu0 %v223
    %5605 = vmatpush1.bf16.msra.mxu0 %v222
    %5606 = vmatprep.subr.bf16.mxu0 %v231
    %5607 = vmatpush1.bf16.msra.mxu0 %v230
    %5608 = vmatprep.subr.bf16.mxu0 %v239
    %5609 = vmatpush1.bf16.msra.mxu0 %v238
    %5610 = vmatprep.subr.bf16.mxu0 %v247
    %5611 = vmatpush1.bf16.msra.mxu0 %v246
    %5612 = vmatprep.subr.bf16.mxu0 %v255
    %5613 = vmatpush1.bf16.msra.mxu0 %v254
    %5614 = vmatprep.subr.bf16.mxu0 %v263
    %5615 = vmatpush1.bf16.msra.mxu0 %v262
    %5616 = vmatprep.subr.bf16.mxu0 %v271
    %5617 = vmatpush1.bf16.msra.mxu0 %v270
    %5618 = vmatprep.subr.bf16.mxu0 %v279
    %5619 = vmatpush1.bf16.msra.mxu0 %v278
    %5620 = vmatprep.subr.bf16.mxu0 %v287
    %5621 = vmatpush1.bf16.msra.mxu0 %v286
    %5622 = vmatprep.subr.bf16.mxu0 %v295
    %5623 = vmatpush1.bf16.msra.mxu0 %v294
    %5624 = vmatprep.subr.bf16.mxu0 %v303
    %5625 = vmatpush1.bf16.msra.mxu0 %v302
    %5626 = vmatprep.subr.bf16.mxu0 %v311
    %5627 = vmatpush1.bf16.msra.mxu0 %v310
    %5628 = vmatprep.subr.bf16.mxu0 %v319
    %5629 = vmatpush1.bf16.msra.mxu0 %v318
    %5630 = vmatprep.subr.bf16.mxu0 %v327
    %5631 = vmatpush1.bf16.msra.mxu0 %v326
    %5632 = vmatprep.subr.bf16.mxu0 %v335
    %5633 = vmatpush1.bf16.msra.mxu0 %v334
    %5634 = vmatprep.subr.bf16.mxu0 %v343
    %5635 = vmatpush1.bf16.msra.mxu0 %v342
    %5636 = vmatprep.mubr.bf16.mxu0 %v5394
    %5637 = vmatmul.mubr.bf16.gmra.mrb[0].mxu0 %v5393
    %v5638 = vpop.f32.mrb[0].mxu0
    %v5639 = vadd.f32 %v5598, %v5638
    %v5640 = vpop.f32.mrb[0].mxu0
    %v5641 = vadd.f32 %v5600, %v5640
    %v5642 = vpop.f32.mrb[0].mxu0
    %v5643 = vpop.f32.mrb[0].mxu0
    %5644 = vdwg.mxu0
    %5645 = vmatprep.subr.bf16.mxu0 %v351
    %5646 = vmatpush1.bf16.msra.mxu0 %v350
    %5647 = vmatprep.subr.bf16.mxu0 %v359
    %5648 = vmatpush1.bf16.msra.mxu0 %v358
    %5649 = vmatprep.subr.bf16.mxu0 %v367
    %5650 = vmatpush1.bf16.msra.mxu0 %v366
    %5651 = vmatprep.subr.bf16.mxu0 %v375
    %5652 = vmatpush1.bf16.msra.mxu0 %v374
    %5653 = vmatprep.subr.bf16.mxu0 %v383
    %5654 = vmatpush1.bf16.msra.mxu0 %v382
    %5655 = vmatprep.subr.bf16.mxu0 %v391
    %5656 = vmatpush1.bf16.msra.mxu0 %v390
    %5657 = vmatprep.subr.bf16.mxu0 %v399
    %5658 = vmatpush1.bf16.msra.mxu0 %v398
    %5659 = vmatprep.subr.bf16.mxu0 %v407
    %5660 = vmatpush1.bf16.msra.mxu0 %v406
    %5661 = vmatprep.subr.bf16.mxu0 %v415
    %5662 = vmatpush1.bf16.msra.mxu0 %v414
    %5663 = vmatprep.subr.bf16.mxu0 %v423
    %5664 = vmatpush1.bf16.msra.mxu0 %v422
    %5665 = vmatprep.subr.bf16.mxu0 %v431
    %5666 = vmatpush1.bf16.msra.mxu0 %v430
    %5667 = vmatprep.subr.bf16.mxu0 %v439
    %5668 = vmatpush1.bf16.msra.mxu0 %v438
    %5669 = vmatprep.subr.bf16.mxu0 %v447
    %5670 = vmatpush1.bf16.msra.mxu0 %v446
    %5671 = vmatprep.subr.bf16.mxu0 %v455
    %5672 = vmatpush1.bf16.msra.mxu0 %v454
    %5673 = vmatprep.subr.bf16.mxu0 %v463
    %5674 = vmatpush1.bf16.msra.mxu0 %v462
    %5675 = vmatprep.subr.bf16.mxu0 %v471
    %5676 = vmatpush1.bf16.msra.mxu0 %v470
    %5677 = vmatprep.mubr.bf16.mxu0 %v5396
    %5678 = vmatmul.mubr.bf16.gmra.mrb[0].mxu0 %v5395
    %v5679 = vpop.f32.mrb[0].mxu0
    %v5680 = vadd.f32 %v5639, %v5679
    %v5681 = vpop.f32.mrb[0].mxu0
    %v5682 = vadd.f32 %v5641, %v5681
    %v5683 = vpop.f32.mrb[0].mxu0
    %v5684 = vpop.f32.mrb[0].mxu0
    %5685 = vdwg.mxu0
    %5686 = vmatprep.subr.bf16.mxu0 %v479
    %5687 = vmatpush1.bf16.msra.mxu0 %v478
    %5688 = vmatprep.subr.bf16.mxu0 %v487
    %5689 = vmatpush1.bf16.msra.mxu0 %v486
    %5690 = vmatprep.subr.bf16.mxu0 %v495
    %5691 = vmatpush1.bf16.msra.mxu0 %v494
    %5692 = vmatprep.subr.bf16.mxu0 %v503
    %5693 = vmatpush1.bf16.msra.mxu0 %v502
    %5694 = vmatprep.subr.bf16.mxu0 %v511
    %5695 = vmatpush1.bf16.msra.mxu0 %v510
    %5696 = vmatprep.subr.bf16.mxu0 %v519
    %5697 = vmatpush1.bf16.msra.mxu0 %v518
    %5698 = vmatprep.subr.bf16.mxu0 %v527
    %5699 = vmatpush1.bf16.msra.mxu0 %v526
    %5700 = vmatprep.subr.bf16.mxu0 %v535
    %5701 = vmatpush1.bf16.msra.mxu0 %v534
    %5702 = vmatprep.subr.bf16.mxu0 %v543
    %5703 = vmatpush1.bf16.msra.mxu0 %v542
    %5704 = vmatprep.subr.bf16.mxu0 %v551
    %5705 = vmatpush1.bf16.msra.mxu0 %v550
    %5706 = vmatprep.subr.bf16.mxu0 %v559
    %5707 = vmatpush1.bf16.msra.mxu0 %v558
    %5708 = vmatprep.subr.bf16.mxu0 %v567
    %5709 = vmatpush1.bf16.msra.mxu0 %v566
    %5710 = vmatprep.subr.bf16.mxu0 %v575
    %5711 = vmatpush1.bf16.msra.mxu0 %v574
    %5712 = vmatprep.subr.bf16.mxu0 %v583
    %5713 = vmatpush1.bf16.msra.mxu0 %v582
    %5714 = vmatprep.subr.bf16.mxu0 %v591
    %5715 = vmatpush1.bf16.msra.mxu0 %v590
    %5716 = vmatprep.subr.bf16.mxu0 %v599
    %5717 = vmatpush1.bf16.msra.mxu0 %v598
    %5718 = vmatprep.mubr.bf16.mxu0 %v5398
    %5719 = vmatmul.mubr.bf16.gmra.mrb[0].mxu0 %v5397
    %v5720 = vpop.f32.mrb[0].mxu0
    %v5721 = vadd.f32 %v5680, %v5720
    %v5722 = vpop.f32.mrb[0].mxu0
    %v5723 = vadd.f32 %v5682, %v5722
    %v5724 = vpop.f32.mrb[0].mxu0
    %v5725 = vpop.f32.mrb[0].mxu0
    %5726 = vdwg.mxu0
    %5727 = vmatprep.subr.bf16.mxu0 %v97
    %5728 = vmatpush1.bf16.msra.mxu0 %v96
    %5729 = vmatprep.subr.bf16.mxu0 %v105
    %5730 = vmatpush1.bf16.msra.mxu0 %v104
    %5731 = vmatprep.subr.bf16.mxu0 %v113
    %5732 = vmatpush1.bf16.msra.mxu0 %v112
    %5733 = vmatprep.subr.bf16.mxu0 %v121
    %5734 = vmatpush1.bf16.msra.mxu0 %v120
    %5735 = vmatprep.subr.bf16.mxu0 %v129
    %5736 = vmatpush1.bf16.msra.mxu0 %v128
    %5737 = vmatprep.subr.bf16.mxu0 %v137
    %5738 = vmatpush1.bf16.msra.mxu0 %v136
    %5739 = vmatprep.subr.bf16.mxu0 %v145
    %5740 = vmatpush1.bf16.msra.mxu0 %v144
    %5741 = vmatprep.subr.bf16.mxu0 %v153
    %5742 = vmatpush1.bf16.msra.mxu0 %v152
    %5743 = vmatprep.subr.bf16.mxu0 %v161
    %5744 = vmatpush1.bf16.msra.mxu0 %v160
    %5745 = vmatprep.subr.bf16.mxu0 %v169
    %5746 = vmatpush1.bf16.msra.mxu0 %v168
    %5747 = vmatprep.subr.bf16.mxu0 %v177
    %5748 = vmatpush1.bf16.msra.mxu0 %v176
    %5749 = vmatprep.subr.bf16.mxu0 %v185
    %5750 = vmatpush1.bf16.msra.mxu0 %v184
    %5751 = vmatprep.subr.bf16.mxu0 %v193
    %5752 = vmatpush1.bf16.msra.mxu0 %v192
    %5753 = vmatprep.subr.bf16.mxu0 %v201
    %5754 = vmatpush1.bf16.msra.mxu0 %v200
    %5755 = vmatprep.subr.bf16.mxu0 %v209
    %5756 = vmatpush1.bf16.msra.mxu0 %v208
    %5757 = vmatprep.subr.bf16.mxu0 %v217
    %5758 = vmatpush1.bf16.msra.mxu0 %v216
    %5759 = vmatprep.mubr.bf16.mxu0 %v5392
    %5760 = vmatmul.mubr.bf16.gmra.mrb[0].mxu0 %v5391
    %v5761 = vpop.f32.mrb[0].mxu0
    %v5762 = vadd.f32 0.0, %v5761
    %v5763 = vpop.f32.mrb[0].mxu0
    %v5764 = vadd.f32 0.0, %v5763
    %v5765 = vpop.f32.mrb[0].mxu0
    %v5766 = vpop.f32.mrb[0].mxu0
    %5767 = vdwg.mxu0
    %5768 = vmatprep.subr.bf16.mxu0 %v225
    %5769 = vmatpush1.bf16.msra.mxu0 %v224
    %5770 = vmatprep.subr.bf16.mxu0 %v233
    %5771 = vmatpush1.bf16.msra.mxu0 %v232
    %5772 = vmatprep.subr.bf16.mxu0 %v241
    %5773 = vmatpush1.bf16.msra.mxu0 %v240
    %5774 = vmatprep.subr.bf16.mxu0 %v249
    %5775 = vmatpush1.bf16.msra.mxu0 %v248
    %5776 = vmatprep.subr.bf16.mxu0 %v257
    %5777 = vmatpush1.bf16.msra.mxu0 %v256
    %5778 = vmatprep.subr.bf16.mxu0 %v265
    %5779 = vmatpush1.bf16.msra.mxu0 %v264
    %5780 = vmatprep.subr.bf16.mxu0 %v273
    %5781 = vmatpush1.bf16.msra.mxu0 %v272
    %5782 = vmatprep.subr.bf16.mxu0 %v281
    %5783 = vmatpush1.bf16.msra.mxu0 %v280
    %5784 = vmatprep.subr.bf16.mxu0 %v289
    %5785 = vmatpush1.bf16.msra.mxu0 %v288
    %5786 = vmatprep.subr.bf16.mxu0 %v297
    %5787 = vmatpush1.bf16.msra.mxu0 %v296
    %5788 = vmatprep.subr.bf16.mxu0 %v305
    %5789 = vmatpush1.bf16.msra.mxu0 %v304
    %5790 = vmatprep.subr.bf16.mxu0 %v313
    %5791 = vmatpush1.bf16.msra.mxu0 %v312
    %5792 = vmatprep.subr.bf16.mxu0 %v321
    %5793 = vmatpush1.bf16.msra.mxu0 %v320
    %5794 = vmatprep.subr.bf16.mxu0 %v329
    %5795 = vmatpush1.bf16.msra.mxu0 %v328
    %5796 = vmatprep.subr.bf16.mxu0 %v337
    %5797 = vmatpush1.bf16.msra.mxu0 %v336
    %5798 = vmatprep.subr.bf16.mxu0 %v345
    %5799 = vmatpush1.bf16.msra.mxu0 %v344
    %5800 = vmatprep.mubr.bf16.mxu0 %v5394
    %5801 = vmatmul.mubr.bf16.gmra.mrb[0].mxu0 %v5393
    %v5802 = vpop.f32.mrb[0].mxu0
    %v5803 = vadd.f32 %v5762, %v5802
    %v5804 = vpop.f32.mrb[0].mxu0
    %v5805 = vadd.f32 %v5764, %v5804
    %v5806 = vpop.f32.mrb[0].mxu0
    %v5807 = vpop.f32.mrb[0].mxu0
    %5808 = vdwg.mxu0
    %5809 = vmatprep.subr.bf16.mxu0 %v353
    %5810 = vmatpush1.bf16.msra.mxu0 %v352
    %5811 = vmatprep.subr.bf16.mxu0 %v361
    %5812 = vmatpush1.bf16.msra.mxu0 %v360
    %5813 = vmatprep.subr.bf16.mxu0 %v369
    %5814 = vmatpush1.bf16.msra.mxu0 %v368
    %5815 = vmatprep.subr.bf16.mxu0 %v377
    %5816 = vmatpush1.bf16.msra.mxu0 %v376
    %5817 = vmatprep.subr.bf16.mxu0 %v385
    %5818 = vmatpush1.bf16.msra.mxu0 %v384
    %5819 = vmatprep.subr.bf16.mxu0 %v393
    %5820 = vmatpush1.bf16.msra.mxu0 %v392
    %5821 = vmatprep.subr.bf16.mxu0 %v401
    %5822 = vmatpush1.bf16.msra.mxu0 %v400
    %5823 = vmatprep.subr.bf16.mxu0 %v409
    %5824 = vmatpush1.bf16.msra.mxu0 %v408
    %5825 = vmatprep.subr.bf16.mxu0 %v417
    %5826 = vmatpush1.bf16.msra.mxu0 %v416
    %5827 = vmatprep.subr.bf16.mxu0 %v425
    %5828 = vmatpush1.bf16.msra.mxu0 %v424
    %5829 = vmatprep.subr.bf16.mxu0 %v433
    %5830 = vmatpush1.bf16.msra.mxu0 %v432
    %5831 = vmatprep.subr.bf16.mxu0 %v441
    %5832 = vmatpush1.bf16.msra.mxu0 %v440
    %5833 = vmatprep.subr.bf16.mxu0 %v449
    %5834 = vmatpush1.bf16.msra.mxu0 %v448
    %5835 = vmatprep.subr.bf16.mxu0 %v457
    %5836 = vmatpush1.bf16.msra.mxu0 %v456
    %5837 = vmatprep.subr.bf16.mxu0 %v465
    %5838 = vmatpush1.bf16.msra.mxu0 %v464
    %5839 = vmatprep.subr.bf16.mxu0 %v473
    %5840 = vmatpush1.bf16.msra.mxu0 %v472
    %5841 = vmatprep.mubr.bf16.mxu0 %v5396
    %5842 = vmatmul.mubr.bf16.gmra.mrb[0].mxu0 %v5395
    %v5843 = vpop.f32.mrb[0].mxu0
    %v5844 = vadd.f32 %v5803, %v5843
    %v5845 = vpop.f32.mrb[0].mxu0
    %v5846 = vadd.f32 %v5805, %v5845
    %v5847 = vpop.f32.mrb[0].mxu0
    %v5848 = vpop.f32.mrb[0].mxu0
    %5849 = vdwg.mxu0
    %5850 = vmatprep.subr.bf16.mxu0 %v481
    %5851 = vmatpush1.bf16.msra.mxu0 %v480
    %5852 = vmatprep.subr.bf16.mxu0 %v489
    %5853 = vmatpush1.bf16.msra.mxu0 %v488
    %5854 = vmatprep.subr.bf16.mxu0 %v497
    %5855 = vmatpush1.bf16.msra.mxu0 %v496
    %5856 = vmatprep.subr.bf16.mxu0 %v505
    %5857 = vmatpush1.bf16.msra.mxu0 %v504
    %5858 = vmatprep.subr.bf16.mxu0 %v513
    %5859 = vmatpush1.bf16.msra.mxu0 %v512
    %5860 = vmatprep.subr.bf16.mxu0 %v521
    %5861 = vmatpush1.bf16.msra.mxu0 %v520
    %5862 = vmatprep.subr.bf16.mxu0 %v529
    %5863 = vmatpush1.bf16.msra.mxu0 %v528
    %5864 = vmatprep.subr.bf16.mxu0 %v537
    %5865 = vmatpush1.bf16.msra.mxu0 %v536
    %5866 = vmatprep.subr.bf16.mxu0 %v545
    %5867 = vmatpush1.bf16.msra.mxu0 %v544
    %5868 = vmatprep.subr.bf16.mxu0 %v553
    %5869 = vmatpush1.bf16.msra.mxu0 %v552
    %5870 = vmatprep.subr.bf16.mxu0 %v561
    %5871 = vmatpush1.bf16.msra.mxu0 %v560
    %5872 = vmatprep.subr.bf16.mxu0 %v569
    %5873 = vmatpush1.bf16.msra.mxu0 %v568
    %5874 = vmatprep.subr.bf16.mxu0 %v577
    %5875 = vmatpush1.bf16.msra.mxu0 %v576
    %5876 = vmatprep.subr.bf16.mxu0 %v585
    %5877 = vmatpush1.bf16.msra.mxu0 %v584
    %5878 = vmatprep.subr.bf16.mxu0 %v593
    %5879 = vmatpush1.bf16.msra.mxu0 %v592
    %5880 = vmatprep.subr.bf16.mxu0 %v601
    %5881 = vmatpush1.bf16.msra.mxu0 %v600
    %5882 = vmatprep.mubr.bf16.mxu0 %v5398
    %5883 = vmatmul.mubr.bf16.gmra.mrb[0].mxu0 %v5397
    %v5884 = vpop.f32.mrb[0].mxu0
    %v5885 = vadd.f32 %v5844, %v5884
    %v5886 = vpop.f32.mrb[0].mxu0
    %v5887 = vadd.f32 %v5846, %v5886
    %v5888 = vpop.f32.mrb[0].mxu0
    %v5889 = vpop.f32.mrb[0].mxu0
    %5890 = vdwg.mxu0
    %5891 = vmatprep.subr.bf16.mxu0 %v99
    %5892 = vmatpush1.bf16.msra.mxu0 %v98
    %5893 = vmatprep.subr.bf16.mxu0 %v107
    %5894 = vmatpush1.bf16.msra.mxu0 %v106
    %5895 = vmatprep.subr.bf16.mxu0 %v115
    %5896 = vmatpush1.bf16.msra.mxu0 %v114
    %5897 = vmatprep.subr.bf16.mxu0 %v123
    %5898 = vmatpush1.bf16.msra.mxu0 %v122
    %5899 = vmatprep.subr.bf16.mxu0 %v131
    %5900 = vmatpush1.bf16.msra.mxu0 %v130
    %5901 = vmatprep.subr.bf16.mxu0 %v139
    %5902 = vmatpush1.bf16.msra.mxu0 %v138
    %5903 = vmatprep.subr.bf16.mxu0 %v147
    %5904 = vmatpush1.bf16.msra.mxu0 %v146
    %5905 = vmatprep.subr.bf16.mxu0 %v155
    %5906 = vmatpush1.bf16.msra.mxu0 %v154
    %5907 = vmatprep.subr.bf16.mxu0 %v163
    %5908 = vmatpush1.bf16.msra.mxu0 %v162
    %5909 = vmatprep.subr.bf16.mxu0 %v171
    %5910 = vmatpush1.bf16.msra.mxu0 %v170
    %5911 = vmatprep.subr.bf16.mxu0 %v179
    %5912 = vmatpush1.bf16.msra.mxu0 %v178
    %5913 = vmatprep.subr.bf16.mxu0 %v187
    %5914 = vmatpush1.bf16.msra.mxu0 %v186
    %5915 = vmatprep.subr.bf16.mxu0 %v195
    %5916 = vmatpush1.bf16.msra.mxu0 %v194
    %5917 = vmatprep.subr.bf16.mxu0 %v203
    %5918 = vmatpush1.bf16.msra.mxu0 %v202
    %5919 = vmatprep.subr.bf16.mxu0 %v211
    %5920 = vmatpush1.bf16.msra.mxu0 %v210
    %5921 = vmatprep.subr.bf16.mxu0 %v219
    %5922 = vmatpush1.bf16.msra.mxu0 %v218
    %5923 = vmatprep.mubr.bf16.mxu0 %v5392
    %5924 = vmatmul.mubr.bf16.gmra.mrb[0].mxu0 %v5391
    %v5925 = vpop.f32.mrb[0].mxu0
    %v5926 = vadd.f32 0.0, %v5925
    %v5927 = vpop.f32.mrb[0].mxu0
    %v5928 = vadd.f32 0.0, %v5927
    %v5929 = vpop.f32.mrb[0].mxu0
    %v5930 = vpop.f32.mrb[0].mxu0
    %5931 = vdwg.mxu0
    %5932 = vmatprep.subr.bf16.mxu0 %v227
    %5933 = vmatpush1.bf16.msra.mxu0 %v226
    %5934 = vmatprep.subr.bf16.mxu0 %v235
    %5935 = vmatpush1.bf16.msra.mxu0 %v234
    %5936 = vmatprep.subr.bf16.mxu0 %v243
    %5937 = vmatpush1.bf16.msra.mxu0 %v242
    %5938 = vmatprep.subr.bf16.mxu0 %v251
    %5939 = vmatpush1.bf16.msra.mxu0 %v250
    %5940 = vmatprep.subr.bf16.mxu0 %v259
    %5941 = vmatpush1.bf16.msra.mxu0 %v258
    %5942 = vmatprep.subr.bf16.mxu0 %v267
    %5943 = vmatpush1.bf16.msra.mxu0 %v266
    %5944 = vmatprep.subr.bf16.mxu0 %v275
    %5945 = vmatpush1.bf16.msra.mxu0 %v274
    %5946 = vmatprep.subr.bf16.mxu0 %v283
    %5947 = vmatpush1.bf16.msra.mxu0 %v282
    %5948 = vmatprep.subr.bf16.mxu0 %v291
    %5949 = vmatpush1.bf16.msra.mxu0 %v290
    %5950 = vmatprep.subr.bf16.mxu0 %v299
    %5951 = vmatpush1.bf16.msra.mxu0 %v298
    %5952 = vmatprep.subr.bf16.mxu0 %v307
    %5953 = vmatpush1.bf16.msra.mxu0 %v306
    %5954 = vmatprep.subr.bf16.mxu0 %v315
    %5955 = vmatpush1.bf16.msra.mxu0 %v314
    %5956 = vmatprep.subr.bf16.mxu0 %v323
    %5957 = vmatpush1.bf16.msra.mxu0 %v322
    %5958 = vmatprep.subr.bf16.mxu0 %v331
    %5959 = vmatpush1.bf16.msra.mxu0 %v330
    %5960 = vmatprep.subr.bf16.mxu0 %v339
    %5961 = vmatpush1.bf16.msra.mxu0 %v338
    %5962 = vmatprep.subr.bf16.mxu0 %v347
    %5963 = vmatpush1.bf16.msra.mxu0 %v346
    %5964 = vmatprep.mubr.bf16.mxu0 %v5394
    %5965 = vmatmul.mubr.bf16.gmra.mrb[0].mxu0 %v5393
    %v5966 = vpop.f32.mrb[0].mxu0
    %v5967 = vadd.f32 %v5926, %v5966
    %v5968 = vpop.f32.mrb[0].mxu0
    %v5969 = vadd.f32 %v5928, %v5968
    %v5970 = vpop.f32.mrb[0].mxu0
    %v5971 = vpop.f32.mrb[0].mxu0
    %5972 = vdwg.mxu0
    %5973 = vmatprep.subr.bf16.mxu0 %v355
    %5974 = vmatpush1.bf16.msra.mxu0 %v354
    %5975 = vmatprep.subr.bf16.mxu0 %v363
    %5976 = vmatpush1.bf16.msra.mxu0 %v362
    %5977 = vmatprep.subr.bf16.mxu0 %v371
    %5978 = vmatpush1.bf16.msra.mxu0 %v370
    %5979 = vmatprep.subr.bf16.mxu0 %v379
    %5980 = vmatpush1.bf16.msra.mxu0 %v378
    %5981 = vmatprep.subr.bf16.mxu0 %v387
    %5982 = vmatpush1.bf16.msra.mxu0 %v386
    %5983 = vmatprep.subr.bf16.mxu0 %v395
    %5984 = vmatpush1.bf16.msra.mxu0 %v394
    %5985 = vmatprep.subr.bf16.mxu0 %v403
    %5986 = vmatpush1.bf16.msra.mxu0 %v402
    %5987 = vmatprep.subr.bf16.mxu0 %v411
    %5988 = vmatpush1.bf16.msra.mxu0 %v410
    %5989 = vmatprep.subr.bf16.mxu0 %v419
    %5990 = vmatpush1.bf16.msra.mxu0 %v418
    %5991 = vmatprep.subr.bf16.mxu0 %v427
    %5992 = vmatpush1.bf16.msra.mxu0 %v426
    %5993 = vmatprep.subr.bf16.mxu0 %v435
    %5994 = vmatpush1.bf16.msra.mxu0 %v434
    %5995 = vmatprep.subr.bf16.mxu0 %v443
    %5996 = vmatpush1.bf16.msra.mxu0 %v442
    %5997 = vmatprep.subr.bf16.mxu0 %v451
    %5998 = vmatpush1.bf16.msra.mxu0 %v450
    %5999 = vmatprep.subr.bf16.mxu0 %v459
    %6000 = vmatpush1.bf16.msra.mxu0 %v458
    %6001 = vmatprep.subr.bf16.mxu0 %v467
    %6002 = vmatpush1.bf16.msra.mxu0 %v466
    %6003 = vmatprep.subr.bf16.mxu0 %v475
    %6004 = vmatpush1.bf16.msra.mxu0 %v474
    %6005 = vmatprep.mubr.bf16.mxu0 %v5396
    %6006 = vmatmul.mubr.bf16.gmra.mrb[0].mxu0 %v5395
    %v6007 = vpop.f32.mrb[0].mxu0
    %v6008 = vadd.f32 %v5967, %v6007
    %v6009 = vpop.f32.mrb[0].mxu0
    %v6010 = vadd.f32 %v5969, %v6009
    %v6011 = vpop.f32.mrb[0].mxu0
    %v6012 = vpop.f32.mrb[0].mxu0
    %6013 = vdwg.mxu0
    %6014 = vmatprep.subr.bf16.mxu0 %v483
    %6015 = vmatpush1.bf16.msra.mxu0 %v482
    %6016 = vmatprep.subr.bf16.mxu0 %v491
    %6017 = vmatpush1.bf16.msra.mxu0 %v490
    %6018 = vmatprep.subr.bf16.mxu0 %v499
    %6019 = vmatpush1.bf16.msra.mxu0 %v498
    %6020 = vmatprep.subr.bf16.mxu0 %v507
    %6021 = vmatpush1.bf16.msra.mxu0 %v506
    %6022 = vmatprep.subr.bf16.mxu0 %v515
    %6023 = vmatpush1.bf16.msra.mxu0 %v514
    %6024 = vmatprep.subr.bf16.mxu0 %v523
    %6025 = vmatpush1.bf16.msra.mxu0 %v522
    %6026 = vmatprep.subr.bf16.mxu0 %v531
    %6027 = vmatpush1.bf16.msra.mxu0 %v530
    %6028 = vmatprep.subr.bf16.mxu0 %v539
    %6029 = vmatpush1.bf16.msra.mxu0 %v538
    %6030 = vmatprep.subr.bf16.mxu0 %v547
    %6031 = vmatpush1.bf16.msra.mxu0 %v546
    %6032 = vmatprep.subr.bf16.mxu0 %v555
    %6033 = vmatpush1.bf16.msra.mxu0 %v554
    %6034 = vmatprep.subr.bf16.mxu0 %v563
    %6035 = vmatpush1.bf16.msra.mxu0 %v562
    %6036 = vmatprep.subr.bf16.mxu0 %v571
    %6037 = vmatpush1.bf16.msra.mxu0 %v570
    %6038 = vmatprep.subr.bf16.mxu0 %v579
    %6039 = vmatpush1.bf16.msra.mxu0 %v578
    %6040 = vmatprep.subr.bf16.mxu0 %v587
    %6041 = vmatpush1.bf16.msra.mxu0 %v586
    %6042 = vmatprep.subr.bf16.mxu0 %v595
    %6043 = vmatpush1.bf16.msra.mxu0 %v594
    %6044 = vmatprep.subr.bf16.mxu0 %v603
    %6045 = vmatpush1.bf16.msra.mxu0 %v602
    %6046 = vmatprep.mubr.bf16.mxu0 %v5398
    %6047 = vmatmul.mubr.bf16.gmra.mrb[0].mxu0 %v5397
    %v6048 = vpop.f32.mrb[0].mxu0
    %v6049 = vadd.f32 %v6008, %v6048
    %v6050 = vpop.f32.mrb[0].mxu0
    %v6051 = vadd.f32 %v6010, %v6050
    %v6052 = vpop.f32.mrb[0].mxu0
    %v6053 = vpop.f32.mrb[0].mxu0
    %6054 = vdwg.mxu0
    %v6055 = vtanh.pop %v5557
    %v6056 = vtanh.pop %v5559
    %v6057 = vtanh.pop %v5721
    %v6058 = vtanh.pop %v5723
    %v6059 = vtanh.pop %v5885
    %v6060 = vtanh.pop %v5887
    %v6061 = vtanh.pop %v6049
    %v6062 = vtanh.pop %v6051
    %s6063 = sadd.f32 %s77, 1.0
    %v6064 = vstv %s6063
    %v6065 = vmul.f32 %v5345, %v6064
    %v6066 = vmul.f32 %v5346, %v6064
    %v6067 = vstv %s77
    %v6068 = vmul.f32 %v6067, %v6055
    %v6069 = vmul.f32 %v6067, %v6056
    %v6070 = vmul.f32 %v6067, %v6057
    %v6071 = vmul.f32 %v6067, %v6058
    %v6072 = vmul.f32 %v6067, %v6059
    %v6073 = vmul.f32 %v6067, %v6060
    %v6074 = vmul.f32 %v6067, %v6061
    %v6075 = vmul.f32 %v6067, %v6062
    %v6084 = vcombine.low %v6068, %v6069
    %v6085 = vcombine.low %v6070, %v6071
    %v6087 = vunpack.c.l.s4 1983009808
    %v6088 = vunpack.c.0.s8 %v6087
    %v6089 = vlaneseq
    %v6090 = vshrl.u32 %v6089, 7
    %v6091 = vsub.s32 %v6088, %v6090
    %v6092 = vrot.slane %v6084, %v6091
    %v6094 = vunpack.c.l.s4 1983009808
    %v6095 = vunpack.c.0.s8 %v6094
    %v6096 = vlaneseq
    %v6097 = vshrl.u32 %v6096, 7
    %v6098 = vsub.s32 %v6095, %v6097
    %v6099 = vrot.slane %v6085, %v6098
    %v6100 = vcombine.low %v6092, %v6099
    %v6101 = vcombine.low %v6072, %v6073
    %v6102 = vcombine.low %v6074, %v6075
    %v6104 = vunpack.c.l.s4 1983009808
    %v6105 = vunpack.c.0.s8 %v6104
    %v6106 = vlaneseq
    %v6107 = vshrl.u32 %v6106, 7
    %v6108 = vsub.s32 %v6105, %v6107
    %v6109 = vrot.slane %v6101, %v6108
    %v6111 = vunpack.c.l.s4 1983009808
    %v6112 = vunpack.c.0.s8 %v6111
    %v6113 = vlaneseq
    %v6114 = vshrl.u32 %v6113, 7
    %v6115 = vsub.s32 %v6112, %v6114
    %v6116 = vrot.slane %v6102, %v6115
    %v6117 = vcombine.low %v6109, %v6116
    %v6120 = vadd.f32 %v6065, %v6100
    %v6121 = vadd.f32 %v6066, %v6117
    %v6124 = vcombine.high %v6120, %v6120
    %v6126 = vunpack.c.l.s4 1983009808
    %v6127 = vunpack.c.0.s8 %v6126
    %v6128 = vlaneseq
    %v6129 = vshrl.u32 %v6128, 7
    %v6130 = vsub.s32 %v6127, %v6129
    %v6131 = vrot.slane %v6120, %v6130
    %v6133 = vunpack.c.l.s4 1983009808
    %v6134 = vunpack.c.0.s8 %v6133
    %v6135 = vlaneseq
    %v6136 = vshrl.u32 %v6135, 7
    %v6137 = vsub.s32 %v6134, %v6136
    %v6138 = vrot.slane %v6124, %v6137
    %v6139 = vcombine.high %v6131, %v6131
    %v6140 = vcombine.high %v6138, %v6138
    %v6141 = vcombine.high %v6121, %v6121
    %v6143 = vunpack.c.l.s4 1983009808
    %v6144 = vunpack.c.0.s8 %v6143
    %v6145 = vlaneseq
    %v6146 = vshrl.u32 %v6145, 7
    %v6147 = vsub.s32 %v6144, %v6146
    %v6148 = vrot.slane %v6121, %v6147
    %v6150 = vunpack.c.l.s4 1983009808
    %v6151 = vunpack.c.0.s8 %v6150
    %v6152 = vlaneseq
    %v6153 = vshrl.u32 %v6152, 7
    %v6154 = vsub.s32 %v6151, %v6153
    %v6155 = vrot.slane %v6141, %v6154
    %v6156 = vcombine.high %v6148, %v6148
    %v6157 = vcombine.high %v6155, %v6155
    %v6166 = vpack.c.bf16 %v6131, %v6131
    %v6167 = vpack.c.bf16 %v6139, %v6139
    %v6168 = vpack.c.bf16 %v6138, %v6138
    %v6169 = vpack.c.bf16 %v6140, %v6140
    %v6170 = vpack.c.bf16 %v6148, %v6148
    %v6171 = vpack.c.bf16 %v6156, %v6156
    %v6172 = vpack.c.bf16 %v6155, %v6155
    %v6173 = vpack.c.bf16 %v6157, %v6157
    %6174 = vmatprep.subr.bf16.mxu0 %v93
    %6175 = vmatpush1.bf16.msra.mxu0 %v92
    %6176 = vmatprep.subr.bf16.mxu0 %v101
    %6177 = vmatpush1.bf16.msra.mxu0 %v100
    %6178 = vmatprep.subr.bf16.mxu0 %v109
    %6179 = vmatpush1.bf16.msra.mxu0 %v108
    %6180 = vmatprep.subr.bf16.mxu0 %v117
    %6181 = vmatpush1.bf16.msra.mxu0 %v116
    %6182 = vmatprep.subr.bf16.mxu0 %v125
    %6183 = vmatpush1.bf16.msra.mxu0 %v124
    %6184 = vmatprep.subr.bf16.mxu0 %v133
    %6185 = vmatpush1.bf16.msra.mxu0 %v132
    %6186 = vmatprep.subr.bf16.mxu0 %v141
    %6187 = vmatpush1.bf16.msra.mxu0 %v140
    %6188 = vmatprep.subr.bf16.mxu0 %v149
    %6189 = vmatpush1.bf16.msra.mxu0 %v148
    %6190 = vmatprep.subr.bf16.mxu0 %v157
    %6191 = vmatpush1.bf16.msra.mxu0 %v156
    %6192 = vmatprep.subr.bf16.mxu0 %v165
    %6193 = vmatpush1.bf16.msra.mxu0 %v164
    %6194 = vmatprep.subr.bf16.mxu0 %v173
    %6195 = vmatpush1.bf16.msra.mxu0 %v172
    %6196 = vmatprep.subr.bf16.mxu0 %v181
    %6197 = vmatpush1.bf16.msra.mxu0 %v180
    %6198 = vmatprep.subr.bf16.mxu0 %v189
    %6199 = vmatpush1.bf16.msra.mxu0 %v188
    %6200 = vmatprep.subr.bf16.mxu0 %v197
    %6201 = vmatpush1.bf16.msra.mxu0 %v196
    %6202 = vmatprep.subr.bf16.mxu0 %v205
    %6203 = vmatpush1.bf16.msra.mxu0 %v204
    %6204 = vmatprep.subr.bf16.mxu0 %v213
    %6205 = vmatpush1.bf16.msra.mxu0 %v212
    %6206 = vmatprep.mubr.bf16.mxu0 %v6167
    %6207 = vmatmul.mubr.bf16.gmra.mrb[0].mxu0 %v6166
    %v6208 = vpop.f32.mrb[0].mxu0
    %v6209 = vadd.f32 0.0, %v6208
    %v6210 = vpop.f32.mrb[0].mxu0
    %v6211 = vadd.f32 0.0, %v6210
    %v6212 = vpop.f32.mrb[0].mxu0
    %v6213 = vpop.f32.mrb[0].mxu0
    %6214 = vdwg.mxu0
    %6215 = vmatprep.subr.bf16.mxu0 %v221
    %6216 = vmatpush1.bf16.msra.mxu0 %v220
    %6217 = vmatprep.subr.bf16.mxu0 %v229
    %6218 = vmatpush1.bf16.msra.mxu0 %v228
    %6219 = vmatprep.subr.bf16.mxu0 %v237
    %6220 = vmatpush1.bf16.msra.mxu0 %v236
    %6221 = vmatprep.subr.bf16.mxu0 %v245
    %6222 = vmatpush1.bf16.msra.mxu0 %v244
    %6223 = vmatprep.subr.bf16.mxu0 %v253
    %6224 = vmatpush1.bf16.msra.mxu0 %v252
    %6225 = vmatprep.subr.bf16.mxu0 %v261
    %6226 = vmatpush1.bf16.msra.mxu0 %v260
    %6227 = vmatprep.subr.bf16.mxu0 %v269
    %6228 = vmatpush1.bf16.msra.mxu0 %v268
    %6229 = vmatprep.subr.bf16.mxu0 %v277
    %6230 = vmatpush1.bf16.msra.mxu0 %v276
    %6231 = vmatprep.subr.bf16.mxu0 %v285
    %6232 = vmatpush1.bf16.msra.mxu0 %v284
    %6233 = vmatprep.subr.bf16.mxu0 %v293
    %6234 = vmatpush1.bf16.msra.mxu0 %v292
    %6235 = vmatprep.subr.bf16.mxu0 %v301
    %6236 = vmatpush1.bf16.msra.mxu0 %v300
    %6237 = vmatprep.subr.bf16.mxu0 %v309
    %6238 = vmatpush1.bf16.msra.mxu0 %v308
    %6239 = vmatprep.subr.bf16.mxu0 %v317
    %6240 = vmatpush1.bf16.msra.mxu0 %v316
    %6241 = vmatprep.subr.bf16.mxu0 %v325
    %6242 = vmatpush1.bf16.msra.mxu0 %v324
    %6243 = vmatprep.subr.bf16.mxu0 %v333
    %6244 = vmatpush1.bf16.msra.mxu0 %v332
    %6245 = vmatprep.subr.bf16.mxu0 %v341
    %6246 = vmatpush1.bf16.msra.mxu0 %v340
    %6247 = vmatprep.mubr.bf16.mxu0 %v6169
    %6248 = vmatmul.mubr.bf16.gmra.mrb[0].mxu0 %v6168
    %v6249 = vpop.f32.mrb[0].mxu0
    %v6250 = vadd.f32 %v6209, %v6249
    %v6251 = vpop.f32.mrb[0].mxu0
    %v6252 = vadd.f32 %v6211, %v6251
    %v6253 = vpop.f32.mrb[0].mxu0
    %v6254 = vpop.f32.mrb[0].mxu0
    %6255 = vdwg.mxu0
    %6256 = vmatprep.subr.bf16.mxu0 %v349
    %6257 = vmatpush1.bf16.msra.mxu0 %v348
    %6258 = vmatprep.subr.bf16.mxu0 %v357
    %6259 = vmatpush1.bf16.msra.mxu0 %v356
    %6260 = vmatprep.subr.bf16.mxu0 %v365
    %6261 = vmatpush1.bf16.msra.mxu0 %v364
    %6262 = vmatprep.subr.bf16.mxu0 %v373
    %6263 = vmatpush1.bf16.msra.mxu0 %v372
    %6264 = vmatprep.subr.bf16.mxu0 %v381
    %6265 = vmatpush1.bf16.msra.mxu0 %v380
    %6266 = vmatprep.subr.bf16.mxu0 %v389
    %6267 = vmatpush1.bf16.msra.mxu0 %v388
    %6268 = vmatprep.subr.bf16.mxu0 %v397
    %6269 = vmatpush1.bf16.msra.mxu0 %v396
    %6270 = vmatprep.subr.bf16.mxu0 %v405
    %6271 = vmatpush1.bf16.msra.mxu0 %v404
    %6272 = vmatprep.subr.bf16.mxu0 %v413
    %6273 = vmatpush1.bf16.msra.mxu0 %v412
    %6274 = vmatprep.subr.bf16.mxu0 %v421
    %6275 = vmatpush1.bf16.msra.mxu0 %v420
    %6276 = vmatprep.subr.bf16.mxu0 %v429
    %6277 = vmatpush1.bf16.msra.mxu0 %v428
    %6278 = vmatprep.subr.bf16.mxu0 %v437
    %6279 = vmatpush1.bf16.msra.mxu0 %v436
    %6280 = vmatprep.subr.bf16.mxu0 %v445
    %6281 = vmatpush1.bf16.msra.mxu0 %v444
    %6282 = vmatprep.subr.bf16.mxu0 %v453
    %6283 = vmatpush1.bf16.msra.mxu0 %v452
    %6284 = vmatprep.subr.bf16.mxu0 %v461
    %6285 = vmatpush1.bf16.msra.mxu0 %v460
    %6286 = vmatprep.subr.bf16.mxu0 %v469
    %6287 = vmatpush1.bf16.msra.mxu0 %v468
    %6288 = vmatprep.mubr.bf16.mxu0 %v6171
    %6289 = vmatmul.mubr.bf16.gmra.mrb[0].mxu0 %v6170
    %v6290 = vpop.f32.mrb[0].mxu0
    %v6291 = vadd.f32 %v6250, %v6290
    %v6292 = vpop.f32.mrb[0].mxu0
    %v6293 = vadd.f32 %v6252, %v6292
    %v6294 = vpop.f32.mrb[0].mxu0
    %v6295 = vpop.f32.mrb[0].mxu0
    %6296 = vdwg.mxu0
    %6297 = vmatprep.subr.bf16.mxu0 %v477
    %6298 = vmatpush1.bf16.msra.mxu0 %v476
    %6299 = vmatprep.subr.bf16.mxu0 %v485
    %6300 = vmatpush1.bf16.msra.mxu0 %v484
    %6301 = vmatprep.subr.bf16.mxu0 %v493
    %6302 = vmatpush1.bf16.msra.mxu0 %v492
    %6303 = vmatprep.subr.bf16.mxu0 %v501
    %6304 = vmatpush1.bf16.msra.mxu0 %v500
    %6305 = vmatprep.subr.bf16.mxu0 %v509
    %6306 = vmatpush1.bf16.msra.mxu0 %v508
    %6307 = vmatprep.subr.bf16.mxu0 %v517
    %6308 = vmatpush1.bf16.msra.mxu0 %v516
    %6309 = vmatprep.subr.bf16.mxu0 %v525
    %6310 = vmatpush1.bf16.msra.mxu0 %v524
    %6311 = vmatprep.subr.bf16.mxu0 %v533
    %6312 = vmatpush1.bf16.msra.mxu0 %v532
    %6313 = vmatprep.subr.bf16.mxu0 %v541
    %6314 = vmatpush1.bf16.msra.mxu0 %v540
    %6315 = vmatprep.subr.bf16.mxu0 %v549
    %6316 = vmatpush1.bf16.msra.mxu0 %v548
    %6317 = vmatprep.subr.bf16.mxu0 %v557
    %6318 = vmatpush1.bf16.msra.mxu0 %v556
    %6319 = vmatprep.subr.bf16.mxu0 %v565
    %6320 = vmatpush1.bf16.msra.mxu0 %v564
    %6321 = vmatprep.subr.bf16.mxu0 %v573
    %6322 = vmatpush1.bf16.msra.mxu0 %v572
    %6323 = vmatprep.subr.bf16.mxu0 %v581
    %6324 = vmatpush1.bf16.msra.mxu0 %v580
    %6325 = vmatprep.subr.bf16.mxu0 %v589
    %6326 = vmatpush1.bf16.msra.mxu0 %v588
    %6327 = vmatprep.subr.bf16.mxu0 %v597
    %6328 = vmatpush1.bf16.msra.mxu0 %v596
    %6329 = vmatprep.mubr.bf16.mxu0 %v6173
    %6330 = vmatmul.mubr.bf16.gmra.mrb[0].mxu0 %v6172
    %v6331 = vpop.f32.mrb[0].mxu0
    %v6332 = vadd.f32 %v6291, %v6331
    %v6333 = vpop.f32.mrb[0].mxu0
    %v6334 = vadd.f32 %v6293, %v6333
    %v6335 = vpop.f32.mrb[0].mxu0
    %v6336 = vpop.f32.mrb[0].mxu0
    %6337 = vdwg.mxu0
    %6338 = vmatprep.subr.bf16.mxu0 %v95
    %6339 = vmatpush1.bf16.msra.mxu0 %v94
    %6340 = vmatprep.subr.bf16.mxu0 %v103
    %6341 = vmatpush1.bf16.msra.mxu0 %v102
    %6342 = vmatprep.subr.bf16.mxu0 %v111
    %6343 = vmatpush1.bf16.msra.mxu0 %v110
    %6344 = vmatprep.subr.bf16.mxu0 %v119
    %6345 = vmatpush1.bf16.msra.mxu0 %v118
    %6346 = vmatprep.subr.bf16.mxu0 %v127
    %6347 = vmatpush1.bf16.msra.mxu0 %v126
    %6348 = vmatprep.subr.bf16.mxu0 %v135
    %6349 = vmatpush1.bf16.msra.mxu0 %v134
    %6350 = vmatprep.subr.bf16.mxu0 %v143
    %6351 = vmatpush1.bf16.msra.mxu0 %v142
    %6352 = vmatprep.subr.bf16.mxu0 %v151
    %6353 = vmatpush1.bf16.msra.mxu0 %v150
    %6354 = vmatprep.subr.bf16.mxu0 %v159
    %6355 = vmatpush1.bf16.msra.mxu0 %v158
    %6356 = vmatprep.subr.bf16.mxu0 %v167
    %6357 = vmatpush1.bf16.msra.mxu0 %v166
    %6358 = vmatprep.subr.bf16.mxu0 %v175
    %6359 = vmatpush1.bf16.msra.mxu0 %v174
    %6360 = vmatprep.subr.bf16.mxu0 %v183
    %6361 = vmatpush1.bf16.msra.mxu0 %v182
    %6362 = vmatprep.subr.bf16.mxu0 %v191
    %6363 = vmatpush1.bf16.msra.mxu0 %v190
    %6364 = vmatprep.subr.bf16.mxu0 %v199
    %6365 = vmatpush1.bf16.msra.mxu0 %v198
    %6366 = vmatprep.subr.bf16.mxu0 %v207
    %6367 = vmatpush1.bf16.msra.mxu0 %v206
    %6368 = vmatprep.subr.bf16.mxu0 %v215
    %6369 = vmatpush1.bf16.msra.mxu0 %v214
    %6370 = vmatprep.mubr.bf16.mxu0 %v6167
    %6371 = vmatmul.mubr.bf16.gmra.mrb[0].mxu0 %v6166
    %v6372 = vpop.f32.mrb[0].mxu0
    %v6373 = vadd.f32 0.0, %v6372
    %v6374 = vpop.f32.mrb[0].mxu0
    %v6375 = vadd.f32 0.0, %v6374
    %v6376 = vpop.f32.mrb[0].mxu0
    %v6377 = vpop.f32.mrb[0].mxu0
    %6378 = vdwg.mxu0
    %6379 = vmatprep.subr.bf16.mxu0 %v223
    %6380 = vmatpush1.bf16.msra.mxu0 %v222
    %6381 = vmatprep.subr.bf16.mxu0 %v231
    %6382 = vmatpush1.bf16.msra.mxu0 %v230
    %6383 = vmatprep.subr.bf16.mxu0 %v239
    %6384 = vmatpush1.bf16.msra.mxu0 %v238
    %6385 = vmatprep.subr.bf16.mxu0 %v247
    %6386 = vmatpush1.bf16.msra.mxu0 %v246
    %6387 = vmatprep.subr.bf16.mxu0 %v255
    %6388 = vmatpush1.bf16.msra.mxu0 %v254
    %6389 = vmatprep.subr.bf16.mxu0 %v263
    %6390 = vmatpush1.bf16.msra.mxu0 %v262
    %6391 = vmatprep.subr.bf16.mxu0 %v271
    %6392 = vmatpush1.bf16.msra.mxu0 %v270
    %6393 = vmatprep.subr.bf16.mxu0 %v279
    %6394 = vmatpush1.bf16.msra.mxu0 %v278
    %6395 = vmatprep.subr.bf16.mxu0 %v287
    %6396 = vmatpush1.bf16.msra.mxu0 %v286
    %6397 = vmatprep.subr.bf16.mxu0 %v295
    %6398 = vmatpush1.bf16.msra.mxu0 %v294
    %6399 = vmatprep.subr.bf16.mxu0 %v303
    %6400 = vmatpush1.bf16.msra.mxu0 %v302
    %6401 = vmatprep.subr.bf16.mxu0 %v311
    %6402 = vmatpush1.bf16.msra.mxu0 %v310
    %6403 = vmatprep.subr.bf16.mxu0 %v319
    %6404 = vmatpush1.bf16.msra.mxu0 %v318
    %6405 = vmatprep.subr.bf16.mxu0 %v327
    %6406 = vmatpush1.bf16.msra.mxu0 %v326
    %6407 = vmatprep.subr.bf16.mxu0 %v335
    %6408 = vmatpush1.bf16.msra.mxu0 %v334
    %6409 = vmatprep.subr.bf16.mxu0 %v343
    %6410 = vmatpush1.bf16.msra.mxu0 %v342
    %6411 = vmatprep.mubr.bf16.mxu0 %v6169
    %6412 = vmatmul.mubr.bf16.gmra.mrb[0].mxu0 %v6168
    %v6413 = vpop.f32.mrb[0].mxu0
    %v6414 = vadd.f32 %v6373, %v6413
    %v6415 = vpop.f32.mrb[0].mxu0
    %v6416 = vadd.f32 %v6375, %v6415
    %v6417 = vpop.f32.mrb[0].mxu0
    %v6418 = vpop.f32.mrb[0].mxu0
    %6419 = vdwg.mxu0
    %6420 = vmatprep.subr.bf16.mxu0 %v351
    %6421 = vmatpush1.bf16.msra.mxu0 %v350
    %6422 = vmatprep.subr.bf16.mxu0 %v359
    %6423 = vmatpush1.bf16.msra.mxu0 %v358
    %6424 = vmatprep.subr.bf16.mxu0 %v367
    %6425 = vmatpush1.bf16.msra.mxu0 %v366
    %6426 = vmatprep.subr.bf16.mxu0 %v375
    %6427 = vmatpush1.bf16.msra.mxu0 %v374
    %6428 = vmatprep.subr.bf16.mxu0 %v383
    %6429 = vmatpush1.bf16.msra.mxu0 %v382
    %6430 = vmatprep.subr.bf16.mxu0 %v391
    %6431 = vmatpush1.bf16.msra.mxu0 %v390
    %6432 = vmatprep.subr.bf16.mxu0 %v399
    %6433 = vmatpush1.bf16.msra.mxu0 %v398
    %6434 = vmatprep.subr.bf16.mxu0 %v407
    %6435 = vmatpush1.bf16.msra.mxu0 %v406
    %6436 = vmatprep.subr.bf16.mxu0 %v415
    %6437 = vmatpush1.bf16.msra.mxu0 %v414
    %6438 = vmatprep.subr.bf16.mxu0 %v423
    %6439 = vmatpush1.bf16.msra.mxu0 %v422
    %6440 = vmatprep.subr.bf16.mxu0 %v431
    %6441 = vmatpush1.bf16.msra.mxu0 %v430
    %6442 = vmatprep.subr.bf16.mxu0 %v439
    %6443 = vmatpush1.bf16.msra.mxu0 %v438
    %6444 = vmatprep.subr.bf16.mxu0 %v447
    %6445 = vmatpush1.bf16.msra.mxu0 %v446
    %6446 = vmatprep.subr.bf16.mxu0 %v455
    %6447 = vmatpush1.bf16.msra.mxu0 %v454
    %6448 = vmatprep.subr.bf16.mxu0 %v463
    %6449 = vmatpush1.bf16.msra.mxu0 %v462
    %6450 = vmatprep.subr.bf16.mxu0 %v471
    %6451 = vmatpush1.bf16.msra.mxu0 %v470
    %6452 = vmatprep.mubr.bf16.mxu0 %v6171
    %6453 = vmatmul.mubr.bf16.gmra.mrb[0].mxu0 %v6170
    %v6454 = vpop.f32.mrb[0].mxu0
    %v6455 = vadd.f32 %v6414, %v6454
    %v6456 = vpop.f32.mrb[0].mxu0
    %v6457 = vadd.f32 %v6416, %v6456
    %v6458 = vpop.f32.mrb[0].mxu0
    %v6459 = vpop.f32.mrb[0].mxu0
    %6460 = vdwg.mxu0
    %6461 = vmatprep.subr.bf16.mxu0 %v479
    %6462 = vmatpush1.bf16.msra.mxu0 %v478
    %6463 = vmatprep.subr.bf16.mxu0 %v487
    %6464 = vmatpush1.bf16.msra.mxu0 %v486
    %6465 = vmatprep.subr.bf16.mxu0 %v495
    %6466 = vmatpush1.bf16.msra.mxu0 %v494
    %6467 = vmatprep.subr.bf16.mxu0 %v503
    %6468 = vmatpush1.bf16.msra.mxu0 %v502
    %6469 = vmatprep.subr.bf16.mxu0 %v511
    %6470 = vmatpush1.bf16.msra.mxu0 %v510
    %6471 = vmatprep.subr.bf16.mxu0 %v519
    %6472 = vmatpush1.bf16.msra.mxu0 %v518
    %6473 = vmatprep.subr.bf16.mxu0 %v527
    %6474 = vmatpush1.bf16.msra.mxu0 %v526
    %6475 = vmatprep.subr.bf16.mxu0 %v535
    %6476 = vmatpush1.bf16.msra.mxu0 %v534
    %6477 = vmatprep.subr.bf16.mxu0 %v543
    %6478 = vmatpush1.bf16.msra.mxu0 %v542
    %6479 = vmatprep.subr.bf16.mxu0 %v551
    %6480 = vmatpush1.bf16.msra.mxu0 %v550
    %6481 = vmatprep.subr.bf16.mxu0 %v559
    %6482 = vmatpush1.bf16.msra.mxu0 %v558
    %6483 = vmatprep.subr.bf16.mxu0 %v567
    %6484 = vmatpush1.bf16.msra.mxu0 %v566
    %6485 = vmatprep.subr.bf16.mxu0 %v575
    %6486 = vmatpush1.bf16.msra.mxu0 %v574
    %6487 = vmatprep.subr.bf16.mxu0 %v583
    %6488 = vmatpush1.bf16.msra.mxu0 %v582
    %6489 = vmatprep.subr.bf16.mxu0 %v591
    %6490 = vmatpush1.bf16.msra.mxu0 %v590
    %6491 = vmatprep.subr.bf16.mxu0 %v599
    %6492 = vmatpush1.bf16.msra.mxu0 %v598
    %6493 = vmatprep.mubr.bf16.mxu0 %v6173
    %6494 = vmatmul.mubr.bf16.gmra.mrb[0].mxu0 %v6172
    %v6495 = vpop.f32.mrb[0].mxu0
    %v6496 = vadd.f32 %v6455, %v6495
    %v6497 = vpop.f32.mrb[0].mxu0
    %v6498 = vadd.f32 %v6457, %v6497
    %v6499 = vpop.f32.mrb[0].mxu0
    %v6500 = vpop.f32.mrb[0].mxu0
    %6501 = vdwg.mxu0
    %6502 = vmatprep.subr.bf16.mxu0 %v97
    %6503 = vmatpush1.bf16.msra.mxu0 %v96
    %6504 = vmatprep.subr.bf16.mxu0 %v105
    %6505 = vmatpush1.bf16.msra.mxu0 %v104
    %6506 = vmatprep.subr.bf16.mxu0 %v113
    %6507 = vmatpush1.bf16.msra.mxu0 %v112
    %6508 = vmatprep.subr.bf16.mxu0 %v121
    %6509 = vmatpush1.bf16.msra.mxu0 %v120
    %6510 = vmatprep.subr.bf16.mxu0 %v129
    %6511 = vmatpush1.bf16.msra.mxu0 %v128
    %6512 = vmatprep.subr.bf16.mxu0 %v137
    %6513 = vmatpush1.bf16.msra.mxu0 %v136
    %6514 = vmatprep.subr.bf16.mxu0 %v145
    %6515 = vmatpush1.bf16.msra.mxu0 %v144
    %6516 = vmatprep.subr.bf16.mxu0 %v153
    %6517 = vmatpush1.bf16.msra.mxu0 %v152
    %6518 = vmatprep.subr.bf16.mxu0 %v161
    %6519 = vmatpush1.bf16.msra.mxu0 %v160
    %6520 = vmatprep.subr.bf16.mxu0 %v169
    %6521 = vmatpush1.bf16.msra.mxu0 %v168
    %6522 = vmatprep.subr.bf16.mxu0 %v177
    %6523 = vmatpush1.bf16.msra.mxu0 %v176
    %6524 = vmatprep.subr.bf16.mxu0 %v185
    %6525 = vmatpush1.bf16.msra.mxu0 %v184
    %6526 = vmatprep.subr.bf16.mxu0 %v193
    %6527 = vmatpush1.bf16.msra.mxu0 %v192
    %6528 = vmatprep.subr.bf16.mxu0 %v201
    %6529 = vmatpush1.bf16.msra.mxu0 %v200
    %6530 = vmatprep.subr.bf16.mxu0 %v209
    %6531 = vmatpush1.bf16.msra.mxu0 %v208
    %6532 = vmatprep.subr.bf16.mxu0 %v217
    %6533 = vmatpush1.bf16.msra.mxu0 %v216
    %6534 = vmatprep.mubr.bf16.mxu0 %v6167
    %6535 = vmatmul.mubr.bf16.gmra.mrb[0].mxu0 %v6166
    %v6536 = vpop.f32.mrb[0].mxu0
    %v6537 = vadd.f32 0.0, %v6536
    %v6538 = vpop.f32.mrb[0].mxu0
    %v6539 = vadd.f32 0.0, %v6538
    %v6540 = vpop.f32.mrb[0].mxu0
    %v6541 = vpop.f32.mrb[0].mxu0
    %6542 = vdwg.mxu0
    %6543 = vmatprep.subr.bf16.mxu0 %v225
    %6544 = vmatpush1.bf16.msra.mxu0 %v224
    %6545 = vmatprep.subr.bf16.mxu0 %v233
    %6546 = vmatpush1.bf16.msra.mxu0 %v232
    %6547 = vmatprep.subr.bf16.mxu0 %v241
    %6548 = vmatpush1.bf16.msra.mxu0 %v240
    %6549 = vmatprep.subr.bf16.mxu0 %v249
    %6550 = vmatpush1.bf16.msra.mxu0 %v248
    %6551 = vmatprep.subr.bf16.mxu0 %v257
    %6552 = vmatpush1.bf16.msra.mxu0 %v256
    %6553 = vmatprep.subr.bf16.mxu0 %v265
    %6554 = vmatpush1.bf16.msra.mxu0 %v264
    %6555 = vmatprep.subr.bf16.mxu0 %v273
    %6556 = vmatpush1.bf16.msra.mxu0 %v272
    %6557 = vmatprep.subr.bf16.mxu0 %v281
    %6558 = vmatpush1.bf16.msra.mxu0 %v280
    %6559 = vmatprep.subr.bf16.mxu0 %v289
    %6560 = vmatpush1.bf16.msra.mxu0 %v288
    %6561 = vmatprep.subr.bf16.mxu0 %v297
    %6562 = vmatpush1.bf16.msra.mxu0 %v296
    %6563 = vmatprep.subr.bf16.mxu0 %v305
    %6564 = vmatpush1.bf16.msra.mxu0 %v304
    %6565 = vmatprep.subr.bf16.mxu0 %v313
    %6566 = vmatpush1.bf16.msra.mxu0 %v312
    %6567 = vmatprep.subr.bf16.mxu0 %v321
    %6568 = vmatpush1.bf16.msra.mxu0 %v320
    %6569 = vmatprep.subr.bf16.mxu0 %v329
    %6570 = vmatpush1.bf16.msra.mxu0 %v328
    %6571 = vmatprep.subr.bf16.mxu0 %v337
    %6572 = vmatpush1.bf16.msra.mxu0 %v336
    %6573 = vmatprep.subr.bf16.mxu0 %v345
    %6574 = vmatpush1.bf16.msra.mxu0 %v344
    %6575 = vmatprep.mubr.bf16.mxu0 %v6169
    %6576 = vmatmul.mubr.bf16.gmra.mrb[0].mxu0 %v6168
    %v6577 = vpop.f32.mrb[0].mxu0
    %v6578 = vadd.f32 %v6537, %v6577
    %v6579 = vpop.f32.mrb[0].mxu0
    %v6580 = vadd.f32 %v6539, %v6579
    %v6581 = vpop.f32.mrb[0].mxu0
    %v6582 = vpop.f32.mrb[0].mxu0
    %6583 = vdwg.mxu0
    %6584 = vmatprep.subr.bf16.mxu0 %v353
    %6585 = vmatpush1.bf16.msra.mxu0 %v352
    %6586 = vmatprep.subr.bf16.mxu0 %v361
    %6587 = vmatpush1.bf16.msra.mxu0 %v360
    %6588 = vmatprep.subr.bf16.mxu0 %v369
    %6589 = vmatpush1.bf16.msra.mxu0 %v368
    %6590 = vmatprep.subr.bf16.mxu0 %v377
    %6591 = vmatpush1.bf16.msra.mxu0 %v376
    %6592 = vmatprep.subr.bf16.mxu0 %v385
    %6593 = vmatpush1.bf16.msra.mxu0 %v384
    %6594 = vmatprep.subr.bf16.mxu0 %v393
    %6595 = vmatpush1.bf16.msra.mxu0 %v392
    %6596 = vmatprep.subr.bf16.mxu0 %v401
    %6597 = vmatpush1.bf16.msra.mxu0 %v400
    %6598 = vmatprep.subr.bf16.mxu0 %v409
    %6599 = vmatpush1.bf16.msra.mxu0 %v408
    %6600 = vmatprep.subr.bf16.mxu0 %v417
    %6601 = vmatpush1.bf16.msra.mxu0 %v416
    %6602 = vmatprep.subr.bf16.mxu0 %v425
    %6603 = vmatpush1.bf16.msra.mxu0 %v424
    %6604 = vmatprep.subr.bf16.mxu0 %v433
    %6605 = vmatpush1.bf16.msra.mxu0 %v432
    %6606 = vmatprep.subr.bf16.mxu0 %v441
    %6607 = vmatpush1.bf16.msra.mxu0 %v440
    %6608 = vmatprep.subr.bf16.mxu0 %v449
    %6609 = vmatpush1.bf16.msra.mxu0 %v448
    %6610 = vmatprep.subr.bf16.mxu0 %v457
    %6611 = vmatpush1.bf16.msra.mxu0 %v456
    %6612 = vmatprep.subr.bf16.mxu0 %v465
    %6613 = vmatpush1.bf16.msra.mxu0 %v464
    %6614 = vmatprep.subr.bf16.mxu0 %v473
    %6615 = vmatpush1.bf16.msra.mxu0 %v472
    %6616 = vmatprep.mubr.bf16.mxu0 %v6171
    %6617 = vmatmul.mubr.bf16.gmra.mrb[0].mxu0 %v6170
    %v6618 = vpop.f32.mrb[0].mxu0
    %v6619 = vadd.f32 %v6578, %v6618
    %v6620 = vpop.f32.mrb[0].mxu0
    %v6621 = vadd.f32 %v6580, %v6620
    %v6622 = vpop.f32.mrb[0].mxu0
    %v6623 = vpop.f32.mrb[0].mxu0
    %6624 = vdwg.mxu0
    %6625 = vmatprep.subr.bf16.mxu0 %v481
    %6626 = vmatpush1.bf16.msra.mxu0 %v480
    %6627 = vmatprep.subr.bf16.mxu0 %v489
    %6628 = vmatpush1.bf16.msra.mxu0 %v488
    %6629 = vmatprep.subr.bf16.mxu0 %v497
    %6630 = vmatpush1.bf16.msra.mxu0 %v496
    %6631 = vmatprep.subr.bf16.mxu0 %v505
    %6632 = vmatpush1.bf16.msra.mxu0 %v504
    %6633 = vmatprep.subr.bf16.mxu0 %v513
    %6634 = vmatpush1.bf16.msra.mxu0 %v512
    %6635 = vmatprep.subr.bf16.mxu0 %v521
    %6636 = vmatpush1.bf16.msra.mxu0 %v520
    %6637 = vmatprep.subr.bf16.mxu0 %v529
    %6638 = vmatpush1.bf16.msra.mxu0 %v528
    %6639 = vmatprep.subr.bf16.mxu0 %v537
    %6640 = vmatpush1.bf16.msra.mxu0 %v536
    %6641 = vmatprep.subr.bf16.mxu0 %v545
    %6642 = vmatpush1.bf16.msra.mxu0 %v544
    %6643 = vmatprep.subr.bf16.mxu0 %v553
    %6644 = vmatpush1.bf16.msra.mxu0 %v552
    %6645 = vmatprep.subr.bf16.mxu0 %v561
    %6646 = vmatpush1.bf16.msra.mxu0 %v560
    %6647 = vmatprep.subr.bf16.mxu0 %v569
    %6648 = vmatpush1.bf16.msra.mxu0 %v568
    %6649 = vmatprep.subr.bf16.mxu0 %v577
    %6650 = vmatpush1.bf16.msra.mxu0 %v576
    %6651 = vmatprep.subr.bf16.mxu0 %v585
    %6652 = vmatpush1.bf16.msra.mxu0 %v584
    %6653 = vmatprep.subr.bf16.mxu0 %v593
    %6654 = vmatpush1.bf16.msra.mxu0 %v592
    %6655 = vmatprep.subr.bf16.mxu0 %v601
    %6656 = vmatpush1.bf16.msra.mxu0 %v600
    %6657 = vmatprep.mubr.bf16.mxu0 %v6173
    %6658 = vmatmul.mubr.bf16.gmra.mrb[0].mxu0 %v6172
    %v6659 = vpop.f32.mrb[0].mxu0
    %v6660 = vadd.f32 %v6619, %v6659
    %v6661 = vpop.f32.mrb[0].mxu0
    %v6662 = vadd.f32 %v6621, %v6661
    %v6663 = vpop.f32.mrb[0].mxu0
    %v6664 = vpop.f32.mrb[0].mxu0
    %6665 = vdwg.mxu0
    %6666 = vmatprep.subr.bf16.mxu0 %v99
    %6667 = vmatpush1.bf16.msra.mxu0 %v98
    %6668 = vmatprep.subr.bf16.mxu0 %v107
    %6669 = vmatpush1.bf16.msra.mxu0 %v106
    %6670 = vmatprep.subr.bf16.mxu0 %v115
    %6671 = vmatpush1.bf16.msra.mxu0 %v114
    %6672 = vmatprep.subr.bf16.mxu0 %v123
    %6673 = vmatpush1.bf16.msra.mxu0 %v122
    %6674 = vmatprep.subr.bf16.mxu0 %v131
    %6675 = vmatpush1.bf16.msra.mxu0 %v130
    %6676 = vmatprep.subr.bf16.mxu0 %v139
    %6677 = vmatpush1.bf16.msra.mxu0 %v138
    %6678 = vmatprep.subr.bf16.mxu0 %v147
    %6679 = vmatpush1.bf16.msra.mxu0 %v146
    %6680 = vmatprep.subr.bf16.mxu0 %v155
    %6681 = vmatpush1.bf16.msra.mxu0 %v154
    %6682 = vmatprep.subr.bf16.mxu0 %v163
    %6683 = vmatpush1.bf16.msra.mxu0 %v162
    %6684 = vmatprep.subr.bf16.mxu0 %v171
    %6685 = vmatpush1.bf16.msra.mxu0 %v170
    %6686 = vmatprep.subr.bf16.mxu0 %v179
    %6687 = vmatpush1.bf16.msra.mxu0 %v178
    %6688 = vmatprep.subr.bf16.mxu0 %v187
    %6689 = vmatpush1.bf16.msra.mxu0 %v186
    %6690 = vmatprep.subr.bf16.mxu0 %v195
    %6691 = vmatpush1.bf16.msra.mxu0 %v194
    %6692 = vmatprep.subr.bf16.mxu0 %v203
    %6693 = vmatpush1.bf16.msra.mxu0 %v202
    %6694 = vmatprep.subr.bf16.mxu0 %v211
    %6695 = vmatpush1.bf16.msra.mxu0 %v210
    %6696 = vmatprep.subr.bf16.mxu0 %v219
    %6697 = vmatpush1.bf16.msra.mxu0 %v218
    %6698 = vmatprep.mubr.bf16.mxu0 %v6167
    %6699 = vmatmul.mubr.bf16.gmra.mrb[0].mxu0 %v6166
    %v6700 = vpop.f32.mrb[0].mxu0
    %v6701 = vadd.f32 0.0, %v6700
    %v6702 = vpop.f32.mrb[0].mxu0
    %v6703 = vadd.f32 0.0, %v6702
    %v6704 = vpop.f32.mrb[0].mxu0
    %v6705 = vpop.f32.mrb[0].mxu0
    %6706 = vdwg.mxu0
    %6707 = vmatprep.subr.bf16.mxu0 %v227
    %6708 = vmatpush1.bf16.msra.mxu0 %v226
    %6709 = vmatprep.subr.bf16.mxu0 %v235
    %6710 = vmatpush1.bf16.msra.mxu0 %v234
    %6711 = vmatprep.subr.bf16.mxu0 %v243
    %6712 = vmatpush1.bf16.msra.mxu0 %v242
    %6713 = vmatprep.subr.bf16.mxu0 %v251
    %6714 = vmatpush1.bf16.msra.mxu0 %v250
    %6715 = vmatprep.subr.bf16.mxu0 %v259
    %6716 = vmatpush1.bf16.msra.mxu0 %v258
    %6717 = vmatprep.subr.bf16.mxu0 %v267
    %6718 = vmatpush1.bf16.msra.mxu0 %v266
    %6719 = vmatprep.subr.bf16.mxu0 %v275
    %6720 = vmatpush1.bf16.msra.mxu0 %v274
    %6721 = vmatprep.subr.bf16.mxu0 %v283
    %6722 = vmatpush1.bf16.msra.mxu0 %v282
    %6723 = vmatprep.subr.bf16.mxu0 %v291
    %6724 = vmatpush1.bf16.msra.mxu0 %v290
    %6725 = vmatprep.subr.bf16.mxu0 %v299
    %6726 = vmatpush1.bf16.msra.mxu0 %v298
    %6727 = vmatprep.subr.bf16.mxu0 %v307
    %6728 = vmatpush1.bf16.msra.mxu0 %v306
    %6729 = vmatprep.subr.bf16.mxu0 %v315
    %6730 = vmatpush1.bf16.msra.mxu0 %v314
    %6731 = vmatprep.subr.bf16.mxu0 %v323
    %6732 = vmatpush1.bf16.msra.mxu0 %v322
    %6733 = vmatprep.subr.bf16.mxu0 %v331
    %6734 = vmatpush1.bf16.msra.mxu0 %v330
    %6735 = vmatprep.subr.bf16.mxu0 %v339
    %6736 = vmatpush1.bf16.msra.mxu0 %v338
    %6737 = vmatprep.subr.bf16.mxu0 %v347
    %6738 = vmatpush1.bf16.msra.mxu0 %v346
    %6739 = vmatprep.mubr.bf16.mxu0 %v6169
    %6740 = vmatmul.mubr.bf16.gmra.mrb[0].mxu0 %v6168
    %v6741 = vpop.f32.mrb[0].mxu0
    %v6742 = vadd.f32 %v6701, %v6741
    %v6743 = vpop.f32.mrb[0].mxu0
    %v6744 = vadd.f32 %v6703, %v6743
    %v6745 = vpop.f32.mrb[0].mxu0
    %v6746 = vpop.f32.mrb[0].mxu0
    %6747 = vdwg.mxu0
    %6748 = vmatprep.subr.bf16.mxu0 %v355
    %6749 = vmatpush1.bf16.msra.mxu0 %v354
    %6750 = vmatprep.subr.bf16.mxu0 %v363
    %6751 = vmatpush1.bf16.msra.mxu0 %v362
    %6752 = vmatprep.subr.bf16.mxu0 %v371
    %6753 = vmatpush1.bf16.msra.mxu0 %v370
    %6754 = vmatprep.subr.bf16.mxu0 %v379
    %6755 = vmatpush1.bf16.msra.mxu0 %v378
    %6756 = vmatprep.subr.bf16.mxu0 %v387
    %6757 = vmatpush1.bf16.msra.mxu0 %v386
    %6758 = vmatprep.subr.bf16.mxu0 %v395
    %6759 = vmatpush1.bf16.msra.mxu0 %v394
    %6760 = vmatprep.subr.bf16.mxu0 %v403
    %6761 = vmatpush1.bf16.msra.mxu0 %v402
    %6762 = vmatprep.subr.bf16.mxu0 %v411
    %6763 = vmatpush1.bf16.msra.mxu0 %v410
    %6764 = vmatprep.subr.bf16.mxu0 %v419
    %6765 = vmatpush1.bf16.msra.mxu0 %v418
    %6766 = vmatprep.subr.bf16.mxu0 %v427
    %6767 = vmatpush1.bf16.msra.mxu0 %v426
    %6768 = vmatprep.subr.bf16.mxu0 %v435
    %6769 = vmatpush1.bf16.msra.mxu0 %v434
    %6770 = vmatprep.subr.bf16.mxu0 %v443
    %6771 = vmatpush1.bf16.msra.mxu0 %v442
    %6772 = vmatprep.subr.bf16.mxu0 %v451
    %6773 = vmatpush1.bf16.msra.mxu0 %v450
    %6774 = vmatprep.subr.bf16.mxu0 %v459
    %6775 = vmatpush1.bf16.msra.mxu0 %v458
    %6776 = vmatprep.subr.bf16.mxu0 %v467
    %6777 = vmatpush1.bf16.msra.mxu0 %v466
    %6778 = vmatprep.subr.bf16.mxu0 %v475
    %6779 = vmatpush1.bf16.msra.mxu0 %v474
    %6780 = vmatprep.mubr.bf16.mxu0 %v6171
    %6781 = vmatmul.mubr.bf16.gmra.mrb[0].mxu0 %v6170
    %v6782 = vpop.f32.mrb[0].mxu0
    %v6783 = vadd.f32 %v6742, %v6782
    %v6784 = vpop.f32.mrb[0].mxu0
    %v6785 = vadd.f32 %v6744, %v6784
    %v6786 = vpop.f32.mrb[0].mxu0
    %v6787 = vpop.f32.mrb[0].mxu0
    %6788 = vdwg.mxu0
    %6789 = vmatprep.subr.bf16.mxu0 %v483
    %6790 = vmatpush1.bf16.msra.mxu0 %v482
    %6791 = vmatprep.subr.bf16.mxu0 %v491
    %6792 = vmatpush1.bf16.msra.mxu0 %v490
    %6793 = vmatprep.subr.bf16.mxu0 %v499
    %6794 = vmatpush1.bf16.msra.mxu0 %v498
    %6795 = vmatprep.subr.bf16.mxu0 %v507
    %6796 = vmatpush1.bf16.msra.mxu0 %v506
    %6797 = vmatprep.subr.bf16.mxu0 %v515
    %6798 = vmatpush1.bf16.msra.mxu0 %v514
    %6799 = vmatprep.subr.bf16.mxu0 %v523
    %6800 = vmatpush1.bf16.msra.mxu0 %v522
    %6801 = vmatprep.subr.bf16.mxu0 %v531
    %6802 = vmatpush1.bf16.msra.mxu0 %v530
    %6803 = vmatprep.subr.bf16.mxu0 %v539
    %6804 = vmatpush1.bf16.msra.mxu0 %v538
    %6805 = vmatprep.subr.bf16.mxu0 %v547
    %6806 = vmatpush1.bf16.msra.mxu0 %v546
    %6807 = vmatprep.subr.bf16.mxu0 %v555
    %6808 = vmatpush1.bf16.msra.mxu0 %v554
    %6809 = vmatprep.subr.bf16.mxu0 %v563
    %6810 = vmatpush1.bf16.msra.mxu0 %v562
    %6811 = vmatprep.subr.bf16.mxu0 %v571
    %6812 = vmatpush1.bf16.msra.mxu0 %v570
    %6813 = vmatprep.subr.bf16.mxu0 %v579
    %6814 = vmatpush1.bf16.msra.mxu0 %v578
    %6815 = vmatprep.subr.bf16.mxu0 %v587
    %6816 = vmatpush1.bf16.msra.mxu0 %v586
    %6817 = vmatprep.subr.bf16.mxu0 %v595
    %6818 = vmatpush1.bf16.msra.mxu0 %v594
    %6819 = vmatprep.subr.bf16.mxu0 %v603
    %6820 = vmatpush1.bf16.msra.mxu0 %v602
    %6821 = vmatprep.mubr.bf16.mxu0 %v6173
    %6822 = vmatmul.mubr.bf16.gmra.mrb[0].mxu0 %v6172
    %v6823 = vpop.f32.mrb[0].mxu0
    %v6824 = vadd.f32 %v6783, %v6823
    %v6825 = vpop.f32.mrb[0].mxu0
    %v6826 = vadd.f32 %v6785, %v6825
    %v6827 = vpop.f32.mrb[0].mxu0
    %v6828 = vpop.f32.mrb[0].mxu0
    %6829 = vdwg.mxu0
    %v6830 = vtanh.pop %v6332
    %v6831 = vtanh.pop %v6334
    %v6832 = vtanh.pop %v6496
    %v6833 = vtanh.pop %v6498
    %v6834 = vtanh.pop %v6660
    %v6835 = vtanh.pop %v6662
    %v6836 = vtanh.pop %v6824
    %v6837 = vtanh.pop %v6826
    %s6838 = sadd.f32 %s79, 1.0
    %v6839 = vstv %s6838
    %v6840 = vmul.f32 %v6120, %v6839
    %v6841 = vmul.f32 %v6121, %v6839
    %v6842 = vstv %s79
    %v6843 = vmul.f32 %v6842, %v6830
    %v6844 = vmul.f32 %v6842, %v6831
    %v6845 = vmul.f32 %v6842, %v6832
    %v6846 = vmul.f32 %v6842, %v6833
    %v6847 = vmul.f32 %v6842, %v6834
    %v6848 = vmul.f32 %v6842, %v6835
    %v6849 = vmul.f32 %v6842, %v6836
    %v6850 = vmul.f32 %v6842, %v6837
    %v6859 = vcombine.low %v6843, %v6844
    %v6860 = vcombine.low %v6845, %v6846
    %v6862 = vunpack.c.l.s4 1983009808
    %v6863 = vunpack.c.0.s8 %v6862
    %v6864 = vlaneseq
    %v6865 = vshrl.u32 %v6864, 7
    %v6866 = vsub.s32 %v6863, %v6865
    %v6867 = vrot.slane %v6859, %v6866
    %v6869 = vunpack.c.l.s4 1983009808
    %v6870 = vunpack.c.0.s8 %v6869
    %v6871 = vlaneseq
    %v6872 = vshrl.u32 %v6871, 7
    %v6873 = vsub.s32 %v6870, %v6872
    %v6874 = vrot.slane %v6860, %v6873
    %v6875 = vcombine.low %v6867, %v6874
    %v6876 = vcombine.low %v6847, %v6848
    %v6877 = vcombine.low %v6849, %v6850
    %v6879 = vunpack.c.l.s4 1983009808
    %v6880 = vunpack.c.0.s8 %v6879
    %v6881 = vlaneseq
    %v6882 = vshrl.u32 %v6881, 7
    %v6883 = vsub.s32 %v6880, %v6882
    %v6884 = vrot.slane %v6876, %v6883
    %v6886 = vunpack.c.l.s4 1983009808
    %v6887 = vunpack.c.0.s8 %v6886
    %v6888 = vlaneseq
    %v6889 = vshrl.u32 %v6888, 7
    %v6890 = vsub.s32 %v6887, %v6889
    %v6891 = vrot.slane %v6877, %v6890
    %v6892 = vcombine.low %v6884, %v6891
    %v6895 = vadd.f32 %v6840, %v6875
    %v6896 = vadd.f32 %v6841, %v6892
    %v6897 = vcombine.low %v5345, %v5345
    %v6899 = vunpack.c.l.s4 1983009808
    %v6900 = vunpack.c.0.s8 %v6899
    %v6901 = vlaneseq
    %v6902 = vshrl.u32 %v6901, 7
    %v6903 = vsub.s32 %v6900, %v6902
    %v6904 = vrot.slane %v6897, %v6903
    %v6905 = vcombine.high %v6904, %v6904
    %v6906 = vcombine.low %v5346, %v5346
    %v6908 = vunpack.c.l.s4 1983009808
    %v6909 = vunpack.c.0.s8 %v6908
    %v6910 = vlaneseq
    %v6911 = vshrl.u32 %v6910, 7
    %v6912 = vsub.s32 %v6909, %v6911
    %v6913 = vrot.slane %v6906, %v6912
    %v6914 = vcombine.high %v6913, %v6913
    %v6919 = vcombine.low %v6131, %v6131
    %v6920 = vcombine.low %v6138, %v6138
    %v6921 = vcombine.low %v6148, %v6148
    %v6922 = vcombine.low %v6155, %v6155
    %v6929 = vcombine.low %v6895, %v6895
    %v6931 = vunpack.c.l.s4 1983009808
    %v6932 = vunpack.c.0.s8 %v6931
    %v6933 = vlaneseq
    %v6934 = vshrl.u32 %v6933, 7
    %v6935 = vsub.s32 %v6932, %v6934
    %v6936 = vrot.slane %v6929, %v6935
    %v6938 = vunpack.c.l.s4 1983009808
    %v6939 = vunpack.c.0.s8 %v6938
    %v6940 = vlaneseq
    %v6941 = vshrl.u32 %v6940, 7
    %v6942 = vsub.s32 %v6939, %v6941
    %v6943 = vrot.slane %v6895, %v6942
    %v6944 = vcombine.low %v6936, %v6936
    %v6945 = vcombine.low %v6943, %v6943
    %v6946 = vcombine.low %v6896, %v6896
    %v6948 = vunpack.c.l.s4 1983009808
    %v6949 = vunpack.c.0.s8 %v6948
    %v6950 = vlaneseq
    %v6951 = vshrl.u32 %v6950, 7
    %v6952 = vsub.s32 %v6949, %v6951
    %v6953 = vrot.slane %v6946, %v6952
    %v6955 = vunpack.c.l.s4 1983009808
    %v6956 = vunpack.c.0.s8 %v6955
    %v6957 = vlaneseq
    %v6958 = vshrl.u32 %v6957, 7
    %v6959 = vsub.s32 %v6956, %v6958
    %v6960 = vrot.slane %v6896, %v6959
    %v6961 = vcombine.low %v6953, %v6953
    %v6962 = vcombine.low %v6960, %v6960
    %v6971 = vsel %vm3780, %v4581, %v6904
    %v6972 = vsel %vm3780, %v4589, %v6905
    %v6973 = vsel %vm3780, %v4588, %v5356
    %v6974 = vsel %vm3780, %v4590, %v5364
    %v6975 = vsel %vm3780, %v4598, %v6913
    %v6976 = vsel %vm3780, %v4606, %v6914
    %v6977 = vsel %vm3780, %v4605, %v5373
    %v6978 = vsel %vm3780, %v4607, %v5381
    %v6979 = vsel %vm3789, %v6971, %v6919
    %v6980 = vsel %vm3789, %v6972, %v6131
    %v6981 = vsel %vm3789, %v6973, %v6920
    %v6982 = vsel %vm3789, %v6974, %v6138
    %v6983 = vsel %vm3789, %v6975, %v6921
    %v6984 = vsel %vm3789, %v6976, %v6148
    %v6985 = vsel %vm3789, %v6977, %v6922
    %v6986 = vsel %vm3789, %v6978, %v6155
    %v6987 = vsel %vm3798, %v6979, %v6944
    %v6988 = vsel %vm3798, %v6980, %v6936
    %v6989 = vsel %vm3798, %v6981, %v6945
    %v6990 = vsel %vm3798, %v6982, %v6943
    %v6991 = vsel %vm3798, %v6983, %v6961
    %v6992 = vsel %vm3798, %v6984, %v6953
    %v6993 = vsel %vm3798, %v6985, %v6962
    %v6994 = vsel %vm3798, %v6986, %v6960
    %6995 = vst [vmem:[#allocation7 + $0x40] sm:$0xff] %v6987
    %6996 = vst [vmem:[#allocation7 + $0x48] sm:$0xff] %v6988
    %6997 = vst [vmem:[#allocation7 + $0x50] sm:$0xff] %v6989
    %6998 = vst [vmem:[#allocation7 + $0x58] sm:$0xff] %v6990
    %6999 = vst [vmem:[#allocation7 + $0x60] sm:$0xff] %v6991
    %7000 = vst [vmem:[#allocation7 + $0x68] sm:$0xff] %v6992
    %7001 = vst [vmem:[#allocation7 + $0x70] sm:$0xff] %v6993
    %7002 = vst [vmem:[#allocation7 + $0x78] sm:$0xff] %v6994
    %7003 = vst [vmem:[#allocation2] sm:$0xff] %v6895
    %7004 = vst [vmem:[#allocation2 + $0x8] sm:$0xff] %v6896
    // Predicated region
    $region14: #{tpu_custom_call.1} parent=1 // pred_check
      _
    $region15: #{tpu_custom_call.1} parent=1 // pred_check_branch
      %7006 = sbr.rel (0) target = $region17
    $region16: #{tpu_custom_call.1} parent=1 // pred_region
      %s7008 = ssub.s32 2048, 2048
      %7009 = vsyncadd [#allocation8], %s7008
      %s7010 = sshll.u32 [#allocation7], 4
      %s7011 = int_to_ptr.vmem [resolvable:$true] %s7010
      %7016 = dma.vmem_to_hbm [thread:$0]  %s7011, 2048, %s3, [#allocation8], 1024, 1024, 64
    $region17: #{tpu_custom_call.1} parent=1 // pred_fallthru
      _
    // Predicated region
    $region18: #{tpu_custom_call.1} parent=1 // pred_check
      _
    $region19: #{tpu_custom_call.1} parent=1 // pred_check_branch
      %7018 = sbr.rel (0) target = $region21
    $region20: #{tpu_custom_call.1} parent=1 // pred_region
      %7019 = dma.done [#allocation8], 2048
    $region21: #{tpu_custom_call.1} parent=1 // pred_fallthru
      _
    %7020 = vsyncpa [#allocation8], 1
  %7021 = vsyncmov [#allocation4]
  %s7022 = vpop.sfrf %7021
  %p7023 = scmp.eq.s32.totalorder %s7022, 0
  %p7024 = pneg %p7023
  %7026 = shalt.err (%p7024)
  %s7027 = scalar_lea.sflag [#allocation4], 1
  %7028 = vsyncmov %s7027
  %s7029 = vpop.sfrf %7028
  %p7030 = scmp.eq.s32.totalorder %s7029, 0
  %p7031 = pneg %p7030
  %7033 = shalt.err (%p7031)

</llo_original>
